<compile_context>
chip_gen: v7x
topology: tpu7x:2x2x1
jax: 0.10.0
libtpu: 0.0.40
codegen_flags: <defaults>
</compile_context>

<pallas_src>
import math

import jax
import jax.numpy as jnp
from jax.experimental import pallas as pl
from jax.experimental.pallas import tpu as pltpu


def _lstm_spatial_kernel(
    xh_ref,    # (B, E+H)   bf16  fused [inputs | hx]
    cx_ref,    # (B, H)     f32
    feat_ref,  # (B, K, D)  bf16  features, channel-last
    wg_ref,    # (E+H, H)   bf16  column tile j of fused gate weight [Wih^T; Whh^T]
    bg_ref,    # (1, H)     f32   column tile j of fused gate bias (b_ih + b_hh)
    wht_ref,   # (H, H)     bf16  hidden_transform weight^T
    bht_ref,   # (1, H)     f32
    aw_ref,    # (D, 1)     bf16  1x1 conv weight (512 -> 1)
    hy_ref,    # (B, H)     f32   output
    cy_ref,    # (B, D)     f32   output (attention-weighted features)
    gates_sc,  # (4, B, H)  f32   VMEM scratch, one slot per gate tile
):
    j = pl.program_id(0)

    # ---- per grid step: one fused-gate column tile on the MXU --------------
    # (the next weight tile's DMA is prefetched by Pallas while this runs)
    gates_sc[j] = (
        jnp.dot(xh_ref[...], wg_ref[...], preferred_element_type=jnp.float32)
        + bg_ref[...]
    )

    # ---- tail (last step): LSTM combine + spatial attention ----------------
    @pl.when(j == pl.num_programs(0) - 1)
    def _():
        i_g = jax.nn.sigmoid(gates_sc[0])
        f_g = jax.nn.sigmoid(gates_sc[1])
        g_g = jnp.tanh(gates_sc[2])
        o_g = jax.nn.sigmoid(gates_sc[3])
        c_new = f_g * cx_ref[...] + i_g * g_g
        hy = o_g * jnp.tanh(c_new)                              # (B, H) f32
        hy_ref[...] = hy

        # hidden_transform (MXU, bf16 operands, f32 accumulate)
        Wh = (
            jnp.dot(hy.astype(jnp.bfloat16), wht_ref[...],
                    preferred_element_type=jnp.float32)
            + bht_ref[...]
        )                                                       # (B, H) f32

        feat = feat_ref[...]                                    # (B, K, D) bf16
        B, K, D = feat.shape

        # tanh(features + Wh) in bf16 (D == H); halves EUP/VALU/spill traffic.
        attn = jnp.tanh(feat + Wh.astype(jnp.bfloat16)[:, None, :])   # (B,K,D) bf16

        # 1x1 conv over the 512 channels -> batched MXU matvec:
        #   (B,K,D) x (B,D,1) -> (B,K,1)
        # The conv bias is omitted: it is constant over the softmax axis, so
        # the attention weights (and hence cy) are unaffected.
        aw_b = jnp.broadcast_to(aw_ref[...][None, :, :], (B, D, 1))
        z = jnp.einsum("bkd,bdn->bkn", attn, aw_b,
                       preferred_element_type=jnp.float32)[:, :, 0]   # (B, K) f32

        # softmax over the 64 spatial positions (lane reductions on (B, K))
        z = z - jnp.max(z, axis=-1, keepdims=True)
        e = jnp.exp(z)
        p = e * pl.reciprocal(jnp.sum(e, axis=-1, keepdims=True), approx=True)

        # cy[b, d] = sum_k features[b, k, d] * p[b, k] -> batched MXU matmul
        p_b = p.astype(jnp.bfloat16)[:, None, :]                # (B, 1, K)
        cy = jnp.einsum("bqk,bkd->bqd", p_b, feat,
                        preferred_element_type=jnp.float32)     # (B, 1, D)
        cy_ref[...] = cy[:, 0, :]


# ---------------------------------------------------------------------------
# One-time preparation (hoisted out of the per-step forward).
# ---------------------------------------------------------------------------
def prepare_params(params):
    """Fuse/transpose/cast weights once; reuse the result for every step.

    The 1x1-conv bias (attn_b) is intentionally not prepared: softmax is
    invariant to a per-batch-constant shift, so it never affects (hy, cy)."""
    H4, _E = params["w_ih"].shape
    H = H4 // 4
    D = params["attn_w"].shape[1]
    w_gates = jnp.concatenate([params["w_ih"].T, params["w_hh"].T], axis=0)  # (E+H, 4H)
    return dict(
        w_gates=w_gates.astype(jnp.bfloat16),
        b_gates=(params["b_ih"] + params["b_hh"]).reshape(1, 4 * H).astype(jnp.float32),
        w_ht=params["w_ht"].T.astype(jnp.bfloat16),              # (H, H)
        b_ht=params["b_ht"].reshape(1, H).astype(jnp.float32),
        attn_w=params["attn_w"].reshape(D, 1).astype(jnp.bfloat16),
    )


def prepare_features(features_bdk):
    """(B, D, K) channels-first -> (B, K, D) channel-last bf16.
    Features are produced once per image and reused across timesteps, so the
    transpose/cast is hoisted out of the per-step forward."""
    return jnp.transpose(features_bdk, (0, 2, 1)).astype(jnp.bfloat16)


@jax.jit
def lstm_spatial_forward(inputs, hx, cx, feat_kd, prep):
    """feat_kd: prepared channel-last (B, K, D) bf16 features (prepare_features).
    prep: output of prepare_params."""
    B, K, D = feat_kd.shape
    H = hx.shape[-1]
    E = inputs.shape[-1]
    EH = E + H
    assert D == H, "expand_as in the reference requires hidden_size == feature dim"

    xh = jnp.concatenate([inputs, hx], axis=1).astype(jnp.bfloat16)   # (B, E+H)
    cx = cx.astype(jnp.float32)

    hy, cy = pl.pallas_call(
        _lstm_spatial_kernel,
        grid=(4,),                                   # one gate-column tile per step
        in_specs=[
            pl.BlockSpec((B, EH), lambda j: (0, 0)),          # xh (resident)
            pl.BlockSpec((B, H), lambda j: (0, 0)),           # cx
            pl.BlockSpec((B, K, D), lambda j: (0, 0, 0)),     # features
            pl.BlockSpec((EH, H), lambda j: (0, j)),          # streamed weight tile
            pl.BlockSpec((1, H), lambda j: (0, j)),           # streamed bias tile
            pl.BlockSpec((H, H), lambda j: (0, 0)),           # w_ht
            pl.BlockSpec((1, H), lambda j: (0, 0)),           # b_ht
            pl.BlockSpec((D, 1), lambda j: (0, 0)),           # attn conv weight
        ],
        out_specs=(
            pl.BlockSpec((B, H), lambda j: (0, 0)),
            pl.BlockSpec((B, D), lambda j: (0, 0)),
        ),
        out_shape=(
            jax.ShapeDtypeStruct((B, H), jnp.float32),
            jax.ShapeDtypeStruct((B, D), jnp.float32),
        ),
        scratch_shapes=[pltpu.VMEM((4, B, H), jnp.float32)],
        compiler_params=pltpu.CompilerParams(
            dimension_semantics=("arbitrary",),
            vmem_limit_bytes=32 * 1024 * 1024,       # v7x-safe (64 MiB physical)
        ),
    )(xh, cx, feat_kd, prep["w_gates"], prep["b_gates"],
      prep["w_ht"], prep["b_ht"], prep["attn_w"])
    return hy, cy


# ---------------------------------------------------------------------------
# Deterministic parameter construction (shapes from LSTMSpatial.__init__).
# ---------------------------------------------------------------------------
def make_params(key, embed_size, hidden_size, feat_channels):
    ks = jax.random.split(key, 8)
    H, E, D = hidden_size, embed_size, feat_channels

    stdv = 1.0 / math.sqrt(H)  # PyTorch LSTMCell default init
    w_ih = jax.random.uniform(ks[0], (4 * H, E), jnp.float32, -stdv, stdv)
    w_hh = jax.random.uniform(ks[1], (4 * H, H), jnp.float32, -stdv, stdv)
    b_ih = jax.random.uniform(ks[2], (4 * H,), jnp.float32, -stdv, stdv)
    b_hh = jax.random.uniform(ks[3], (4 * H,), jnp.float32, -stdv, stdv)

    # hidden_transform: kaiming_uniform weight, zero bias (per _initialize_weights)
    bound = math.sqrt(6.0 / H)
    w_ht = jax.random.uniform(ks[4], (H, H), jnp.float32, -bound, bound)
    b_ht = jnp.zeros((H,), jnp.float32)

    # attn 1x1 conv (D -> 1), PyTorch default-style uniform init
    cbound = 1.0 / math.sqrt(D)
    attn_w = jax.random.uniform(ks[5], (1, D, 1, 1), jnp.float32, -cbound, cbound)
    attn_b = jax.random.uniform(ks[6], (1,), jnp.float32, -cbound, cbound)

    return dict(w_ih=w_ih, w_hh=w_hh, b_ih=b_ih, b_hh=b_hh,
                w_ht=w_ht, b_ht=b_ht, attn_w=attn_w, attn_b=attn_b)


def reference_forward(inputs, hx, cx, features, params):
    """Pure-JAX f32 mirror of the PyTorch forward (for verification)."""
    HI = jax.lax.Precision.HIGHEST
    H = hx.shape[-1]
    gates = (inputs @ params["w_ih"].T + params["b_ih"]
             + hx @ params["w_hh"].T + params["b_hh"])
    i_g = jax.nn.sigmoid(gates[:, 0 * H:1 * H])
    f_g = jax.nn.sigmoid(gates[:, 1 * H:2 * H])
    g_g = jnp.tanh(gates[:, 2 * H:3 * H])
    o_g = jax.nn.sigmoid(gates[:, 3 * H:4 * H])
    c_lstm = f_g * cx + i_g * g_g
    hy = o_g * jnp.tanh(c_lstm)
    Wh = jnp.dot(hy, params["w_ht"].T, precision=HI) + params["b_ht"]
    attn_in = jnp.tanh(features + Wh[:, :, None])           # (B, D, K)
    w = params["attn_w"].reshape(-1)                         # (D,)
    z = jnp.einsum("bdk,d->bk", attn_in, w, precision=HI) + params["attn_b"][0]
    p = jax.nn.softmax(z, axis=1)
    cy = jnp.einsum("bdk,bk->bd", features, p, precision=HI)
    return hy, cy


if __name__ == "__main__":
    # Shapes implied by the forward: D = 512 channels, K = 8*8 = 64 spatial,
    # hidden_size == D == 512 (expand_as requirement); small batch / embed.
    B, E, H, D, K = 8, 32, 512, 512, 64

    key = jax.random.PRNGKey(0)
    k_in, k_hx, k_cx, k_feat, k_par = jax.random.split(key, 5)

    inputs = jax.random.normal(k_in, (B, E), jnp.float32)
    hx = jax.random.normal(k_hx, (B, H), jnp.float32)
    cx = jax.random.normal(k_cx, (B, H), jnp.float32)
    features = jax.random.normal(k_feat, (B, D, K), jnp.float32)
    params = make_params(k_par, E, H, D)

    # One-time preparation (hoisted out of the per-step path).
    prep = prepare_params(params)
    feat_kd = prepare_features(features)

    hy, cy = lstm_spatial_forward(inputs, hx, cx, feat_kd, prep)
    jax.block_until_ready((hy, cy))

    hy_ref, cy_ref = reference_forward(inputs, hx, cx, features, params)
    assert hy.shape == (B, H) and cy.shape == (B, D)
    # bf16 MXU operands through three chained matmuls -> 3e-2 tolerance.
    assert jnp.allclose(hy, hy_ref, atol=3e-2, rtol=3e-2)
    assert jnp.allclose(cy, cy_ref, atol=3e-2, rtol=3e-2)

    print("KERNEL_OK")
</pallas_src>

<mosaic_0001>
module attributes {stable_mosaic.version = 11 : i64} {
  func.func @_lstm_spatial_kernel(%arg0: i32, %arg1: memref<8x544xbf16, #tpu.memory_space<vmem>>, %arg2: memref<8x512xf32, #tpu.memory_space<vmem>>, %arg3: memref<8x64x512xbf16, #tpu.memory_space<vmem>>, %arg4: memref<544x512xbf16, #tpu.memory_space<vmem>>, %arg5: memref<1x512xf32, #tpu.memory_space<vmem>>, %arg6: memref<512x512xbf16, #tpu.memory_space<vmem>>, %arg7: memref<1x512xf32, #tpu.memory_space<vmem>>, %arg8: memref<512x1xbf16, #tpu.memory_space<vmem>>, %arg9: memref<8x512xf32, #tpu.memory_space<vmem>>, %arg10: memref<8x512xf32, #tpu.memory_space<vmem>>, %arg11: memref<4x8x512xf32, #tpu.memory_space<vmem>>) attributes {dimension_semantics = [#tpu.dimension_semantics<arbitrary>], iteration_bounds = array<i64: 4>, scalar_prefetch = 0 : i64, scratch_operands = 1 : i64, tpu.core_type = #tpu.core_type<tc>, window_params = [{pipeline_mode = #tpu.pipeline_mode<synchronous>, transform_indices = @transform_0, window_bounds = array<i64: 8, 544>}, {pipeline_mode = #tpu.pipeline_mode<synchronous>, transform_indices = @transform_1, window_bounds = array<i64: 8, 512>}, {pipeline_mode = #tpu.pipeline_mode<synchronous>, transform_indices = @transform_2, window_bounds = array<i64: 8, 64, 512>}, {transform_indices = @transform_3, window_bounds = array<i64: 544, 512>}, {transform_indices = @transform_4, window_bounds = array<i64: 1, 512>}, {pipeline_mode = #tpu.pipeline_mode<synchronous>, transform_indices = @transform_5, window_bounds = array<i64: 512, 512>}, {pipeline_mode = #tpu.pipeline_mode<synchronous>, transform_indices = @transform_6, window_bounds = array<i64: 1, 512>}, {pipeline_mode = #tpu.pipeline_mode<synchronous>, transform_indices = @transform_7, window_bounds = array<i64: 512, 1>}, {pipeline_mode = #tpu.pipeline_mode<synchronous>, transform_indices = @transform_8, window_bounds = array<i64: 8, 512>}, {pipeline_mode = #tpu.pipeline_mode<synchronous>, transform_indices = @transform_9, window_bounds = array<i64: 8, 512>}]} {
    %c0 = arith.constant 0 : index
    %c0_0 = arith.constant 0 : index
    %0 = vector.load %arg1[%c0, %c0_0] : memref<8x544xbf16, #tpu.memory_space<vmem>>, vector<8x544xbf16>
    %c0_1 = arith.constant 0 : index
    %c0_2 = arith.constant 0 : index
    %1 = vector.load %arg4[%c0_1, %c0_2] : memref<544x512xbf16, #tpu.memory_space<vmem>>, vector<544x512xbf16>
    %cst = arith.constant dense<0.000000e+00> : vector<8x512xf32>
    %2 = tpu.matmul %0, %1, %cst {dimension_numbers = #tpu.dot_dimension_numbers<[1], [0], [0], [1], [0, 0, 1, 1], [], []>} : vector<8x544xbf16>, vector<544x512xbf16>, vector<8x512xf32> -> vector<8x512xf32>
    %c0_3 = arith.constant 0 : index
    %c0_4 = arith.constant 0 : index
    %3 = vector.load %arg5[%c0_3, %c0_4] : memref<1x512xf32, #tpu.memory_space<vmem>>, vector<1x512xf32>
    %4 = vector.broadcast %3 : vector<1x512xf32> to vector<8x512xf32>
    %5 = arith.addf %2, %4 : vector<8x512xf32>
    %6 = arith.index_cast %arg0 : i32 to index
    %c0_5 = arith.constant 0 : index
    %c0_6 = arith.constant 0 : index
    %7 = vector.load %arg11[%6, %c0_5, %c0_6] : memref<4x8x512xf32, #tpu.memory_space<vmem>>, vector<1x8x512xf32>
    %8 = vector.shape_cast %7 : vector<1x8x512xf32> to vector<8x512xf32>
    %9 = vector.shape_cast %5 : vector<8x512xf32> to vector<1x8x512xf32>
    tpu.vector_store %arg11[%6, %c0_5, %c0_6], %9 {strides = array<i32>} : memref<4x8x512xf32, #tpu.memory_space<vmem>>, vector<1x8x512xf32>,
    %c3_i32 = arith.constant 3 : i32
    %10 = arith.cmpi eq, %arg0, %c3_i32 : i32
    %11 = arith.extui %10 : i1 to i32
    %c0_i32 = arith.constant 0 : i32
    %12 = arith.cmpi ne, %11, %c0_i32 : i32
    scf.if %12 {
      %c0_7 = arith.constant 0 : index
      %c0_8 = arith.constant 0 : index
      %c0_9 = arith.constant 0 : index
      %13 = vector.load %arg11[%c0_7, %c0_8, %c0_9] : memref<4x8x512xf32, #tpu.memory_space<vmem>>, vector<1x8x512xf32>
      %14 = vector.shape_cast %13 : vector<1x8x512xf32> to vector<8x512xf32>
      %15 = arith.negf %14 : vector<8x512xf32>
      %16 = math.exp %15 : vector<8x512xf32>
      %cst_10 = arith.constant 1.000000e+00 : f32
      %17 = vector.broadcast %cst_10 : f32 to vector<8x512xf32>
      %18 = arith.addf %17, %16 : vector<8x512xf32>
      %19 = arith.divf %17, %18 : vector<8x512xf32>
      %c1 = arith.constant 1 : index
      %c0_11 = arith.constant 0 : index
      %c0_12 = arith.constant 0 : index
      %20 = vector.load %arg11[%c1, %c0_11, %c0_12] : memref<4x8x512xf32, #tpu.memory_space<vmem>>, vector<1x8x512xf32>
      %21 = vector.shape_cast %20 : vector<1x8x512xf32> to vector<8x512xf32>
      %22 = arith.negf %21 : vector<8x512xf32>
      %23 = math.exp %22 : vector<8x512xf32>
      %cst_13 = arith.constant 1.000000e+00 : f32
      %24 = vector.broadcast %cst_13 : f32 to vector<8x512xf32>
      %25 = arith.addf %24, %23 : vector<8x512xf32>
      %26 = arith.divf %24, %25 : vector<8x512xf32>
      %c2 = arith.constant 2 : index
      %c0_14 = arith.constant 0 : index
      %c0_15 = arith.constant 0 : index
      %27 = vector.load %arg11[%c2, %c0_14, %c0_15] : memref<4x8x512xf32, #tpu.memory_space<vmem>>, vector<1x8x512xf32>
      %28 = vector.shape_cast %27 : vector<1x8x512xf32> to vector<8x512xf32>
      %29 = math.tanh %28 : vector<8x512xf32>
      %c3 = arith.constant 3 : index
      %c0_16 = arith.constant 0 : index
      %c0_17 = arith.constant 0 : index
      %30 = vector.load %arg11[%c3, %c0_16, %c0_17] : memref<4x8x512xf32, #tpu.memory_space<vmem>>, vector<1x8x512xf32>
      %31 = vector.shape_cast %30 : vector<1x8x512xf32> to vector<8x512xf32>
      %32 = arith.negf %31 : vector<8x512xf32>
      %33 = math.exp %32 : vector<8x512xf32>
      %cst_18 = arith.constant 1.000000e+00 : f32
      %34 = vector.broadcast %cst_18 : f32 to vector<8x512xf32>
      %35 = arith.addf %34, %33 : vector<8x512xf32>
      %36 = arith.divf %34, %35 : vector<8x512xf32>
      %c0_19 = arith.constant 0 : index
      %c0_20 = arith.constant 0 : index
      %37 = vector.load %arg2[%c0_19, %c0_20] : memref<8x512xf32, #tpu.memory_space<vmem>>, vector<8x512xf32>
      %38 = arith.mulf %26, %37 : vector<8x512xf32>
      %39 = arith.mulf %19, %29 : vector<8x512xf32>
      %40 = arith.addf %38, %39 : vector<8x512xf32>
      %41 = math.tanh %40 : vector<8x512xf32>
      %42 = arith.mulf %36, %41 : vector<8x512xf32>
      %c0_21 = arith.constant 0 : index
      %c0_22 = arith.constant 0 : index
      %43 = vector.load %arg9[%c0_21, %c0_22] : memref<8x512xf32, #tpu.memory_space<vmem>>, vector<8x512xf32>
      tpu.vector_store %arg9[%c0_21, %c0_22], %42 {strides = array<i32>} : memref<8x512xf32, #tpu.memory_space<vmem>>, vector<8x512xf32>,
      %44 = arith.truncf %42 : vector<8x512xf32> to vector<8x512xbf16>
      %c0_23 = arith.constant 0 : index
      %c0_24 = arith.constant 0 : index
      %45 = vector.load %arg6[%c0_23, %c0_24] : memref<512x512xbf16, #tpu.memory_space<vmem>>, vector<512x512xbf16>
      %cst_25 = arith.constant dense<0.000000e+00> : vector<8x512xf32>
      %46 = tpu.matmul %44, %45, %cst_25 {dimension_numbers = #tpu.dot_dimension_numbers<[1], [0], [0], [1], [0, 0, 1, 1], [], []>} : vector<8x512xbf16>, vector<512x512xbf16>, vector<8x512xf32> -> vector<8x512xf32>
      %c0_26 = arith.constant 0 : index
      %c0_27 = arith.constant 0 : index
      %47 = vector.load %arg7[%c0_26, %c0_27] : memref<1x512xf32, #tpu.memory_space<vmem>>, vector<1x512xf32>
      %48 = vector.broadcast %47 : vector<1x512xf32> to vector<8x512xf32>
      %49 = arith.addf %46, %48 : vector<8x512xf32>
      %c0_28 = arith.constant 0 : index
      %c0_29 = arith.constant 0 : index
      %c0_30 = arith.constant 0 : index
      %50 = vector.load %arg3[%c0_28, %c0_29, %c0_30] : memref<8x64x512xbf16, #tpu.memory_space<vmem>>, vector<8x64x512xbf16>
      %51 = arith.truncf %49 : vector<8x512xf32> to vector<8x512xbf16>
      %52 = vector.shape_cast %51 : vector<8x512xbf16> to vector<8x1x512xbf16>
      %53 = vector.broadcast %52 : vector<8x1x512xbf16> to vector<8x64x512xbf16>
      %54 = arith.addf %50, %53 : vector<8x64x512xbf16>
      %55 = math.tanh %54 : vector<8x64x512xbf16>
      %c0_31 = arith.constant 0 : index
      %c0_32 = arith.constant 0 : index
      %56 = vector.load %arg8[%c0_31, %c0_32] : memref<512x1xbf16, #tpu.memory_space<vmem>>, vector<512x1xbf16>
      %57 = vector.shape_cast %56 : vector<512x1xbf16> to vector<1x512x1xbf16>
      %58 = vector.shape_cast %57 : vector<1x512x1xbf16> to vector<1x512x1xbf16>
      %59 = vector.broadcast %58 : vector<1x512x1xbf16> to vector<8x512x1xbf16>
      "tpu.trace_start"() <{level = 10 : i32, message = "bkd,bdn->bkn"}> : () -> ()
      %cst_33 = arith.constant dense<0.000000e+00> : vector<8x64x1xf32>
      %60 = tpu.matmul %55, %59, %cst_33 {dimension_numbers = #tpu.dot_dimension_numbers<[2], [1], [1], [2], [0, 0, 0, 1, 1, 2], [0], [0]>} : vector<8x64x512xbf16>, vector<8x512x1xbf16>, vector<8x64x1xf32> -> vector<8x64x1xf32>
      "tpu.trace_stop"() : () -> ()
      %61 = vector.shape_cast %60 : vector<8x64x1xf32> to vector<8x64xf32>
      %cst_34 = arith.constant dense<0xFF800000> : vector<8xf32>
      %62 = vector.multi_reduction <maximumf>, %61, %cst_34 [1] : vector<8x64xf32> to vector<8xf32>
      %63 = vector.shape_cast %62 : vector<8xf32> to vector<8x1xf32>
      %64 = vector.broadcast %63 : vector<8x1xf32> to vector<8x64xf32>
      %65 = arith.subf %61, %64 : vector<8x64xf32>
      %66 = math.exp %65 : vector<8x64xf32>
      %cst_35 = arith.constant dense<0.000000e+00> : vector<8xf32>
      %67 = vector.multi_reduction <add>, %66, %cst_35 [1] : vector<8x64xf32> to vector<8xf32>
      %68 = vector.shape_cast %67 : vector<8xf32> to vector<8x1xf32>
      %69 = tpu.reciprocal %68 {approx = true} : vector<8x1xf32> -> vector<8x1xf32>
      %70 = vector.broadcast %69 : vector<8x1xf32> to vector<8x64xf32>
      %71 = arith.mulf %66, %70 : vector<8x64xf32>
      %72 = arith.truncf %71 : vector<8x64xf32> to vector<8x64xbf16>
      %73 = vector.shape_cast %72 : vector<8x64xbf16> to vector<8x1x64xbf16>
      "tpu.trace_start"() <{level = 10 : i32, message = "bqk,bkd->bqd"}> : () -> ()
      %cst_36 = arith.constant dense<0.000000e+00> : vector<8x1x512xf32>
      %74 = tpu.matmul %73, %50, %cst_36 {dimension_numbers = #tpu.dot_dimension_numbers<[2], [1], [1], [2], [0, 0, 0, 1, 1, 2], [0], [0]>} : vector<8x1x64xbf16>, vector<8x64x512xbf16>, vector<8x1x512xf32> -> vector<8x1x512xf32>
      "tpu.trace_stop"() : () -> ()
      %75 = vector.shape_cast %74 : vector<8x1x512xf32> to vector<8x512xf32>
      %c0_37 = arith.constant 0 : index
      %c0_38 = arith.constant 0 : index
      %76 = vector.load %arg10[%c0_37, %c0_38] : memref<8x512xf32, #tpu.memory_space<vmem>>, vector<8x512xf32>
      tpu.vector_store %arg10[%c0_37, %c0_38], %75 {strides = array<i32>} : memref<8x512xf32, #tpu.memory_space<vmem>>, vector<8x512xf32>,
    } else {
    }
    return
  }
  func.func @transform_0(%arg0: i32) -> (i32, i32) {
    %c0_i32 = arith.constant 0 : i32
    %c0_i32_0 = arith.constant 0 : i32
    %c0_i32_1 = arith.constant 0 : i32
    return %c0_i32, %c0_i32_0 : i32, i32
  }
  func.func @transform_1(%arg0: i32) -> (i32, i32) {
    %c0_i32 = arith.constant 0 : i32
    %c0_i32_0 = arith.constant 0 : i32
    %c0_i32_1 = arith.constant 0 : i32
    return %c0_i32, %c0_i32_0 : i32, i32
  }
  func.func @transform_2(%arg0: i32) -> (i32, i32, i32) {
    %c0_i32 = arith.constant 0 : i32
    %c0_i32_0 = arith.constant 0 : i32
    %c0_i32_1 = arith.constant 0 : i32
    %c0_i32_2 = arith.constant 0 : i32
    return %c0_i32, %c0_i32_0, %c0_i32_1 : i32, i32, i32
  }
  func.func @transform_3(%arg0: i32) -> (i32, i32) {
    %c0_i32 = arith.constant 0 : i32
    %c0_i32_0 = arith.constant 0 : i32
    return %c0_i32, %arg0 : i32, i32
  }
  func.func @transform_4(%arg0: i32) -> (i32, i32) {
    %c0_i32 = arith.constant 0 : i32
    %c0_i32_0 = arith.constant 0 : i32
    return %c0_i32, %arg0 : i32, i32
  }
  func.func @transform_5(%arg0: i32) -> (i32, i32) {
    %c0_i32 = arith.constant 0 : i32
    %c0_i32_0 = arith.constant 0 : i32
    %c0_i32_1 = arith.constant 0 : i32
    return %c0_i32, %c0_i32_0 : i32, i32
  }
  func.func @transform_6(%arg0: i32) -> (i32, i32) {
    %c0_i32 = arith.constant 0 : i32
    %c0_i32_0 = arith.constant 0 : i32
    %c0_i32_1 = arith.constant 0 : i32
    return %c0_i32, %c0_i32_0 : i32, i32
  }
  func.func @transform_7(%arg0: i32) -> (i32, i32) {
    %c0_i32 = arith.constant 0 : i32
    %c0_i32_0 = arith.constant 0 : i32
    %c0_i32_1 = arith.constant 0 : i32
    return %c0_i32, %c0_i32_0 : i32, i32
  }
  func.func @transform_8(%arg0: i32) -> (i32, i32) {
    %c0_i32 = arith.constant 0 : i32
    %c0_i32_0 = arith.constant 0 : i32
    %c0_i32_1 = arith.constant 0 : i32
    return %c0_i32, %c0_i32_0 : i32, i32
  }
  func.func @transform_9(%arg0: i32) -> (i32, i32) {
    %c0_i32 = arith.constant 0 : i32
    %c0_i32_0 = arith.constant 0 : i32
    %c0_i32_1 = arith.constant 0 : i32
    return %c0_i32, %c0_i32_0 : i32, i32
  }
}

</mosaic_0001>

<llo_original>
// kernel: lstm_spatial_forward.1
$region0: #{lstm_spatial_forward.1}
  #allocation0 [shape = 'u32[]', space=smem, size = 0x4, offset = 0x4, fixed_abs, tag = 'smem constant byte address 0x4 - core index']
  #allocation1 [shape = 'u32[144,128]{1,0:T(1,128)}', space=vmem, size = 0x12000, scoped, tag = 'internal scratch']
  #allocation2 [shape = 'f32[4,8,512]{2,1,0:T(8,128)}', space=vmem, size = 0x10000, scoped, tag = 'scratch operand']
  %s0 = inlined_call_operand.vmem [shape: bf16[8,544], index: 0, kind: input, shape index: {}]
  %s1 = inlined_call_operand.hbm [shape: f32[8,512], index: 1, kind: input, shape index: {}]
  %s2 = inlined_call_operand.hbm [shape: bf16[8,64,512], index: 2, kind: input, shape index: {}]
  %s3 = inlined_call_operand.hbm [shape: bf16[544,2048], index: 3, kind: input, shape index: {}]
  %s4 = inlined_call_operand.hbm [shape: f32[1,2048], index: 4, kind: input, shape index: {}]
  %s5 = inlined_call_operand.hbm [shape: bf16[512,512], index: 5, kind: input, shape index: {}]
  %s6 = inlined_call_operand.hbm [shape: f32[1,512], index: 6, kind: input, shape index: {}]
  %s7 = inlined_call_operand.vmem [shape: bf16[512,1], index: 7, kind: input, shape index: {}]
  %s8 = inlined_call_operand.hbm [shape: f32[8,512], index: 8, kind: output, shape index: {0}]
  %s9 = inlined_call_operand.hbm [shape: f32[8,512], index: 9, kind: output, shape index: {1}]
  %10 = xla_tuple %s8, %s9
  %s11 = sld [smem:[#allocation0]]
  $region101: #{lstm_spatial_forward.1} parent=0
    _
  %s13 = ssub.s32 1, %s11
  %s14 = scalar_select 0, %s13, %s11
  $region1: #{lstm_spatial_forward.1} parent=0
    #allocation3 [shape = 'u8[16384]{0}', space=vmem, size = 0x4000, scoped, tag = 'input window, operand 1, single buffered']
    #allocation4 [shape = 's32[2]{0}', space=sflag, size = 0x8, scoped, tag = 'scoped memory for lstm_spatial_forward.1']
    #allocation5 [shape = 's32[2]{0}', space=sflag, size = 0x8, scoped, tag = 'scoped memory for lstm_spatial_forward.1']
    #allocation6 [shape = 'u8[524288]{0}', space=vmem, size = 0x80000, scoped, tag = 'input window, operand 2, single buffered']
    #allocation7 [shape = 's32[1]{0}', space=sflag, size = 0x4, scoped, tag = 'scoped memory for lstm_spatial_forward.1']
    #allocation8 [shape = 'u8[1114112]{0}', space=vmem, size = 0x110000, scoped, tag = 'input window, operand 3']
    #allocation9 [shape = 'u8[4096]{0}', space=vmem, size = 0x1000, scoped, tag = 'input window, operand 4']
    #allocation10 [shape = 'u8[524288]{0}', space=vmem, size = 0x80000, scoped, tag = 'input window, operand 5, single buffered']
    #allocation11 [shape = 'u8[2048]{0}', space=vmem, size = 0x800, scoped, tag = 'input window, operand 6, single buffered']
    #allocation12 [shape = 's32[1]{0}', space=sflag, size = 0x4, scoped, tag = 'scoped memory for lstm_spatial_forward.1']
    #allocation13 [shape = 'u8[16384]{0}', space=vmem, size = 0x4000, scoped, tag = 'output window, operand 0, single buffered']
    #allocation14 [shape = 'u8[16384]{0}', space=vmem, size = 0x4000, scoped, tag = 'output window, operand 1, single buffered']
    #allocation15 [shape = 's32[1]{0}', space=sflag, size = 0x4, scoped, tag = 'scoped memory for lstm_spatial_forward.1']
    %15 = vsyncpa [#allocation4], 0
    %16 = vsyncpa [#allocation7], 0
    %17 = vsyncpa [#allocation12], 0
    %18 = vsyncpa [#allocation5], 0
    %19 = vsyncpa [#allocation15], 0
    loop: start=0, step=1, limit=6
    $region2: #{lstm_spatial_forward.1} parent=1 // loop_pre_header
      _
    $region3: #{lstm_spatial_forward.1} parent=1 // loop_header
      %s21 = sphi 0, %s25
      %p22 = scmp.ge.s32.totalorder %s21, 6
      %s29 = sphi 0, %s29
      %s31 = sphi 0, %s29
      %s32 = sphi 0, %s31
      %s46 = sphi 0, %s32
      %s50 = sphi 0, %s50
      %s52 = sphi 0, %s50
      %s53 = sphi 0, %s52
      %s67 = sphi 0, %s53
      %s71 = sphi 0, %s71
      %s73 = sphi 0, %s71
      %s74 = sphi 0, %s73
      %s88 = sphi 0, %s74
      %s94 = sphi 0, %s96
      %s97 = sphi 0, %s94
      %s98 = sphi 0, %s97
      %s114 = sphi 0, %s98
      %s120 = sphi 0, %s122
      %s123 = sphi 0, %s120
      %s124 = sphi 0, %s123
      %s140 = sphi 0, %s124
      %s144 = sphi 0, %s144
      %s146 = sphi 0, %s144
      %s147 = sphi 0, %s146
      %s161 = sphi 0, %s147
      %s165 = sphi 0, %s165
      %s167 = sphi 0, %s165
      %s168 = sphi 0, %s167
      %s182 = sphi 0, %s168
      %s186 = sphi 0, %s186
      %s188 = sphi 0, %s186
      %s189 = sphi 0, %s188
      %s203 = sphi 0, %s189
      %s207 = sphi 0, %s207
      %s209 = sphi 0, %s207
      %s210 = sphi 0, %s209
      %s224 = sphi 0, %s210
      %s228 = sphi 0, %s228
      %s230 = sphi 0, %s228
      %s231 = sphi 0, %s230
      %s245 = sphi 0, %s231
    $region4: #{lstm_spatial_forward.1} parent=1 // loop_header_branch
      %24 = sbr.rel (%p22) target = $region8
    $region5: #{lstm_spatial_forward.1} parent=1 // loop_body
      %s26 = ssub.s32 %s21, 1
      %s27 = ssub.s32 %s21, 2
      %s28 = sadd.s32 %s21, 1
      %s30 = sadd.s32 %s29, 1
      %p33 = scmp.eq.s32.totalorder %s21, 3
      %p34 = scmp.ne.s32.totalorder %s29, %s31
      %p35 = scmp.eq.s32.totalorder %s21, 0
      %p36 = por %p34, %p35
      %p37 = scmp.ne.s32.totalorder %s29, %s31
      %p38 = scmp.eq.s32.totalorder %s26, 3
      %p39 = por %p37, %p38
      %p40 = scmp.ne.s32.totalorder %s31, %s32
      %p41 = scmp.eq.s32.totalorder %s26, 0
      %p42 = por %p40, %p41
      %p43 = scmp.ne.s32.totalorder %s31, %s32
      %p44 = scmp.eq.s32.totalorder %s27, 3
      %p45 = por %p43, %p44
      %p47 = scmp.ne.s32.totalorder %s32, %s46
      %p48 = scmp.eq.s32.totalorder %s27, 0
      %p49 = por %p47, %p48
      %s51 = sadd.s32 %s50, 1
      %p54 = scmp.eq.s32.totalorder %s21, 3
      %p55 = scmp.ne.s32.totalorder %s50, %s52
      %p56 = scmp.eq.s32.totalorder %s21, 0
      %p57 = por %p55, %p56
      %p58 = scmp.ne.s32.totalorder %s50, %s52
      %p59 = scmp.eq.s32.totalorder %s26, 3
      %p60 = por %p58, %p59
      %p61 = scmp.ne.s32.totalorder %s52, %s53
      %p62 = scmp.eq.s32.totalorder %s26, 0
      %p63 = por %p61, %p62
      %p64 = scmp.ne.s32.totalorder %s52, %s53
      %p65 = scmp.eq.s32.totalorder %s27, 3
      %p66 = por %p64, %p65
      %p68 = scmp.ne.s32.totalorder %s53, %s67
      %p69 = scmp.eq.s32.totalorder %s27, 0
      %p70 = por %p68, %p69
      %s72 = sadd.s32 %s71, 1
      %p75 = scmp.eq.s32.totalorder %s21, 3
      %p76 = scmp.ne.s32.totalorder %s71, %s73
      %p77 = scmp.eq.s32.totalorder %s21, 0
      %p78 = por %p76, %p77
      %p79 = scmp.ne.s32.totalorder %s71, %s73
      %p80 = scmp.eq.s32.totalorder %s26, 3
      %p81 = por %p79, %p80
      %p82 = scmp.ne.s32.totalorder %s73, %s74
      %p83 = scmp.eq.s32.totalorder %s26, 0
      %p84 = por %p82, %p83
      %p85 = scmp.ne.s32.totalorder %s73, %s74
      %p86 = scmp.eq.s32.totalorder %s27, 3
      %p87 = por %p85, %p86
      %p89 = scmp.ne.s32.totalorder %s74, %s88
      %p90 = scmp.eq.s32.totalorder %s27, 0
      %p91 = por %p89, %p90
      %s92 = ssub.s32 %s21, %s28
      %p93 = scmp.eq.s32.totalorder %s92, 0
      %s95 = sadd.s32 %s94, 1
      %s96 = scalar_select %p93, %s94, %s95
      %p99 = pneg %p93
      %p100 = scmp.eq.s32.totalorder %s21, 3
      %p101 = por %p99, %p100
      %p102 = scmp.ne.s32.totalorder %s94, %s97
      %p103 = scmp.eq.s32.totalorder %s21, 0
      %p104 = por %p102, %p103
      %p105 = scmp.ne.s32.totalorder %s94, %s97
      %p106 = scmp.eq.s32.totalorder %s26, 3
      %p107 = por %p105, %p106
      %p108 = scmp.ne.s32.totalorder %s97, %s98
      %p109 = scmp.eq.s32.totalorder %s26, 0
      %p110 = por %p108, %p109
      %p111 = scmp.ne.s32.totalorder %s97, %s98
      %p112 = scmp.eq.s32.totalorder %s27, 3
      %p113 = por %p111, %p112
      %p115 = scmp.ne.s32.totalorder %s98, %s114
      %p116 = scmp.eq.s32.totalorder %s27, 0
      %p117 = por %p115, %p116
      %s118 = ssub.s32 %s21, %s28
      %p119 = scmp.eq.s32.totalorder %s118, 0
      %s121 = sadd.s32 %s120, 1
      %s122 = scalar_select %p119, %s120, %s121
      %p125 = pneg %p119
      %p126 = scmp.eq.s32.totalorder %s21, 3
      %p127 = por %p125, %p126
      %p128 = scmp.ne.s32.totalorder %s120, %s123
      %p129 = scmp.eq.s32.totalorder %s21, 0
      %p130 = por %p128, %p129
      %p131 = scmp.ne.s32.totalorder %s120, %s123
      %p132 = scmp.eq.s32.totalorder %s26, 3
      %p133 = por %p131, %p132
      %p134 = scmp.ne.s32.totalorder %s123, %s124
      %p135 = scmp.eq.s32.totalorder %s26, 0
      %p136 = por %p134, %p135
      %p137 = scmp.ne.s32.totalorder %s123, %s124
      %p138 = scmp.eq.s32.totalorder %s27, 3
      %p139 = por %p137, %p138
      %p141 = scmp.ne.s32.totalorder %s124, %s140
      %p142 = scmp.eq.s32.totalorder %s27, 0
      %p143 = por %p141, %p142
      %s145 = sadd.s32 %s144, 1
      %p148 = scmp.eq.s32.totalorder %s21, 3
      %p149 = scmp.ne.s32.totalorder %s144, %s146
      %p150 = scmp.eq.s32.totalorder %s21, 0
      %p151 = por %p149, %p150
      %p152 = scmp.ne.s32.totalorder %s144, %s146
      %p153 = scmp.eq.s32.totalorder %s26, 3
      %p154 = por %p152, %p153
      %p155 = scmp.ne.s32.totalorder %s146, %s147
      %p156 = scmp.eq.s32.totalorder %s26, 0
      %p157 = por %p155, %p156
      %p158 = scmp.ne.s32.totalorder %s146, %s147
      %p159 = scmp.eq.s32.totalorder %s27, 3
      %p160 = por %p158, %p159
      %p162 = scmp.ne.s32.totalorder %s147, %s161
      %p163 = scmp.eq.s32.totalorder %s27, 0
      %p164 = por %p162, %p163
      %s166 = sadd.s32 %s165, 1
      %p169 = scmp.eq.s32.totalorder %s21, 3
      %p170 = scmp.ne.s32.totalorder %s165, %s167
      %p171 = scmp.eq.s32.totalorder %s21, 0
      %p172 = por %p170, %p171
      %p173 = scmp.ne.s32.totalorder %s165, %s167
      %p174 = scmp.eq.s32.totalorder %s26, 3
      %p175 = por %p173, %p174
      %p176 = scmp.ne.s32.totalorder %s167, %s168
      %p177 = scmp.eq.s32.totalorder %s26, 0
      %p178 = por %p176, %p177
      %p179 = scmp.ne.s32.totalorder %s167, %s168
      %p180 = scmp.eq.s32.totalorder %s27, 3
      %p181 = por %p179, %p180
      %p183 = scmp.ne.s32.totalorder %s168, %s182
      %p184 = scmp.eq.s32.totalorder %s27, 0
      %p185 = por %p183, %p184
      %s187 = sadd.s32 %s186, 1
      %p190 = scmp.eq.s32.totalorder %s21, 3
      %p191 = scmp.ne.s32.totalorder %s186, %s188
      %p192 = scmp.eq.s32.totalorder %s21, 0
      %p193 = por %p191, %p192
      %p194 = scmp.ne.s32.totalorder %s186, %s188
      %p195 = scmp.eq.s32.totalorder %s26, 3
      %p196 = por %p194, %p195
      %p197 = scmp.ne.s32.totalorder %s188, %s189
      %p198 = scmp.eq.s32.totalorder %s26, 0
      %p199 = por %p197, %p198
      %p200 = scmp.ne.s32.totalorder %s188, %s189
      %p201 = scmp.eq.s32.totalorder %s27, 3
      %p202 = por %p200, %p201
      %p204 = scmp.ne.s32.totalorder %s189, %s203
      %p205 = scmp.eq.s32.totalorder %s27, 0
      %p206 = por %p204, %p205
      %s208 = sadd.s32 %s207, 1
      %p211 = scmp.eq.s32.totalorder %s21, 3
      %p212 = scmp.ne.s32.totalorder %s207, %s209
      %p213 = scmp.eq.s32.totalorder %s21, 0
      %p214 = por %p212, %p213
      %p215 = scmp.ne.s32.totalorder %s207, %s209
      %p216 = scmp.eq.s32.totalorder %s26, 3
      %p217 = por %p215, %p216
      %p218 = scmp.ne.s32.totalorder %s209, %s210
      %p219 = scmp.eq.s32.totalorder %s26, 0
      %p220 = por %p218, %p219
      %p221 = scmp.ne.s32.totalorder %s209, %s210
      %p222 = scmp.eq.s32.totalorder %s27, 3
      %p223 = por %p221, %p222
      %p225 = scmp.ne.s32.totalorder %s210, %s224
      %p226 = scmp.eq.s32.totalorder %s27, 0
      %p227 = por %p225, %p226
      %s229 = sadd.s32 %s228, 1
      %p232 = scmp.eq.s32.totalorder %s21, 3
      %p233 = scmp.ne.s32.totalorder %s228, %s230
      %p234 = scmp.eq.s32.totalorder %s21, 0
      %p235 = por %p233, %p234
      %p236 = scmp.ne.s32.totalorder %s228, %s230
      %p237 = scmp.eq.s32.totalorder %s26, 3
      %p238 = por %p236, %p237
      %p239 = scmp.ne.s32.totalorder %s230, %s231
      %p240 = scmp.eq.s32.totalorder %s26, 0
      %p241 = por %p239, %p240
      %p242 = scmp.ne.s32.totalorder %s230, %s231
      %p243 = scmp.eq.s32.totalorder %s27, 3
      %p244 = por %p242, %p243
      %p246 = scmp.ne.s32.totalorder %s231, %s245
      %p247 = scmp.eq.s32.totalorder %s27, 0
      %p248 = por %p246, %p247
      %p249 = scmp.le.s32.totalorder 1, %s21
      %p250 = scmp.lt.s32.totalorder %s21, 5
      %p251 = pnand %p249, %p250
      %p252 = pneg %p251
      // Predicated region
      $region9: #{lstm_spatial_forward.1} parent=5 // pred_check
        _
      $region10: #{lstm_spatial_forward.1} parent=5 // pred_check_branch
        %254 = sbr.rel (%p251) target = $region12
      $region11: #{lstm_spatial_forward.1} parent=5 // pred_region
        %s255 = ssub.s32 %s21, 1
        // Predicated region
        $region13: #{lstm_spatial_forward.1} parent=11 // pred_check
          %p256 = pneg %p42
        $region14: #{lstm_spatial_forward.1} parent=11 // pred_check_branch
          %258 = sbr.rel (%p256) target = $region16
        $region15: #{lstm_spatial_forward.1} parent=11 // pred_region
          _
        $region16: #{lstm_spatial_forward.1} parent=11 // pred_fallthru
          _
        // Predicated region
        $region17: #{lstm_spatial_forward.1} parent=11 // pred_check
          %p259 = pneg %p63
        $region18: #{lstm_spatial_forward.1} parent=11 // pred_check_branch
          %261 = sbr.rel (%p259) target = $region20
        $region19: #{lstm_spatial_forward.1} parent=11 // pred_region
          %s263 = ssub.s32 512, 512
          %264 = vsyncadd [#allocation4], %s263
          %s266 = sshll.u32 [#allocation3], 4
          %s267 = int_to_ptr.vmem [resolvable:$true] %s266
          %269 = dma.hbm_to_vmem [thread:$0]  %s1, 512, %s267, [#allocation4]
        $region20: #{lstm_spatial_forward.1} parent=11 // pred_fallthru
          _
        // Predicated region
        $region21: #{lstm_spatial_forward.1} parent=11 // pred_check
          %p270 = pneg %p84
        $region22: #{lstm_spatial_forward.1} parent=11 // pred_check_branch
          %272 = sbr.rel (%p270) target = $region24
        $region23: #{lstm_spatial_forward.1} parent=11 // pred_region
          %s274 = ssub.s32 16384, 16384
          %275 = vsyncadd [#allocation7], %s274
          %s276 = sshll.u32 [#allocation6], 4
          %s277 = int_to_ptr.vmem [resolvable:$true] %s276
          %282 = dma.hbm_to_vmem [thread:$0]  %s2, 16384, %s277, [#allocation7], 256, 256, 16
        $region24: #{lstm_spatial_forward.1} parent=11 // pred_fallthru
          _
        // Predicated region
        $region25: #{lstm_spatial_forward.1} parent=11 // pred_check
          %p283 = pneg %p157
        $region26: #{lstm_spatial_forward.1} parent=11 // pred_check_branch
          %285 = sbr.rel (%p283) target = $region28
        $region27: #{lstm_spatial_forward.1} parent=11 // pred_region
          %s287 = ssub.s32 16384, 16384
          %288 = vsyncadd [#allocation7], %s287
          %s289 = sshll.u32 [#allocation10], 4
          %s290 = int_to_ptr.vmem [resolvable:$true] %s289
          %295 = dma.hbm_to_vmem [thread:$0]  %s5, 16384, %s290, [#allocation7], 256, 256, 16
        $region28: #{lstm_spatial_forward.1} parent=11 // pred_fallthru
          _
        // Predicated region
        $region29: #{lstm_spatial_forward.1} parent=11 // pred_check
          %p296 = pneg %p178
        $region30: #{lstm_spatial_forward.1} parent=11 // pred_check_branch
          %298 = sbr.rel (%p296) target = $region32
        $region31: #{lstm_spatial_forward.1} parent=11 // pred_region
          %s300 = ssub.s32 64, 64
          %301 = vsyncadd [#allocation12], %s300
          %s303 = sshll.u32 [#allocation11], 4
          %s304 = int_to_ptr.vmem [resolvable:$true] %s303
          %306 = dma.hbm_to_vmem [thread:$0]  %s6, 64, %s304, [#allocation12]
        $region32: #{lstm_spatial_forward.1} parent=11 // pred_fallthru
          _
        // Predicated region
        $region33: #{lstm_spatial_forward.1} parent=11 // pred_check
          %p307 = pneg %p199
        $region34: #{lstm_spatial_forward.1} parent=11 // pred_check_branch
          %309 = sbr.rel (%p307) target = $region36
        $region35: #{lstm_spatial_forward.1} parent=11 // pred_region
          _
        $region36: #{lstm_spatial_forward.1} parent=11 // pred_fallthru
          _
      $region12: #{lstm_spatial_forward.1} parent=5 // pred_fallthru
        _
      %p310 = scmp.lt.s32.totalorder %s21, 4
      // Predicated region
      $region37: #{lstm_spatial_forward.1} parent=5 // pred_check
        %p311 = pneg %p310
      $region38: #{lstm_spatial_forward.1} parent=5 // pred_check_branch
        %313 = sbr.rel (%p311) target = $region40
      $region39: #{lstm_spatial_forward.1} parent=5 // pred_region
        // Predicated region
        $region41: #{lstm_spatial_forward.1} parent=39 // pred_check
          %p314 = pneg %p104
        $region42: #{lstm_spatial_forward.1} parent=39 // pred_check_branch
          %316 = sbr.rel (%p314) target = $region44
        $region43: #{lstm_spatial_forward.1} parent=39 // pred_region
          %s317 = sand.u32 %s21, 1
          %s318 = scalar_lea.sflag [#allocation4], %s317
          %s319 = sand.u32 %s94, 1
          %s320 = smul.addr %s319, 1088
          %s321 = scalar_lea.vmem [#allocation8], %s320
          %s322 = smul.u32 4, %s21
          %s324 = ssub.s32 17408, 17408
          %325 = vsyncadd %s318, %s324
          %s326 = smul.addr %s322, 64
          %s327 = scalar_lea.hbm %s3, %s326
          %s328 = sshll.u32 %s321, 4
          %s329 = int_to_ptr.vmem [resolvable:$true] %s328
          %334 = dma.hbm_to_vmem [thread:$0]  %s327, 17408, %s329, %s318, 1024, 256, 16
        $region44: #{lstm_spatial_forward.1} parent=39 // pred_fallthru
          _
        // Predicated region
        $region45: #{lstm_spatial_forward.1} parent=39 // pred_check
          %p335 = pneg %p130
        $region46: #{lstm_spatial_forward.1} parent=39 // pred_check_branch
          %337 = sbr.rel (%p335) target = $region48
        $region47: #{lstm_spatial_forward.1} parent=39 // pred_region
          %s338 = sand.u32 %s21, 1
          %s339 = scalar_lea.sflag [#allocation4], %s338
          %s340 = sand.u32 %s120, 1
          %s341 = smul.addr %s340, 4
          %s342 = scalar_lea.vmem [#allocation9], %s341
          %s343 = smul.u32 4, %s21
          %s345 = ssub.s32 64, 64
          %346 = vsyncadd %s339, %s345
          %s347 = smul.addr %s343, 16
          %s348 = scalar_lea.hbm %s4, %s347
          %s350 = sshll.u32 %s342, 4
          %s351 = int_to_ptr.vmem [resolvable:$true] %s350
          %353 = dma.hbm_to_vmem [thread:$0]  %s348, 64, %s351, %s339
        $region48: #{lstm_spatial_forward.1} parent=39 // pred_fallthru
          _
      $region40: #{lstm_spatial_forward.1} parent=5 // pred_fallthru
        _
      %p354 = scmp.le.s32.totalorder 1, %s21
      %p355 = scmp.lt.s32.totalorder %s21, 5
      %p356 = pnand %p354, %p355
      %p357 = pneg %p356
      // Predicated region
      $region49: #{lstm_spatial_forward.1} parent=5 // pred_check
        _
      $region50: #{lstm_spatial_forward.1} parent=5 // pred_check_branch
        %359 = sbr.rel (%p356) target = $region52
      $region51: #{lstm_spatial_forward.1} parent=5 // pred_region
        %s360 = ssub.s32 %s21, 1
        // Predicated region
        $region53: #{lstm_spatial_forward.1} parent=51 // pred_check
          %p361 = pneg %p63
        $region54: #{lstm_spatial_forward.1} parent=51 // pred_check_branch
          %363 = sbr.rel (%p361) target = $region56
        $region55: #{lstm_spatial_forward.1} parent=51 // pred_region
          %364 = dma.done [#allocation4], 512
        $region56: #{lstm_spatial_forward.1} parent=51 // pred_fallthru
          _
        // Predicated region
        $region57: #{lstm_spatial_forward.1} parent=51 // pred_check
          %p365 = pneg %p84
        $region58: #{lstm_spatial_forward.1} parent=51 // pred_check_branch
          %367 = sbr.rel (%p365) target = $region60
        $region59: #{lstm_spatial_forward.1} parent=51 // pred_region
          %368 = dma.done [#allocation7], 16384
        $region60: #{lstm_spatial_forward.1} parent=51 // pred_fallthru
          _
        %s369 = sand.u32 %s26, 1
        %s370 = scalar_lea.sflag [#allocation4], %s369
        %s371 = sand.u32 %s97, 1
        %s372 = smul.addr %s371, 1088
        %s373 = scalar_lea.vmem [#allocation8], %s372
        // Predicated region
        $region61: #{lstm_spatial_forward.1} parent=51 // pred_check
          %p374 = pneg %p110
        $region62: #{lstm_spatial_forward.1} parent=51 // pred_check_branch
          %376 = sbr.rel (%p374) target = $region64
        $region63: #{lstm_spatial_forward.1} parent=51 // pred_region
          %377 = dma.done %s370, 17408
        $region64: #{lstm_spatial_forward.1} parent=51 // pred_fallthru
          _
        %s378 = sand.u32 %s26, 1
        %s379 = scalar_lea.sflag [#allocation4], %s378
        %s380 = sand.u32 %s123, 1
        %s381 = smul.addr %s380, 4
        %s382 = scalar_lea.vmem [#allocation9], %s381
        // Predicated region
        $region65: #{lstm_spatial_forward.1} parent=51 // pred_check
          %p383 = pneg %p136
        $region66: #{lstm_spatial_forward.1} parent=51 // pred_check_branch
          %385 = sbr.rel (%p383) target = $region68
        $region67: #{lstm_spatial_forward.1} parent=51 // pred_region
          %386 = dma.done %s379, 64
        $region68: #{lstm_spatial_forward.1} parent=51 // pred_fallthru
          _
        // Predicated region
        $region69: #{lstm_spatial_forward.1} parent=51 // pred_check
          %p387 = pneg %p157
        $region70: #{lstm_spatial_forward.1} parent=51 // pred_check_branch
          %389 = sbr.rel (%p387) target = $region72
        $region71: #{lstm_spatial_forward.1} parent=51 // pred_region
          %390 = dma.done [#allocation7], 16384
        $region72: #{lstm_spatial_forward.1} parent=51 // pred_fallthru
          _
        // Predicated region
        $region73: #{lstm_spatial_forward.1} parent=51 // pred_check
          %p391 = pneg %p178
        $region74: #{lstm_spatial_forward.1} parent=51 // pred_check_branch
          %393 = sbr.rel (%p391) target = $region76
        $region75: #{lstm_spatial_forward.1} parent=51 // pred_region
          %394 = dma.done [#allocation12], 64
        $region76: #{lstm_spatial_forward.1} parent=51 // pred_fallthru
          _
        %p395 = pneg %p42
        %p396 = pneg %p39
        %p397 = pneg %p63
        %p398 = pneg %p60
        %p399 = pneg %p84
        %p400 = pneg %p81
        %s401 = sand.u32 %s26, 1
        %s402 = scalar_lea.sflag [#allocation4], %s401
        %s403 = sand.u32 %s97, 1
        %s404 = smul.addr %s403, 1088
        %s405 = scalar_lea.vmem [#allocation8], %s404
        %p406 = pneg %p110
        %p407 = pneg %p107
        %s408 = sand.u32 %s26, 1
        %s409 = scalar_lea.sflag [#allocation4], %s408
        %s410 = sand.u32 %s123, 1
        %s411 = smul.addr %s410, 4
        %s412 = scalar_lea.vmem [#allocation9], %s411
        %p413 = pneg %p136
        %p414 = pneg %p133
        %p415 = pneg %p157
        %p416 = pneg %p154
        %p417 = pneg %p178
        %p418 = pneg %p175
        %p419 = pneg %p199
        %p420 = pneg %p196
        %p421 = pneg %p220
        %p422 = pneg %p217
        %p423 = pneg %p241
        %p424 = pneg %p238
        %s425 = smul.u32 4, %s26
        %s426 = smul.u32 4, %s26
        %v428 = vld [vmem:[%s0] sm:$0xff]
        %v429 = vld [vmem:[%s0 + $0x8] sm:$0xff]
        %v430 = vld [vmem:[%s0 + $0x10] sm:$0xf]
        %v431 = vld [vmem:[%s373] sm:$0xff]
        %v432 = vld [vmem:[%s373 + $0x8] sm:$0xff]
        %v433 = vld [vmem:[%s373 + $0x10] sm:$0xff]
        %v434 = vld [vmem:[%s373 + $0x18] sm:$0xff]
        %v435 = vld [vmem:[%s373 + $0x20] sm:$0xff]
        %v436 = vld [vmem:[%s373 + $0x28] sm:$0xff]
        %v437 = vld [vmem:[%s373 + $0x30] sm:$0xff]
        %v438 = vld [vmem:[%s373 + $0x38] sm:$0xff]
        %v439 = vld [vmem:[%s373 + $0x40] sm:$0xff]
        %v440 = vld [vmem:[%s373 + $0x48] sm:$0xff]
        %v441 = vld [vmem:[%s373 + $0x50] sm:$0xff]
        %v442 = vld [vmem:[%s373 + $0x58] sm:$0xff]
        %v443 = vld [vmem:[%s373 + $0x60] sm:$0xff]
        %v444 = vld [vmem:[%s373 + $0x68] sm:$0xff]
        %v445 = vld [vmem:[%s373 + $0x70] sm:$0xff]
        %v446 = vld [vmem:[%s373 + $0x78] sm:$0xff]
        %v447 = vld [vmem:[%s373 + $0x80] sm:$0xff]
        %v448 = vld [vmem:[%s373 + $0x88] sm:$0xff]
        %v449 = vld [vmem:[%s373 + $0x90] sm:$0xff]
        %v450 = vld [vmem:[%s373 + $0x98] sm:$0xff]
        %v451 = vld [vmem:[%s373 + $0xa0] sm:$0xff]
        %v452 = vld [vmem:[%s373 + $0xa8] sm:$0xff]
        %v453 = vld [vmem:[%s373 + $0xb0] sm:$0xff]
        %v454 = vld [vmem:[%s373 + $0xb8] sm:$0xff]
        %v455 = vld [vmem:[%s373 + $0xc0] sm:$0xff]
        %v456 = vld [vmem:[%s373 + $0xc8] sm:$0xff]
        %v457 = vld [vmem:[%s373 + $0xd0] sm:$0xff]
        %v458 = vld [vmem:[%s373 + $0xd8] sm:$0xff]
        %v459 = vld [vmem:[%s373 + $0xe0] sm:$0xff]
        %v460 = vld [vmem:[%s373 + $0xe8] sm:$0xff]
        %v461 = vld [vmem:[%s373 + $0xf0] sm:$0xff]
        %v462 = vld [vmem:[%s373 + $0xf8] sm:$0xff]
        %v463 = vld [vmem:[%s373 + $0x100] sm:$0xff]
        %v464 = vld [vmem:[%s373 + $0x108] sm:$0xff]
        %v465 = vld [vmem:[%s373 + $0x110] sm:$0xff]
        %v466 = vld [vmem:[%s373 + $0x118] sm:$0xff]
        %v467 = vld [vmem:[%s373 + $0x120] sm:$0xff]
        %v468 = vld [vmem:[%s373 + $0x128] sm:$0xff]
        %v469 = vld [vmem:[%s373 + $0x130] sm:$0xff]
        %v470 = vld [vmem:[%s373 + $0x138] sm:$0xff]
        %v471 = vld [vmem:[%s373 + $0x140] sm:$0xff]
        %v472 = vld [vmem:[%s373 + $0x148] sm:$0xff]
        %v473 = vld [vmem:[%s373 + $0x150] sm:$0xff]
        %v474 = vld [vmem:[%s373 + $0x158] sm:$0xff]
        %v475 = vld [vmem:[%s373 + $0x160] sm:$0xff]
        %v476 = vld [vmem:[%s373 + $0x168] sm:$0xff]
        %v477 = vld [vmem:[%s373 + $0x170] sm:$0xff]
        %v478 = vld [vmem:[%s373 + $0x178] sm:$0xff]
        %v479 = vld [vmem:[%s373 + $0x180] sm:$0xff]
        %v480 = vld [vmem:[%s373 + $0x188] sm:$0xff]
        %v481 = vld [vmem:[%s373 + $0x190] sm:$0xff]
        %v482 = vld [vmem:[%s373 + $0x198] sm:$0xff]
        %v483 = vld [vmem:[%s373 + $0x1a0] sm:$0xff]
        %v484 = vld [vmem:[%s373 + $0x1a8] sm:$0xff]
        %v485 = vld [vmem:[%s373 + $0x1b0] sm:$0xff]
        %v486 = vld [vmem:[%s373 + $0x1b8] sm:$0xff]
        %v487 = vld [vmem:[%s373 + $0x1c0] sm:$0xff]
        %v488 = vld [vmem:[%s373 + $0x1c8] sm:$0xff]
        %v489 = vld [vmem:[%s373 + $0x1d0] sm:$0xff]
        %v490 = vld [vmem:[%s373 + $0x1d8] sm:$0xff]
        %v491 = vld [vmem:[%s373 + $0x1e0] sm:$0xff]
        %v492 = vld [vmem:[%s373 + $0x1e8] sm:$0xff]
        %v493 = vld [vmem:[%s373 + $0x1f0] sm:$0xff]
        %v494 = vld [vmem:[%s373 + $0x1f8] sm:$0xff]
        %v495 = vld [vmem:[%s373 + $0x200] sm:$0xff]
        %v496 = vld [vmem:[%s373 + $0x208] sm:$0xff]
        %v497 = vld [vmem:[%s373 + $0x210] sm:$0xff]
        %v498 = vld [vmem:[%s373 + $0x218] sm:$0xff]
        %v499 = vld [vmem:[%s373 + $0x220] sm:$0xff]
        %v500 = vld [vmem:[%s373 + $0x228] sm:$0xff]
        %v501 = vld [vmem:[%s373 + $0x230] sm:$0xff]
        %v502 = vld [vmem:[%s373 + $0x238] sm:$0xff]
        %v503 = vld [vmem:[%s373 + $0x240] sm:$0xff]
        %v504 = vld [vmem:[%s373 + $0x248] sm:$0xff]
        %v505 = vld [vmem:[%s373 + $0x250] sm:$0xff]
        %v506 = vld [vmem:[%s373 + $0x258] sm:$0xff]
        %v507 = vld [vmem:[%s373 + $0x260] sm:$0xff]
        %v508 = vld [vmem:[%s373 + $0x268] sm:$0xff]
        %v509 = vld [vmem:[%s373 + $0x270] sm:$0xff]
        %v510 = vld [vmem:[%s373 + $0x278] sm:$0xff]
        %v511 = vld [vmem:[%s373 + $0x280] sm:$0xff]
        %v512 = vld [vmem:[%s373 + $0x288] sm:$0xff]
        %v513 = vld [vmem:[%s373 + $0x290] sm:$0xff]
        %v514 = vld [vmem:[%s373 + $0x298] sm:$0xff]
        %v515 = vld [vmem:[%s373 + $0x2a0] sm:$0xff]
        %v516 = vld [vmem:[%s373 + $0x2a8] sm:$0xff]
        %v517 = vld [vmem:[%s373 + $0x2b0] sm:$0xff]
        %v518 = vld [vmem:[%s373 + $0x2b8] sm:$0xff]
        %v519 = vld [vmem:[%s373 + $0x2c0] sm:$0xff]
        %v520 = vld [vmem:[%s373 + $0x2c8] sm:$0xff]
        %v521 = vld [vmem:[%s373 + $0x2d0] sm:$0xff]
        %v522 = vld [vmem:[%s373 + $0x2d8] sm:$0xff]
        %v523 = vld [vmem:[%s373 + $0x2e0] sm:$0xff]
        %v524 = vld [vmem:[%s373 + $0x2e8] sm:$0xff]
        %v525 = vld [vmem:[%s373 + $0x2f0] sm:$0xff]
        %v526 = vld [vmem:[%s373 + $0x2f8] sm:$0xff]
        %v527 = vld [vmem:[%s373 + $0x300] sm:$0xff]
        %v528 = vld [vmem:[%s373 + $0x308] sm:$0xff]
        %v529 = vld [vmem:[%s373 + $0x310] sm:$0xff]
        %v530 = vld [vmem:[%s373 + $0x318] sm:$0xff]
        %v531 = vld [vmem:[%s373 + $0x320] sm:$0xff]
        %v532 = vld [vmem:[%s373 + $0x328] sm:$0xff]
        %v533 = vld [vmem:[%s373 + $0x330] sm:$0xff]
        %v534 = vld [vmem:[%s373 + $0x338] sm:$0xff]
        %v535 = vld [vmem:[%s373 + $0x340] sm:$0xff]
        %v536 = vld [vmem:[%s373 + $0x348] sm:$0xff]
        %v537 = vld [vmem:[%s373 + $0x350] sm:$0xff]
        %v538 = vld [vmem:[%s373 + $0x358] sm:$0xff]
        %v539 = vld [vmem:[%s373 + $0x360] sm:$0xff]
        %v540 = vld [vmem:[%s373 + $0x368] sm:$0xff]
        %v541 = vld [vmem:[%s373 + $0x370] sm:$0xff]
        %v542 = vld [vmem:[%s373 + $0x378] sm:$0xff]
        %v543 = vld [vmem:[%s373 + $0x380] sm:$0xff]
        %v544 = vld [vmem:[%s373 + $0x388] sm:$0xff]
        %v545 = vld [vmem:[%s373 + $0x390] sm:$0xff]
        %v546 = vld [vmem:[%s373 + $0x398] sm:$0xff]
        %v547 = vld [vmem:[%s373 + $0x3a0] sm:$0xff]
        %v548 = vld [vmem:[%s373 + $0x3a8] sm:$0xff]
        %v549 = vld [vmem:[%s373 + $0x3b0] sm:$0xff]
        %v550 = vld [vmem:[%s373 + $0x3b8] sm:$0xff]
        %v551 = vld [vmem:[%s373 + $0x3c0] sm:$0xff]
        %v552 = vld [vmem:[%s373 + $0x3c8] sm:$0xff]
        %v553 = vld [vmem:[%s373 + $0x3d0] sm:$0xff]
        %v554 = vld [vmem:[%s373 + $0x3d8] sm:$0xff]
        %v555 = vld [vmem:[%s373 + $0x3e0] sm:$0xff]
        %v556 = vld [vmem:[%s373 + $0x3e8] sm:$0xff]
        %v557 = vld [vmem:[%s373 + $0x3f0] sm:$0xff]
        %v558 = vld [vmem:[%s373 + $0x3f8] sm:$0xff]
        %v559 = vld [vmem:[%s373 + $0x400] sm:$0xff]
        %v560 = vld [vmem:[%s373 + $0x408] sm:$0xff]
        %v561 = vld [vmem:[%s373 + $0x410] sm:$0xff]
        %v562 = vld [vmem:[%s373 + $0x418] sm:$0xff]
        %v563 = vld [vmem:[%s373 + $0x420] sm:$0xff]
        %v564 = vld [vmem:[%s373 + $0x428] sm:$0xff]
        %v565 = vld [vmem:[%s373 + $0x430] sm:$0xff]
        %v566 = vld [vmem:[%s373 + $0x438] sm:$0xff]
        %v567 = vld [vmem:[%s382] sm:$0xf]
        %v569 = vlaneseq
        %v570 = vshrl.u32 %v569, 7
        %v571 = vsub.s32 0, %v570
        %v572 = vrot.slane %v567, %v571
        %v573 = vlaneseq
        %v574 = vshrl.u32 %v573, 7
        %v575 = vsub.s32 1, %v574
        %v576 = vrot.slane %v567, %v575
        %v577 = vlaneseq
        %v578 = vshrl.u32 %v577, 7
        %v579 = vsub.s32 2, %v578
        %v580 = vrot.slane %v567, %v579
        %v581 = vlaneseq
        %v582 = vshrl.u32 %v581, 7
        %v583 = vsub.s32 3, %v582
        %v584 = vrot.slane %v567, %v583
        %v592 = vunpack.c.l.b16 %v428
        %v593 = vunpack.c.h.b16 %v428
        %v594 = vunpack.c.l.b16 %v429
        %v595 = vunpack.c.h.b16 %v429
        %v596 = vunpack.c.l.b16 %v430
        %v597 = vpack.c.b16 %v592, %v592
        %v598 = vpack.c.b16 %v593, %v593
        %v599 = vpack.c.b16 %v594, %v594
        %v600 = vpack.c.b16 %v595, %v595
        %v601 = vpack.c.b16 %v596, %v596
        %v742 = vunpack.c.l.b16 %v431
        %v743 = vunpack.c.h.b16 %v431
        %v744 = vunpack.c.l.b16 %v432
        %v745 = vunpack.c.h.b16 %v432
        %v746 = vunpack.c.l.b16 %v433
        %v747 = vunpack.c.h.b16 %v433
        %v748 = vunpack.c.l.b16 %v434
        %v749 = vunpack.c.h.b16 %v434
        %v750 = vunpack.c.l.b16 %v435
        %v751 = vunpack.c.h.b16 %v435
        %v752 = vunpack.c.l.b16 %v436
        %v753 = vunpack.c.h.b16 %v436
        %v754 = vunpack.c.l.b16 %v437
        %v755 = vunpack.c.h.b16 %v437
        %v756 = vunpack.c.l.b16 %v438
        %v757 = vunpack.c.h.b16 %v438
        %v758 = vunpack.c.l.b16 %v439
        %v759 = vunpack.c.h.b16 %v439
        %v760 = vunpack.c.l.b16 %v440
        %v761 = vunpack.c.h.b16 %v440
        %v762 = vunpack.c.l.b16 %v441
        %v763 = vunpack.c.h.b16 %v441
        %v764 = vunpack.c.l.b16 %v442
        %v765 = vunpack.c.h.b16 %v442
        %v766 = vunpack.c.l.b16 %v443
        %v767 = vunpack.c.h.b16 %v443
        %v768 = vunpack.c.l.b16 %v444
        %v769 = vunpack.c.h.b16 %v444
        %v770 = vunpack.c.l.b16 %v445
        %v771 = vunpack.c.h.b16 %v445
        %v772 = vunpack.c.l.b16 %v446
        %v773 = vunpack.c.h.b16 %v446
        %v774 = vunpack.c.l.b16 %v447
        %v775 = vunpack.c.h.b16 %v447
        %v776 = vunpack.c.l.b16 %v448
        %v777 = vunpack.c.h.b16 %v448
        %v778 = vunpack.c.l.b16 %v449
        %v779 = vunpack.c.h.b16 %v449
        %v780 = vunpack.c.l.b16 %v450
        %v781 = vunpack.c.h.b16 %v450
        %v782 = vunpack.c.l.b16 %v451
        %v783 = vunpack.c.h.b16 %v451
        %v784 = vunpack.c.l.b16 %v452
        %v785 = vunpack.c.h.b16 %v452
        %v786 = vunpack.c.l.b16 %v453
        %v787 = vunpack.c.h.b16 %v453
        %v788 = vunpack.c.l.b16 %v454
        %v789 = vunpack.c.h.b16 %v454
        %v790 = vunpack.c.l.b16 %v455
        %v791 = vunpack.c.h.b16 %v455
        %v792 = vunpack.c.l.b16 %v456
        %v793 = vunpack.c.h.b16 %v456
        %v794 = vunpack.c.l.b16 %v457
        %v795 = vunpack.c.h.b16 %v457
        %v796 = vunpack.c.l.b16 %v458
        %v797 = vunpack.c.h.b16 %v458
        %v798 = vunpack.c.l.b16 %v459
        %v799 = vunpack.c.h.b16 %v459
        %v800 = vunpack.c.l.b16 %v460
        %v801 = vunpack.c.h.b16 %v460
        %v802 = vunpack.c.l.b16 %v461
        %v803 = vunpack.c.h.b16 %v461
        %v804 = vunpack.c.l.b16 %v462
        %v805 = vunpack.c.h.b16 %v462
        %v806 = vunpack.c.l.b16 %v463
        %v807 = vunpack.c.h.b16 %v463
        %v808 = vunpack.c.l.b16 %v464
        %v809 = vunpack.c.h.b16 %v464
        %v810 = vunpack.c.l.b16 %v465
        %v811 = vunpack.c.h.b16 %v465
        %v812 = vunpack.c.l.b16 %v466
        %v813 = vunpack.c.h.b16 %v466
        %v814 = vunpack.c.l.b16 %v467
        %v815 = vunpack.c.h.b16 %v467
        %v816 = vunpack.c.l.b16 %v468
        %v817 = vunpack.c.h.b16 %v468
        %v818 = vunpack.c.l.b16 %v469
        %v819 = vunpack.c.h.b16 %v469
        %v820 = vunpack.c.l.b16 %v470
        %v821 = vunpack.c.h.b16 %v470
        %v822 = vunpack.c.l.b16 %v471
        %v823 = vunpack.c.h.b16 %v471
        %v824 = vunpack.c.l.b16 %v472
        %v825 = vunpack.c.h.b16 %v472
        %v826 = vunpack.c.l.b16 %v473
        %v827 = vunpack.c.h.b16 %v473
        %v828 = vunpack.c.l.b16 %v474
        %v829 = vunpack.c.h.b16 %v474
        %v830 = vunpack.c.l.b16 %v475
        %v831 = vunpack.c.h.b16 %v475
        %v832 = vunpack.c.l.b16 %v476
        %v833 = vunpack.c.h.b16 %v476
        %v834 = vunpack.c.l.b16 %v477
        %v835 = vunpack.c.h.b16 %v477
        %v836 = vunpack.c.l.b16 %v478
        %v837 = vunpack.c.h.b16 %v478
        %v838 = vunpack.c.l.b16 %v479
        %v839 = vunpack.c.h.b16 %v479
        %v840 = vunpack.c.l.b16 %v480
        %v841 = vunpack.c.h.b16 %v480
        %v842 = vunpack.c.l.b16 %v481
        %v843 = vunpack.c.h.b16 %v481
        %v844 = vunpack.c.l.b16 %v482
        %v845 = vunpack.c.h.b16 %v482
        %v846 = vunpack.c.l.b16 %v483
        %v847 = vunpack.c.h.b16 %v483
        %v848 = vunpack.c.l.b16 %v484
        %v849 = vunpack.c.h.b16 %v484
        %v850 = vunpack.c.l.b16 %v485
        %v851 = vunpack.c.h.b16 %v485
        %v852 = vunpack.c.l.b16 %v486
        %v853 = vunpack.c.h.b16 %v486
        %v854 = vunpack.c.l.b16 %v487
        %v855 = vunpack.c.h.b16 %v487
        %v856 = vunpack.c.l.b16 %v488
        %v857 = vunpack.c.h.b16 %v488
        %v858 = vunpack.c.l.b16 %v489
        %v859 = vunpack.c.h.b16 %v489
        %v860 = vunpack.c.l.b16 %v490
        %v861 = vunpack.c.h.b16 %v490
        %v862 = vunpack.c.l.b16 %v491
        %v863 = vunpack.c.h.b16 %v491
        %v864 = vunpack.c.l.b16 %v492
        %v865 = vunpack.c.h.b16 %v492
        %v866 = vunpack.c.l.b16 %v493
        %v867 = vunpack.c.h.b16 %v493
        %v868 = vunpack.c.l.b16 %v494
        %v869 = vunpack.c.h.b16 %v494
        %v870 = vunpack.c.l.b16 %v495
        %v871 = vunpack.c.h.b16 %v495
        %v872 = vunpack.c.l.b16 %v496
        %v873 = vunpack.c.h.b16 %v496
        %v874 = vunpack.c.l.b16 %v497
        %v875 = vunpack.c.h.b16 %v497
        %v876 = vunpack.c.l.b16 %v498
        %v877 = vunpack.c.h.b16 %v498
        %v878 = vunpack.c.l.b16 %v499
        %v879 = vunpack.c.h.b16 %v499
        %v880 = vunpack.c.l.b16 %v500
        %v881 = vunpack.c.h.b16 %v500
        %v882 = vunpack.c.l.b16 %v501
        %v883 = vunpack.c.h.b16 %v501
        %v884 = vunpack.c.l.b16 %v502
        %v885 = vunpack.c.h.b16 %v502
        %v886 = vunpack.c.l.b16 %v503
        %v887 = vunpack.c.h.b16 %v503
        %v888 = vunpack.c.l.b16 %v504
        %v889 = vunpack.c.h.b16 %v504
        %v890 = vunpack.c.l.b16 %v505
        %v891 = vunpack.c.h.b16 %v505
        %v892 = vunpack.c.l.b16 %v506
        %v893 = vunpack.c.h.b16 %v506
        %v894 = vunpack.c.l.b16 %v507
        %v895 = vunpack.c.h.b16 %v507
        %v896 = vunpack.c.l.b16 %v508
        %v897 = vunpack.c.h.b16 %v508
        %v898 = vunpack.c.l.b16 %v509
        %v899 = vunpack.c.h.b16 %v509
        %v900 = vunpack.c.l.b16 %v510
        %v901 = vunpack.c.h.b16 %v510
        %v902 = vunpack.c.l.b16 %v511
        %v903 = vunpack.c.h.b16 %v511
        %v904 = vunpack.c.l.b16 %v512
        %v905 = vunpack.c.h.b16 %v512
        %v906 = vunpack.c.l.b16 %v513
        %v907 = vunpack.c.h.b16 %v513
        %v908 = vunpack.c.l.b16 %v514
        %v909 = vunpack.c.h.b16 %v514
        %v910 = vunpack.c.l.b16 %v515
        %v911 = vunpack.c.h.b16 %v515
        %v912 = vunpack.c.l.b16 %v516
        %v913 = vunpack.c.h.b16 %v516
        %v914 = vunpack.c.l.b16 %v517
        %v915 = vunpack.c.h.b16 %v517
        %v916 = vunpack.c.l.b16 %v518
        %v917 = vunpack.c.h.b16 %v518
        %v918 = vunpack.c.l.b16 %v519
        %v919 = vunpack.c.h.b16 %v519
        %v920 = vunpack.c.l.b16 %v520
        %v921 = vunpack.c.h.b16 %v520
        %v922 = vunpack.c.l.b16 %v521
        %v923 = vunpack.c.h.b16 %v521
        %v924 = vunpack.c.l.b16 %v522
        %v925 = vunpack.c.h.b16 %v522
        %v926 = vunpack.c.l.b16 %v523
        %v927 = vunpack.c.h.b16 %v523
        %v928 = vunpack.c.l.b16 %v524
        %v929 = vunpack.c.h.b16 %v524
        %v930 = vunpack.c.l.b16 %v525
        %v931 = vunpack.c.h.b16 %v525
        %v932 = vunpack.c.l.b16 %v526
        %v933 = vunpack.c.h.b16 %v526
        %v934 = vunpack.c.l.b16 %v527
        %v935 = vunpack.c.h.b16 %v527
        %v936 = vunpack.c.l.b16 %v528
        %v937 = vunpack.c.h.b16 %v528
        %v938 = vunpack.c.l.b16 %v529
        %v939 = vunpack.c.h.b16 %v529
        %v940 = vunpack.c.l.b16 %v530
        %v941 = vunpack.c.h.b16 %v530
        %v942 = vunpack.c.l.b16 %v531
        %v943 = vunpack.c.h.b16 %v531
        %v944 = vunpack.c.l.b16 %v532
        %v945 = vunpack.c.h.b16 %v532
        %v946 = vunpack.c.l.b16 %v533
        %v947 = vunpack.c.h.b16 %v533
        %v948 = vunpack.c.l.b16 %v534
        %v949 = vunpack.c.h.b16 %v534
        %v950 = vunpack.c.l.b16 %v535
        %v951 = vunpack.c.h.b16 %v535
        %v952 = vunpack.c.l.b16 %v536
        %v953 = vunpack.c.h.b16 %v536
        %v954 = vunpack.c.l.b16 %v537
        %v955 = vunpack.c.h.b16 %v537
        %v956 = vunpack.c.l.b16 %v538
        %v957 = vunpack.c.h.b16 %v538
        %v958 = vunpack.c.l.b16 %v539
        %v959 = vunpack.c.h.b16 %v539
        %v960 = vunpack.c.l.b16 %v540
        %v961 = vunpack.c.h.b16 %v540
        %v962 = vunpack.c.l.b16 %v541
        %v963 = vunpack.c.h.b16 %v541
        %v964 = vunpack.c.l.b16 %v542
        %v965 = vunpack.c.h.b16 %v542
        %v966 = vunpack.c.l.b16 %v543
        %v967 = vunpack.c.h.b16 %v543
        %v968 = vunpack.c.l.b16 %v544
        %v969 = vunpack.c.h.b16 %v544
        %v970 = vunpack.c.l.b16 %v545
        %v971 = vunpack.c.h.b16 %v545
        %v972 = vunpack.c.l.b16 %v546
        %v973 = vunpack.c.h.b16 %v546
        %v974 = vunpack.c.l.b16 %v547
        %v975 = vunpack.c.h.b16 %v547
        %v976 = vunpack.c.l.b16 %v548
        %v977 = vunpack.c.h.b16 %v548
        %v978 = vunpack.c.l.b16 %v549
        %v979 = vunpack.c.h.b16 %v549
        %v980 = vunpack.c.l.b16 %v550
        %v981 = vunpack.c.h.b16 %v550
        %v982 = vunpack.c.l.b16 %v551
        %v983 = vunpack.c.h.b16 %v551
        %v984 = vunpack.c.l.b16 %v552
        %v985 = vunpack.c.h.b16 %v552
        %v986 = vunpack.c.l.b16 %v553
        %v987 = vunpack.c.h.b16 %v553
        %v988 = vunpack.c.l.b16 %v554
        %v989 = vunpack.c.h.b16 %v554
        %v990 = vunpack.c.l.b16 %v555
        %v991 = vunpack.c.h.b16 %v555
        %v992 = vunpack.c.l.b16 %v556
        %v993 = vunpack.c.h.b16 %v556
        %v994 = vunpack.c.l.b16 %v557
        %v995 = vunpack.c.h.b16 %v557
        %v996 = vunpack.c.l.b16 %v558
        %v997 = vunpack.c.h.b16 %v558
        %v998 = vunpack.c.l.b16 %v559
        %v999 = vunpack.c.h.b16 %v559
        %v1000 = vunpack.c.l.b16 %v560
        %v1001 = vunpack.c.h.b16 %v560
        %v1002 = vunpack.c.l.b16 %v561
        %v1003 = vunpack.c.h.b16 %v561
        %v1004 = vunpack.c.l.b16 %v562
        %v1005 = vunpack.c.h.b16 %v562
        %v1006 = vunpack.c.l.b16 %v563
        %v1007 = vunpack.c.h.b16 %v563
        %v1008 = vunpack.c.l.b16 %v564
        %v1009 = vunpack.c.h.b16 %v564
        %v1010 = vunpack.c.l.b16 %v565
        %v1011 = vunpack.c.h.b16 %v565
        %v1012 = vunpack.c.l.b16 %v566
        %v1013 = vunpack.c.h.b16 %v566
        %v1014 = vpack.c.b16 %v746, %v742
        %v1015 = vpack.c.b16 %v747, %v743
        %v1016 = vpack.c.b16 %v748, %v744
        %v1017 = vpack.c.b16 %v749, %v745
        %v1018 = vpack.c.b16 %v754, %v750
        %v1019 = vpack.c.b16 %v755, %v751
        %v1020 = vpack.c.b16 %v756, %v752
        %v1021 = vpack.c.b16 %v757, %v753
        %v1022 = vpack.c.b16 %v762, %v758
        %v1023 = vpack.c.b16 %v763, %v759
        %v1024 = vpack.c.b16 %v764, %v760
        %v1025 = vpack.c.b16 %v765, %v761
        %v1026 = vpack.c.b16 %v770, %v766
        %v1027 = vpack.c.b16 %v771, %v767
        %v1028 = vpack.c.b16 %v772, %v768
        %v1029 = vpack.c.b16 %v773, %v769
        %v1030 = vpack.c.b16 %v778, %v774
        %v1031 = vpack.c.b16 %v779, %v775
        %v1032 = vpack.c.b16 %v780, %v776
        %v1033 = vpack.c.b16 %v781, %v777
        %v1034 = vpack.c.b16 %v786, %v782
        %v1035 = vpack.c.b16 %v787, %v783
        %v1036 = vpack.c.b16 %v788, %v784
        %v1037 = vpack.c.b16 %v789, %v785
        %v1038 = vpack.c.b16 %v794, %v790
        %v1039 = vpack.c.b16 %v795, %v791
        %v1040 = vpack.c.b16 %v796, %v792
        %v1041 = vpack.c.b16 %v797, %v793
        %v1042 = vpack.c.b16 %v802, %v798
        %v1043 = vpack.c.b16 %v803, %v799
        %v1044 = vpack.c.b16 %v804, %v800
        %v1045 = vpack.c.b16 %v805, %v801
        %v1046 = vpack.c.b16 %v810, %v806
        %v1047 = vpack.c.b16 %v811, %v807
        %v1048 = vpack.c.b16 %v812, %v808
        %v1049 = vpack.c.b16 %v813, %v809
        %v1050 = vpack.c.b16 %v818, %v814
        %v1051 = vpack.c.b16 %v819, %v815
        %v1052 = vpack.c.b16 %v820, %v816
        %v1053 = vpack.c.b16 %v821, %v817
        %v1054 = vpack.c.b16 %v826, %v822
        %v1055 = vpack.c.b16 %v827, %v823
        %v1056 = vpack.c.b16 %v828, %v824
        %v1057 = vpack.c.b16 %v829, %v825
        %v1058 = vpack.c.b16 %v834, %v830
        %v1059 = vpack.c.b16 %v835, %v831
        %v1060 = vpack.c.b16 %v836, %v832
        %v1061 = vpack.c.b16 %v837, %v833
        %v1062 = vpack.c.b16 %v842, %v838
        %v1063 = vpack.c.b16 %v843, %v839
        %v1064 = vpack.c.b16 %v844, %v840
        %v1065 = vpack.c.b16 %v845, %v841
        %v1066 = vpack.c.b16 %v850, %v846
        %v1067 = vpack.c.b16 %v851, %v847
        %v1068 = vpack.c.b16 %v852, %v848
        %v1069 = vpack.c.b16 %v853, %v849
        %v1070 = vpack.c.b16 %v858, %v854
        %v1071 = vpack.c.b16 %v859, %v855
        %v1072 = vpack.c.b16 %v860, %v856
        %v1073 = vpack.c.b16 %v861, %v857
        %v1074 = vpack.c.b16 %v866, %v862
        %v1075 = vpack.c.b16 %v867, %v863
        %v1076 = vpack.c.b16 %v868, %v864
        %v1077 = vpack.c.b16 %v869, %v865
        %v1078 = vpack.c.b16 %v874, %v870
        %v1079 = vpack.c.b16 %v875, %v871
        %v1080 = vpack.c.b16 %v876, %v872
        %v1081 = vpack.c.b16 %v877, %v873
        %v1082 = vpack.c.b16 %v882, %v878
        %v1083 = vpack.c.b16 %v883, %v879
        %v1084 = vpack.c.b16 %v884, %v880
        %v1085 = vpack.c.b16 %v885, %v881
        %v1086 = vpack.c.b16 %v890, %v886
        %v1087 = vpack.c.b16 %v891, %v887
        %v1088 = vpack.c.b16 %v892, %v888
        %v1089 = vpack.c.b16 %v893, %v889
        %v1090 = vpack.c.b16 %v898, %v894
        %v1091 = vpack.c.b16 %v899, %v895
        %v1092 = vpack.c.b16 %v900, %v896
        %v1093 = vpack.c.b16 %v901, %v897
        %v1094 = vpack.c.b16 %v906, %v902
        %v1095 = vpack.c.b16 %v907, %v903
        %v1096 = vpack.c.b16 %v908, %v904
        %v1097 = vpack.c.b16 %v909, %v905
        %v1098 = vpack.c.b16 %v914, %v910
        %v1099 = vpack.c.b16 %v915, %v911
        %v1100 = vpack.c.b16 %v916, %v912
        %v1101 = vpack.c.b16 %v917, %v913
        %v1102 = vpack.c.b16 %v922, %v918
        %v1103 = vpack.c.b16 %v923, %v919
        %v1104 = vpack.c.b16 %v924, %v920
        %v1105 = vpack.c.b16 %v925, %v921
        %v1106 = vpack.c.b16 %v930, %v926
        %v1107 = vpack.c.b16 %v931, %v927
        %v1108 = vpack.c.b16 %v932, %v928
        %v1109 = vpack.c.b16 %v933, %v929
        %v1110 = vpack.c.b16 %v938, %v934
        %v1111 = vpack.c.b16 %v939, %v935
        %v1112 = vpack.c.b16 %v940, %v936
        %v1113 = vpack.c.b16 %v941, %v937
        %v1114 = vpack.c.b16 %v946, %v942
        %v1115 = vpack.c.b16 %v947, %v943
        %v1116 = vpack.c.b16 %v948, %v944
        %v1117 = vpack.c.b16 %v949, %v945
        %v1118 = vpack.c.b16 %v954, %v950
        %v1119 = vpack.c.b16 %v955, %v951
        %v1120 = vpack.c.b16 %v956, %v952
        %v1121 = vpack.c.b16 %v957, %v953
        %v1122 = vpack.c.b16 %v962, %v958
        %v1123 = vpack.c.b16 %v963, %v959
        %v1124 = vpack.c.b16 %v964, %v960
        %v1125 = vpack.c.b16 %v965, %v961
        %v1126 = vpack.c.b16 %v970, %v966
        %v1127 = vpack.c.b16 %v971, %v967
        %v1128 = vpack.c.b16 %v972, %v968
        %v1129 = vpack.c.b16 %v973, %v969
        %v1130 = vpack.c.b16 %v978, %v974
        %v1131 = vpack.c.b16 %v979, %v975
        %v1132 = vpack.c.b16 %v980, %v976
        %v1133 = vpack.c.b16 %v981, %v977
        %v1134 = vpack.c.b16 %v986, %v982
        %v1135 = vpack.c.b16 %v987, %v983
        %v1136 = vpack.c.b16 %v988, %v984
        %v1137 = vpack.c.b16 %v989, %v985
        %v1138 = vpack.c.b16 %v994, %v990
        %v1139 = vpack.c.b16 %v995, %v991
        %v1140 = vpack.c.b16 %v996, %v992
        %v1141 = vpack.c.b16 %v997, %v993
        %v1142 = vpack.c.b16 %v1002, %v998
        %v1143 = vpack.c.b16 %v1003, %v999
        %v1144 = vpack.c.b16 %v1004, %v1000
        %v1145 = vpack.c.b16 %v1005, %v1001
        %v1146 = vpack.c.b16 %v1010, %v1006
        %v1147 = vpack.c.b16 %v1011, %v1007
        %v1148 = vpack.c.b16 %v1012, %v1008
        %v1149 = vpack.c.b16 %v1013, %v1009
        %vm1286 = vcmask 261120
        %v1288 = vsel %vm1286, %v601, 0
        %1290 = vmatprep.subr.bf16.mxu0 %v1015
        %1291 = vmatpush1.bf16.msra.mxu0 %v1014
        %1292 = vmatprep.subr.bf16.mxu0 %v1019
        %1293 = vmatpush1.bf16.msra.mxu0 %v1018
        %1294 = vmatprep.subr.bf16.mxu0 %v1023
        %1295 = vmatpush1.bf16.msra.mxu0 %v1022
        %1296 = vmatprep.subr.bf16.mxu0 %v1027
        %1297 = vmatpush1.bf16.msra.mxu0 %v1026
        %1298 = vmatprep.subr.bf16.mxu0 %v1031
        %1299 = vmatpush1.bf16.msra.mxu0 %v1030
        %1300 = vmatprep.subr.bf16.mxu0 %v1035
        %1301 = vmatpush1.bf16.msra.mxu0 %v1034
        %1302 = vmatprep.subr.bf16.mxu0 %v1039
        %1303 = vmatpush1.bf16.msra.mxu0 %v1038
        %1304 = vmatprep.subr.bf16.mxu0 %v1043
        %1305 = vmatpush1.bf16.msra.mxu0 %v1042
        %1306 = vmatprep.subr.bf16.mxu0 %v1047
        %1307 = vmatpush1.bf16.msra.mxu0 %v1046
        %1308 = vmatprep.subr.bf16.mxu0 %v1051
        %1309 = vmatpush1.bf16.msra.mxu0 %v1050
        %1310 = vmatprep.subr.bf16.mxu0 %v1055
        %1311 = vmatpush1.bf16.msra.mxu0 %v1054
        %1312 = vmatprep.subr.bf16.mxu0 %v1059
        %1313 = vmatpush1.bf16.msra.mxu0 %v1058
        %1314 = vmatprep.subr.bf16.mxu0 %v1063
        %1315 = vmatpush1.bf16.msra.mxu0 %v1062
        %1316 = vmatprep.subr.bf16.mxu0 %v1067
        %1317 = vmatpush1.bf16.msra.mxu0 %v1066
        %1318 = vmatprep.subr.bf16.mxu0 %v1071
        %1319 = vmatpush1.bf16.msra.mxu0 %v1070
        %1320 = vmatprep.subr.bf16.mxu0 %v1075
        %1321 = vmatpush1.bf16.msra.mxu0 %v1074
        %1322 = vmatprep.mubr.bf16.mxu0 %v598
        %1323 = vmatmul.mubr.bf16.gmra.mrb[0].mxu0 %v597
        %v1324 = vpop.f32.mrb[0].mxu0
        %v1325 = vadd.f32 %v572, %v1324
        %v1326 = vpop.f32.mrb[0].mxu0
        %v1327 = vadd.f32 %v576, %v1326
        %v1328 = vpop.f32.mrb[0].mxu0
        %v1329 = vpop.f32.mrb[0].mxu0
        %1330 = vdwg.mxu0
        %1331 = vmatprep.subr.bf16.mxu0 %v1079
        %1332 = vmatpush1.bf16.msra.mxu0 %v1078
        %1333 = vmatprep.subr.bf16.mxu0 %v1083
        %1334 = vmatpush1.bf16.msra.mxu0 %v1082
        %1335 = vmatprep.subr.bf16.mxu0 %v1087
        %1336 = vmatpush1.bf16.msra.mxu0 %v1086
        %1337 = vmatprep.subr.bf16.mxu0 %v1091
        %1338 = vmatpush1.bf16.msra.mxu0 %v1090
        %1339 = vmatprep.subr.bf16.mxu0 %v1095
        %1340 = vmatpush1.bf16.msra.mxu0 %v1094
        %1341 = vmatprep.subr.bf16.mxu0 %v1099
        %1342 = vmatpush1.bf16.msra.mxu0 %v1098
        %1343 = vmatprep.subr.bf16.mxu0 %v1103
        %1344 = vmatpush1.bf16.msra.mxu0 %v1102
        %1345 = vmatprep.subr.bf16.mxu0 %v1107
        %1346 = vmatpush1.bf16.msra.mxu0 %v1106
        %1347 = vmatprep.subr.bf16.mxu0 %v1111
        %1348 = vmatpush1.bf16.msra.mxu0 %v1110
        %1349 = vmatprep.subr.bf16.mxu0 %v1115
        %1350 = vmatpush1.bf16.msra.mxu0 %v1114
        %1351 = vmatprep.subr.bf16.mxu0 %v1119
        %1352 = vmatpush1.bf16.msra.mxu0 %v1118
        %1353 = vmatprep.subr.bf16.mxu0 %v1123
        %1354 = vmatpush1.bf16.msra.mxu0 %v1122
        %1355 = vmatprep.subr.bf16.mxu0 %v1127
        %1356 = vmatpush1.bf16.msra.mxu0 %v1126
        %1357 = vmatprep.subr.bf16.mxu0 %v1131
        %1358 = vmatpush1.bf16.msra.mxu0 %v1130
        %1359 = vmatprep.subr.bf16.mxu0 %v1135
        %1360 = vmatpush1.bf16.msra.mxu0 %v1134
        %1361 = vmatprep.subr.bf16.mxu0 %v1139
        %1362 = vmatpush1.bf16.msra.mxu0 %v1138
        %1363 = vmatprep.mubr.bf16.mxu0 %v600
        %1364 = vmatmul.mubr.bf16.gmra.mrb[0].mxu0 %v599
        %v1365 = vpop.f32.mrb[0].mxu0
        %v1366 = vadd.f32 %v1325, %v1365
        %v1367 = vpop.f32.mrb[0].mxu0
        %v1368 = vadd.f32 %v1327, %v1367
        %v1369 = vpop.f32.mrb[0].mxu0
        %v1370 = vpop.f32.mrb[0].mxu0
        %1371 = vdwg.mxu0
        %1372 = vmatprep.subr.bf16.mxu0 %v1143
        %1373 = vmatpush1.bf16.msra.mxu0 %v1142
        %1374 = vmatprep.subr.bf16.mxu0 %v1147
        %1375 = vmatpush1.bf16.msra.mxu0 %v1146
        %1376 = vmatprep.subr.bf16.mxu0 0
        %1377 = vmatpush1.bf16.msra.mxu0 0
        %1378 = vmatprep.subr.bf16.mxu0 0
        %1379 = vmatpush1.bf16.msra.mxu0 0
        %1380 = vmatprep.subr.bf16.mxu0 0
        %1381 = vmatpush1.bf16.msra.mxu0 0
        %1382 = vmatprep.subr.bf16.mxu0 0
        %1383 = vmatpush1.bf16.msra.mxu0 0
        %1384 = vmatprep.subr.bf16.mxu0 0
        %1385 = vmatpush1.bf16.msra.mxu0 0
        %1386 = vmatprep.subr.bf16.mxu0 0
        %1387 = vmatpush1.bf16.msra.mxu0 0
        %1388 = vmatprep.subr.bf16.mxu0 0
        %1389 = vmatpush1.bf16.msra.mxu0 0
        %1390 = vmatprep.subr.bf16.mxu0 0
        %1391 = vmatpush1.bf16.msra.mxu0 0
        %1392 = vmatprep.subr.bf16.mxu0 0
        %1393 = vmatpush1.bf16.msra.mxu0 0
        %1394 = vmatprep.subr.bf16.mxu0 0
        %1395 = vmatpush1.bf16.msra.mxu0 0
        %1396 = vmatprep.subr.bf16.mxu0 0
        %1397 = vmatpush1.bf16.msra.mxu0 0
        %1398 = vmatprep.subr.bf16.mxu0 0
        %1399 = vmatpush1.bf16.msra.mxu0 0
        %1400 = vmatprep.subr.bf16.mxu0 0
        %1401 = vmatpush1.bf16.msra.mxu0 0
        %1402 = vmatprep.subr.bf16.mxu0 0
        %1403 = vmatpush1.bf16.msra.mxu0 0
        %1404 = vmatprep.mubr.bf16.mxu0 0
        %1405 = vmatmul.mubr.bf16.gmra.mrb[0].mxu0 %v1288
        %v1406 = vpop.f32.mrb[0].mxu0
        %v1407 = vadd.f32 %v1366, %v1406
        %v1408 = vpop.f32.mrb[0].mxu0
        %v1409 = vadd.f32 %v1368, %v1408
        %v1410 = vpop.f32.mrb[0].mxu0
        %v1411 = vpop.f32.mrb[0].mxu0
        %1412 = vdwg.mxu0
        %1413 = vmatprep.subr.bf16.mxu0 %v1017
        %1414 = vmatpush1.bf16.msra.mxu0 %v1016
        %1415 = vmatprep.subr.bf16.mxu0 %v1021
        %1416 = vmatpush1.bf16.msra.mxu0 %v1020
        %1417 = vmatprep.subr.bf16.mxu0 %v1025
        %1418 = vmatpush1.bf16.msra.mxu0 %v1024
        %1419 = vmatprep.subr.bf16.mxu0 %v1029
        %1420 = vmatpush1.bf16.msra.mxu0 %v1028
        %1421 = vmatprep.subr.bf16.mxu0 %v1033
        %1422 = vmatpush1.bf16.msra.mxu0 %v1032
        %1423 = vmatprep.subr.bf16.mxu0 %v1037
        %1424 = vmatpush1.bf16.msra.mxu0 %v1036
        %1425 = vmatprep.subr.bf16.mxu0 %v1041
        %1426 = vmatpush1.bf16.msra.mxu0 %v1040
        %1427 = vmatprep.subr.bf16.mxu0 %v1045
        %1428 = vmatpush1.bf16.msra.mxu0 %v1044
        %1429 = vmatprep.subr.bf16.mxu0 %v1049
        %1430 = vmatpush1.bf16.msra.mxu0 %v1048
        %1431 = vmatprep.subr.bf16.mxu0 %v1053
        %1432 = vmatpush1.bf16.msra.mxu0 %v1052
        %1433 = vmatprep.subr.bf16.mxu0 %v1057
        %1434 = vmatpush1.bf16.msra.mxu0 %v1056
        %1435 = vmatprep.subr.bf16.mxu0 %v1061
        %1436 = vmatpush1.bf16.msra.mxu0 %v1060
        %1437 = vmatprep.subr.bf16.mxu0 %v1065
        %1438 = vmatpush1.bf16.msra.mxu0 %v1064
        %1439 = vmatprep.subr.bf16.mxu0 %v1069
        %1440 = vmatpush1.bf16.msra.mxu0 %v1068
        %1441 = vmatprep.subr.bf16.mxu0 %v1073
        %1442 = vmatpush1.bf16.msra.mxu0 %v1072
        %1443 = vmatprep.subr.bf16.mxu0 %v1077
        %1444 = vmatpush1.bf16.msra.mxu0 %v1076
        %1445 = vmatprep.mubr.bf16.mxu0 %v598
        %1446 = vmatmul.mubr.bf16.gmra.mrb[0].mxu0 %v597
        %v1447 = vpop.f32.mrb[0].mxu0
        %v1448 = vadd.f32 %v580, %v1447
        %v1449 = vpop.f32.mrb[0].mxu0
        %v1450 = vadd.f32 %v584, %v1449
        %v1451 = vpop.f32.mrb[0].mxu0
        %v1452 = vpop.f32.mrb[0].mxu0
        %1453 = vdwg.mxu0
        %1454 = vmatprep.subr.bf16.mxu0 %v1081
        %1455 = vmatpush1.bf16.msra.mxu0 %v1080
        %1456 = vmatprep.subr.bf16.mxu0 %v1085
        %1457 = vmatpush1.bf16.msra.mxu0 %v1084
        %1458 = vmatprep.subr.bf16.mxu0 %v1089
        %1459 = vmatpush1.bf16.msra.mxu0 %v1088
        %1460 = vmatprep.subr.bf16.mxu0 %v1093
        %1461 = vmatpush1.bf16.msra.mxu0 %v1092
        %1462 = vmatprep.subr.bf16.mxu0 %v1097
        %1463 = vmatpush1.bf16.msra.mxu0 %v1096
        %1464 = vmatprep.subr.bf16.mxu0 %v1101
        %1465 = vmatpush1.bf16.msra.mxu0 %v1100
        %1466 = vmatprep.subr.bf16.mxu0 %v1105
        %1467 = vmatpush1.bf16.msra.mxu0 %v1104
        %1468 = vmatprep.subr.bf16.mxu0 %v1109
        %1469 = vmatpush1.bf16.msra.mxu0 %v1108
        %1470 = vmatprep.subr.bf16.mxu0 %v1113
        %1471 = vmatpush1.bf16.msra.mxu0 %v1112
        %1472 = vmatprep.subr.bf16.mxu0 %v1117
        %1473 = vmatpush1.bf16.msra.mxu0 %v1116
        %1474 = vmatprep.subr.bf16.mxu0 %v1121
        %1475 = vmatpush1.bf16.msra.mxu0 %v1120
        %1476 = vmatprep.subr.bf16.mxu0 %v1125
        %1477 = vmatpush1.bf16.msra.mxu0 %v1124
        %1478 = vmatprep.subr.bf16.mxu0 %v1129
        %1479 = vmatpush1.bf16.msra.mxu0 %v1128
        %1480 = vmatprep.subr.bf16.mxu0 %v1133
        %1481 = vmatpush1.bf16.msra.mxu0 %v1132
        %1482 = vmatprep.subr.bf16.mxu0 %v1137
        %1483 = vmatpush1.bf16.msra.mxu0 %v1136
        %1484 = vmatprep.subr.bf16.mxu0 %v1141
        %1485 = vmatpush1.bf16.msra.mxu0 %v1140
        %1486 = vmatprep.mubr.bf16.mxu0 %v600
        %1487 = vmatmul.mubr.bf16.gmra.mrb[0].mxu0 %v599
        %v1488 = vpop.f32.mrb[0].mxu0
        %v1489 = vadd.f32 %v1448, %v1488
        %v1490 = vpop.f32.mrb[0].mxu0
        %v1491 = vadd.f32 %v1450, %v1490
        %v1492 = vpop.f32.mrb[0].mxu0
        %v1493 = vpop.f32.mrb[0].mxu0
        %1494 = vdwg.mxu0
        %1495 = vmatprep.subr.bf16.mxu0 %v1145
        %1496 = vmatpush1.bf16.msra.mxu0 %v1144
        %1497 = vmatprep.subr.bf16.mxu0 %v1149
        %1498 = vmatpush1.bf16.msra.mxu0 %v1148
        %1499 = vmatprep.subr.bf16.mxu0 0
        %1500 = vmatpush1.bf16.msra.mxu0 0
        %1501 = vmatprep.subr.bf16.mxu0 0
        %1502 = vmatpush1.bf16.msra.mxu0 0
        %1503 = vmatprep.subr.bf16.mxu0 0
        %1504 = vmatpush1.bf16.msra.mxu0 0
        %1505 = vmatprep.subr.bf16.mxu0 0
        %1506 = vmatpush1.bf16.msra.mxu0 0
        %1507 = vmatprep.subr.bf16.mxu0 0
        %1508 = vmatpush1.bf16.msra.mxu0 0
        %1509 = vmatprep.subr.bf16.mxu0 0
        %1510 = vmatpush1.bf16.msra.mxu0 0
        %1511 = vmatprep.subr.bf16.mxu0 0
        %1512 = vmatpush1.bf16.msra.mxu0 0
        %1513 = vmatprep.subr.bf16.mxu0 0
        %1514 = vmatpush1.bf16.msra.mxu0 0
        %1515 = vmatprep.subr.bf16.mxu0 0
        %1516 = vmatpush1.bf16.msra.mxu0 0
        %1517 = vmatprep.subr.bf16.mxu0 0
        %1518 = vmatpush1.bf16.msra.mxu0 0
        %1519 = vmatprep.subr.bf16.mxu0 0
        %1520 = vmatpush1.bf16.msra.mxu0 0
        %1521 = vmatprep.subr.bf16.mxu0 0
        %1522 = vmatpush1.bf16.msra.mxu0 0
        %1523 = vmatprep.subr.bf16.mxu0 0
        %1524 = vmatpush1.bf16.msra.mxu0 0
        %1525 = vmatprep.subr.bf16.mxu0 0
        %1526 = vmatpush1.bf16.msra.mxu0 0
        %1527 = vmatprep.mubr.bf16.mxu0 0
        %1528 = vmatmul.mubr.bf16.gmra.mrb[0].mxu0 %v1288
        %v1529 = vpop.f32.mrb[0].mxu0
        %v1530 = vadd.f32 %v1489, %v1529
        %v1531 = vpop.f32.mrb[0].mxu0
        %v1532 = vadd.f32 %v1491, %v1531
        %v1533 = vpop.f32.mrb[0].mxu0
        %v1534 = vpop.f32.mrb[0].mxu0
        %1535 = vdwg.mxu0
        %s1536 = smul.u32 %s26, 4
        %s1537 = smul.addr %s1536, 8
        %s1538 = scalar_lea.vmem [#allocation2], %s1537
        %1539 = vst [vmem:[%s1538] sm:$0xff] %v1407
        %1540 = vst [vmem:[%s1538 + $0x8] sm:$0xff] %v1409
        %1541 = vst [vmem:[%s1538 + $0x10] sm:$0xff] %v1530
        %1542 = vst [vmem:[%s1538 + $0x18] sm:$0xff] %v1532
        %p1543 = scmp.eq.s32.totalorder %s26, 3
        // Predicated region
        $region77: #{lstm_spatial_forward.1} parent=51 // pred_check
          %p1544 = pneg %p1543
        $region78: #{lstm_spatial_forward.1} parent=51 // pred_check_branch
          %1546 = sbr.rel (%p1544) target = $region80
        $region79: #{lstm_spatial_forward.1} parent=51 // pred_region
          %v1547 = vld [vmem:[#allocation2] sm:$0xff]
          %v1548 = vld [vmem:[#allocation2 + $0x8] sm:$0xff]
          %v1549 = vld [vmem:[#allocation2 + $0x10] sm:$0xff]
          %v1550 = vld [vmem:[#allocation2 + $0x18] sm:$0xff]
          %v1551 = vxor.u32 %v1547, 2147483648
          %v1552 = vxor.u32 %v1548, 2147483648
          %v1553 = vxor.u32 %v1549, 2147483648
          %v1554 = vxor.u32 %v1550, 2147483648
          %v1555 = vmul.f32 %v1551, 1.442695
          %v1556 = vpow.pop %v1555
          %v1557 = vmul.f32 %v1552, 1.442695
          %v1558 = vpow.pop %v1557
          %v1559 = vmul.f32 %v1553, 1.442695
          %v1560 = vpow.pop %v1559
          %v1561 = vmul.f32 %v1554, 1.442695
          %v1562 = vpow.pop %v1561
          %v1563 = vadd.f32 %v1556, 1.0
          %v1564 = vadd.f32 %v1558, 1.0
          %v1565 = vadd.f32 %v1560, 1.0
          %v1566 = vadd.f32 %v1562, 1.0
          %v1567 = vrcp.pop %v1563
          %v1568 = vmul.f32 1.0, %v1567
          %v1569 = vrcp.pop %v1564
          %v1570 = vmul.f32 1.0, %v1569
          %v1571 = vrcp.pop %v1565
          %v1572 = vmul.f32 1.0, %v1571
          %v1573 = vrcp.pop %v1566
          %v1574 = vmul.f32 1.0, %v1573
          %s1575 = scalar_lea.vmem [#allocation2], 32
          %v1576 = vld [vmem:[%s1575] sm:$0xff]
          %v1577 = vld [vmem:[%s1575 + $0x8] sm:$0xff]
          %v1578 = vld [vmem:[%s1575 + $0x10] sm:$0xff]
          %v1579 = vld [vmem:[%s1575 + $0x18] sm:$0xff]
          %v1580 = vxor.u32 %v1576, 2147483648
          %v1581 = vxor.u32 %v1577, 2147483648
          %v1582 = vxor.u32 %v1578, 2147483648
          %v1583 = vxor.u32 %v1579, 2147483648
          %v1584 = vmul.f32 %v1580, 1.442695
          %v1585 = vpow.pop %v1584
          %v1586 = vmul.f32 %v1581, 1.442695
          %v1587 = vpow.pop %v1586
          %v1588 = vmul.f32 %v1582, 1.442695
          %v1589 = vpow.pop %v1588
          %v1590 = vmul.f32 %v1583, 1.442695
          %v1591 = vpow.pop %v1590
          %v1592 = vadd.f32 %v1585, 1.0
          %v1593 = vadd.f32 %v1587, 1.0
          %v1594 = vadd.f32 %v1589, 1.0
          %v1595 = vadd.f32 %v1591, 1.0
          %v1596 = vrcp.pop %v1592
          %v1597 = vmul.f32 1.0, %v1596
          %v1598 = vrcp.pop %v1593
          %v1599 = vmul.f32 1.0, %v1598
          %v1600 = vrcp.pop %v1594
          %v1601 = vmul.f32 1.0, %v1600
          %v1602 = vrcp.pop %v1595
          %v1603 = vmul.f32 1.0, %v1602
          %s1604 = scalar_lea.vmem [#allocation2], 64
          %v1605 = vld [vmem:[%s1604] sm:$0xff]
          %v1606 = vld [vmem:[%s1604 + $0x8] sm:$0xff]
          %v1607 = vld [vmem:[%s1604 + $0x10] sm:$0xff]
          %v1608 = vld [vmem:[%s1604 + $0x18] sm:$0xff]
          %v1609 = vtanh.pop %v1605
          %v1610 = vtanh.pop %v1606
          %v1611 = vtanh.pop %v1607
          %v1612 = vtanh.pop %v1608
          %s1613 = scalar_lea.vmem [#allocation2], 96
          %v1614 = vld [vmem:[%s1613] sm:$0xff]
          %v1615 = vld [vmem:[%s1613 + $0x8] sm:$0xff]
          %v1616 = vld [vmem:[%s1613 + $0x10] sm:$0xff]
          %v1617 = vld [vmem:[%s1613 + $0x18] sm:$0xff]
          %v1618 = vxor.u32 %v1614, 2147483648
          %v1619 = vxor.u32 %v1615, 2147483648
          %v1620 = vxor.u32 %v1616, 2147483648
          %v1621 = vxor.u32 %v1617, 2147483648
          %v1622 = vmul.f32 %v1618, 1.442695
          %v1623 = vpow.pop %v1622
          %v1624 = vmul.f32 %v1619, 1.442695
          %v1625 = vpow.pop %v1624
          %v1626 = vmul.f32 %v1620, 1.442695
          %v1627 = vpow.pop %v1626
          %v1628 = vmul.f32 %v1621, 1.442695
          %v1629 = vpow.pop %v1628
          %v1630 = vadd.f32 %v1623, 1.0
          %v1631 = vadd.f32 %v1625, 1.0
          %v1632 = vadd.f32 %v1627, 1.0
          %v1633 = vadd.f32 %v1629, 1.0
          %v1634 = vrcp.pop %v1630
          %v1635 = vmul.f32 1.0, %v1634
          %v1636 = vrcp.pop %v1631
          %v1637 = vmul.f32 1.0, %v1636
          %v1638 = vrcp.pop %v1632
          %v1639 = vmul.f32 1.0, %v1638
          %v1640 = vrcp.pop %v1633
          %v1641 = vmul.f32 1.0, %v1640
          %v1642 = vld [vmem:[#allocation3] sm:$0xff]
          %v1643 = vld [vmem:[#allocation3 + $0x8] sm:$0xff]
          %v1644 = vld [vmem:[#allocation3 + $0x10] sm:$0xff]
          %v1645 = vld [vmem:[#allocation3 + $0x18] sm:$0xff]
          %v1646 = vmul.f32 %v1597, %v1642
          %v1647 = vmul.f32 %v1599, %v1643
          %v1648 = vmul.f32 %v1601, %v1644
          %v1649 = vmul.f32 %v1603, %v1645
          %v1650 = vmul.f32 %v1568, %v1609
          %v1651 = vmul.f32 %v1570, %v1610
          %v1652 = vmul.f32 %v1572, %v1611
          %v1653 = vmul.f32 %v1574, %v1612
          %v1654 = vadd.f32 %v1646, %v1650
          %v1655 = vadd.f32 %v1647, %v1651
          %v1656 = vadd.f32 %v1648, %v1652
          %v1657 = vadd.f32 %v1649, %v1653
          %v1658 = vtanh.pop %v1654
          %v1659 = vtanh.pop %v1655
          %v1660 = vtanh.pop %v1656
          %v1661 = vtanh.pop %v1657
          %v1662 = vmul.f32 %v1635, %v1658
          %v1663 = vmul.f32 %v1637, %v1659
          %v1664 = vmul.f32 %v1639, %v1660
          %v1665 = vmul.f32 %v1641, %v1661
          %1666 = vst [vmem:[#allocation13] sm:$0xff] %v1662
          %1667 = vst [vmem:[#allocation13 + $0x8] sm:$0xff] %v1663
          %1668 = vst [vmem:[#allocation13 + $0x10] sm:$0xff] %v1664
          %1669 = vst [vmem:[#allocation13 + $0x18] sm:$0xff] %v1665
          %v1670 = vpack.c.bf16 %v1662, %v1662
          %v1671 = vpack.c.bf16 %v1663, %v1663
          %v1672 = vpack.c.bf16 %v1664, %v1664
          %v1673 = vpack.c.bf16 %v1665, %v1665
          %v1674 = vld [vmem:[#allocation10] sm:$0xff]
          %v1675 = vld [vmem:[#allocation10 + $0x8] sm:$0xff]
          %v1676 = vld [vmem:[#allocation10 + $0x10] sm:$0xff]
          %v1677 = vld [vmem:[#allocation10 + $0x18] sm:$0xff]
          %v1678 = vld [vmem:[#allocation10 + $0x20] sm:$0xff]
          %v1679 = vld [vmem:[#allocation10 + $0x28] sm:$0xff]
          %v1680 = vld [vmem:[#allocation10 + $0x30] sm:$0xff]
          %v1681 = vld [vmem:[#allocation10 + $0x38] sm:$0xff]
          %v1682 = vld [vmem:[#allocation10 + $0x40] sm:$0xff]
          %v1683 = vld [vmem:[#allocation10 + $0x48] sm:$0xff]
          %v1684 = vld [vmem:[#allocation10 + $0x50] sm:$0xff]
          %v1685 = vld [vmem:[#allocation10 + $0x58] sm:$0xff]
          %v1686 = vld [vmem:[#allocation10 + $0x60] sm:$0xff]
          %v1687 = vld [vmem:[#allocation10 + $0x68] sm:$0xff]
          %v1688 = vld [vmem:[#allocation10 + $0x70] sm:$0xff]
          %v1689 = vld [vmem:[#allocation10 + $0x78] sm:$0xff]
          %v1690 = vld [vmem:[#allocation10 + $0x80] sm:$0xff]
          %v1691 = vld [vmem:[#allocation10 + $0x88] sm:$0xff]
          %v1692 = vld [vmem:[#allocation10 + $0x90] sm:$0xff]
          %v1693 = vld [vmem:[#allocation10 + $0x98] sm:$0xff]
          %v1694 = vld [vmem:[#allocation10 + $0xa0] sm:$0xff]
          %v1695 = vld [vmem:[#allocation10 + $0xa8] sm:$0xff]
          %v1696 = vld [vmem:[#allocation10 + $0xb0] sm:$0xff]
          %v1697 = vld [vmem:[#allocation10 + $0xb8] sm:$0xff]
          %v1698 = vld [vmem:[#allocation10 + $0xc0] sm:$0xff]
          %v1699 = vld [vmem:[#allocation10 + $0xc8] sm:$0xff]
          %v1700 = vld [vmem:[#allocation10 + $0xd0] sm:$0xff]
          %v1701 = vld [vmem:[#allocation10 + $0xd8] sm:$0xff]
          %v1702 = vld [vmem:[#allocation10 + $0xe0] sm:$0xff]
          %v1703 = vld [vmem:[#allocation10 + $0xe8] sm:$0xff]
          %v1704 = vld [vmem:[#allocation10 + $0xf0] sm:$0xff]
          %v1705 = vld [vmem:[#allocation10 + $0xf8] sm:$0xff]
          %v1706 = vld [vmem:[#allocation10 + $0x100] sm:$0xff]
          %v1707 = vld [vmem:[#allocation10 + $0x108] sm:$0xff]
          %v1708 = vld [vmem:[#allocation10 + $0x110] sm:$0xff]
          %v1709 = vld [vmem:[#allocation10 + $0x118] sm:$0xff]
          %v1710 = vld [vmem:[#allocation10 + $0x120] sm:$0xff]
          %v1711 = vld [vmem:[#allocation10 + $0x128] sm:$0xff]
          %v1712 = vld [vmem:[#allocation10 + $0x130] sm:$0xff]
          %v1713 = vld [vmem:[#allocation10 + $0x138] sm:$0xff]
          %v1714 = vld [vmem:[#allocation10 + $0x140] sm:$0xff]
          %v1715 = vld [vmem:[#allocation10 + $0x148] sm:$0xff]
          %v1716 = vld [vmem:[#allocation10 + $0x150] sm:$0xff]
          %v1717 = vld [vmem:[#allocation10 + $0x158] sm:$0xff]
          %v1718 = vld [vmem:[#allocation10 + $0x160] sm:$0xff]
          %v1719 = vld [vmem:[#allocation10 + $0x168] sm:$0xff]
          %v1720 = vld [vmem:[#allocation10 + $0x170] sm:$0xff]
          %v1721 = vld [vmem:[#allocation10 + $0x178] sm:$0xff]
          %v1722 = vld [vmem:[#allocation10 + $0x180] sm:$0xff]
          %v1723 = vld [vmem:[#allocation10 + $0x188] sm:$0xff]
          %v1724 = vld [vmem:[#allocation10 + $0x190] sm:$0xff]
          %v1725 = vld [vmem:[#allocation10 + $0x198] sm:$0xff]
          %v1726 = vld [vmem:[#allocation10 + $0x1a0] sm:$0xff]
          %v1727 = vld [vmem:[#allocation10 + $0x1a8] sm:$0xff]
          %v1728 = vld [vmem:[#allocation10 + $0x1b0] sm:$0xff]
          %v1729 = vld [vmem:[#allocation10 + $0x1b8] sm:$0xff]
          %v1730 = vld [vmem:[#allocation10 + $0x1c0] sm:$0xff]
          %v1731 = vld [vmem:[#allocation10 + $0x1c8] sm:$0xff]
          %v1732 = vld [vmem:[#allocation10 + $0x1d0] sm:$0xff]
          %v1733 = vld [vmem:[#allocation10 + $0x1d8] sm:$0xff]
          %v1734 = vld [vmem:[#allocation10 + $0x1e0] sm:$0xff]
          %v1735 = vld [vmem:[#allocation10 + $0x1e8] sm:$0xff]
          %v1736 = vld [vmem:[#allocation10 + $0x1f0] sm:$0xff]
          %v1737 = vld [vmem:[#allocation10 + $0x1f8] sm:$0xff]
          %v1738 = vld [vmem:[#allocation10 + $0x200] sm:$0xff]
          %v1739 = vld [vmem:[#allocation10 + $0x208] sm:$0xff]
          %v1740 = vld [vmem:[#allocation10 + $0x210] sm:$0xff]
          %v1741 = vld [vmem:[#allocation10 + $0x218] sm:$0xff]
          %v1742 = vld [vmem:[#allocation10 + $0x220] sm:$0xff]
          %v1743 = vld [vmem:[#allocation10 + $0x228] sm:$0xff]
          %v1744 = vld [vmem:[#allocation10 + $0x230] sm:$0xff]
          %v1745 = vld [vmem:[#allocation10 + $0x238] sm:$0xff]
          %v1746 = vld [vmem:[#allocation10 + $0x240] sm:$0xff]
          %v1747 = vld [vmem:[#allocation10 + $0x248] sm:$0xff]
          %v1748 = vld [vmem:[#allocation10 + $0x250] sm:$0xff]
          %v1749 = vld [vmem:[#allocation10 + $0x258] sm:$0xff]
          %v1750 = vld [vmem:[#allocation10 + $0x260] sm:$0xff]
          %v1751 = vld [vmem:[#allocation10 + $0x268] sm:$0xff]
          %v1752 = vld [vmem:[#allocation10 + $0x270] sm:$0xff]
          %v1753 = vld [vmem:[#allocation10 + $0x278] sm:$0xff]
          %v1754 = vld [vmem:[#allocation10 + $0x280] sm:$0xff]
          %v1755 = vld [vmem:[#allocation10 + $0x288] sm:$0xff]
          %v1756 = vld [vmem:[#allocation10 + $0x290] sm:$0xff]
          %v1757 = vld [vmem:[#allocation10 + $0x298] sm:$0xff]
          %v1758 = vld [vmem:[#allocation10 + $0x2a0] sm:$0xff]
          %v1759 = vld [vmem:[#allocation10 + $0x2a8] sm:$0xff]
          %v1760 = vld [vmem:[#allocation10 + $0x2b0] sm:$0xff]
          %v1761 = vld [vmem:[#allocation10 + $0x2b8] sm:$0xff]
          %v1762 = vld [vmem:[#allocation10 + $0x2c0] sm:$0xff]
          %v1763 = vld [vmem:[#allocation10 + $0x2c8] sm:$0xff]
          %v1764 = vld [vmem:[#allocation10 + $0x2d0] sm:$0xff]
          %v1765 = vld [vmem:[#allocation10 + $0x2d8] sm:$0xff]
          %v1766 = vld [vmem:[#allocation10 + $0x2e0] sm:$0xff]
          %v1767 = vld [vmem:[#allocation10 + $0x2e8] sm:$0xff]
          %v1768 = vld [vmem:[#allocation10 + $0x2f0] sm:$0xff]
          %v1769 = vld [vmem:[#allocation10 + $0x2f8] sm:$0xff]
          %v1770 = vld [vmem:[#allocation10 + $0x300] sm:$0xff]
          %v1771 = vld [vmem:[#allocation10 + $0x308] sm:$0xff]
          %v1772 = vld [vmem:[#allocation10 + $0x310] sm:$0xff]
          %v1773 = vld [vmem:[#allocation10 + $0x318] sm:$0xff]
          %v1774 = vld [vmem:[#allocation10 + $0x320] sm:$0xff]
          %v1775 = vld [vmem:[#allocation10 + $0x328] sm:$0xff]
          %v1776 = vld [vmem:[#allocation10 + $0x330] sm:$0xff]
          %v1777 = vld [vmem:[#allocation10 + $0x338] sm:$0xff]
          %v1778 = vld [vmem:[#allocation10 + $0x340] sm:$0xff]
          %v1779 = vld [vmem:[#allocation10 + $0x348] sm:$0xff]
          %v1780 = vld [vmem:[#allocation10 + $0x350] sm:$0xff]
          %v1781 = vld [vmem:[#allocation10 + $0x358] sm:$0xff]
          %v1782 = vld [vmem:[#allocation10 + $0x360] sm:$0xff]
          %v1783 = vld [vmem:[#allocation10 + $0x368] sm:$0xff]
          %v1784 = vld [vmem:[#allocation10 + $0x370] sm:$0xff]
          %v1785 = vld [vmem:[#allocation10 + $0x378] sm:$0xff]
          %v1786 = vld [vmem:[#allocation10 + $0x380] sm:$0xff]
          %v1787 = vld [vmem:[#allocation10 + $0x388] sm:$0xff]
          %v1788 = vld [vmem:[#allocation10 + $0x390] sm:$0xff]
          %v1789 = vld [vmem:[#allocation10 + $0x398] sm:$0xff]
          %v1790 = vld [vmem:[#allocation10 + $0x3a0] sm:$0xff]
          %v1791 = vld [vmem:[#allocation10 + $0x3a8] sm:$0xff]
          %v1792 = vld [vmem:[#allocation10 + $0x3b0] sm:$0xff]
          %v1793 = vld [vmem:[#allocation10 + $0x3b8] sm:$0xff]
          %v1794 = vld [vmem:[#allocation10 + $0x3c0] sm:$0xff]
          %v1795 = vld [vmem:[#allocation10 + $0x3c8] sm:$0xff]
          %v1796 = vld [vmem:[#allocation10 + $0x3d0] sm:$0xff]
          %v1797 = vld [vmem:[#allocation10 + $0x3d8] sm:$0xff]
          %v1798 = vld [vmem:[#allocation10 + $0x3e0] sm:$0xff]
          %v1799 = vld [vmem:[#allocation10 + $0x3e8] sm:$0xff]
          %v1800 = vld [vmem:[#allocation10 + $0x3f0] sm:$0xff]
          %v1801 = vld [vmem:[#allocation10 + $0x3f8] sm:$0xff]
          %v1802 = vld [vmem:[#allocation11] sm:$0xf]
          %v1804 = vlaneseq
          %v1805 = vshrl.u32 %v1804, 7
          %v1806 = vsub.s32 0, %v1805
          %v1807 = vrot.slane %v1802, %v1806
          %v1808 = vlaneseq
          %v1809 = vshrl.u32 %v1808, 7
          %v1810 = vsub.s32 1, %v1809
          %v1811 = vrot.slane %v1802, %v1810
          %v1812 = vlaneseq
          %v1813 = vshrl.u32 %v1812, 7
          %v1814 = vsub.s32 2, %v1813
          %v1815 = vrot.slane %v1802, %v1814
          %v1816 = vlaneseq
          %v1817 = vshrl.u32 %v1816, 7
          %v1818 = vsub.s32 3, %v1817
          %v1819 = vrot.slane %v1802, %v1818
          %v1952 = vunpack.c.l.b16 %v1674
          %v1953 = vunpack.c.h.b16 %v1674
          %v1954 = vunpack.c.l.b16 %v1675
          %v1955 = vunpack.c.h.b16 %v1675
          %v1956 = vunpack.c.l.b16 %v1676
          %v1957 = vunpack.c.h.b16 %v1676
          %v1958 = vunpack.c.l.b16 %v1677
          %v1959 = vunpack.c.h.b16 %v1677
          %v1960 = vunpack.c.l.b16 %v1678
          %v1961 = vunpack.c.h.b16 %v1678
          %v1962 = vunpack.c.l.b16 %v1679
          %v1963 = vunpack.c.h.b16 %v1679
          %v1964 = vunpack.c.l.b16 %v1680
          %v1965 = vunpack.c.h.b16 %v1680
          %v1966 = vunpack.c.l.b16 %v1681
          %v1967 = vunpack.c.h.b16 %v1681
          %v1968 = vunpack.c.l.b16 %v1682
          %v1969 = vunpack.c.h.b16 %v1682
          %v1970 = vunpack.c.l.b16 %v1683
          %v1971 = vunpack.c.h.b16 %v1683
          %v1972 = vunpack.c.l.b16 %v1684
          %v1973 = vunpack.c.h.b16 %v1684
          %v1974 = vunpack.c.l.b16 %v1685
          %v1975 = vunpack.c.h.b16 %v1685
          %v1976 = vunpack.c.l.b16 %v1686
          %v1977 = vunpack.c.h.b16 %v1686
          %v1978 = vunpack.c.l.b16 %v1687
          %v1979 = vunpack.c.h.b16 %v1687
          %v1980 = vunpack.c.l.b16 %v1688
          %v1981 = vunpack.c.h.b16 %v1688
          %v1982 = vunpack.c.l.b16 %v1689
          %v1983 = vunpack.c.h.b16 %v1689
          %v1984 = vunpack.c.l.b16 %v1690
          %v1985 = vunpack.c.h.b16 %v1690
          %v1986 = vunpack.c.l.b16 %v1691
          %v1987 = vunpack.c.h.b16 %v1691
          %v1988 = vunpack.c.l.b16 %v1692
          %v1989 = vunpack.c.h.b16 %v1692
          %v1990 = vunpack.c.l.b16 %v1693
          %v1991 = vunpack.c.h.b16 %v1693
          %v1992 = vunpack.c.l.b16 %v1694
          %v1993 = vunpack.c.h.b16 %v1694
          %v1994 = vunpack.c.l.b16 %v1695
          %v1995 = vunpack.c.h.b16 %v1695
          %v1996 = vunpack.c.l.b16 %v1696
          %v1997 = vunpack.c.h.b16 %v1696
          %v1998 = vunpack.c.l.b16 %v1697
          %v1999 = vunpack.c.h.b16 %v1697
          %v2000 = vunpack.c.l.b16 %v1698
          %v2001 = vunpack.c.h.b16 %v1698
          %v2002 = vunpack.c.l.b16 %v1699
          %v2003 = vunpack.c.h.b16 %v1699
          %v2004 = vunpack.c.l.b16 %v1700
          %v2005 = vunpack.c.h.b16 %v1700
          %v2006 = vunpack.c.l.b16 %v1701
          %v2007 = vunpack.c.h.b16 %v1701
          %v2008 = vunpack.c.l.b16 %v1702
          %v2009 = vunpack.c.h.b16 %v1702
          %v2010 = vunpack.c.l.b16 %v1703
          %v2011 = vunpack.c.h.b16 %v1703
          %v2012 = vunpack.c.l.b16 %v1704
          %v2013 = vunpack.c.h.b16 %v1704
          %v2014 = vunpack.c.l.b16 %v1705
          %v2015 = vunpack.c.h.b16 %v1705
          %v2016 = vunpack.c.l.b16 %v1706
          %v2017 = vunpack.c.h.b16 %v1706
          %v2018 = vunpack.c.l.b16 %v1707
          %v2019 = vunpack.c.h.b16 %v1707
          %v2020 = vunpack.c.l.b16 %v1708
          %v2021 = vunpack.c.h.b16 %v1708
          %v2022 = vunpack.c.l.b16 %v1709
          %v2023 = vunpack.c.h.b16 %v1709
          %v2024 = vunpack.c.l.b16 %v1710
          %v2025 = vunpack.c.h.b16 %v1710
          %v2026 = vunpack.c.l.b16 %v1711
          %v2027 = vunpack.c.h.b16 %v1711
          %v2028 = vunpack.c.l.b16 %v1712
          %v2029 = vunpack.c.h.b16 %v1712
          %v2030 = vunpack.c.l.b16 %v1713
          %v2031 = vunpack.c.h.b16 %v1713
          %v2032 = vunpack.c.l.b16 %v1714
          %v2033 = vunpack.c.h.b16 %v1714
          %v2034 = vunpack.c.l.b16 %v1715
          %v2035 = vunpack.c.h.b16 %v1715
          %v2036 = vunpack.c.l.b16 %v1716
          %v2037 = vunpack.c.h.b16 %v1716
          %v2038 = vunpack.c.l.b16 %v1717
          %v2039 = vunpack.c.h.b16 %v1717
          %v2040 = vunpack.c.l.b16 %v1718
          %v2041 = vunpack.c.h.b16 %v1718
          %v2042 = vunpack.c.l.b16 %v1719
          %v2043 = vunpack.c.h.b16 %v1719
          %v2044 = vunpack.c.l.b16 %v1720
          %v2045 = vunpack.c.h.b16 %v1720
          %v2046 = vunpack.c.l.b16 %v1721
          %v2047 = vunpack.c.h.b16 %v1721
          %v2048 = vunpack.c.l.b16 %v1722
          %v2049 = vunpack.c.h.b16 %v1722
          %v2050 = vunpack.c.l.b16 %v1723
          %v2051 = vunpack.c.h.b16 %v1723
          %v2052 = vunpack.c.l.b16 %v1724
          %v2053 = vunpack.c.h.b16 %v1724
          %v2054 = vunpack.c.l.b16 %v1725
          %v2055 = vunpack.c.h.b16 %v1725
          %v2056 = vunpack.c.l.b16 %v1726
          %v2057 = vunpack.c.h.b16 %v1726
          %v2058 = vunpack.c.l.b16 %v1727
          %v2059 = vunpack.c.h.b16 %v1727
          %v2060 = vunpack.c.l.b16 %v1728
          %v2061 = vunpack.c.h.b16 %v1728
          %v2062 = vunpack.c.l.b16 %v1729
          %v2063 = vunpack.c.h.b16 %v1729
          %v2064 = vunpack.c.l.b16 %v1730
          %v2065 = vunpack.c.h.b16 %v1730
          %v2066 = vunpack.c.l.b16 %v1731
          %v2067 = vunpack.c.h.b16 %v1731
          %v2068 = vunpack.c.l.b16 %v1732
          %v2069 = vunpack.c.h.b16 %v1732
          %v2070 = vunpack.c.l.b16 %v1733
          %v2071 = vunpack.c.h.b16 %v1733
          %v2072 = vunpack.c.l.b16 %v1734
          %v2073 = vunpack.c.h.b16 %v1734
          %v2074 = vunpack.c.l.b16 %v1735
          %v2075 = vunpack.c.h.b16 %v1735
          %v2076 = vunpack.c.l.b16 %v1736
          %v2077 = vunpack.c.h.b16 %v1736
          %v2078 = vunpack.c.l.b16 %v1737
          %v2079 = vunpack.c.h.b16 %v1737
          %v2080 = vunpack.c.l.b16 %v1738
          %v2081 = vunpack.c.h.b16 %v1738
          %v2082 = vunpack.c.l.b16 %v1739
          %v2083 = vunpack.c.h.b16 %v1739
          %v2084 = vunpack.c.l.b16 %v1740
          %v2085 = vunpack.c.h.b16 %v1740
          %v2086 = vunpack.c.l.b16 %v1741
          %v2087 = vunpack.c.h.b16 %v1741
          %v2088 = vunpack.c.l.b16 %v1742
          %v2089 = vunpack.c.h.b16 %v1742
          %v2090 = vunpack.c.l.b16 %v1743
          %v2091 = vunpack.c.h.b16 %v1743
          %v2092 = vunpack.c.l.b16 %v1744
          %v2093 = vunpack.c.h.b16 %v1744
          %v2094 = vunpack.c.l.b16 %v1745
          %v2095 = vunpack.c.h.b16 %v1745
          %v2096 = vunpack.c.l.b16 %v1746
          %v2097 = vunpack.c.h.b16 %v1746
          %v2098 = vunpack.c.l.b16 %v1747
          %v2099 = vunpack.c.h.b16 %v1747
          %v2100 = vunpack.c.l.b16 %v1748
          %v2101 = vunpack.c.h.b16 %v1748
          %v2102 = vunpack.c.l.b16 %v1749
          %v2103 = vunpack.c.h.b16 %v1749
          %v2104 = vunpack.c.l.b16 %v1750
          %v2105 = vunpack.c.h.b16 %v1750
          %v2106 = vunpack.c.l.b16 %v1751
          %v2107 = vunpack.c.h.b16 %v1751
          %v2108 = vunpack.c.l.b16 %v1752
          %v2109 = vunpack.c.h.b16 %v1752
          %v2110 = vunpack.c.l.b16 %v1753
          %v2111 = vunpack.c.h.b16 %v1753
          %v2112 = vunpack.c.l.b16 %v1754
          %v2113 = vunpack.c.h.b16 %v1754
          %v2114 = vunpack.c.l.b16 %v1755
          %v2115 = vunpack.c.h.b16 %v1755
          %v2116 = vunpack.c.l.b16 %v1756
          %v2117 = vunpack.c.h.b16 %v1756
          %v2118 = vunpack.c.l.b16 %v1757
          %v2119 = vunpack.c.h.b16 %v1757
          %v2120 = vunpack.c.l.b16 %v1758
          %v2121 = vunpack.c.h.b16 %v1758
          %v2122 = vunpack.c.l.b16 %v1759
          %v2123 = vunpack.c.h.b16 %v1759
          %v2124 = vunpack.c.l.b16 %v1760
          %v2125 = vunpack.c.h.b16 %v1760
          %v2126 = vunpack.c.l.b16 %v1761
          %v2127 = vunpack.c.h.b16 %v1761
          %v2128 = vunpack.c.l.b16 %v1762
          %v2129 = vunpack.c.h.b16 %v1762
          %v2130 = vunpack.c.l.b16 %v1763
          %v2131 = vunpack.c.h.b16 %v1763
          %v2132 = vunpack.c.l.b16 %v1764
          %v2133 = vunpack.c.h.b16 %v1764
          %v2134 = vunpack.c.l.b16 %v1765
          %v2135 = vunpack.c.h.b16 %v1765
          %v2136 = vunpack.c.l.b16 %v1766
          %v2137 = vunpack.c.h.b16 %v1766
          %v2138 = vunpack.c.l.b16 %v1767
          %v2139 = vunpack.c.h.b16 %v1767
          %v2140 = vunpack.c.l.b16 %v1768
          %v2141 = vunpack.c.h.b16 %v1768
          %v2142 = vunpack.c.l.b16 %v1769
          %v2143 = vunpack.c.h.b16 %v1769
          %v2144 = vunpack.c.l.b16 %v1770
          %v2145 = vunpack.c.h.b16 %v1770
          %v2146 = vunpack.c.l.b16 %v1771
          %v2147 = vunpack.c.h.b16 %v1771
          %v2148 = vunpack.c.l.b16 %v1772
          %v2149 = vunpack.c.h.b16 %v1772
          %v2150 = vunpack.c.l.b16 %v1773
          %v2151 = vunpack.c.h.b16 %v1773
          %v2152 = vunpack.c.l.b16 %v1774
          %v2153 = vunpack.c.h.b16 %v1774
          %v2154 = vunpack.c.l.b16 %v1775
          %v2155 = vunpack.c.h.b16 %v1775
          %v2156 = vunpack.c.l.b16 %v1776
          %v2157 = vunpack.c.h.b16 %v1776
          %v2158 = vunpack.c.l.b16 %v1777
          %v2159 = vunpack.c.h.b16 %v1777
          %v2160 = vunpack.c.l.b16 %v1778
          %v2161 = vunpack.c.h.b16 %v1778
          %v2162 = vunpack.c.l.b16 %v1779
          %v2163 = vunpack.c.h.b16 %v1779
          %v2164 = vunpack.c.l.b16 %v1780
          %v2165 = vunpack.c.h.b16 %v1780
          %v2166 = vunpack.c.l.b16 %v1781
          %v2167 = vunpack.c.h.b16 %v1781
          %v2168 = vunpack.c.l.b16 %v1782
          %v2169 = vunpack.c.h.b16 %v1782
          %v2170 = vunpack.c.l.b16 %v1783
          %v2171 = vunpack.c.h.b16 %v1783
          %v2172 = vunpack.c.l.b16 %v1784
          %v2173 = vunpack.c.h.b16 %v1784
          %v2174 = vunpack.c.l.b16 %v1785
          %v2175 = vunpack.c.h.b16 %v1785
          %v2176 = vunpack.c.l.b16 %v1786
          %v2177 = vunpack.c.h.b16 %v1786
          %v2178 = vunpack.c.l.b16 %v1787
          %v2179 = vunpack.c.h.b16 %v1787
          %v2180 = vunpack.c.l.b16 %v1788
          %v2181 = vunpack.c.h.b16 %v1788
          %v2182 = vunpack.c.l.b16 %v1789
          %v2183 = vunpack.c.h.b16 %v1789
          %v2184 = vunpack.c.l.b16 %v1790
          %v2185 = vunpack.c.h.b16 %v1790
          %v2186 = vunpack.c.l.b16 %v1791
          %v2187 = vunpack.c.h.b16 %v1791
          %v2188 = vunpack.c.l.b16 %v1792
          %v2189 = vunpack.c.h.b16 %v1792
          %v2190 = vunpack.c.l.b16 %v1793
          %v2191 = vunpack.c.h.b16 %v1793
          %v2192 = vunpack.c.l.b16 %v1794
          %v2193 = vunpack.c.h.b16 %v1794
          %v2194 = vunpack.c.l.b16 %v1795
          %v2195 = vunpack.c.h.b16 %v1795
          %v2196 = vunpack.c.l.b16 %v1796
          %v2197 = vunpack.c.h.b16 %v1796
          %v2198 = vunpack.c.l.b16 %v1797
          %v2199 = vunpack.c.h.b16 %v1797
          %v2200 = vunpack.c.l.b16 %v1798
          %v2201 = vunpack.c.h.b16 %v1798
          %v2202 = vunpack.c.l.b16 %v1799
          %v2203 = vunpack.c.h.b16 %v1799
          %v2204 = vunpack.c.l.b16 %v1800
          %v2205 = vunpack.c.h.b16 %v1800
          %v2206 = vunpack.c.l.b16 %v1801
          %v2207 = vunpack.c.h.b16 %v1801
          %v2208 = vpack.c.b16 %v1956, %v1952
          %v2209 = vpack.c.b16 %v1957, %v1953
          %v2210 = vpack.c.b16 %v1958, %v1954
          %v2211 = vpack.c.b16 %v1959, %v1955
          %v2212 = vpack.c.b16 %v1964, %v1960
          %v2213 = vpack.c.b16 %v1965, %v1961
          %v2214 = vpack.c.b16 %v1966, %v1962
          %v2215 = vpack.c.b16 %v1967, %v1963
          %v2216 = vpack.c.b16 %v1972, %v1968
          %v2217 = vpack.c.b16 %v1973, %v1969
          %v2218 = vpack.c.b16 %v1974, %v1970
          %v2219 = vpack.c.b16 %v1975, %v1971
          %v2220 = vpack.c.b16 %v1980, %v1976
          %v2221 = vpack.c.b16 %v1981, %v1977
          %v2222 = vpack.c.b16 %v1982, %v1978
          %v2223 = vpack.c.b16 %v1983, %v1979
          %v2224 = vpack.c.b16 %v1988, %v1984
          %v2225 = vpack.c.b16 %v1989, %v1985
          %v2226 = vpack.c.b16 %v1990, %v1986
          %v2227 = vpack.c.b16 %v1991, %v1987
          %v2228 = vpack.c.b16 %v1996, %v1992
          %v2229 = vpack.c.b16 %v1997, %v1993
          %v2230 = vpack.c.b16 %v1998, %v1994
          %v2231 = vpack.c.b16 %v1999, %v1995
          %v2232 = vpack.c.b16 %v2004, %v2000
          %v2233 = vpack.c.b16 %v2005, %v2001
          %v2234 = vpack.c.b16 %v2006, %v2002
          %v2235 = vpack.c.b16 %v2007, %v2003
          %v2236 = vpack.c.b16 %v2012, %v2008
          %v2237 = vpack.c.b16 %v2013, %v2009
          %v2238 = vpack.c.b16 %v2014, %v2010
          %v2239 = vpack.c.b16 %v2015, %v2011
          %v2240 = vpack.c.b16 %v2020, %v2016
          %v2241 = vpack.c.b16 %v2021, %v2017
          %v2242 = vpack.c.b16 %v2022, %v2018
          %v2243 = vpack.c.b16 %v2023, %v2019
          %v2244 = vpack.c.b16 %v2028, %v2024
          %v2245 = vpack.c.b16 %v2029, %v2025
          %v2246 = vpack.c.b16 %v2030, %v2026
          %v2247 = vpack.c.b16 %v2031, %v2027
          %v2248 = vpack.c.b16 %v2036, %v2032
          %v2249 = vpack.c.b16 %v2037, %v2033
          %v2250 = vpack.c.b16 %v2038, %v2034
          %v2251 = vpack.c.b16 %v2039, %v2035
          %v2252 = vpack.c.b16 %v2044, %v2040
          %v2253 = vpack.c.b16 %v2045, %v2041
          %v2254 = vpack.c.b16 %v2046, %v2042
          %v2255 = vpack.c.b16 %v2047, %v2043
          %v2256 = vpack.c.b16 %v2052, %v2048
          %v2257 = vpack.c.b16 %v2053, %v2049
          %v2258 = vpack.c.b16 %v2054, %v2050
          %v2259 = vpack.c.b16 %v2055, %v2051
          %v2260 = vpack.c.b16 %v2060, %v2056
          %v2261 = vpack.c.b16 %v2061, %v2057
          %v2262 = vpack.c.b16 %v2062, %v2058
          %v2263 = vpack.c.b16 %v2063, %v2059
          %v2264 = vpack.c.b16 %v2068, %v2064
          %v2265 = vpack.c.b16 %v2069, %v2065
          %v2266 = vpack.c.b16 %v2070, %v2066
          %v2267 = vpack.c.b16 %v2071, %v2067
          %v2268 = vpack.c.b16 %v2076, %v2072
          %v2269 = vpack.c.b16 %v2077, %v2073
          %v2270 = vpack.c.b16 %v2078, %v2074
          %v2271 = vpack.c.b16 %v2079, %v2075
          %v2272 = vpack.c.b16 %v2084, %v2080
          %v2273 = vpack.c.b16 %v2085, %v2081
          %v2274 = vpack.c.b16 %v2086, %v2082
          %v2275 = vpack.c.b16 %v2087, %v2083
          %v2276 = vpack.c.b16 %v2092, %v2088
          %v2277 = vpack.c.b16 %v2093, %v2089
          %v2278 = vpack.c.b16 %v2094, %v2090
          %v2279 = vpack.c.b16 %v2095, %v2091
          %v2280 = vpack.c.b16 %v2100, %v2096
          %v2281 = vpack.c.b16 %v2101, %v2097
          %v2282 = vpack.c.b16 %v2102, %v2098
          %v2283 = vpack.c.b16 %v2103, %v2099
          %v2284 = vpack.c.b16 %v2108, %v2104
          %v2285 = vpack.c.b16 %v2109, %v2105
          %v2286 = vpack.c.b16 %v2110, %v2106
          %v2287 = vpack.c.b16 %v2111, %v2107
          %v2288 = vpack.c.b16 %v2116, %v2112
          %v2289 = vpack.c.b16 %v2117, %v2113
          %v2290 = vpack.c.b16 %v2118, %v2114
          %v2291 = vpack.c.b16 %v2119, %v2115
          %v2292 = vpack.c.b16 %v2124, %v2120
          %v2293 = vpack.c.b16 %v2125, %v2121
          %v2294 = vpack.c.b16 %v2126, %v2122
          %v2295 = vpack.c.b16 %v2127, %v2123
          %v2296 = vpack.c.b16 %v2132, %v2128
          %v2297 = vpack.c.b16 %v2133, %v2129
          %v2298 = vpack.c.b16 %v2134, %v2130
          %v2299 = vpack.c.b16 %v2135, %v2131
          %v2300 = vpack.c.b16 %v2140, %v2136
          %v2301 = vpack.c.b16 %v2141, %v2137
          %v2302 = vpack.c.b16 %v2142, %v2138
          %v2303 = vpack.c.b16 %v2143, %v2139
          %v2304 = vpack.c.b16 %v2148, %v2144
          %v2305 = vpack.c.b16 %v2149, %v2145
          %v2306 = vpack.c.b16 %v2150, %v2146
          %v2307 = vpack.c.b16 %v2151, %v2147
          %v2308 = vpack.c.b16 %v2156, %v2152
          %v2309 = vpack.c.b16 %v2157, %v2153
          %v2310 = vpack.c.b16 %v2158, %v2154
          %v2311 = vpack.c.b16 %v2159, %v2155
          %v2312 = vpack.c.b16 %v2164, %v2160
          %v2313 = vpack.c.b16 %v2165, %v2161
          %v2314 = vpack.c.b16 %v2166, %v2162
          %v2315 = vpack.c.b16 %v2167, %v2163
          %v2316 = vpack.c.b16 %v2172, %v2168
          %v2317 = vpack.c.b16 %v2173, %v2169
          %v2318 = vpack.c.b16 %v2174, %v2170
          %v2319 = vpack.c.b16 %v2175, %v2171
          %v2320 = vpack.c.b16 %v2180, %v2176
          %v2321 = vpack.c.b16 %v2181, %v2177
          %v2322 = vpack.c.b16 %v2182, %v2178
          %v2323 = vpack.c.b16 %v2183, %v2179
          %v2324 = vpack.c.b16 %v2188, %v2184
          %v2325 = vpack.c.b16 %v2189, %v2185
          %v2326 = vpack.c.b16 %v2190, %v2186
          %v2327 = vpack.c.b16 %v2191, %v2187
          %v2328 = vpack.c.b16 %v2196, %v2192
          %v2329 = vpack.c.b16 %v2197, %v2193
          %v2330 = vpack.c.b16 %v2198, %v2194
          %v2331 = vpack.c.b16 %v2199, %v2195
          %v2332 = vpack.c.b16 %v2204, %v2200
          %v2333 = vpack.c.b16 %v2205, %v2201
          %v2334 = vpack.c.b16 %v2206, %v2202
          %v2335 = vpack.c.b16 %v2207, %v2203
          %2464 = vmatprep.subr.bf16.mxu0 %v2209
          %2465 = vmatpush1.bf16.msra.mxu0 %v2208
          %2466 = vmatprep.subr.bf16.mxu0 %v2213
          %2467 = vmatpush1.bf16.msra.mxu0 %v2212
          %2468 = vmatprep.subr.bf16.mxu0 %v2217
          %2469 = vmatpush1.bf16.msra.mxu0 %v2216
          %2470 = vmatprep.subr.bf16.mxu0 %v2221
          %2471 = vmatpush1.bf16.msra.mxu0 %v2220
          %2472 = vmatprep.subr.bf16.mxu0 %v2225
          %2473 = vmatpush1.bf16.msra.mxu0 %v2224
          %2474 = vmatprep.subr.bf16.mxu0 %v2229
          %2475 = vmatpush1.bf16.msra.mxu0 %v2228
          %2476 = vmatprep.subr.bf16.mxu0 %v2233
          %2477 = vmatpush1.bf16.msra.mxu0 %v2232
          %2478 = vmatprep.subr.bf16.mxu0 %v2237
          %2479 = vmatpush1.bf16.msra.mxu0 %v2236
          %2480 = vmatprep.subr.bf16.mxu0 %v2241
          %2481 = vmatpush1.bf16.msra.mxu0 %v2240
          %2482 = vmatprep.subr.bf16.mxu0 %v2245
          %2483 = vmatpush1.bf16.msra.mxu0 %v2244
          %2484 = vmatprep.subr.bf16.mxu0 %v2249
          %2485 = vmatpush1.bf16.msra.mxu0 %v2248
          %2486 = vmatprep.subr.bf16.mxu0 %v2253
          %2487 = vmatpush1.bf16.msra.mxu0 %v2252
          %2488 = vmatprep.subr.bf16.mxu0 %v2257
          %2489 = vmatpush1.bf16.msra.mxu0 %v2256
          %2490 = vmatprep.subr.bf16.mxu0 %v2261
          %2491 = vmatpush1.bf16.msra.mxu0 %v2260
          %2492 = vmatprep.subr.bf16.mxu0 %v2265
          %2493 = vmatpush1.bf16.msra.mxu0 %v2264
          %2494 = vmatprep.subr.bf16.mxu0 %v2269
          %2495 = vmatpush1.bf16.msra.mxu0 %v2268
          %2496 = vmatprep.mubr.bf16.mxu0 %v1671
          %2497 = vmatmul.mubr.bf16.gmra.mrb[0].mxu0 %v1670
          %v2498 = vpop.f32.mrb[0].mxu0
          %v2499 = vadd.f32 %v1807, %v2498
          %v2500 = vpop.f32.mrb[0].mxu0
          %v2501 = vadd.f32 %v1811, %v2500
          %v2502 = vpop.f32.mrb[0].mxu0
          %v2503 = vpop.f32.mrb[0].mxu0
          %2504 = vdwg.mxu0
          %2505 = vmatprep.subr.bf16.mxu0 %v2273
          %2506 = vmatpush1.bf16.msra.mxu0 %v2272
          %2507 = vmatprep.subr.bf16.mxu0 %v2277
          %2508 = vmatpush1.bf16.msra.mxu0 %v2276
          %2509 = vmatprep.subr.bf16.mxu0 %v2281
          %2510 = vmatpush1.bf16.msra.mxu0 %v2280
          %2511 = vmatprep.subr.bf16.mxu0 %v2285
          %2512 = vmatpush1.bf16.msra.mxu0 %v2284
          %2513 = vmatprep.subr.bf16.mxu0 %v2289
          %2514 = vmatpush1.bf16.msra.mxu0 %v2288
          %2515 = vmatprep.subr.bf16.mxu0 %v2293
          %2516 = vmatpush1.bf16.msra.mxu0 %v2292
          %2517 = vmatprep.subr.bf16.mxu0 %v2297
          %2518 = vmatpush1.bf16.msra.mxu0 %v2296
          %2519 = vmatprep.subr.bf16.mxu0 %v2301
          %2520 = vmatpush1.bf16.msra.mxu0 %v2300
          %2521 = vmatprep.subr.bf16.mxu0 %v2305
          %2522 = vmatpush1.bf16.msra.mxu0 %v2304
          %2523 = vmatprep.subr.bf16.mxu0 %v2309
          %2524 = vmatpush1.bf16.msra.mxu0 %v2308
          %2525 = vmatprep.subr.bf16.mxu0 %v2313
          %2526 = vmatpush1.bf16.msra.mxu0 %v2312
          %2527 = vmatprep.subr.bf16.mxu0 %v2317
          %2528 = vmatpush1.bf16.msra.mxu0 %v2316
          %2529 = vmatprep.subr.bf16.mxu0 %v2321
          %2530 = vmatpush1.bf16.msra.mxu0 %v2320
          %2531 = vmatprep.subr.bf16.mxu0 %v2325
          %2532 = vmatpush1.bf16.msra.mxu0 %v2324
          %2533 = vmatprep.subr.bf16.mxu0 %v2329
          %2534 = vmatpush1.bf16.msra.mxu0 %v2328
          %2535 = vmatprep.subr.bf16.mxu0 %v2333
          %2536 = vmatpush1.bf16.msra.mxu0 %v2332
          %2537 = vmatprep.mubr.bf16.mxu0 %v1673
          %2538 = vmatmul.mubr.bf16.gmra.mrb[0].mxu0 %v1672
          %v2539 = vpop.f32.mrb[0].mxu0
          %v2540 = vadd.f32 %v2499, %v2539
          %v2541 = vpop.f32.mrb[0].mxu0
          %v2542 = vadd.f32 %v2501, %v2541
          %v2543 = vpop.f32.mrb[0].mxu0
          %v2544 = vpop.f32.mrb[0].mxu0
          %2545 = vdwg.mxu0
          %2546 = vmatprep.subr.bf16.mxu0 %v2211
          %2547 = vmatpush1.bf16.msra.mxu0 %v2210
          %2548 = vmatprep.subr.bf16.mxu0 %v2215
          %2549 = vmatpush1.bf16.msra.mxu0 %v2214
          %2550 = vmatprep.subr.bf16.mxu0 %v2219
          %2551 = vmatpush1.bf16.msra.mxu0 %v2218
          %2552 = vmatprep.subr.bf16.mxu0 %v2223
          %2553 = vmatpush1.bf16.msra.mxu0 %v2222
          %2554 = vmatprep.subr.bf16.mxu0 %v2227
          %2555 = vmatpush1.bf16.msra.mxu0 %v2226
          %2556 = vmatprep.subr.bf16.mxu0 %v2231
          %2557 = vmatpush1.bf16.msra.mxu0 %v2230
          %2558 = vmatprep.subr.bf16.mxu0 %v2235
          %2559 = vmatpush1.bf16.msra.mxu0 %v2234
          %2560 = vmatprep.subr.bf16.mxu0 %v2239
          %2561 = vmatpush1.bf16.msra.mxu0 %v2238
          %2562 = vmatprep.subr.bf16.mxu0 %v2243
          %2563 = vmatpush1.bf16.msra.mxu0 %v2242
          %2564 = vmatprep.subr.bf16.mxu0 %v2247
          %2565 = vmatpush1.bf16.msra.mxu0 %v2246
          %2566 = vmatprep.subr.bf16.mxu0 %v2251
          %2567 = vmatpush1.bf16.msra.mxu0 %v2250
          %2568 = vmatprep.subr.bf16.mxu0 %v2255
          %2569 = vmatpush1.bf16.msra.mxu0 %v2254
          %2570 = vmatprep.subr.bf16.mxu0 %v2259
          %2571 = vmatpush1.bf16.msra.mxu0 %v2258
          %2572 = vmatprep.subr.bf16.mxu0 %v2263
          %2573 = vmatpush1.bf16.msra.mxu0 %v2262
          %2574 = vmatprep.subr.bf16.mxu0 %v2267
          %2575 = vmatpush1.bf16.msra.mxu0 %v2266
          %2576 = vmatprep.subr.bf16.mxu0 %v2271
          %2577 = vmatpush1.bf16.msra.mxu0 %v2270
          %2578 = vmatprep.mubr.bf16.mxu0 %v1671
          %2579 = vmatmul.mubr.bf16.gmra.mrb[0].mxu0 %v1670
          %v2580 = vpop.f32.mrb[0].mxu0
          %v2581 = vadd.f32 %v1815, %v2580
          %v2582 = vpop.f32.mrb[0].mxu0
          %v2583 = vadd.f32 %v1819, %v2582
          %v2584 = vpop.f32.mrb[0].mxu0
          %v2585 = vpop.f32.mrb[0].mxu0
          %2586 = vdwg.mxu0
          %2587 = vmatprep.subr.bf16.mxu0 %v2275
          %2588 = vmatpush1.bf16.msra.mxu0 %v2274
          %2589 = vmatprep.subr.bf16.mxu0 %v2279
          %2590 = vmatpush1.bf16.msra.mxu0 %v2278
          %2591 = vmatprep.subr.bf16.mxu0 %v2283
          %2592 = vmatpush1.bf16.msra.mxu0 %v2282
          %2593 = vmatprep.subr.bf16.mxu0 %v2287
          %2594 = vmatpush1.bf16.msra.mxu0 %v2286
          %2595 = vmatprep.subr.bf16.mxu0 %v2291
          %2596 = vmatpush1.bf16.msra.mxu0 %v2290
          %2597 = vmatprep.subr.bf16.mxu0 %v2295
          %2598 = vmatpush1.bf16.msra.mxu0 %v2294
          %2599 = vmatprep.subr.bf16.mxu0 %v2299
          %2600 = vmatpush1.bf16.msra.mxu0 %v2298
          %2601 = vmatprep.subr.bf16.mxu0 %v2303
          %2602 = vmatpush1.bf16.msra.mxu0 %v2302
          %2603 = vmatprep.subr.bf16.mxu0 %v2307
          %2604 = vmatpush1.bf16.msra.mxu0 %v2306
          %2605 = vmatprep.subr.bf16.mxu0 %v2311
          %2606 = vmatpush1.bf16.msra.mxu0 %v2310
          %2607 = vmatprep.subr.bf16.mxu0 %v2315
          %2608 = vmatpush1.bf16.msra.mxu0 %v2314
          %2609 = vmatprep.subr.bf16.mxu0 %v2319
          %2610 = vmatpush1.bf16.msra.mxu0 %v2318
          %2611 = vmatprep.subr.bf16.mxu0 %v2323
          %2612 = vmatpush1.bf16.msra.mxu0 %v2322
          %2613 = vmatprep.subr.bf16.mxu0 %v2327
          %2614 = vmatpush1.bf16.msra.mxu0 %v2326
          %2615 = vmatprep.subr.bf16.mxu0 %v2331
          %2616 = vmatpush1.bf16.msra.mxu0 %v2330
          %2617 = vmatprep.subr.bf16.mxu0 %v2335
          %2618 = vmatpush1.bf16.msra.mxu0 %v2334
          %2619 = vmatprep.mubr.bf16.mxu0 %v1673
          %2620 = vmatmul.mubr.bf16.gmra.mrb[0].mxu0 %v1672
          %v2621 = vpop.f32.mrb[0].mxu0
          %v2622 = vadd.f32 %v2581, %v2621
          %v2623 = vpop.f32.mrb[0].mxu0
          %v2624 = vadd.f32 %v2583, %v2623
          %v2625 = vpop.f32.mrb[0].mxu0
          %v2626 = vpop.f32.mrb[0].mxu0
          %2627 = vdwg.mxu0
          %v2628 = vld [vmem:[#allocation6] sm:$0xff]
          %v2629 = vld [vmem:[#allocation6 + $0x8] sm:$0xff]
          %v2630 = vld [vmem:[#allocation6 + $0x10] sm:$0xff]
          %v2631 = vld [vmem:[#allocation6 + $0x18] sm:$0xff]
          %v2632 = vld [vmem:[#allocation6 + $0x20] sm:$0xff]
          %v2633 = vld [vmem:[#allocation6 + $0x28] sm:$0xff]
          %v2634 = vld [vmem:[#allocation6 + $0x30] sm:$0xff]
          %v2635 = vld [vmem:[#allocation6 + $0x38] sm:$0xff]
          %v2636 = vld [vmem:[#allocation6 + $0x40] sm:$0xff]
          %v2637 = vld [vmem:[#allocation6 + $0x48] sm:$0xff]
          %v2638 = vld [vmem:[#allocation6 + $0x50] sm:$0xff]
          %v2639 = vld [vmem:[#allocation6 + $0x58] sm:$0xff]
          %v2640 = vld [vmem:[#allocation6 + $0x60] sm:$0xff]
          %v2641 = vld [vmem:[#allocation6 + $0x68] sm:$0xff]
          %v2642 = vld [vmem:[#allocation6 + $0x70] sm:$0xff]
          %v2643 = vld [vmem:[#allocation6 + $0x78] sm:$0xff]
          %v2644 = vld [vmem:[#allocation6 + $0x80] sm:$0xff]
          %v2645 = vld [vmem:[#allocation6 + $0x88] sm:$0xff]
          %v2646 = vld [vmem:[#allocation6 + $0x90] sm:$0xff]
          %v2647 = vld [vmem:[#allocation6 + $0x98] sm:$0xff]
          %v2648 = vld [vmem:[#allocation6 + $0xa0] sm:$0xff]
          %v2649 = vld [vmem:[#allocation6 + $0xa8] sm:$0xff]
          %v2650 = vld [vmem:[#allocation6 + $0xb0] sm:$0xff]
          %v2651 = vld [vmem:[#allocation6 + $0xb8] sm:$0xff]
          %v2652 = vld [vmem:[#allocation6 + $0xc0] sm:$0xff]
          %v2653 = vld [vmem:[#allocation6 + $0xc8] sm:$0xff]
          %v2654 = vld [vmem:[#allocation6 + $0xd0] sm:$0xff]
          %v2655 = vld [vmem:[#allocation6 + $0xd8] sm:$0xff]
          %v2656 = vld [vmem:[#allocation6 + $0xe0] sm:$0xff]
          %v2657 = vld [vmem:[#allocation6 + $0xe8] sm:$0xff]
          %v2658 = vld [vmem:[#allocation6 + $0xf0] sm:$0xff]
          %v2659 = vld [vmem:[#allocation6 + $0xf8] sm:$0xff]
          %v2660 = vld [vmem:[#allocation6 + $0x100] sm:$0xff]
          %v2661 = vld [vmem:[#allocation6 + $0x108] sm:$0xff]
          %v2662 = vld [vmem:[#allocation6 + $0x110] sm:$0xff]
          %v2663 = vld [vmem:[#allocation6 + $0x118] sm:$0xff]
          %v2664 = vld [vmem:[#allocation6 + $0x120] sm:$0xff]
          %v2665 = vld [vmem:[#allocation6 + $0x128] sm:$0xff]
          %v2666 = vld [vmem:[#allocation6 + $0x130] sm:$0xff]
          %v2667 = vld [vmem:[#allocation6 + $0x138] sm:$0xff]
          %v2668 = vld [vmem:[#allocation6 + $0x140] sm:$0xff]
          %v2669 = vld [vmem:[#allocation6 + $0x148] sm:$0xff]
          %v2670 = vld [vmem:[#allocation6 + $0x150] sm:$0xff]
          %v2671 = vld [vmem:[#allocation6 + $0x158] sm:$0xff]
          %v2672 = vld [vmem:[#allocation6 + $0x160] sm:$0xff]
          %v2673 = vld [vmem:[#allocation6 + $0x168] sm:$0xff]
          %v2674 = vld [vmem:[#allocation6 + $0x170] sm:$0xff]
          %v2675 = vld [vmem:[#allocation6 + $0x178] sm:$0xff]
          %v2676 = vld [vmem:[#allocation6 + $0x180] sm:$0xff]
          %v2677 = vld [vmem:[#allocation6 + $0x188] sm:$0xff]
          %v2678 = vld [vmem:[#allocation6 + $0x190] sm:$0xff]
          %v2679 = vld [vmem:[#allocation6 + $0x198] sm:$0xff]
          %v2680 = vld [vmem:[#allocation6 + $0x1a0] sm:$0xff]
          %v2681 = vld [vmem:[#allocation6 + $0x1a8] sm:$0xff]
          %v2682 = vld [vmem:[#allocation6 + $0x1b0] sm:$0xff]
          %v2683 = vld [vmem:[#allocation6 + $0x1b8] sm:$0xff]
          %v2684 = vld [vmem:[#allocation6 + $0x1c0] sm:$0xff]
          %v2685 = vld [vmem:[#allocation6 + $0x1c8] sm:$0xff]
          %v2686 = vld [vmem:[#allocation6 + $0x1d0] sm:$0xff]
          %v2687 = vld [vmem:[#allocation6 + $0x1d8] sm:$0xff]
          %v2688 = vld [vmem:[#allocation6 + $0x1e0] sm:$0xff]
          %v2689 = vld [vmem:[#allocation6 + $0x1e8] sm:$0xff]
          %v2690 = vld [vmem:[#allocation6 + $0x1f0] sm:$0xff]
          %v2691 = vld [vmem:[#allocation6 + $0x1f8] sm:$0xff]
          %v2692 = vld [vmem:[#allocation6 + $0x200] sm:$0xff]
          %v2693 = vld [vmem:[#allocation6 + $0x208] sm:$0xff]
          %v2694 = vld [vmem:[#allocation6 + $0x210] sm:$0xff]
          %v2695 = vld [vmem:[#allocation6 + $0x218] sm:$0xff]
          %v2696 = vld [vmem:[#allocation6 + $0x220] sm:$0xff]
          %v2697 = vld [vmem:[#allocation6 + $0x228] sm:$0xff]
          %v2698 = vld [vmem:[#allocation6 + $0x230] sm:$0xff]
          %v2699 = vld [vmem:[#allocation6 + $0x238] sm:$0xff]
          %v2700 = vld [vmem:[#allocation6 + $0x240] sm:$0xff]
          %v2701 = vld [vmem:[#allocation6 + $0x248] sm:$0xff]
          %v2702 = vld [vmem:[#allocation6 + $0x250] sm:$0xff]
          %v2703 = vld [vmem:[#allocation6 + $0x258] sm:$0xff]
          %v2704 = vld [vmem:[#allocation6 + $0x260] sm:$0xff]
          %v2705 = vld [vmem:[#allocation6 + $0x268] sm:$0xff]
          %v2706 = vld [vmem:[#allocation6 + $0x270] sm:$0xff]
          %v2707 = vld [vmem:[#allocation6 + $0x278] sm:$0xff]
          %v2708 = vld [vmem:[#allocation6 + $0x280] sm:$0xff]
          %v2709 = vld [vmem:[#allocation6 + $0x288] sm:$0xff]
          %v2710 = vld [vmem:[#allocation6 + $0x290] sm:$0xff]
          %v2711 = vld [vmem:[#allocation6 + $0x298] sm:$0xff]
          %v2712 = vld [vmem:[#allocation6 + $0x2a0] sm:$0xff]
          %v2713 = vld [vmem:[#allocation6 + $0x2a8] sm:$0xff]
          %v2714 = vld [vmem:[#allocation6 + $0x2b0] sm:$0xff]
          %v2715 = vld [vmem:[#allocation6 + $0x2b8] sm:$0xff]
          %v2716 = vld [vmem:[#allocation6 + $0x2c0] sm:$0xff]
          %v2717 = vld [vmem:[#allocation6 + $0x2c8] sm:$0xff]
          %v2718 = vld [vmem:[#allocation6 + $0x2d0] sm:$0xff]
          %v2719 = vld [vmem:[#allocation6 + $0x2d8] sm:$0xff]
          %v2720 = vld [vmem:[#allocation6 + $0x2e0] sm:$0xff]
          %v2721 = vld [vmem:[#allocation6 + $0x2e8] sm:$0xff]
          %v2722 = vld [vmem:[#allocation6 + $0x2f0] sm:$0xff]
          %v2723 = vld [vmem:[#allocation6 + $0x2f8] sm:$0xff]
          %v2724 = vld [vmem:[#allocation6 + $0x300] sm:$0xff]
          %v2725 = vld [vmem:[#allocation6 + $0x308] sm:$0xff]
          %v2726 = vld [vmem:[#allocation6 + $0x310] sm:$0xff]
          %v2727 = vld [vmem:[#allocation6 + $0x318] sm:$0xff]
          %v2728 = vld [vmem:[#allocation6 + $0x320] sm:$0xff]
          %v2729 = vld [vmem:[#allocation6 + $0x328] sm:$0xff]
          %v2730 = vld [vmem:[#allocation6 + $0x330] sm:$0xff]
          %v2731 = vld [vmem:[#allocation6 + $0x338] sm:$0xff]
          %v2732 = vld [vmem:[#allocation6 + $0x340] sm:$0xff]
          %v2733 = vld [vmem:[#allocation6 + $0x348] sm:$0xff]
          %v2734 = vld [vmem:[#allocation6 + $0x350] sm:$0xff]
          %v2735 = vld [vmem:[#allocation6 + $0x358] sm:$0xff]
          %v2736 = vld [vmem:[#allocation6 + $0x360] sm:$0xff]
          %v2737 = vld [vmem:[#allocation6 + $0x368] sm:$0xff]
          %v2738 = vld [vmem:[#allocation6 + $0x370] sm:$0xff]
          %v2739 = vld [vmem:[#allocation6 + $0x378] sm:$0xff]
          %v2740 = vld [vmem:[#allocation6 + $0x380] sm:$0xff]
          %v2741 = vld [vmem:[#allocation6 + $0x388] sm:$0xff]
          %v2742 = vld [vmem:[#allocation6 + $0x390] sm:$0xff]
          %v2743 = vld [vmem:[#allocation6 + $0x398] sm:$0xff]
          %v2744 = vld [vmem:[#allocation6 + $0x3a0] sm:$0xff]
          %v2745 = vld [vmem:[#allocation6 + $0x3a8] sm:$0xff]
          %v2746 = vld [vmem:[#allocation6 + $0x3b0] sm:$0xff]
          %v2747 = vld [vmem:[#allocation6 + $0x3b8] sm:$0xff]
          %v2748 = vld [vmem:[#allocation6 + $0x3c0] sm:$0xff]
          %v2749 = vld [vmem:[#allocation6 + $0x3c8] sm:$0xff]
          %v2750 = vld [vmem:[#allocation6 + $0x3d0] sm:$0xff]
          %v2751 = vld [vmem:[#allocation6 + $0x3d8] sm:$0xff]
          %v2752 = vld [vmem:[#allocation6 + $0x3e0] sm:$0xff]
          %v2753 = vld [vmem:[#allocation6 + $0x3e8] sm:$0xff]
          %v2754 = vld [vmem:[#allocation6 + $0x3f0] sm:$0xff]
          %v2755 = vld [vmem:[#allocation6 + $0x3f8] sm:$0xff]
          %v2756 = vpack.c.bf16 %v2540, %v2540
          %v2757 = vpack.c.bf16 %v2542, %v2542
          %v2758 = vpack.c.bf16 %v2622, %v2622
          %v2759 = vpack.c.bf16 %v2624, %v2624
          %v2764 = vcombine.low %v2756, %v2757
          %v2765 = vcombine.low %v2758, %v2759
          %v2767 = vunpack.c.l.s4 1966171168
          %v2768 = vunpack.c.0.s8 %v2767
          %v2769 = vlaneseq
          %v2770 = vshrl.u32 %v2769, 7
          %v2771 = vsub.s32 %v2768, %v2770
          %v2772 = vrot.slane %v2764, %v2771
          %v2774 = vunpack.c.l.s4 1966171168
          %v2775 = vunpack.c.0.s8 %v2774
          %v2776 = vlaneseq
          %v2777 = vshrl.u32 %v2776, 7
          %v2778 = vsub.s32 %v2775, %v2777
          %v2779 = vrot.slane %v2765, %v2778
          %v2780 = vcombine.low %v2772, %v2779
          %v2781 = vcombine.high %v2772, %v2779
          %v2783 = vunpack.c.l.s4 1966171168
          %v2784 = vunpack.c.0.s8 %v2783
          %v2785 = vlaneseq
          %v2786 = vshrl.u32 %v2785, 7
          %v2787 = vsub.s32 %v2784, %v2786
          %v2788 = vrot.slane %v2780, %v2787
          %v2790 = vunpack.c.l.s4 1966171168
          %v2791 = vunpack.c.0.s8 %v2790
          %v2792 = vlaneseq
          %v2793 = vshrl.u32 %v2792, 7
          %v2794 = vsub.s32 %v2791, %v2793
          %v2795 = vrot.slane %v2781, %v2794
          %v2796 = vcombine.high %v2788, %v2788
          %v2797 = vcombine.high %v2795, %v2795
          %v2798 = vunpack.i.l.s16 %v2788
          %v2799 = vunpack.i.h.s16 %v2788
          %v2800 = vunpack.i.l.s16 %v2795
          %v2801 = vunpack.i.h.s16 %v2795
          %v2802 = vunpack.i.l.s16 %v2796
          %v2803 = vunpack.i.h.s16 %v2796
          %v2804 = vunpack.i.l.s16 %v2797
          %v2805 = vunpack.i.h.s16 %v2797
          %v2806 = vpack.i.b16 %v2798, %v2798
          %v2807 = vpack.i.b16 %v2799, %v2799
          %v2808 = vpack.i.b16 %v2800, %v2800
          %v2809 = vpack.i.b16 %v2801, %v2801
          %v2810 = vpack.i.b16 %v2802, %v2802
          %v2811 = vpack.i.b16 %v2803, %v2803
          %v2812 = vpack.i.b16 %v2804, %v2804
          %v2813 = vpack.i.b16 %v2805, %v2805
          %v2814 = vlaneseq
          %v2815 = vshrl.u32 %v2814, 7
          %v2816 = vsub.s32 0, %v2815
          %v2817 = vrot.slane %v2806, %v2816
          %v2818 = vlaneseq
          %v2819 = vshrl.u32 %v2818, 7
          %v2820 = vsub.s32 1, %v2819
          %v2821 = vrot.slane %v2806, %v2820
          %v2822 = vlaneseq
          %v2823 = vshrl.u32 %v2822, 7
          %v2824 = vsub.s32 2, %v2823
          %v2825 = vrot.slane %v2806, %v2824
          %v2826 = vlaneseq
          %v2827 = vshrl.u32 %v2826, 7
          %v2828 = vsub.s32 3, %v2827
          %v2829 = vrot.slane %v2806, %v2828
          %v2830 = vlaneseq
          %v2831 = vshrl.u32 %v2830, 7
          %v2832 = vsub.s32 0, %v2831
          %v2833 = vrot.slane %v2807, %v2832
          %v2834 = vlaneseq
          %v2835 = vshrl.u32 %v2834, 7
          %v2836 = vsub.s32 1, %v2835
          %v2837 = vrot.slane %v2807, %v2836
          %v2838 = vlaneseq
          %v2839 = vshrl.u32 %v2838, 7
          %v2840 = vsub.s32 2, %v2839
          %v2841 = vrot.slane %v2807, %v2840
          %v2842 = vlaneseq
          %v2843 = vshrl.u32 %v2842, 7
          %v2844 = vsub.s32 3, %v2843
          %v2845 = vrot.slane %v2807, %v2844
          %v2846 = vlaneseq
          %v2847 = vshrl.u32 %v2846, 7
          %v2848 = vsub.s32 0, %v2847
          %v2849 = vrot.slane %v2808, %v2848
          %v2850 = vlaneseq
          %v2851 = vshrl.u32 %v2850, 7
          %v2852 = vsub.s32 1, %v2851
          %v2853 = vrot.slane %v2808, %v2852
          %v2854 = vlaneseq
          %v2855 = vshrl.u32 %v2854, 7
          %v2856 = vsub.s32 2, %v2855
          %v2857 = vrot.slane %v2808, %v2856
          %v2858 = vlaneseq
          %v2859 = vshrl.u32 %v2858, 7
          %v2860 = vsub.s32 3, %v2859
          %v2861 = vrot.slane %v2808, %v2860
          %v2862 = vlaneseq
          %v2863 = vshrl.u32 %v2862, 7
          %v2864 = vsub.s32 0, %v2863
          %v2865 = vrot.slane %v2809, %v2864
          %v2866 = vlaneseq
          %v2867 = vshrl.u32 %v2866, 7
          %v2868 = vsub.s32 1, %v2867
          %v2869 = vrot.slane %v2809, %v2868
          %v2870 = vlaneseq
          %v2871 = vshrl.u32 %v2870, 7
          %v2872 = vsub.s32 2, %v2871
          %v2873 = vrot.slane %v2809, %v2872
          %v2874 = vlaneseq
          %v2875 = vshrl.u32 %v2874, 7
          %v2876 = vsub.s32 3, %v2875
          %v2877 = vrot.slane %v2809, %v2876
          %v2878 = vlaneseq
          %v2879 = vshrl.u32 %v2878, 7
          %v2880 = vsub.s32 0, %v2879
          %v2881 = vrot.slane %v2810, %v2880
          %v2882 = vlaneseq
          %v2883 = vshrl.u32 %v2882, 7
          %v2884 = vsub.s32 1, %v2883
          %v2885 = vrot.slane %v2810, %v2884
          %v2886 = vlaneseq
          %v2887 = vshrl.u32 %v2886, 7
          %v2888 = vsub.s32 2, %v2887
          %v2889 = vrot.slane %v2810, %v2888
          %v2890 = vlaneseq
          %v2891 = vshrl.u32 %v2890, 7
          %v2892 = vsub.s32 3, %v2891
          %v2893 = vrot.slane %v2810, %v2892
          %v2894 = vlaneseq
          %v2895 = vshrl.u32 %v2894, 7
          %v2896 = vsub.s32 0, %v2895
          %v2897 = vrot.slane %v2811, %v2896
          %v2898 = vlaneseq
          %v2899 = vshrl.u32 %v2898, 7
          %v2900 = vsub.s32 1, %v2899
          %v2901 = vrot.slane %v2811, %v2900
          %v2902 = vlaneseq
          %v2903 = vshrl.u32 %v2902, 7
          %v2904 = vsub.s32 2, %v2903
          %v2905 = vrot.slane %v2811, %v2904
          %v2906 = vlaneseq
          %v2907 = vshrl.u32 %v2906, 7
          %v2908 = vsub.s32 3, %v2907
          %v2909 = vrot.slane %v2811, %v2908
          %v2910 = vlaneseq
          %v2911 = vshrl.u32 %v2910, 7
          %v2912 = vsub.s32 0, %v2911
          %v2913 = vrot.slane %v2812, %v2912
          %v2914 = vlaneseq
          %v2915 = vshrl.u32 %v2914, 7
          %v2916 = vsub.s32 1, %v2915
          %v2917 = vrot.slane %v2812, %v2916
          %v2918 = vlaneseq
          %v2919 = vshrl.u32 %v2918, 7
          %v2920 = vsub.s32 2, %v2919
          %v2921 = vrot.slane %v2812, %v2920
          %v2922 = vlaneseq
          %v2923 = vshrl.u32 %v2922, 7
          %v2924 = vsub.s32 3, %v2923
          %v2925 = vrot.slane %v2812, %v2924
          %v2926 = vlaneseq
          %v2927 = vshrl.u32 %v2926, 7
          %v2928 = vsub.s32 0, %v2927
          %v2929 = vrot.slane %v2813, %v2928
          %v2930 = vlaneseq
          %v2931 = vshrl.u32 %v2930, 7
          %v2932 = vsub.s32 1, %v2931
          %v2933 = vrot.slane %v2813, %v2932
          %v2934 = vlaneseq
          %v2935 = vshrl.u32 %v2934, 7
          %v2936 = vsub.s32 2, %v2935
          %v2937 = vrot.slane %v2813, %v2936
          %v2938 = vlaneseq
          %v2939 = vshrl.u32 %v2938, 7
          %v2940 = vsub.s32 3, %v2939
          %v2941 = vrot.slane %v2813, %v2940
          %v2943 = vpack.i.b16 %v2817, %v2817
          %v2945 = vlaneseq
          %v2946 = vshrl.u32 %v2945, 7
          %v2947 = vsub.s32 0, %v2946
          %v2948 = vrot.slane %v2943, %v2947
          %v2950 = vpack.i.b16 %v2821, %v2821
          %v2952 = vlaneseq
          %v2953 = vshrl.u32 %v2952, 7
          %v2954 = vsub.s32 0, %v2953
          %v2955 = vrot.slane %v2950, %v2954
          %v2957 = vpack.i.b16 %v2825, %v2825
          %v2959 = vlaneseq
          %v2960 = vshrl.u32 %v2959, 7
          %v2961 = vsub.s32 0, %v2960
          %v2962 = vrot.slane %v2957, %v2961
          %v2964 = vpack.i.b16 %v2829, %v2829
          %v2966 = vlaneseq
          %v2967 = vshrl.u32 %v2966, 7
          %v2968 = vsub.s32 0, %v2967
          %v2969 = vrot.slane %v2964, %v2968
          %v2971 = vpack.i.b16 %v2833, %v2833
          %v2973 = vlaneseq
          %v2974 = vshrl.u32 %v2973, 7
          %v2975 = vsub.s32 0, %v2974
          %v2976 = vrot.slane %v2971, %v2975
          %v2978 = vpack.i.b16 %v2837, %v2837
          %v2980 = vlaneseq
          %v2981 = vshrl.u32 %v2980, 7
          %v2982 = vsub.s32 0, %v2981
          %v2983 = vrot.slane %v2978, %v2982
          %v2985 = vpack.i.b16 %v2841, %v2841
          %v2987 = vlaneseq
          %v2988 = vshrl.u32 %v2987, 7
          %v2989 = vsub.s32 0, %v2988
          %v2990 = vrot.slane %v2985, %v2989
          %v2992 = vpack.i.b16 %v2845, %v2845
          %v2994 = vlaneseq
          %v2995 = vshrl.u32 %v2994, 7
          %v2996 = vsub.s32 0, %v2995
          %v2997 = vrot.slane %v2992, %v2996
          %v2999 = vpack.i.b16 %v2849, %v2849
          %v3001 = vlaneseq
          %v3002 = vshrl.u32 %v3001, 7
          %v3003 = vsub.s32 0, %v3002
          %v3004 = vrot.slane %v2999, %v3003
          %v3006 = vpack.i.b16 %v2853, %v2853
          %v3008 = vlaneseq
          %v3009 = vshrl.u32 %v3008, 7
          %v3010 = vsub.s32 0, %v3009
          %v3011 = vrot.slane %v3006, %v3010
          %v3013 = vpack.i.b16 %v2857, %v2857
          %v3015 = vlaneseq
          %v3016 = vshrl.u32 %v3015, 7
          %v3017 = vsub.s32 0, %v3016
          %v3018 = vrot.slane %v3013, %v3017
          %v3020 = vpack.i.b16 %v2861, %v2861
          %v3022 = vlaneseq
          %v3023 = vshrl.u32 %v3022, 7
          %v3024 = vsub.s32 0, %v3023
          %v3025 = vrot.slane %v3020, %v3024
          %v3027 = vpack.i.b16 %v2865, %v2865
          %v3029 = vlaneseq
          %v3030 = vshrl.u32 %v3029, 7
          %v3031 = vsub.s32 0, %v3030
          %v3032 = vrot.slane %v3027, %v3031
          %v3034 = vpack.i.b16 %v2869, %v2869
          %v3036 = vlaneseq
          %v3037 = vshrl.u32 %v3036, 7
          %v3038 = vsub.s32 0, %v3037
          %v3039 = vrot.slane %v3034, %v3038
          %v3041 = vpack.i.b16 %v2873, %v2873
          %v3043 = vlaneseq
          %v3044 = vshrl.u32 %v3043, 7
          %v3045 = vsub.s32 0, %v3044
          %v3046 = vrot.slane %v3041, %v3045
          %v3048 = vpack.i.b16 %v2877, %v2877
          %v3050 = vlaneseq
          %v3051 = vshrl.u32 %v3050, 7
          %v3052 = vsub.s32 0, %v3051
          %v3053 = vrot.slane %v3048, %v3052
          %v3055 = vpack.i.b16 %v2881, %v2881
          %v3057 = vlaneseq
          %v3058 = vshrl.u32 %v3057, 7
          %v3059 = vsub.s32 0, %v3058
          %v3060 = vrot.slane %v3055, %v3059
          %v3062 = vpack.i.b16 %v2885, %v2885
          %v3064 = vlaneseq
          %v3065 = vshrl.u32 %v3064, 7
          %v3066 = vsub.s32 0, %v3065
          %v3067 = vrot.slane %v3062, %v3066
          %v3069 = vpack.i.b16 %v2889, %v2889
          %v3071 = vlaneseq
          %v3072 = vshrl.u32 %v3071, 7
          %v3073 = vsub.s32 0, %v3072
          %v3074 = vrot.slane %v3069, %v3073
          %v3076 = vpack.i.b16 %v2893, %v2893
          %v3078 = vlaneseq
          %v3079 = vshrl.u32 %v3078, 7
          %v3080 = vsub.s32 0, %v3079
          %v3081 = vrot.slane %v3076, %v3080
          %v3083 = vpack.i.b16 %v2897, %v2897
          %v3085 = vlaneseq
          %v3086 = vshrl.u32 %v3085, 7
          %v3087 = vsub.s32 0, %v3086
          %v3088 = vrot.slane %v3083, %v3087
          %v3090 = vpack.i.b16 %v2901, %v2901
          %v3092 = vlaneseq
          %v3093 = vshrl.u32 %v3092, 7
          %v3094 = vsub.s32 0, %v3093
          %v3095 = vrot.slane %v3090, %v3094
          %v3097 = vpack.i.b16 %v2905, %v2905
          %v3099 = vlaneseq
          %v3100 = vshrl.u32 %v3099, 7
          %v3101 = vsub.s32 0, %v3100
          %v3102 = vrot.slane %v3097, %v3101
          %v3104 = vpack.i.b16 %v2909, %v2909
          %v3106 = vlaneseq
          %v3107 = vshrl.u32 %v3106, 7
          %v3108 = vsub.s32 0, %v3107
          %v3109 = vrot.slane %v3104, %v3108
          %v3111 = vpack.i.b16 %v2913, %v2913
          %v3113 = vlaneseq
          %v3114 = vshrl.u32 %v3113, 7
          %v3115 = vsub.s32 0, %v3114
          %v3116 = vrot.slane %v3111, %v3115
          %v3118 = vpack.i.b16 %v2917, %v2917
          %v3120 = vlaneseq
          %v3121 = vshrl.u32 %v3120, 7
          %v3122 = vsub.s32 0, %v3121
          %v3123 = vrot.slane %v3118, %v3122
          %v3125 = vpack.i.b16 %v2921, %v2921
          %v3127 = vlaneseq
          %v3128 = vshrl.u32 %v3127, 7
          %v3129 = vsub.s32 0, %v3128
          %v3130 = vrot.slane %v3125, %v3129
          %v3132 = vpack.i.b16 %v2925, %v2925
          %v3134 = vlaneseq
          %v3135 = vshrl.u32 %v3134, 7
          %v3136 = vsub.s32 0, %v3135
          %v3137 = vrot.slane %v3132, %v3136
          %v3139 = vpack.i.b16 %v2929, %v2929
          %v3141 = vlaneseq
          %v3142 = vshrl.u32 %v3141, 7
          %v3143 = vsub.s32 0, %v3142
          %v3144 = vrot.slane %v3139, %v3143
          %v3146 = vpack.i.b16 %v2933, %v2933
          %v3148 = vlaneseq
          %v3149 = vshrl.u32 %v3148, 7
          %v3150 = vsub.s32 0, %v3149
          %v3151 = vrot.slane %v3146, %v3150
          %v3153 = vpack.i.b16 %v2937, %v2937
          %v3155 = vlaneseq
          %v3156 = vshrl.u32 %v3155, 7
          %v3157 = vsub.s32 0, %v3156
          %v3158 = vrot.slane %v3153, %v3157
          %v3160 = vpack.i.b16 %v2941, %v2941
          %v3162 = vlaneseq
          %v3163 = vshrl.u32 %v3162, 7
          %v3164 = vsub.s32 0, %v3163
          %v3165 = vrot.slane %v3160, %v3164
          %v3198 = vunpack.c.l.b16 %v2948
          %v3199 = vunpack.c.l.b16 %v2955
          %v3200 = vunpack.c.l.b16 %v2962
          %v3201 = vunpack.c.l.b16 %v2969
          %v3202 = vunpack.c.l.b16 %v2976
          %v3203 = vunpack.c.l.b16 %v2983
          %v3204 = vunpack.c.l.b16 %v2990
          %v3205 = vunpack.c.l.b16 %v2997
          %v3206 = vunpack.c.l.b16 %v3004
          %v3207 = vunpack.c.l.b16 %v3011
          %v3208 = vunpack.c.l.b16 %v3018
          %v3209 = vunpack.c.l.b16 %v3025
          %v3210 = vunpack.c.l.b16 %v3032
          %v3211 = vunpack.c.l.b16 %v3039
          %v3212 = vunpack.c.l.b16 %v3046
          %v3213 = vunpack.c.l.b16 %v3053
          %v3214 = vunpack.c.l.b16 %v3060
          %v3215 = vunpack.c.l.b16 %v3067
          %v3216 = vunpack.c.l.b16 %v3074
          %v3217 = vunpack.c.l.b16 %v3081
          %v3218 = vunpack.c.l.b16 %v3088
          %v3219 = vunpack.c.l.b16 %v3095
          %v3220 = vunpack.c.l.b16 %v3102
          %v3221 = vunpack.c.l.b16 %v3109
          %v3222 = vunpack.c.l.b16 %v3116
          %v3223 = vunpack.c.l.b16 %v3123
          %v3224 = vunpack.c.l.b16 %v3130
          %v3225 = vunpack.c.l.b16 %v3137
          %v3226 = vunpack.c.l.b16 %v3144
          %v3227 = vunpack.c.l.b16 %v3151
          %v3228 = vunpack.c.l.b16 %v3158
          %v3229 = vunpack.c.l.b16 %v3165
          %v3230 = vpack.c.b16 %v3199, %v3198
          %v3231 = vpack.c.b16 %v3201, %v3200
          %v3232 = vpack.c.b16 %v3203, %v3202
          %v3233 = vpack.c.b16 %v3205, %v3204
          %v3234 = vpack.c.b16 %v3207, %v3206
          %v3235 = vpack.c.b16 %v3209, %v3208
          %v3236 = vpack.c.b16 %v3211, %v3210
          %v3237 = vpack.c.b16 %v3213, %v3212
          %v3238 = vpack.c.b16 %v3215, %v3214
          %v3239 = vpack.c.b16 %v3217, %v3216
          %v3240 = vpack.c.b16 %v3219, %v3218
          %v3241 = vpack.c.b16 %v3221, %v3220
          %v3242 = vpack.c.b16 %v3223, %v3222
          %v3243 = vpack.c.b16 %v3225, %v3224
          %v3244 = vpack.c.b16 %v3227, %v3226
          %v3245 = vpack.c.b16 %v3229, %v3228
          %v3262 = vadd.bf16 %v2628, %v3230
          %v3263 = vadd.bf16 %v2629, %v3231
          %v3264 = vadd.bf16 %v2630, %v3230
          %v3265 = vadd.bf16 %v2631, %v3231
          %v3266 = vadd.bf16 %v2632, %v3230
          %v3267 = vadd.bf16 %v2633, %v3231
          %v3268 = vadd.bf16 %v2634, %v3230
          %v3269 = vadd.bf16 %v2635, %v3231
          %v3270 = vadd.bf16 %v2636, %v3230
          %v3271 = vadd.bf16 %v2637, %v3231
          %v3272 = vadd.bf16 %v2638, %v3230
          %v3273 = vadd.bf16 %v2639, %v3231
          %v3274 = vadd.bf16 %v2640, %v3230
          %v3275 = vadd.bf16 %v2641, %v3231
          %v3276 = vadd.bf16 %v2642, %v3230
          %v3277 = vadd.bf16 %v2643, %v3231
          %v3278 = vadd.bf16 %v2644, %v3232
          %v3279 = vadd.bf16 %v2645, %v3233
          %v3280 = vadd.bf16 %v2646, %v3232
          %v3281 = vadd.bf16 %v2647, %v3233
          %v3282 = vadd.bf16 %v2648, %v3232
          %v3283 = vadd.bf16 %v2649, %v3233
          %v3284 = vadd.bf16 %v2650, %v3232
          %v3285 = vadd.bf16 %v2651, %v3233
          %v3286 = vadd.bf16 %v2652, %v3232
          %v3287 = vadd.bf16 %v2653, %v3233
          %v3288 = vadd.bf16 %v2654, %v3232
          %v3289 = vadd.bf16 %v2655, %v3233
          %v3290 = vadd.bf16 %v2656, %v3232
          %v3291 = vadd.bf16 %v2657, %v3233
          %v3292 = vadd.bf16 %v2658, %v3232
          %v3293 = vadd.bf16 %v2659, %v3233
          %v3294 = vadd.bf16 %v2660, %v3234
          %v3295 = vadd.bf16 %v2661, %v3235
          %v3296 = vadd.bf16 %v2662, %v3234
          %v3297 = vadd.bf16 %v2663, %v3235
          %v3298 = vadd.bf16 %v2664, %v3234
          %v3299 = vadd.bf16 %v2665, %v3235
          %v3300 = vadd.bf16 %v2666, %v3234
          %v3301 = vadd.bf16 %v2667, %v3235
          %v3302 = vadd.bf16 %v2668, %v3234
          %v3303 = vadd.bf16 %v2669, %v3235
          %v3304 = vadd.bf16 %v2670, %v3234
          %v3305 = vadd.bf16 %v2671, %v3235
          %v3306 = vadd.bf16 %v2672, %v3234
          %v3307 = vadd.bf16 %v2673, %v3235
          %v3308 = vadd.bf16 %v2674, %v3234
          %v3309 = vadd.bf16 %v2675, %v3235
          %v3310 = vadd.bf16 %v2676, %v3236
          %v3311 = vadd.bf16 %v2677, %v3237
          %v3312 = vadd.bf16 %v2678, %v3236
          %v3313 = vadd.bf16 %v2679, %v3237
          %v3314 = vadd.bf16 %v2680, %v3236
          %v3315 = vadd.bf16 %v2681, %v3237
          %v3316 = vadd.bf16 %v2682, %v3236
          %v3317 = vadd.bf16 %v2683, %v3237
          %v3318 = vadd.bf16 %v2684, %v3236
          %v3319 = vadd.bf16 %v2685, %v3237
          %v3320 = vadd.bf16 %v2686, %v3236
          %v3321 = vadd.bf16 %v2687, %v3237
          %v3322 = vadd.bf16 %v2688, %v3236
          %v3323 = vadd.bf16 %v2689, %v3237
          %v3324 = vadd.bf16 %v2690, %v3236
          %v3325 = vadd.bf16 %v2691, %v3237
          %v3326 = vadd.bf16 %v2692, %v3238
          %v3327 = vadd.bf16 %v2693, %v3239
          %v3328 = vadd.bf16 %v2694, %v3238
          %v3329 = vadd.bf16 %v2695, %v3239
          %v3330 = vadd.bf16 %v2696, %v3238
          %v3331 = vadd.bf16 %v2697, %v3239
          %v3332 = vadd.bf16 %v2698, %v3238
          %v3333 = vadd.bf16 %v2699, %v3239
          %v3334 = vadd.bf16 %v2700, %v3238
          %v3335 = vadd.bf16 %v2701, %v3239
          %v3336 = vadd.bf16 %v2702, %v3238
          %v3337 = vadd.bf16 %v2703, %v3239
          %v3338 = vadd.bf16 %v2704, %v3238
          %v3339 = vadd.bf16 %v2705, %v3239
          %v3340 = vadd.bf16 %v2706, %v3238
          %v3341 = vadd.bf16 %v2707, %v3239
          %v3342 = vadd.bf16 %v2708, %v3240
          %v3343 = vadd.bf16 %v2709, %v3241
          %v3344 = vadd.bf16 %v2710, %v3240
          %v3345 = vadd.bf16 %v2711, %v3241
          %v3346 = vadd.bf16 %v2712, %v3240
          %v3347 = vadd.bf16 %v2713, %v3241
          %v3348 = vadd.bf16 %v2714, %v3240
          %v3349 = vadd.bf16 %v2715, %v3241
          %v3350 = vadd.bf16 %v2716, %v3240
          %v3351 = vadd.bf16 %v2717, %v3241
          %v3352 = vadd.bf16 %v2718, %v3240
          %v3353 = vadd.bf16 %v2719, %v3241
          %v3354 = vadd.bf16 %v2720, %v3240
          %v3355 = vadd.bf16 %v2721, %v3241
          %v3356 = vadd.bf16 %v2722, %v3240
          %v3357 = vadd.bf16 %v2723, %v3241
          %v3358 = vadd.bf16 %v2724, %v3242
          %v3359 = vadd.bf16 %v2725, %v3243
          %v3360 = vadd.bf16 %v2726, %v3242
          %v3361 = vadd.bf16 %v2727, %v3243
          %v3362 = vadd.bf16 %v2728, %v3242
          %v3363 = vadd.bf16 %v2729, %v3243
          %v3364 = vadd.bf16 %v2730, %v3242
          %v3365 = vadd.bf16 %v2731, %v3243
          %v3366 = vadd.bf16 %v2732, %v3242
          %v3367 = vadd.bf16 %v2733, %v3243
          %v3368 = vadd.bf16 %v2734, %v3242
          %v3369 = vadd.bf16 %v2735, %v3243
          %v3370 = vadd.bf16 %v2736, %v3242
          %v3371 = vadd.bf16 %v2737, %v3243
          %v3372 = vadd.bf16 %v2738, %v3242
          %v3373 = vadd.bf16 %v2739, %v3243
          %v3374 = vadd.bf16 %v2740, %v3244
          %v3375 = vadd.bf16 %v2741, %v3245
          %v3376 = vadd.bf16 %v2742, %v3244
          %v3377 = vadd.bf16 %v2743, %v3245
          %v3378 = vadd.bf16 %v2744, %v3244
          %v3379 = vadd.bf16 %v2745, %v3245
          %v3380 = vadd.bf16 %v2746, %v3244
          %v3381 = vadd.bf16 %v2747, %v3245
          %v3382 = vadd.bf16 %v2748, %v3244
          %v3383 = vadd.bf16 %v2749, %v3245
          %v3384 = vadd.bf16 %v2750, %v3244
          %v3385 = vadd.bf16 %v2751, %v3245
          %v3386 = vadd.bf16 %v2752, %v3244
          %v3387 = vadd.bf16 %v2753, %v3245
          %v3388 = vadd.bf16 %v2754, %v3244
          %v3389 = vadd.bf16 %v2755, %v3245
          %v3390 = vtanh.bf16.pop %v3262
          %v3391 = vtanh.bf16.pop %v3263
          %v3392 = vtanh.bf16.pop %v3264
          %v3393 = vtanh.bf16.pop %v3265
          %v3394 = vtanh.bf16.pop %v3266
          %v3395 = vtanh.bf16.pop %v3267
          %v3396 = vtanh.bf16.pop %v3268
          %v3397 = vtanh.bf16.pop %v3269
          %v3398 = vtanh.bf16.pop %v3270
          %v3399 = vtanh.bf16.pop %v3271
          %v3400 = vtanh.bf16.pop %v3272
          %v3401 = vtanh.bf16.pop %v3273
          %v3402 = vtanh.bf16.pop %v3274
          %v3403 = vtanh.bf16.pop %v3275
          %v3404 = vtanh.bf16.pop %v3276
          %v3405 = vtanh.bf16.pop %v3277
          %v3406 = vtanh.bf16.pop %v3278
          %v3407 = vtanh.bf16.pop %v3279
          %v3408 = vtanh.bf16.pop %v3280
          %v3409 = vtanh.bf16.pop %v3281
          %v3410 = vtanh.bf16.pop %v3282
          %v3411 = vtanh.bf16.pop %v3283
          %v3412 = vtanh.bf16.pop %v3284
          %v3413 = vtanh.bf16.pop %v3285
          %v3414 = vtanh.bf16.pop %v3286
          %v3415 = vtanh.bf16.pop %v3287
          %v3416 = vtanh.bf16.pop %v3288
          %v3417 = vtanh.bf16.pop %v3289
          %v3418 = vtanh.bf16.pop %v3290
          %v3419 = vtanh.bf16.pop %v3291
          %v3420 = vtanh.bf16.pop %v3292
          %v3421 = vtanh.bf16.pop %v3293
          %v3422 = vtanh.bf16.pop %v3294
          %v3423 = vtanh.bf16.pop %v3295
          %v3424 = vtanh.bf16.pop %v3296
          %v3425 = vtanh.bf16.pop %v3297
          %v3426 = vtanh.bf16.pop %v3298
          %v3427 = vtanh.bf16.pop %v3299
          %v3428 = vtanh.bf16.pop %v3300
          %v3429 = vtanh.bf16.pop %v3301
          %v3430 = vtanh.bf16.pop %v3302
          %v3431 = vtanh.bf16.pop %v3303
          %v3432 = vtanh.bf16.pop %v3304
          %v3433 = vtanh.bf16.pop %v3305
          %v3434 = vtanh.bf16.pop %v3306
          %v3435 = vtanh.bf16.pop %v3307
          %v3436 = vtanh.bf16.pop %v3308
          %v3437 = vtanh.bf16.pop %v3309
          %v3438 = vtanh.bf16.pop %v3310
          %v3439 = vtanh.bf16.pop %v3311
          %v3440 = vtanh.bf16.pop %v3312
          %v3441 = vtanh.bf16.pop %v3313
          %v3442 = vtanh.bf16.pop %v3314
          %v3443 = vtanh.bf16.pop %v3315
          %v3444 = vtanh.bf16.pop %v3316
          %v3445 = vtanh.bf16.pop %v3317
          %v3446 = vtanh.bf16.pop %v3318
          %v3447 = vtanh.bf16.pop %v3319
          %v3448 = vtanh.bf16.pop %v3320
          %v3449 = vtanh.bf16.pop %v3321
          %v3450 = vtanh.bf16.pop %v3322
          %v3451 = vtanh.bf16.pop %v3323
          %v3452 = vtanh.bf16.pop %v3324
          %v3453 = vtanh.bf16.pop %v3325
          %v3454 = vtanh.bf16.pop %v3326
          %v3455 = vtanh.bf16.pop %v3327
          %v3456 = vtanh.bf16.pop %v3328
          %v3457 = vtanh.bf16.pop %v3329
          %v3458 = vtanh.bf16.pop %v3330
          %v3459 = vtanh.bf16.pop %v3331
          %v3460 = vtanh.bf16.pop %v3332
          %v3461 = vtanh.bf16.pop %v3333
          %v3462 = vtanh.bf16.pop %v3334
          %v3463 = vtanh.bf16.pop %v3335
          %v3464 = vtanh.bf16.pop %v3336
          %v3465 = vtanh.bf16.pop %v3337
          %v3466 = vtanh.bf16.pop %v3338
          %v3467 = vtanh.bf16.pop %v3339
          %v3468 = vtanh.bf16.pop %v3340
          %v3469 = vtanh.bf16.pop %v3341
          %v3470 = vtanh.bf16.pop %v3342
          %v3471 = vtanh.bf16.pop %v3343
          %v3472 = vtanh.bf16.pop %v3344
          %v3473 = vtanh.bf16.pop %v3345
          %v3474 = vtanh.bf16.pop %v3346
          %v3475 = vtanh.bf16.pop %v3347
          %v3476 = vtanh.bf16.pop %v3348
          %v3477 = vtanh.bf16.pop %v3349
          %v3478 = vtanh.bf16.pop %v3350
          %v3479 = vtanh.bf16.pop %v3351
          %v3480 = vtanh.bf16.pop %v3352
          %v3481 = vtanh.bf16.pop %v3353
          %v3482 = vtanh.bf16.pop %v3354
          %v3483 = vtanh.bf16.pop %v3355
          %v3484 = vtanh.bf16.pop %v3356
          %v3485 = vtanh.bf16.pop %v3357
          %v3486 = vtanh.bf16.pop %v3358
          %v3487 = vtanh.bf16.pop %v3359
          %v3488 = vtanh.bf16.pop %v3360
          %v3489 = vtanh.bf16.pop %v3361
          %v3490 = vtanh.bf16.pop %v3362
          %v3491 = vtanh.bf16.pop %v3363
          %v3492 = vtanh.bf16.pop %v3364
          %v3493 = vtanh.bf16.pop %v3365
          %v3494 = vtanh.bf16.pop %v3366
          %v3495 = vtanh.bf16.pop %v3367
          %v3496 = vtanh.bf16.pop %v3368
          %v3497 = vtanh.bf16.pop %v3369
          %v3498 = vtanh.bf16.pop %v3370
          %v3499 = vtanh.bf16.pop %v3371
          %v3500 = vtanh.bf16.pop %v3372
          %v3501 = vtanh.bf16.pop %v3373
          %v3502 = vtanh.bf16.pop %v3374
          %v3503 = vtanh.bf16.pop %v3375
          %v3504 = vtanh.bf16.pop %v3376
          %v3505 = vtanh.bf16.pop %v3377
          %v3506 = vtanh.bf16.pop %v3378
          %v3507 = vtanh.bf16.pop %v3379
          %v3508 = vtanh.bf16.pop %v3380
          %v3509 = vtanh.bf16.pop %v3381
          %v3510 = vtanh.bf16.pop %v3382
          %v3511 = vtanh.bf16.pop %v3383
          %v3512 = vtanh.bf16.pop %v3384
          %v3513 = vtanh.bf16.pop %v3385
          %v3514 = vtanh.bf16.pop %v3386
          %v3515 = vtanh.bf16.pop %v3387
          %v3516 = vtanh.bf16.pop %v3388
          %v3517 = vtanh.bf16.pop %v3389
          %v3518 = vld [vmem:[%s7] sm:$0xf]
          %v3519 = vld [vmem:[%s7 + $0x4] sm:$0xf]
          %v3520 = vld [vmem:[%s7 + $0x8] sm:$0xf]
          %v3521 = vld [vmem:[%s7 + $0xc] sm:$0xf]
          %v3522 = vld [vmem:[%s7 + $0x10] sm:$0xf]
          %v3523 = vld [vmem:[%s7 + $0x14] sm:$0xf]
          %v3524 = vld [vmem:[%s7 + $0x18] sm:$0xf]
          %v3525 = vld [vmem:[%s7 + $0x1c] sm:$0xf]
          %v3526 = vld [vmem:[%s7 + $0x20] sm:$0xf]
          %v3527 = vld [vmem:[%s7 + $0x24] sm:$0xf]
          %v3528 = vld [vmem:[%s7 + $0x28] sm:$0xf]
          %v3529 = vld [vmem:[%s7 + $0x2c] sm:$0xf]
          %v3530 = vld [vmem:[%s7 + $0x30] sm:$0xf]
          %v3531 = vld [vmem:[%s7 + $0x34] sm:$0xf]
          %v3532 = vld [vmem:[%s7 + $0x38] sm:$0xf]
          %v3533 = vld [vmem:[%s7 + $0x3c] sm:$0xf]
          %v3534 = vld [vmem:[%s7 + $0x40] sm:$0xf]
          %v3535 = vld [vmem:[%s7 + $0x44] sm:$0xf]
          %v3536 = vld [vmem:[%s7 + $0x48] sm:$0xf]
          %v3537 = vld [vmem:[%s7 + $0x4c] sm:$0xf]
          %v3538 = vld [vmem:[%s7 + $0x50] sm:$0xf]
          %v3539 = vld [vmem:[%s7 + $0x54] sm:$0xf]
          %v3540 = vld [vmem:[%s7 + $0x58] sm:$0xf]
          %v3541 = vld [vmem:[%s7 + $0x5c] sm:$0xf]
          %v3542 = vld [vmem:[%s7 + $0x60] sm:$0xf]
          %v3543 = vld [vmem:[%s7 + $0x64] sm:$0xf]
          %v3544 = vld [vmem:[%s7 + $0x68] sm:$0xf]
          %v3545 = vld [vmem:[%s7 + $0x6c] sm:$0xf]
          %v3546 = vld [vmem:[%s7 + $0x70] sm:$0xf]
          %v3547 = vld [vmem:[%s7 + $0x74] sm:$0xf]
          %v3548 = vld [vmem:[%s7 + $0x78] sm:$0xf]
          %v3549 = vld [vmem:[%s7 + $0x7c] sm:$0xf]
          %v3550 = vld [vmem:[%s7 + $0x80] sm:$0xf]
          %v3551 = vld [vmem:[%s7 + $0x84] sm:$0xf]
          %v3552 = vld [vmem:[%s7 + $0x88] sm:$0xf]
          %v3553 = vld [vmem:[%s7 + $0x8c] sm:$0xf]
          %v3554 = vld [vmem:[%s7 + $0x90] sm:$0xf]
          %v3555 = vld [vmem:[%s7 + $0x94] sm:$0xf]
          %v3556 = vld [vmem:[%s7 + $0x98] sm:$0xf]
          %v3557 = vld [vmem:[%s7 + $0x9c] sm:$0xf]
          %v3558 = vld [vmem:[%s7 + $0xa0] sm:$0xf]
          %v3559 = vld [vmem:[%s7 + $0xa4] sm:$0xf]
          %v3560 = vld [vmem:[%s7 + $0xa8] sm:$0xf]
          %v3561 = vld [vmem:[%s7 + $0xac] sm:$0xf]
          %v3562 = vld [vmem:[%s7 + $0xb0] sm:$0xf]
          %v3563 = vld [vmem:[%s7 + $0xb4] sm:$0xf]
          %v3564 = vld [vmem:[%s7 + $0xb8] sm:$0xf]
          %v3565 = vld [vmem:[%s7 + $0xbc] sm:$0xf]
          %v3566 = vld [vmem:[%s7 + $0xc0] sm:$0xf]
          %v3567 = vld [vmem:[%s7 + $0xc4] sm:$0xf]
          %v3568 = vld [vmem:[%s7 + $0xc8] sm:$0xf]
          %v3569 = vld [vmem:[%s7 + $0xcc] sm:$0xf]
          %v3570 = vld [vmem:[%s7 + $0xd0] sm:$0xf]
          %v3571 = vld [vmem:[%s7 + $0xd4] sm:$0xf]
          %v3572 = vld [vmem:[%s7 + $0xd8] sm:$0xf]
          %v3573 = vld [vmem:[%s7 + $0xdc] sm:$0xf]
          %v3574 = vld [vmem:[%s7 + $0xe0] sm:$0xf]
          %v3575 = vld [vmem:[%s7 + $0xe4] sm:$0xf]
          %v3576 = vld [vmem:[%s7 + $0xe8] sm:$0xf]
          %v3577 = vld [vmem:[%s7 + $0xec] sm:$0xf]
          %v3578 = vld [vmem:[%s7 + $0xf0] sm:$0xf]
          %v3579 = vld [vmem:[%s7 + $0xf4] sm:$0xf]
          %v3580 = vld [vmem:[%s7 + $0xf8] sm:$0xf]
          %v3581 = vld [vmem:[%s7 + $0xfc] sm:$0xf]
          %v3598 = vunpack.c.l.b16 %v3390
          %v3599 = vunpack.c.h.b16 %v3390
          %v3600 = vunpack.c.l.b16 %v3391
          %v3601 = vunpack.c.h.b16 %v3391
          %v3602 = vunpack.c.l.b16 %v3392
          %v3603 = vunpack.c.h.b16 %v3392
          %v3604 = vunpack.c.l.b16 %v3393
          %v3605 = vunpack.c.h.b16 %v3393
          %v3606 = vunpack.c.l.b16 %v3394
          %v3607 = vunpack.c.h.b16 %v3394
          %v3608 = vunpack.c.l.b16 %v3395
          %v3609 = vunpack.c.h.b16 %v3395
          %v3610 = vunpack.c.l.b16 %v3396
          %v3611 = vunpack.c.h.b16 %v3396
          %v3612 = vunpack.c.l.b16 %v3397
          %v3613 = vunpack.c.h.b16 %v3397
          %v3614 = vunpack.c.l.b16 %v3398
          %v3615 = vunpack.c.h.b16 %v3398
          %v3616 = vunpack.c.l.b16 %v3399
          %v3617 = vunpack.c.h.b16 %v3399
          %v3618 = vunpack.c.l.b16 %v3400
          %v3619 = vunpack.c.h.b16 %v3400
          %v3620 = vunpack.c.l.b16 %v3401
          %v3621 = vunpack.c.h.b16 %v3401
          %v3622 = vunpack.c.l.b16 %v3402
          %v3623 = vunpack.c.h.b16 %v3402
          %v3624 = vunpack.c.l.b16 %v3403
          %v3625 = vunpack.c.h.b16 %v3403
          %v3626 = vunpack.c.l.b16 %v3404
          %v3627 = vunpack.c.h.b16 %v3404
          %v3628 = vunpack.c.l.b16 %v3405
          %v3629 = vunpack.c.h.b16 %v3405
          %v3630 = vpack.c.b16 %v3602, %v3598
          %v3631 = vpack.c.b16 %v3603, %v3599
          %v3632 = vpack.c.b16 %v3604, %v3600
          %v3633 = vpack.c.b16 %v3605, %v3601
          %v3634 = vpack.c.b16 %v3610, %v3606
          %v3635 = vpack.c.b16 %v3611, %v3607
          %v3636 = vpack.c.b16 %v3612, %v3608
          %v3637 = vpack.c.b16 %v3613, %v3609
          %v3638 = vpack.c.b16 %v3618, %v3614
          %v3639 = vpack.c.b16 %v3619, %v3615
          %v3640 = vpack.c.b16 %v3620, %v3616
          %v3641 = vpack.c.b16 %v3621, %v3617
          %v3642 = vpack.c.b16 %v3626, %v3622
          %v3643 = vpack.c.b16 %v3627, %v3623
          %v3644 = vpack.c.b16 %v3628, %v3624
          %v3645 = vpack.c.b16 %v3629, %v3625
          %v3726 = vunpack.c.l.b16 %v3518
          %v3727 = vunpack.c.l.b16 %v3519
          %v3728 = vunpack.c.l.b16 %v3520
          %v3729 = vunpack.c.l.b16 %v3521
          %v3730 = vunpack.c.l.b16 %v3522
          %v3731 = vunpack.c.l.b16 %v3523
          %v3732 = vunpack.c.l.b16 %v3524
          %v3733 = vunpack.c.l.b16 %v3525
          %v3734 = vunpack.c.l.b16 %v3526
          %v3735 = vunpack.c.l.b16 %v3527
          %v3736 = vunpack.c.l.b16 %v3528
          %v3737 = vunpack.c.l.b16 %v3529
          %v3738 = vunpack.c.l.b16 %v3530
          %v3739 = vunpack.c.l.b16 %v3531
          %v3740 = vunpack.c.l.b16 %v3532
          %v3741 = vunpack.c.l.b16 %v3533
          %v3742 = vunpack.c.l.b16 %v3534
          %v3743 = vunpack.c.l.b16 %v3535
          %v3744 = vunpack.c.l.b16 %v3536
          %v3745 = vunpack.c.l.b16 %v3537
          %v3746 = vunpack.c.l.b16 %v3538
          %v3747 = vunpack.c.l.b16 %v3539
          %v3748 = vunpack.c.l.b16 %v3540
          %v3749 = vunpack.c.l.b16 %v3541
          %v3750 = vunpack.c.l.b16 %v3542
          %v3751 = vunpack.c.l.b16 %v3543
          %v3752 = vunpack.c.l.b16 %v3544
          %v3753 = vunpack.c.l.b16 %v3545
          %v3754 = vunpack.c.l.b16 %v3546
          %v3755 = vunpack.c.l.b16 %v3547
          %v3756 = vunpack.c.l.b16 %v3548
          %v3757 = vunpack.c.l.b16 %v3549
          %v3758 = vunpack.c.l.b16 %v3550
          %v3759 = vunpack.c.l.b16 %v3551
          %v3760 = vunpack.c.l.b16 %v3552
          %v3761 = vunpack.c.l.b16 %v3553
          %v3762 = vunpack.c.l.b16 %v3554
          %v3763 = vunpack.c.l.b16 %v3555
          %v3764 = vunpack.c.l.b16 %v3556
          %v3765 = vunpack.c.l.b16 %v3557
          %v3766 = vunpack.c.l.b16 %v3558
          %v3767 = vunpack.c.l.b16 %v3559
          %v3768 = vunpack.c.l.b16 %v3560
          %v3769 = vunpack.c.l.b16 %v3561
          %v3770 = vunpack.c.l.b16 %v3562
          %v3771 = vunpack.c.l.b16 %v3563
          %v3772 = vunpack.c.l.b16 %v3564
          %v3773 = vunpack.c.l.b16 %v3565
          %v3774 = vunpack.c.l.b16 %v3566
          %v3775 = vunpack.c.l.b16 %v3567
          %v3776 = vunpack.c.l.b16 %v3568
          %v3777 = vunpack.c.l.b16 %v3569
          %v3778 = vunpack.c.l.b16 %v3570
          %v3779 = vunpack.c.l.b16 %v3571
          %v3780 = vunpack.c.l.b16 %v3572
          %v3781 = vunpack.c.l.b16 %v3573
          %v3782 = vunpack.c.l.b16 %v3574
          %v3783 = vunpack.c.l.b16 %v3575
          %v3784 = vunpack.c.l.b16 %v3576
          %v3785 = vunpack.c.l.b16 %v3577
          %v3786 = vunpack.c.l.b16 %v3578
          %v3787 = vunpack.c.l.b16 %v3579
          %v3788 = vunpack.c.l.b16 %v3580
          %v3789 = vunpack.c.l.b16 %v3581
          %v3790 = vpack.c.b16 %v3727, %v3726
          %v3791 = vpack.c.b16 %v3729, %v3728
          %v3792 = vpack.c.b16 %v3731, %v3730
          %v3793 = vpack.c.b16 %v3733, %v3732
          %v3794 = vpack.c.b16 %v3735, %v3734
          %v3795 = vpack.c.b16 %v3737, %v3736
          %v3796 = vpack.c.b16 %v3739, %v3738
          %v3797 = vpack.c.b16 %v3741, %v3740
          %v3798 = vpack.c.b16 %v3743, %v3742
          %v3799 = vpack.c.b16 %v3745, %v3744
          %v3800 = vpack.c.b16 %v3747, %v3746
          %v3801 = vpack.c.b16 %v3749, %v3748
          %v3802 = vpack.c.b16 %v3751, %v3750
          %v3803 = vpack.c.b16 %v3753, %v3752
          %v3804 = vpack.c.b16 %v3755, %v3754
          %v3805 = vpack.c.b16 %v3757, %v3756
          %v3806 = vpack.c.b16 %v3759, %v3758
          %v3807 = vpack.c.b16 %v3761, %v3760
          %v3808 = vpack.c.b16 %v3763, %v3762
          %v3809 = vpack.c.b16 %v3765, %v3764
          %v3810 = vpack.c.b16 %v3767, %v3766
          %v3811 = vpack.c.b16 %v3769, %v3768
          %v3812 = vpack.c.b16 %v3771, %v3770
          %v3813 = vpack.c.b16 %v3773, %v3772
          %v3814 = vpack.c.b16 %v3775, %v3774
          %v3815 = vpack.c.b16 %v3777, %v3776
          %v3816 = vpack.c.b16 %v3779, %v3778
          %v3817 = vpack.c.b16 %v3781, %v3780
          %v3818 = vpack.c.b16 %v3783, %v3782
          %v3819 = vpack.c.b16 %v3785, %v3784
          %v3820 = vpack.c.b16 %v3787, %v3786
          %v3821 = vpack.c.b16 %v3789, %v3788
          %3854 = vmatprep.subr.bf16.mxu0 0
          %3855 = vmatpush1.bf16.msra.mxu0 %v3790
          %3856 = vmatprep.subr.bf16.mxu0 0
          %3857 = vmatpush1.bf16.msra.mxu0 %v3791
          %3858 = vmatprep.subr.bf16.mxu0 0
          %3859 = vmatpush1.bf16.msra.mxu0 %v3792
          %3860 = vmatprep.subr.bf16.mxu0 0
          %3861 = vmatpush1.bf16.msra.mxu0 %v3793
          %3862 = vmatprep.subr.bf16.mxu0 0
          %3863 = vmatpush1.bf16.msra.mxu0 %v3794
          %3864 = vmatprep.subr.bf16.mxu0 0
          %3865 = vmatpush1.bf16.msra.mxu0 %v3795
          %3866 = vmatprep.subr.bf16.mxu0 0
          %3867 = vmatpush1.bf16.msra.mxu0 %v3796
          %3868 = vmatprep.subr.bf16.mxu0 0
          %3869 = vmatpush1.bf16.msra.mxu0 %v3797
          %3870 = vmatprep.subr.bf16.mxu0 0
          %3871 = vmatpush1.bf16.msra.mxu0 %v3798
          %3872 = vmatprep.subr.bf16.mxu0 0
          %3873 = vmatpush1.bf16.msra.mxu0 %v3799
          %3874 = vmatprep.subr.bf16.mxu0 0
          %3875 = vmatpush1.bf16.msra.mxu0 %v3800
          %3876 = vmatprep.subr.bf16.mxu0 0
          %3877 = vmatpush1.bf16.msra.mxu0 %v3801
          %3878 = vmatprep.subr.bf16.mxu0 0
          %3879 = vmatpush1.bf16.msra.mxu0 %v3802
          %3880 = vmatprep.subr.bf16.mxu0 0
          %3881 = vmatpush1.bf16.msra.mxu0 %v3803
          %3882 = vmatprep.subr.bf16.mxu0 0
          %3883 = vmatpush1.bf16.msra.mxu0 %v3804
          %3884 = vmatprep.subr.bf16.mxu0 0
          %3885 = vmatpush1.bf16.msra.mxu0 %v3805
          %3886 = vmatprep.mubr.bf16.mxu0 %v3631
          %3887 = vmatmul.mubr.bf16.gmra.mrb[0].mxu0 %v3630
          %v3888 = vpop.f32.mrb[0].mxu0
          %v3889 = vadd.f32 0.0, %v3888
          %v3890 = vpop.f32.mrb[0].mxu0
          %v3891 = vpop.f32.mrb[0].mxu0
          %v3892 = vadd.f32 0.0, %v3891
          %v3893 = vpop.f32.mrb[0].mxu0
          %3894 = vmatprep.mubr.bf16.mxu0 %v3635
          %3895 = vmatmul.mubr.bf16.gmra.mrb[0].mxu0 %v3634
          %v3896 = vpop.f32.mrb[0].mxu0
          %v3897 = vadd.f32 0.0, %v3896
          %v3898 = vpop.f32.mrb[0].mxu0
          %v3899 = vpop.f32.mrb[0].mxu0
          %v3900 = vadd.f32 0.0, %v3899
          %v3901 = vpop.f32.mrb[0].mxu0
          %3902 = vmatprep.mubr.bf16.mxu0 %v3639
          %3903 = vmatmul.mubr.bf16.gmra.mrb[0].mxu0 %v3638
          %v3904 = vpop.f32.mrb[0].mxu0
          %v3905 = vadd.f32 0.0, %v3904
          %v3906 = vpop.f32.mrb[0].mxu0
          %v3907 = vpop.f32.mrb[0].mxu0
          %v3908 = vadd.f32 0.0, %v3907
          %v3909 = vpop.f32.mrb[0].mxu0
          %3910 = vmatprep.mubr.bf16.mxu0 %v3643
          %3911 = vmatmul.mubr.bf16.gmra.mrb[0].mxu0 %v3642
          %v3912 = vpop.f32.mrb[0].mxu0
          %v3913 = vadd.f32 0.0, %v3912
          %v3914 = vpop.f32.mrb[0].mxu0
          %v3915 = vpop.f32.mrb[0].mxu0
          %v3916 = vadd.f32 0.0, %v3915
          %v3917 = vpop.f32.mrb[0].mxu0
          %3918 = vdwg.mxu0
          %3919 = vmatprep.subr.bf16.mxu0 0
          %3920 = vmatpush1.bf16.msra.mxu0 %v3806
          %3921 = vmatprep.subr.bf16.mxu0 0
          %3922 = vmatpush1.bf16.msra.mxu0 %v3807
          %3923 = vmatprep.subr.bf16.mxu0 0
          %3924 = vmatpush1.bf16.msra.mxu0 %v3808
          %3925 = vmatprep.subr.bf16.mxu0 0
          %3926 = vmatpush1.bf16.msra.mxu0 %v3809
          %3927 = vmatprep.subr.bf16.mxu0 0
          %3928 = vmatpush1.bf16.msra.mxu0 %v3810
          %3929 = vmatprep.subr.bf16.mxu0 0
          %3930 = vmatpush1.bf16.msra.mxu0 %v3811
          %3931 = vmatprep.subr.bf16.mxu0 0
          %3932 = vmatpush1.bf16.msra.mxu0 %v3812
          %3933 = vmatprep.subr.bf16.mxu0 0
          %3934 = vmatpush1.bf16.msra.mxu0 %v3813
          %3935 = vmatprep.subr.bf16.mxu0 0
          %3936 = vmatpush1.bf16.msra.mxu0 %v3814
          %3937 = vmatprep.subr.bf16.mxu0 0
          %3938 = vmatpush1.bf16.msra.mxu0 %v3815
          %3939 = vmatprep.subr.bf16.mxu0 0
          %3940 = vmatpush1.bf16.msra.mxu0 %v3816
          %3941 = vmatprep.subr.bf16.mxu0 0
          %3942 = vmatpush1.bf16.msra.mxu0 %v3817
          %3943 = vmatprep.subr.bf16.mxu0 0
          %3944 = vmatpush1.bf16.msra.mxu0 %v3818
          %3945 = vmatprep.subr.bf16.mxu0 0
          %3946 = vmatpush1.bf16.msra.mxu0 %v3819
          %3947 = vmatprep.subr.bf16.mxu0 0
          %3948 = vmatpush1.bf16.msra.mxu0 %v3820
          %3949 = vmatprep.subr.bf16.mxu0 0
          %3950 = vmatpush1.bf16.msra.mxu0 %v3821
          %3951 = vmatprep.mubr.bf16.mxu0 %v3633
          %3952 = vmatmul.mubr.bf16.gmra.mrb[0].mxu0 %v3632
          %v3953 = vpop.f32.mrb[0].mxu0
          %v3954 = vadd.f32 %v3889, %v3953
          %v3955 = vpop.f32.mrb[0].mxu0
          %v3956 = vpop.f32.mrb[0].mxu0
          %v3957 = vadd.f32 %v3892, %v3956
          %v3958 = vpop.f32.mrb[0].mxu0
          %3959 = vmatprep.mubr.bf16.mxu0 %v3637
          %3960 = vmatmul.mubr.bf16.gmra.mrb[0].mxu0 %v3636
          %v3961 = vpop.f32.mrb[0].mxu0
          %v3962 = vadd.f32 %v3897, %v3961
          %v3963 = vpop.f32.mrb[0].mxu0
          %v3964 = vpop.f32.mrb[0].mxu0
          %v3965 = vadd.f32 %v3900, %v3964
          %v3966 = vpop.f32.mrb[0].mxu0
          %3967 = vmatprep.mubr.bf16.mxu0 %v3641
          %3968 = vmatmul.mubr.bf16.gmra.mrb[0].mxu0 %v3640
          %v3969 = vpop.f32.mrb[0].mxu0
          %v3970 = vadd.f32 %v3905, %v3969
          %v3971 = vpop.f32.mrb[0].mxu0
          %v3972 = vpop.f32.mrb[0].mxu0
          %v3973 = vadd.f32 %v3908, %v3972
          %v3974 = vpop.f32.mrb[0].mxu0
          %3975 = vmatprep.mubr.bf16.mxu0 %v3645
          %3976 = vmatmul.mubr.bf16.gmra.mrb[0].mxu0 %v3644
          %v3977 = vpop.f32.mrb[0].mxu0
          %v3978 = vadd.f32 %v3913, %v3977
          %v3979 = vpop.f32.mrb[0].mxu0
          %v3980 = vpop.f32.mrb[0].mxu0
          %v3981 = vadd.f32 %v3916, %v3980
          %v3982 = vpop.f32.mrb[0].mxu0
          %3983 = vdwg.mxu0
          %v4000 = vunpack.c.l.b16 %v3406
          %v4001 = vunpack.c.h.b16 %v3406
          %v4002 = vunpack.c.l.b16 %v3407
          %v4003 = vunpack.c.h.b16 %v3407
          %v4004 = vunpack.c.l.b16 %v3408
          %v4005 = vunpack.c.h.b16 %v3408
          %v4006 = vunpack.c.l.b16 %v3409
          %v4007 = vunpack.c.h.b16 %v3409
          %v4008 = vunpack.c.l.b16 %v3410
          %v4009 = vunpack.c.h.b16 %v3410
          %v4010 = vunpack.c.l.b16 %v3411
          %v4011 = vunpack.c.h.b16 %v3411
          %v4012 = vunpack.c.l.b16 %v3412
          %v4013 = vunpack.c.h.b16 %v3412
          %v4014 = vunpack.c.l.b16 %v3413
          %v4015 = vunpack.c.h.b16 %v3413
          %v4016 = vunpack.c.l.b16 %v3414
          %v4017 = vunpack.c.h.b16 %v3414
          %v4018 = vunpack.c.l.b16 %v3415
          %v4019 = vunpack.c.h.b16 %v3415
          %v4020 = vunpack.c.l.b16 %v3416
          %v4021 = vunpack.c.h.b16 %v3416
          %v4022 = vunpack.c.l.b16 %v3417
          %v4023 = vunpack.c.h.b16 %v3417
          %v4024 = vunpack.c.l.b16 %v3418
          %v4025 = vunpack.c.h.b16 %v3418
          %v4026 = vunpack.c.l.b16 %v3419
          %v4027 = vunpack.c.h.b16 %v3419
          %v4028 = vunpack.c.l.b16 %v3420
          %v4029 = vunpack.c.h.b16 %v3420
          %v4030 = vunpack.c.l.b16 %v3421
          %v4031 = vunpack.c.h.b16 %v3421
          %v4032 = vpack.c.b16 %v4004, %v4000
          %v4033 = vpack.c.b16 %v4005, %v4001
          %v4034 = vpack.c.b16 %v4006, %v4002
          %v4035 = vpack.c.b16 %v4007, %v4003
          %v4036 = vpack.c.b16 %v4012, %v4008
          %v4037 = vpack.c.b16 %v4013, %v4009
          %v4038 = vpack.c.b16 %v4014, %v4010
          %v4039 = vpack.c.b16 %v4015, %v4011
          %v4040 = vpack.c.b16 %v4020, %v4016
          %v4041 = vpack.c.b16 %v4021, %v4017
          %v4042 = vpack.c.b16 %v4022, %v4018
          %v4043 = vpack.c.b16 %v4023, %v4019
          %v4044 = vpack.c.b16 %v4028, %v4024
          %v4045 = vpack.c.b16 %v4029, %v4025
          %v4046 = vpack.c.b16 %v4030, %v4026
          %v4047 = vpack.c.b16 %v4031, %v4027
          %4064 = vmatprep.subr.bf16.mxu0 0
          %4065 = vmatpush1.bf16.msra.mxu0 %v3790
          %4066 = vmatprep.subr.bf16.mxu0 0
          %4067 = vmatpush1.bf16.msra.mxu0 %v3791
          %4068 = vmatprep.subr.bf16.mxu0 0
          %4069 = vmatpush1.bf16.msra.mxu0 %v3792
          %4070 = vmatprep.subr.bf16.mxu0 0
          %4071 = vmatpush1.bf16.msra.mxu0 %v3793
          %4072 = vmatprep.subr.bf16.mxu0 0
          %4073 = vmatpush1.bf16.msra.mxu0 %v3794
          %4074 = vmatprep.subr.bf16.mxu0 0
          %4075 = vmatpush1.bf16.msra.mxu0 %v3795
          %4076 = vmatprep.subr.bf16.mxu0 0
          %4077 = vmatpush1.bf16.msra.mxu0 %v3796
          %4078 = vmatprep.subr.bf16.mxu0 0
          %4079 = vmatpush1.bf16.msra.mxu0 %v3797
          %4080 = vmatprep.subr.bf16.mxu0 0
          %4081 = vmatpush1.bf16.msra.mxu0 %v3798
          %4082 = vmatprep.subr.bf16.mxu0 0
          %4083 = vmatpush1.bf16.msra.mxu0 %v3799
          %4084 = vmatprep.subr.bf16.mxu0 0
          %4085 = vmatpush1.bf16.msra.mxu0 %v3800
          %4086 = vmatprep.subr.bf16.mxu0 0
          %4087 = vmatpush1.bf16.msra.mxu0 %v3801
          %4088 = vmatprep.subr.bf16.mxu0 0
          %4089 = vmatpush1.bf16.msra.mxu0 %v3802
          %4090 = vmatprep.subr.bf16.mxu0 0
          %4091 = vmatpush1.bf16.msra.mxu0 %v3803
          %4092 = vmatprep.subr.bf16.mxu0 0
          %4093 = vmatpush1.bf16.msra.mxu0 %v3804
          %4094 = vmatprep.subr.bf16.mxu0 0
          %4095 = vmatpush1.bf16.msra.mxu0 %v3805
          %4096 = vmatprep.mubr.bf16.mxu0 %v4033
          %4097 = vmatmul.mubr.bf16.gmra.mrb[0].mxu0 %v4032
          %v4098 = vpop.f32.mrb[0].mxu0
          %v4099 = vadd.f32 0.0, %v4098
          %v4100 = vpop.f32.mrb[0].mxu0
          %v4101 = vpop.f32.mrb[0].mxu0
          %v4102 = vadd.f32 0.0, %v4101
          %v4103 = vpop.f32.mrb[0].mxu0
          %4104 = vmatprep.mubr.bf16.mxu0 %v4037
          %4105 = vmatmul.mubr.bf16.gmra.mrb[0].mxu0 %v4036
          %v4106 = vpop.f32.mrb[0].mxu0
          %v4107 = vadd.f32 0.0, %v4106
          %v4108 = vpop.f32.mrb[0].mxu0
          %v4109 = vpop.f32.mrb[0].mxu0
          %v4110 = vadd.f32 0.0, %v4109
          %v4111 = vpop.f32.mrb[0].mxu0
          %4112 = vmatprep.mubr.bf16.mxu0 %v4041
          %4113 = vmatmul.mubr.bf16.gmra.mrb[0].mxu0 %v4040
          %v4114 = vpop.f32.mrb[0].mxu0
          %v4115 = vadd.f32 0.0, %v4114
          %v4116 = vpop.f32.mrb[0].mxu0
          %v4117 = vpop.f32.mrb[0].mxu0
          %v4118 = vadd.f32 0.0, %v4117
          %v4119 = vpop.f32.mrb[0].mxu0
          %4120 = vmatprep.mubr.bf16.mxu0 %v4045
          %4121 = vmatmul.mubr.bf16.gmra.mrb[0].mxu0 %v4044
          %v4122 = vpop.f32.mrb[0].mxu0
          %v4123 = vadd.f32 0.0, %v4122
          %v4124 = vpop.f32.mrb[0].mxu0
          %v4125 = vpop.f32.mrb[0].mxu0
          %v4126 = vadd.f32 0.0, %v4125
          %v4127 = vpop.f32.mrb[0].mxu0
          %4128 = vdwg.mxu0
          %4129 = vmatprep.subr.bf16.mxu0 0
          %4130 = vmatpush1.bf16.msra.mxu0 %v3806
          %4131 = vmatprep.subr.bf16.mxu0 0
          %4132 = vmatpush1.bf16.msra.mxu0 %v3807
          %4133 = vmatprep.subr.bf16.mxu0 0
          %4134 = vmatpush1.bf16.msra.mxu0 %v3808
          %4135 = vmatprep.subr.bf16.mxu0 0
          %4136 = vmatpush1.bf16.msra.mxu0 %v3809
          %4137 = vmatprep.subr.bf16.mxu0 0
          %4138 = vmatpush1.bf16.msra.mxu0 %v3810
          %4139 = vmatprep.subr.bf16.mxu0 0
          %4140 = vmatpush1.bf16.msra.mxu0 %v3811
          %4141 = vmatprep.subr.bf16.mxu0 0
          %4142 = vmatpush1.bf16.msra.mxu0 %v3812
          %4143 = vmatprep.subr.bf16.mxu0 0
          %4144 = vmatpush1.bf16.msra.mxu0 %v3813
          %4145 = vmatprep.subr.bf16.mxu0 0
          %4146 = vmatpush1.bf16.msra.mxu0 %v3814
          %4147 = vmatprep.subr.bf16.mxu0 0
          %4148 = vmatpush1.bf16.msra.mxu0 %v3815
          %4149 = vmatprep.subr.bf16.mxu0 0
          %4150 = vmatpush1.bf16.msra.mxu0 %v3816
          %4151 = vmatprep.subr.bf16.mxu0 0
          %4152 = vmatpush1.bf16.msra.mxu0 %v3817
          %4153 = vmatprep.subr.bf16.mxu0 0
          %4154 = vmatpush1.bf16.msra.mxu0 %v3818
          %4155 = vmatprep.subr.bf16.mxu0 0
          %4156 = vmatpush1.bf16.msra.mxu0 %v3819
          %4157 = vmatprep.subr.bf16.mxu0 0
          %4158 = vmatpush1.bf16.msra.mxu0 %v3820
          %4159 = vmatprep.subr.bf16.mxu0 0
          %4160 = vmatpush1.bf16.msra.mxu0 %v3821
          %4161 = vmatprep.mubr.bf16.mxu0 %v4035
          %4162 = vmatmul.mubr.bf16.gmra.mrb[0].mxu0 %v4034
          %v4163 = vpop.f32.mrb[0].mxu0
          %v4164 = vadd.f32 %v4099, %v4163
          %v4165 = vpop.f32.mrb[0].mxu0
          %v4166 = vpop.f32.mrb[0].mxu0
          %v4167 = vadd.f32 %v4102, %v4166
          %v4168 = vpop.f32.mrb[0].mxu0
          %4169 = vmatprep.mubr.bf16.mxu0 %v4039
          %4170 = vmatmul.mubr.bf16.gmra.mrb[0].mxu0 %v4038
          %v4171 = vpop.f32.mrb[0].mxu0
          %v4172 = vadd.f32 %v4107, %v4171
          %v4173 = vpop.f32.mrb[0].mxu0
          %v4174 = vpop.f32.mrb[0].mxu0
          %v4175 = vadd.f32 %v4110, %v4174
          %v4176 = vpop.f32.mrb[0].mxu0
          %4177 = vmatprep.mubr.bf16.mxu0 %v4043
          %4178 = vmatmul.mubr.bf16.gmra.mrb[0].mxu0 %v4042
          %v4179 = vpop.f32.mrb[0].mxu0
          %v4180 = vadd.f32 %v4115, %v4179
          %v4181 = vpop.f32.mrb[0].mxu0
          %v4182 = vpop.f32.mrb[0].mxu0
          %v4183 = vadd.f32 %v4118, %v4182
          %v4184 = vpop.f32.mrb[0].mxu0
          %4185 = vmatprep.mubr.bf16.mxu0 %v4047
          %4186 = vmatmul.mubr.bf16.gmra.mrb[0].mxu0 %v4046
          %v4187 = vpop.f32.mrb[0].mxu0
          %v4188 = vadd.f32 %v4123, %v4187
          %v4189 = vpop.f32.mrb[0].mxu0
          %v4190 = vpop.f32.mrb[0].mxu0
          %v4191 = vadd.f32 %v4126, %v4190
          %v4192 = vpop.f32.mrb[0].mxu0
          %4193 = vdwg.mxu0
          %v4210 = vunpack.c.l.b16 %v3422
          %v4211 = vunpack.c.h.b16 %v3422
          %v4212 = vunpack.c.l.b16 %v3423
          %v4213 = vunpack.c.h.b16 %v3423
          %v4214 = vunpack.c.l.b16 %v3424
          %v4215 = vunpack.c.h.b16 %v3424
          %v4216 = vunpack.c.l.b16 %v3425
          %v4217 = vunpack.c.h.b16 %v3425
          %v4218 = vunpack.c.l.b16 %v3426
          %v4219 = vunpack.c.h.b16 %v3426
          %v4220 = vunpack.c.l.b16 %v3427
          %v4221 = vunpack.c.h.b16 %v3427
          %v4222 = vunpack.c.l.b16 %v3428
          %v4223 = vunpack.c.h.b16 %v3428
          %v4224 = vunpack.c.l.b16 %v3429
          %v4225 = vunpack.c.h.b16 %v3429
          %v4226 = vunpack.c.l.b16 %v3430
          %v4227 = vunpack.c.h.b16 %v3430
          %v4228 = vunpack.c.l.b16 %v3431
          %v4229 = vunpack.c.h.b16 %v3431
          %v4230 = vunpack.c.l.b16 %v3432
          %v4231 = vunpack.c.h.b16 %v3432
          %v4232 = vunpack.c.l.b16 %v3433
          %v4233 = vunpack.c.h.b16 %v3433
          %v4234 = vunpack.c.l.b16 %v3434
          %v4235 = vunpack.c.h.b16 %v3434
          %v4236 = vunpack.c.l.b16 %v3435
          %v4237 = vunpack.c.h.b16 %v3435
          %v4238 = vunpack.c.l.b16 %v3436
          %v4239 = vunpack.c.h.b16 %v3436
          %v4240 = vunpack.c.l.b16 %v3437
          %v4241 = vunpack.c.h.b16 %v3437
          %v4242 = vpack.c.b16 %v4214, %v4210
          %v4243 = vpack.c.b16 %v4215, %v4211
          %v4244 = vpack.c.b16 %v4216, %v4212
          %v4245 = vpack.c.b16 %v4217, %v4213
          %v4246 = vpack.c.b16 %v4222, %v4218
          %v4247 = vpack.c.b16 %v4223, %v4219
          %v4248 = vpack.c.b16 %v4224, %v4220
          %v4249 = vpack.c.b16 %v4225, %v4221
          %v4250 = vpack.c.b16 %v4230, %v4226
          %v4251 = vpack.c.b16 %v4231, %v4227
          %v4252 = vpack.c.b16 %v4232, %v4228
          %v4253 = vpack.c.b16 %v4233, %v4229
          %v4254 = vpack.c.b16 %v4238, %v4234
          %v4255 = vpack.c.b16 %v4239, %v4235
          %v4256 = vpack.c.b16 %v4240, %v4236
          %v4257 = vpack.c.b16 %v4241, %v4237
          %4274 = vmatprep.subr.bf16.mxu0 0
          %4275 = vmatpush1.bf16.msra.mxu0 %v3790
          %4276 = vmatprep.subr.bf16.mxu0 0
          %4277 = vmatpush1.bf16.msra.mxu0 %v3791
          %4278 = vmatprep.subr.bf16.mxu0 0
          %4279 = vmatpush1.bf16.msra.mxu0 %v3792
          %4280 = vmatprep.subr.bf16.mxu0 0
          %4281 = vmatpush1.bf16.msra.mxu0 %v3793
          %4282 = vmatprep.subr.bf16.mxu0 0
          %4283 = vmatpush1.bf16.msra.mxu0 %v3794
          %4284 = vmatprep.subr.bf16.mxu0 0
          %4285 = vmatpush1.bf16.msra.mxu0 %v3795
          %4286 = vmatprep.subr.bf16.mxu0 0
          %4287 = vmatpush1.bf16.msra.mxu0 %v3796
          %4288 = vmatprep.subr.bf16.mxu0 0
          %4289 = vmatpush1.bf16.msra.mxu0 %v3797
          %4290 = vmatprep.subr.bf16.mxu0 0
          %4291 = vmatpush1.bf16.msra.mxu0 %v3798
          %4292 = vmatprep.subr.bf16.mxu0 0
          %4293 = vmatpush1.bf16.msra.mxu0 %v3799
          %4294 = vmatprep.subr.bf16.mxu0 0
          %4295 = vmatpush1.bf16.msra.mxu0 %v3800
          %4296 = vmatprep.subr.bf16.mxu0 0
          %4297 = vmatpush1.bf16.msra.mxu0 %v3801
          %4298 = vmatprep.subr.bf16.mxu0 0
          %4299 = vmatpush1.bf16.msra.mxu0 %v3802
          %4300 = vmatprep.subr.bf16.mxu0 0
          %4301 = vmatpush1.bf16.msra.mxu0 %v3803
          %4302 = vmatprep.subr.bf16.mxu0 0
          %4303 = vmatpush1.bf16.msra.mxu0 %v3804
          %4304 = vmatprep.subr.bf16.mxu0 0
          %4305 = vmatpush1.bf16.msra.mxu0 %v3805
          %4306 = vmatprep.mubr.bf16.mxu0 %v4243
          %4307 = vmatmul.mubr.bf16.gmra.mrb[0].mxu0 %v4242
          %v4308 = vpop.f32.mrb[0].mxu0
          %v4309 = vadd.f32 0.0, %v4308
          %v4310 = vpop.f32.mrb[0].mxu0
          %v4311 = vpop.f32.mrb[0].mxu0
          %v4312 = vadd.f32 0.0, %v4311
          %v4313 = vpop.f32.mrb[0].mxu0
          %4314 = vmatprep.mubr.bf16.mxu0 %v4247
          %4315 = vmatmul.mubr.bf16.gmra.mrb[0].mxu0 %v4246
          %v4316 = vpop.f32.mrb[0].mxu0
          %v4317 = vadd.f32 0.0, %v4316
          %v4318 = vpop.f32.mrb[0].mxu0
          %v4319 = vpop.f32.mrb[0].mxu0
          %v4320 = vadd.f32 0.0, %v4319
          %v4321 = vpop.f32.mrb[0].mxu0
          %4322 = vmatprep.mubr.bf16.mxu0 %v4251
          %4323 = vmatmul.mubr.bf16.gmra.mrb[0].mxu0 %v4250
          %v4324 = vpop.f32.mrb[0].mxu0
          %v4325 = vadd.f32 0.0, %v4324
          %v4326 = vpop.f32.mrb[0].mxu0
          %v4327 = vpop.f32.mrb[0].mxu0
          %v4328 = vadd.f32 0.0, %v4327
          %v4329 = vpop.f32.mrb[0].mxu0
          %4330 = vmatprep.mubr.bf16.mxu0 %v4255
          %4331 = vmatmul.mubr.bf16.gmra.mrb[0].mxu0 %v4254
          %v4332 = vpop.f32.mrb[0].mxu0
          %v4333 = vadd.f32 0.0, %v4332
          %v4334 = vpop.f32.mrb[0].mxu0
          %v4335 = vpop.f32.mrb[0].mxu0
          %v4336 = vadd.f32 0.0, %v4335
          %v4337 = vpop.f32.mrb[0].mxu0
          %4338 = vdwg.mxu0
          %4339 = vmatprep.subr.bf16.mxu0 0
          %4340 = vmatpush1.bf16.msra.mxu0 %v3806
          %4341 = vmatprep.subr.bf16.mxu0 0
          %4342 = vmatpush1.bf16.msra.mxu0 %v3807
          %4343 = vmatprep.subr.bf16.mxu0 0
          %4344 = vmatpush1.bf16.msra.mxu0 %v3808
          %4345 = vmatprep.subr.bf16.mxu0 0
          %4346 = vmatpush1.bf16.msra.mxu0 %v3809
          %4347 = vmatprep.subr.bf16.mxu0 0
          %4348 = vmatpush1.bf16.msra.mxu0 %v3810
          %4349 = vmatprep.subr.bf16.mxu0 0
          %4350 = vmatpush1.bf16.msra.mxu0 %v3811
          %4351 = vmatprep.subr.bf16.mxu0 0
          %4352 = vmatpush1.bf16.msra.mxu0 %v3812
          %4353 = vmatprep.subr.bf16.mxu0 0
          %4354 = vmatpush1.bf16.msra.mxu0 %v3813
          %4355 = vmatprep.subr.bf16.mxu0 0
          %4356 = vmatpush1.bf16.msra.mxu0 %v3814
          %4357 = vmatprep.subr.bf16.mxu0 0
          %4358 = vmatpush1.bf16.msra.mxu0 %v3815
          %4359 = vmatprep.subr.bf16.mxu0 0
          %4360 = vmatpush1.bf16.msra.mxu0 %v3816
          %4361 = vmatprep.subr.bf16.mxu0 0
          %4362 = vmatpush1.bf16.msra.mxu0 %v3817
          %4363 = vmatprep.subr.bf16.mxu0 0
          %4364 = vmatpush1.bf16.msra.mxu0 %v3818
          %4365 = vmatprep.subr.bf16.mxu0 0
          %4366 = vmatpush1.bf16.msra.mxu0 %v3819
          %4367 = vmatprep.subr.bf16.mxu0 0
          %4368 = vmatpush1.bf16.msra.mxu0 %v3820
          %4369 = vmatprep.subr.bf16.mxu0 0
          %4370 = vmatpush1.bf16.msra.mxu0 %v3821
          %4371 = vmatprep.mubr.bf16.mxu0 %v4245
          %4372 = vmatmul.mubr.bf16.gmra.mrb[0].mxu0 %v4244
          %v4373 = vpop.f32.mrb[0].mxu0
          %v4374 = vadd.f32 %v4309, %v4373
          %v4375 = vpop.f32.mrb[0].mxu0
          %v4376 = vpop.f32.mrb[0].mxu0
          %v4377 = vadd.f32 %v4312, %v4376
          %v4378 = vpop.f32.mrb[0].mxu0
          %4379 = vmatprep.mubr.bf16.mxu0 %v4249
          %4380 = vmatmul.mubr.bf16.gmra.mrb[0].mxu0 %v4248
          %v4381 = vpop.f32.mrb[0].mxu0
          %v4382 = vadd.f32 %v4317, %v4381
          %v4383 = vpop.f32.mrb[0].mxu0
          %v4384 = vpop.f32.mrb[0].mxu0
          %v4385 = vadd.f32 %v4320, %v4384
          %v4386 = vpop.f32.mrb[0].mxu0
          %4387 = vmatprep.mubr.bf16.mxu0 %v4253
          %4388 = vmatmul.mubr.bf16.gmra.mrb[0].mxu0 %v4252
          %v4389 = vpop.f32.mrb[0].mxu0
          %v4390 = vadd.f32 %v4325, %v4389
          %v4391 = vpop.f32.mrb[0].mxu0
          %v4392 = vpop.f32.mrb[0].mxu0
          %v4393 = vadd.f32 %v4328, %v4392
          %v4394 = vpop.f32.mrb[0].mxu0
          %4395 = vmatprep.mubr.bf16.mxu0 %v4257
          %4396 = vmatmul.mubr.bf16.gmra.mrb[0].mxu0 %v4256
          %v4397 = vpop.f32.mrb[0].mxu0
          %v4398 = vadd.f32 %v4333, %v4397
          %v4399 = vpop.f32.mrb[0].mxu0
          %v4400 = vpop.f32.mrb[0].mxu0
          %v4401 = vadd.f32 %v4336, %v4400
          %v4402 = vpop.f32.mrb[0].mxu0
          %4403 = vdwg.mxu0
          %v4420 = vunpack.c.l.b16 %v3438
          %v4421 = vunpack.c.h.b16 %v3438
          %v4422 = vunpack.c.l.b16 %v3439
          %v4423 = vunpack.c.h.b16 %v3439
          %v4424 = vunpack.c.l.b16 %v3440
          %v4425 = vunpack.c.h.b16 %v3440
          %v4426 = vunpack.c.l.b16 %v3441
          %v4427 = vunpack.c.h.b16 %v3441
          %v4428 = vunpack.c.l.b16 %v3442
          %v4429 = vunpack.c.h.b16 %v3442
          %v4430 = vunpack.c.l.b16 %v3443
          %v4431 = vunpack.c.h.b16 %v3443
          %v4432 = vunpack.c.l.b16 %v3444
          %v4433 = vunpack.c.h.b16 %v3444
          %v4434 = vunpack.c.l.b16 %v3445
          %v4435 = vunpack.c.h.b16 %v3445
          %v4436 = vunpack.c.l.b16 %v3446
          %v4437 = vunpack.c.h.b16 %v3446
          %v4438 = vunpack.c.l.b16 %v3447
          %v4439 = vunpack.c.h.b16 %v3447
          %v4440 = vunpack.c.l.b16 %v3448
          %v4441 = vunpack.c.h.b16 %v3448
          %v4442 = vunpack.c.l.b16 %v3449
          %v4443 = vunpack.c.h.b16 %v3449
          %v4444 = vunpack.c.l.b16 %v3450
          %v4445 = vunpack.c.h.b16 %v3450
          %v4446 = vunpack.c.l.b16 %v3451
          %v4447 = vunpack.c.h.b16 %v3451
          %v4448 = vunpack.c.l.b16 %v3452
          %v4449 = vunpack.c.h.b16 %v3452
          %v4450 = vunpack.c.l.b16 %v3453
          %v4451 = vunpack.c.h.b16 %v3453
          %v4452 = vpack.c.b16 %v4424, %v4420
          %v4453 = vpack.c.b16 %v4425, %v4421
          %v4454 = vpack.c.b16 %v4426, %v4422
          %v4455 = vpack.c.b16 %v4427, %v4423
          %v4456 = vpack.c.b16 %v4432, %v4428
          %v4457 = vpack.c.b16 %v4433, %v4429
          %v4458 = vpack.c.b16 %v4434, %v4430
          %v4459 = vpack.c.b16 %v4435, %v4431
          %v4460 = vpack.c.b16 %v4440, %v4436
          %v4461 = vpack.c.b16 %v4441, %v4437
          %v4462 = vpack.c.b16 %v4442, %v4438
          %v4463 = vpack.c.b16 %v4443, %v4439
          %v4464 = vpack.c.b16 %v4448, %v4444
          %v4465 = vpack.c.b16 %v4449, %v4445
          %v4466 = vpack.c.b16 %v4450, %v4446
          %v4467 = vpack.c.b16 %v4451, %v4447
          %4484 = vmatprep.subr.bf16.mxu0 0
          %4485 = vmatpush1.bf16.msra.mxu0 %v3790
          %4486 = vmatprep.subr.bf16.mxu0 0
          %4487 = vmatpush1.bf16.msra.mxu0 %v3791
          %4488 = vmatprep.subr.bf16.mxu0 0
          %4489 = vmatpush1.bf16.msra.mxu0 %v3792
          %4490 = vmatprep.subr.bf16.mxu0 0
          %4491 = vmatpush1.bf16.msra.mxu0 %v3793
          %4492 = vmatprep.subr.bf16.mxu0 0
          %4493 = vmatpush1.bf16.msra.mxu0 %v3794
          %4494 = vmatprep.subr.bf16.mxu0 0
          %4495 = vmatpush1.bf16.msra.mxu0 %v3795
          %4496 = vmatprep.subr.bf16.mxu0 0
          %4497 = vmatpush1.bf16.msra.mxu0 %v3796
          %4498 = vmatprep.subr.bf16.mxu0 0
          %4499 = vmatpush1.bf16.msra.mxu0 %v3797
          %4500 = vmatprep.subr.bf16.mxu0 0
          %4501 = vmatpush1.bf16.msra.mxu0 %v3798
          %4502 = vmatprep.subr.bf16.mxu0 0
          %4503 = vmatpush1.bf16.msra.mxu0 %v3799
          %4504 = vmatprep.subr.bf16.mxu0 0
          %4505 = vmatpush1.bf16.msra.mxu0 %v3800
          %4506 = vmatprep.subr.bf16.mxu0 0
          %4507 = vmatpush1.bf16.msra.mxu0 %v3801
          %4508 = vmatprep.subr.bf16.mxu0 0
          %4509 = vmatpush1.bf16.msra.mxu0 %v3802
          %4510 = vmatprep.subr.bf16.mxu0 0
          %4511 = vmatpush1.bf16.msra.mxu0 %v3803
          %4512 = vmatprep.subr.bf16.mxu0 0
          %4513 = vmatpush1.bf16.msra.mxu0 %v3804
          %4514 = vmatprep.subr.bf16.mxu0 0
          %4515 = vmatpush1.bf16.msra.mxu0 %v3805
          %4516 = vmatprep.mubr.bf16.mxu0 %v4453
          %4517 = vmatmul.mubr.bf16.gmra.mrb[0].mxu0 %v4452
          %v4518 = vpop.f32.mrb[0].mxu0
          %v4519 = vadd.f32 0.0, %v4518
          %v4520 = vpop.f32.mrb[0].mxu0
          %v4521 = vpop.f32.mrb[0].mxu0
          %v4522 = vadd.f32 0.0, %v4521
          %v4523 = vpop.f32.mrb[0].mxu0
          %4524 = vmatprep.mubr.bf16.mxu0 %v4457
          %4525 = vmatmul.mubr.bf16.gmra.mrb[0].mxu0 %v4456
          %v4526 = vpop.f32.mrb[0].mxu0
          %v4527 = vadd.f32 0.0, %v4526
          %v4528 = vpop.f32.mrb[0].mxu0
          %v4529 = vpop.f32.mrb[0].mxu0
          %v4530 = vadd.f32 0.0, %v4529
          %v4531 = vpop.f32.mrb[0].mxu0
          %4532 = vmatprep.mubr.bf16.mxu0 %v4461
          %4533 = vmatmul.mubr.bf16.gmra.mrb[0].mxu0 %v4460
          %v4534 = vpop.f32.mrb[0].mxu0
          %v4535 = vadd.f32 0.0, %v4534
          %v4536 = vpop.f32.mrb[0].mxu0
          %v4537 = vpop.f32.mrb[0].mxu0
          %v4538 = vadd.f32 0.0, %v4537
          %v4539 = vpop.f32.mrb[0].mxu0
          %4540 = vmatprep.mubr.bf16.mxu0 %v4465
          %4541 = vmatmul.mubr.bf16.gmra.mrb[0].mxu0 %v4464
          %v4542 = vpop.f32.mrb[0].mxu0
          %v4543 = vadd.f32 0.0, %v4542
          %v4544 = vpop.f32.mrb[0].mxu0
          %v4545 = vpop.f32.mrb[0].mxu0
          %v4546 = vadd.f32 0.0, %v4545
          %v4547 = vpop.f32.mrb[0].mxu0
          %4548 = vdwg.mxu0
          %4549 = vmatprep.subr.bf16.mxu0 0
          %4550 = vmatpush1.bf16.msra.mxu0 %v3806
          %4551 = vmatprep.subr.bf16.mxu0 0
          %4552 = vmatpush1.bf16.msra.mxu0 %v3807
          %4553 = vmatprep.subr.bf16.mxu0 0
          %4554 = vmatpush1.bf16.msra.mxu0 %v3808
          %4555 = vmatprep.subr.bf16.mxu0 0
          %4556 = vmatpush1.bf16.msra.mxu0 %v3809
          %4557 = vmatprep.subr.bf16.mxu0 0
          %4558 = vmatpush1.bf16.msra.mxu0 %v3810
          %4559 = vmatprep.subr.bf16.mxu0 0
          %4560 = vmatpush1.bf16.msra.mxu0 %v3811
          %4561 = vmatprep.subr.bf16.mxu0 0
          %4562 = vmatpush1.bf16.msra.mxu0 %v3812
          %4563 = vmatprep.subr.bf16.mxu0 0
          %4564 = vmatpush1.bf16.msra.mxu0 %v3813
          %4565 = vmatprep.subr.bf16.mxu0 0
          %4566 = vmatpush1.bf16.msra.mxu0 %v3814
          %4567 = vmatprep.subr.bf16.mxu0 0
          %4568 = vmatpush1.bf16.msra.mxu0 %v3815
          %4569 = vmatprep.subr.bf16.mxu0 0
          %4570 = vmatpush1.bf16.msra.mxu0 %v3816
          %4571 = vmatprep.subr.bf16.mxu0 0
          %4572 = vmatpush1.bf16.msra.mxu0 %v3817
          %4573 = vmatprep.subr.bf16.mxu0 0
          %4574 = vmatpush1.bf16.msra.mxu0 %v3818
          %4575 = vmatprep.subr.bf16.mxu0 0
          %4576 = vmatpush1.bf16.msra.mxu0 %v3819
          %4577 = vmatprep.subr.bf16.mxu0 0
          %4578 = vmatpush1.bf16.msra.mxu0 %v3820
          %4579 = vmatprep.subr.bf16.mxu0 0
          %4580 = vmatpush1.bf16.msra.mxu0 %v3821
          %4581 = vmatprep.mubr.bf16.mxu0 %v4455
          %4582 = vmatmul.mubr.bf16.gmra.mrb[0].mxu0 %v4454
          %v4583 = vpop.f32.mrb[0].mxu0
          %v4584 = vadd.f32 %v4519, %v4583
          %v4585 = vpop.f32.mrb[0].mxu0
          %v4586 = vpop.f32.mrb[0].mxu0
          %v4587 = vadd.f32 %v4522, %v4586
          %v4588 = vpop.f32.mrb[0].mxu0
          %4589 = vmatprep.mubr.bf16.mxu0 %v4459
          %4590 = vmatmul.mubr.bf16.gmra.mrb[0].mxu0 %v4458
          %v4591 = vpop.f32.mrb[0].mxu0
          %v4592 = vadd.f32 %v4527, %v4591
          %v4593 = vpop.f32.mrb[0].mxu0
          %v4594 = vpop.f32.mrb[0].mxu0
          %v4595 = vadd.f32 %v4530, %v4594
          %v4596 = vpop.f32.mrb[0].mxu0
          %4597 = vmatprep.mubr.bf16.mxu0 %v4463
          %4598 = vmatmul.mubr.bf16.gmra.mrb[0].mxu0 %v4462
          %v4599 = vpop.f32.mrb[0].mxu0
          %v4600 = vadd.f32 %v4535, %v4599
          %v4601 = vpop.f32.mrb[0].mxu0
          %v4602 = vpop.f32.mrb[0].mxu0
          %v4603 = vadd.f32 %v4538, %v4602
          %v4604 = vpop.f32.mrb[0].mxu0
          %4605 = vmatprep.mubr.bf16.mxu0 %v4467
          %4606 = vmatmul.mubr.bf16.gmra.mrb[0].mxu0 %v4466
          %v4607 = vpop.f32.mrb[0].mxu0
          %v4608 = vadd.f32 %v4543, %v4607
          %v4609 = vpop.f32.mrb[0].mxu0
          %v4610 = vpop.f32.mrb[0].mxu0
          %v4611 = vadd.f32 %v4546, %v4610
          %v4612 = vpop.f32.mrb[0].mxu0
          %4613 = vdwg.mxu0
          %v4630 = vunpack.c.l.b16 %v3454
          %v4631 = vunpack.c.h.b16 %v3454
          %v4632 = vunpack.c.l.b16 %v3455
          %v4633 = vunpack.c.h.b16 %v3455
          %v4634 = vunpack.c.l.b16 %v3456
          %v4635 = vunpack.c.h.b16 %v3456
          %v4636 = vunpack.c.l.b16 %v3457
          %v4637 = vunpack.c.h.b16 %v3457
          %v4638 = vunpack.c.l.b16 %v3458
          %v4639 = vunpack.c.h.b16 %v3458
          %v4640 = vunpack.c.l.b16 %v3459
          %v4641 = vunpack.c.h.b16 %v3459
          %v4642 = vunpack.c.l.b16 %v3460
          %v4643 = vunpack.c.h.b16 %v3460
          %v4644 = vunpack.c.l.b16 %v3461
          %v4645 = vunpack.c.h.b16 %v3461
          %v4646 = vunpack.c.l.b16 %v3462
          %v4647 = vunpack.c.h.b16 %v3462
          %v4648 = vunpack.c.l.b16 %v3463
          %v4649 = vunpack.c.h.b16 %v3463
          %v4650 = vunpack.c.l.b16 %v3464
          %v4651 = vunpack.c.h.b16 %v3464
          %v4652 = vunpack.c.l.b16 %v3465
          %v4653 = vunpack.c.h.b16 %v3465
          %v4654 = vunpack.c.l.b16 %v3466
          %v4655 = vunpack.c.h.b16 %v3466
          %v4656 = vunpack.c.l.b16 %v3467
          %v4657 = vunpack.c.h.b16 %v3467
          %v4658 = vunpack.c.l.b16 %v3468
          %v4659 = vunpack.c.h.b16 %v3468
          %v4660 = vunpack.c.l.b16 %v3469
          %v4661 = vunpack.c.h.b16 %v3469
          %v4662 = vpack.c.b16 %v4634, %v4630
          %v4663 = vpack.c.b16 %v4635, %v4631
          %v4664 = vpack.c.b16 %v4636, %v4632
          %v4665 = vpack.c.b16 %v4637, %v4633
          %v4666 = vpack.c.b16 %v4642, %v4638
          %v4667 = vpack.c.b16 %v4643, %v4639
          %v4668 = vpack.c.b16 %v4644, %v4640
          %v4669 = vpack.c.b16 %v4645, %v4641
          %v4670 = vpack.c.b16 %v4650, %v4646
          %v4671 = vpack.c.b16 %v4651, %v4647
          %v4672 = vpack.c.b16 %v4652, %v4648
          %v4673 = vpack.c.b16 %v4653, %v4649
          %v4674 = vpack.c.b16 %v4658, %v4654
          %v4675 = vpack.c.b16 %v4659, %v4655
          %v4676 = vpack.c.b16 %v4660, %v4656
          %v4677 = vpack.c.b16 %v4661, %v4657
          %4694 = vmatprep.subr.bf16.mxu0 0
          %4695 = vmatpush1.bf16.msra.mxu0 %v3790
          %4696 = vmatprep.subr.bf16.mxu0 0
          %4697 = vmatpush1.bf16.msra.mxu0 %v3791
          %4698 = vmatprep.subr.bf16.mxu0 0
          %4699 = vmatpush1.bf16.msra.mxu0 %v3792
          %4700 = vmatprep.subr.bf16.mxu0 0
          %4701 = vmatpush1.bf16.msra.mxu0 %v3793
          %4702 = vmatprep.subr.bf16.mxu0 0
          %4703 = vmatpush1.bf16.msra.mxu0 %v3794
          %4704 = vmatprep.subr.bf16.mxu0 0
          %4705 = vmatpush1.bf16.msra.mxu0 %v3795
          %4706 = vmatprep.subr.bf16.mxu0 0
          %4707 = vmatpush1.bf16.msra.mxu0 %v3796
          %4708 = vmatprep.subr.bf16.mxu0 0
          %4709 = vmatpush1.bf16.msra.mxu0 %v3797
          %4710 = vmatprep.subr.bf16.mxu0 0
          %4711 = vmatpush1.bf16.msra.mxu0 %v3798
          %4712 = vmatprep.subr.bf16.mxu0 0
          %4713 = vmatpush1.bf16.msra.mxu0 %v3799
          %4714 = vmatprep.subr.bf16.mxu0 0
          %4715 = vmatpush1.bf16.msra.mxu0 %v3800
          %4716 = vmatprep.subr.bf16.mxu0 0
          %4717 = vmatpush1.bf16.msra.mxu0 %v3801
          %4718 = vmatprep.subr.bf16.mxu0 0
          %4719 = vmatpush1.bf16.msra.mxu0 %v3802
          %4720 = vmatprep.subr.bf16.mxu0 0
          %4721 = vmatpush1.bf16.msra.mxu0 %v3803
          %4722 = vmatprep.subr.bf16.mxu0 0
          %4723 = vmatpush1.bf16.msra.mxu0 %v3804
          %4724 = vmatprep.subr.bf16.mxu0 0
          %4725 = vmatpush1.bf16.msra.mxu0 %v3805
          %4726 = vmatprep.mubr.bf16.mxu0 %v4663
          %4727 = vmatmul.mubr.bf16.gmra.mrb[0].mxu0 %v4662
          %v4728 = vpop.f32.mrb[0].mxu0
          %v4729 = vadd.f32 0.0, %v4728
          %v4730 = vpop.f32.mrb[0].mxu0
          %v4731 = vpop.f32.mrb[0].mxu0
          %v4732 = vadd.f32 0.0, %v4731
          %v4733 = vpop.f32.mrb[0].mxu0
          %4734 = vmatprep.mubr.bf16.mxu0 %v4667
          %4735 = vmatmul.mubr.bf16.gmra.mrb[0].mxu0 %v4666
          %v4736 = vpop.f32.mrb[0].mxu0
          %v4737 = vadd.f32 0.0, %v4736
          %v4738 = vpop.f32.mrb[0].mxu0
          %v4739 = vpop.f32.mrb[0].mxu0
          %v4740 = vadd.f32 0.0, %v4739
          %v4741 = vpop.f32.mrb[0].mxu0
          %4742 = vmatprep.mubr.bf16.mxu0 %v4671
          %4743 = vmatmul.mubr.bf16.gmra.mrb[0].mxu0 %v4670
          %v4744 = vpop.f32.mrb[0].mxu0
          %v4745 = vadd.f32 0.0, %v4744
          %v4746 = vpop.f32.mrb[0].mxu0
          %v4747 = vpop.f32.mrb[0].mxu0
          %v4748 = vadd.f32 0.0, %v4747
          %v4749 = vpop.f32.mrb[0].mxu0
          %4750 = vmatprep.mubr.bf16.mxu0 %v4675
          %4751 = vmatmul.mubr.bf16.gmra.mrb[0].mxu0 %v4674
          %v4752 = vpop.f32.mrb[0].mxu0
          %v4753 = vadd.f32 0.0, %v4752
          %v4754 = vpop.f32.mrb[0].mxu0
          %v4755 = vpop.f32.mrb[0].mxu0
          %v4756 = vadd.f32 0.0, %v4755
          %v4757 = vpop.f32.mrb[0].mxu0
          %4758 = vdwg.mxu0
          %4759 = vmatprep.subr.bf16.mxu0 0
          %4760 = vmatpush1.bf16.msra.mxu0 %v3806
          %4761 = vmatprep.subr.bf16.mxu0 0
          %4762 = vmatpush1.bf16.msra.mxu0 %v3807
          %4763 = vmatprep.subr.bf16.mxu0 0
          %4764 = vmatpush1.bf16.msra.mxu0 %v3808
          %4765 = vmatprep.subr.bf16.mxu0 0
          %4766 = vmatpush1.bf16.msra.mxu0 %v3809
          %4767 = vmatprep.subr.bf16.mxu0 0
          %4768 = vmatpush1.bf16.msra.mxu0 %v3810
          %4769 = vmatprep.subr.bf16.mxu0 0
          %4770 = vmatpush1.bf16.msra.mxu0 %v3811
          %4771 = vmatprep.subr.bf16.mxu0 0
          %4772 = vmatpush1.bf16.msra.mxu0 %v3812
          %4773 = vmatprep.subr.bf16.mxu0 0
          %4774 = vmatpush1.bf16.msra.mxu0 %v3813
          %4775 = vmatprep.subr.bf16.mxu0 0
          %4776 = vmatpush1.bf16.msra.mxu0 %v3814
          %4777 = vmatprep.subr.bf16.mxu0 0
          %4778 = vmatpush1.bf16.msra.mxu0 %v3815
          %4779 = vmatprep.subr.bf16.mxu0 0
          %4780 = vmatpush1.bf16.msra.mxu0 %v3816
          %4781 = vmatprep.subr.bf16.mxu0 0
          %4782 = vmatpush1.bf16.msra.mxu0 %v3817
          %4783 = vmatprep.subr.bf16.mxu0 0
          %4784 = vmatpush1.bf16.msra.mxu0 %v3818
          %4785 = vmatprep.subr.bf16.mxu0 0
          %4786 = vmatpush1.bf16.msra.mxu0 %v3819
          %4787 = vmatprep.subr.bf16.mxu0 0
          %4788 = vmatpush1.bf16.msra.mxu0 %v3820
          %4789 = vmatprep.subr.bf16.mxu0 0
          %4790 = vmatpush1.bf16.msra.mxu0 %v3821
          %4791 = vmatprep.mubr.bf16.mxu0 %v4665
          %4792 = vmatmul.mubr.bf16.gmra.mrb[0].mxu0 %v4664
          %v4793 = vpop.f32.mrb[0].mxu0
          %v4794 = vadd.f32 %v4729, %v4793
          %v4795 = vpop.f32.mrb[0].mxu0
          %v4796 = vpop.f32.mrb[0].mxu0
          %v4797 = vadd.f32 %v4732, %v4796
          %v4798 = vpop.f32.mrb[0].mxu0
          %4799 = vmatprep.mubr.bf16.mxu0 %v4669
          %4800 = vmatmul.mubr.bf16.gmra.mrb[0].mxu0 %v4668
          %v4801 = vpop.f32.mrb[0].mxu0
          %v4802 = vadd.f32 %v4737, %v4801
          %v4803 = vpop.f32.mrb[0].mxu0
          %v4804 = vpop.f32.mrb[0].mxu0
          %v4805 = vadd.f32 %v4740, %v4804
          %v4806 = vpop.f32.mrb[0].mxu0
          %4807 = vmatprep.mubr.bf16.mxu0 %v4673
          %4808 = vmatmul.mubr.bf16.gmra.mrb[0].mxu0 %v4672
          %v4809 = vpop.f32.mrb[0].mxu0
          %v4810 = vadd.f32 %v4745, %v4809
          %v4811 = vpop.f32.mrb[0].mxu0
          %v4812 = vpop.f32.mrb[0].mxu0
          %v4813 = vadd.f32 %v4748, %v4812
          %v4814 = vpop.f32.mrb[0].mxu0
          %4815 = vmatprep.mubr.bf16.mxu0 %v4677
          %4816 = vmatmul.mubr.bf16.gmra.mrb[0].mxu0 %v4676
          %v4817 = vpop.f32.mrb[0].mxu0
          %v4818 = vadd.f32 %v4753, %v4817
          %v4819 = vpop.f32.mrb[0].mxu0
          %v4820 = vpop.f32.mrb[0].mxu0
          %v4821 = vadd.f32 %v4756, %v4820
          %v4822 = vpop.f32.mrb[0].mxu0
          %4823 = vdwg.mxu0
          %v4840 = vunpack.c.l.b16 %v3470
          %v4841 = vunpack.c.h.b16 %v3470
          %v4842 = vunpack.c.l.b16 %v3471
          %v4843 = vunpack.c.h.b16 %v3471
          %v4844 = vunpack.c.l.b16 %v3472
          %v4845 = vunpack.c.h.b16 %v3472
          %v4846 = vunpack.c.l.b16 %v3473
          %v4847 = vunpack.c.h.b16 %v3473
          %v4848 = vunpack.c.l.b16 %v3474
          %v4849 = vunpack.c.h.b16 %v3474
          %v4850 = vunpack.c.l.b16 %v3475
          %v4851 = vunpack.c.h.b16 %v3475
          %v4852 = vunpack.c.l.b16 %v3476
          %v4853 = vunpack.c.h.b16 %v3476
          %v4854 = vunpack.c.l.b16 %v3477
          %v4855 = vunpack.c.h.b16 %v3477
          %v4856 = vunpack.c.l.b16 %v3478
          %v4857 = vunpack.c.h.b16 %v3478
          %v4858 = vunpack.c.l.b16 %v3479
          %v4859 = vunpack.c.h.b16 %v3479
          %v4860 = vunpack.c.l.b16 %v3480
          %v4861 = vunpack.c.h.b16 %v3480
          %v4862 = vunpack.c.l.b16 %v3481
          %v4863 = vunpack.c.h.b16 %v3481
          %v4864 = vunpack.c.l.b16 %v3482
          %v4865 = vunpack.c.h.b16 %v3482
          %v4866 = vunpack.c.l.b16 %v3483
          %v4867 = vunpack.c.h.b16 %v3483
          %v4868 = vunpack.c.l.b16 %v3484
          %v4869 = vunpack.c.h.b16 %v3484
          %v4870 = vunpack.c.l.b16 %v3485
          %v4871 = vunpack.c.h.b16 %v3485
          %v4872 = vpack.c.b16 %v4844, %v4840
          %v4873 = vpack.c.b16 %v4845, %v4841
          %v4874 = vpack.c.b16 %v4846, %v4842
          %v4875 = vpack.c.b16 %v4847, %v4843
          %v4876 = vpack.c.b16 %v4852, %v4848
          %v4877 = vpack.c.b16 %v4853, %v4849
          %v4878 = vpack.c.b16 %v4854, %v4850
          %v4879 = vpack.c.b16 %v4855, %v4851
          %v4880 = vpack.c.b16 %v4860, %v4856
          %v4881 = vpack.c.b16 %v4861, %v4857
          %v4882 = vpack.c.b16 %v4862, %v4858
          %v4883 = vpack.c.b16 %v4863, %v4859
          %v4884 = vpack.c.b16 %v4868, %v4864
          %v4885 = vpack.c.b16 %v4869, %v4865
          %v4886 = vpack.c.b16 %v4870, %v4866
          %v4887 = vpack.c.b16 %v4871, %v4867
          %4904 = vmatprep.subr.bf16.mxu0 0
          %4905 = vmatpush1.bf16.msra.mxu0 %v3790
          %4906 = vmatprep.subr.bf16.mxu0 0
          %4907 = vmatpush1.bf16.msra.mxu0 %v3791
          %4908 = vmatprep.subr.bf16.mxu0 0
          %4909 = vmatpush1.bf16.msra.mxu0 %v3792
          %4910 = vmatprep.subr.bf16.mxu0 0
          %4911 = vmatpush1.bf16.msra.mxu0 %v3793
          %4912 = vmatprep.subr.bf16.mxu0 0
          %4913 = vmatpush1.bf16.msra.mxu0 %v3794
          %4914 = vmatprep.subr.bf16.mxu0 0
          %4915 = vmatpush1.bf16.msra.mxu0 %v3795
          %4916 = vmatprep.subr.bf16.mxu0 0
          %4917 = vmatpush1.bf16.msra.mxu0 %v3796
          %4918 = vmatprep.subr.bf16.mxu0 0
          %4919 = vmatpush1.bf16.msra.mxu0 %v3797
          %4920 = vmatprep.subr.bf16.mxu0 0
          %4921 = vmatpush1.bf16.msra.mxu0 %v3798
          %4922 = vmatprep.subr.bf16.mxu0 0
          %4923 = vmatpush1.bf16.msra.mxu0 %v3799
          %4924 = vmatprep.subr.bf16.mxu0 0
          %4925 = vmatpush1.bf16.msra.mxu0 %v3800
          %4926 = vmatprep.subr.bf16.mxu0 0
          %4927 = vmatpush1.bf16.msra.mxu0 %v3801
          %4928 = vmatprep.subr.bf16.mxu0 0
          %4929 = vmatpush1.bf16.msra.mxu0 %v3802
          %4930 = vmatprep.subr.bf16.mxu0 0
          %4931 = vmatpush1.bf16.msra.mxu0 %v3803
          %4932 = vmatprep.subr.bf16.mxu0 0
          %4933 = vmatpush1.bf16.msra.mxu0 %v3804
          %4934 = vmatprep.subr.bf16.mxu0 0
          %4935 = vmatpush1.bf16.msra.mxu0 %v3805
          %4936 = vmatprep.mubr.bf16.mxu0 %v4873
          %4937 = vmatmul.mubr.bf16.gmra.mrb[0].mxu0 %v4872
          %v4938 = vpop.f32.mrb[0].mxu0
          %v4939 = vadd.f32 0.0, %v4938
          %v4940 = vpop.f32.mrb[0].mxu0
          %v4941 = vpop.f32.mrb[0].mxu0
          %v4942 = vadd.f32 0.0, %v4941
          %v4943 = vpop.f32.mrb[0].mxu0
          %4944 = vmatprep.mubr.bf16.mxu0 %v4877
          %4945 = vmatmul.mubr.bf16.gmra.mrb[0].mxu0 %v4876
          %v4946 = vpop.f32.mrb[0].mxu0
          %v4947 = vadd.f32 0.0, %v4946
          %v4948 = vpop.f32.mrb[0].mxu0
          %v4949 = vpop.f32.mrb[0].mxu0
          %v4950 = vadd.f32 0.0, %v4949
          %v4951 = vpop.f32.mrb[0].mxu0
          %4952 = vmatprep.mubr.bf16.mxu0 %v4881
          %4953 = vmatmul.mubr.bf16.gmra.mrb[0].mxu0 %v4880
          %v4954 = vpop.f32.mrb[0].mxu0
          %v4955 = vadd.f32 0.0, %v4954
          %v4956 = vpop.f32.mrb[0].mxu0
          %v4957 = vpop.f32.mrb[0].mxu0
          %v4958 = vadd.f32 0.0, %v4957
          %v4959 = vpop.f32.mrb[0].mxu0
          %4960 = vmatprep.mubr.bf16.mxu0 %v4885
          %4961 = vmatmul.mubr.bf16.gmra.mrb[0].mxu0 %v4884
          %v4962 = vpop.f32.mrb[0].mxu0
          %v4963 = vadd.f32 0.0, %v4962
          %v4964 = vpop.f32.mrb[0].mxu0
          %v4965 = vpop.f32.mrb[0].mxu0
          %v4966 = vadd.f32 0.0, %v4965
          %v4967 = vpop.f32.mrb[0].mxu0
          %4968 = vdwg.mxu0
          %4969 = vmatprep.subr.bf16.mxu0 0
          %4970 = vmatpush1.bf16.msra.mxu0 %v3806
          %4971 = vmatprep.subr.bf16.mxu0 0
          %4972 = vmatpush1.bf16.msra.mxu0 %v3807
          %4973 = vmatprep.subr.bf16.mxu0 0
          %4974 = vmatpush1.bf16.msra.mxu0 %v3808
          %4975 = vmatprep.subr.bf16.mxu0 0
          %4976 = vmatpush1.bf16.msra.mxu0 %v3809
          %4977 = vmatprep.subr.bf16.mxu0 0
          %4978 = vmatpush1.bf16.msra.mxu0 %v3810
          %4979 = vmatprep.subr.bf16.mxu0 0
          %4980 = vmatpush1.bf16.msra.mxu0 %v3811
          %4981 = vmatprep.subr.bf16.mxu0 0
          %4982 = vmatpush1.bf16.msra.mxu0 %v3812
          %4983 = vmatprep.subr.bf16.mxu0 0
          %4984 = vmatpush1.bf16.msra.mxu0 %v3813
          %4985 = vmatprep.subr.bf16.mxu0 0
          %4986 = vmatpush1.bf16.msra.mxu0 %v3814
          %4987 = vmatprep.subr.bf16.mxu0 0
          %4988 = vmatpush1.bf16.msra.mxu0 %v3815
          %4989 = vmatprep.subr.bf16.mxu0 0
          %4990 = vmatpush1.bf16.msra.mxu0 %v3816
          %4991 = vmatprep.subr.bf16.mxu0 0
          %4992 = vmatpush1.bf16.msra.mxu0 %v3817
          %4993 = vmatprep.subr.bf16.mxu0 0
          %4994 = vmatpush1.bf16.msra.mxu0 %v3818
          %4995 = vmatprep.subr.bf16.mxu0 0
          %4996 = vmatpush1.bf16.msra.mxu0 %v3819
          %4997 = vmatprep.subr.bf16.mxu0 0
          %4998 = vmatpush1.bf16.msra.mxu0 %v3820
          %4999 = vmatprep.subr.bf16.mxu0 0
          %5000 = vmatpush1.bf16.msra.mxu0 %v3821
          %5001 = vmatprep.mubr.bf16.mxu0 %v4875
          %5002 = vmatmul.mubr.bf16.gmra.mrb[0].mxu0 %v4874
          %v5003 = vpop.f32.mrb[0].mxu0
          %v5004 = vadd.f32 %v4939, %v5003
          %v5005 = vpop.f32.mrb[0].mxu0
          %v5006 = vpop.f32.mrb[0].mxu0
          %v5007 = vadd.f32 %v4942, %v5006
          %v5008 = vpop.f32.mrb[0].mxu0
          %5009 = vmatprep.mubr.bf16.mxu0 %v4879
          %5010 = vmatmul.mubr.bf16.gmra.mrb[0].mxu0 %v4878
          %v5011 = vpop.f32.mrb[0].mxu0
          %v5012 = vadd.f32 %v4947, %v5011
          %v5013 = vpop.f32.mrb[0].mxu0
          %v5014 = vpop.f32.mrb[0].mxu0
          %v5015 = vadd.f32 %v4950, %v5014
          %v5016 = vpop.f32.mrb[0].mxu0
          %5017 = vmatprep.mubr.bf16.mxu0 %v4883
          %5018 = vmatmul.mubr.bf16.gmra.mrb[0].mxu0 %v4882
          %v5019 = vpop.f32.mrb[0].mxu0
          %v5020 = vadd.f32 %v4955, %v5019
          %v5021 = vpop.f32.mrb[0].mxu0
          %v5022 = vpop.f32.mrb[0].mxu0
          %v5023 = vadd.f32 %v4958, %v5022
          %v5024 = vpop.f32.mrb[0].mxu0
          %5025 = vmatprep.mubr.bf16.mxu0 %v4887
          %5026 = vmatmul.mubr.bf16.gmra.mrb[0].mxu0 %v4886
          %v5027 = vpop.f32.mrb[0].mxu0
          %v5028 = vadd.f32 %v4963, %v5027
          %v5029 = vpop.f32.mrb[0].mxu0
          %v5030 = vpop.f32.mrb[0].mxu0
          %v5031 = vadd.f32 %v4966, %v5030
          %v5032 = vpop.f32.mrb[0].mxu0
          %5033 = vdwg.mxu0
          %v5050 = vunpack.c.l.b16 %v3486
          %v5051 = vunpack.c.h.b16 %v3486
          %v5052 = vunpack.c.l.b16 %v3487
          %v5053 = vunpack.c.h.b16 %v3487
          %v5054 = vunpack.c.l.b16 %v3488
          %v5055 = vunpack.c.h.b16 %v3488
          %v5056 = vunpack.c.l.b16 %v3489
          %v5057 = vunpack.c.h.b16 %v3489
          %v5058 = vunpack.c.l.b16 %v3490
          %v5059 = vunpack.c.h.b16 %v3490
          %v5060 = vunpack.c.l.b16 %v3491
          %v5061 = vunpack.c.h.b16 %v3491
          %v5062 = vunpack.c.l.b16 %v3492
          %v5063 = vunpack.c.h.b16 %v3492
          %v5064 = vunpack.c.l.b16 %v3493
          %v5065 = vunpack.c.h.b16 %v3493
          %v5066 = vunpack.c.l.b16 %v3494
          %v5067 = vunpack.c.h.b16 %v3494
          %v5068 = vunpack.c.l.b16 %v3495
          %v5069 = vunpack.c.h.b16 %v3495
          %v5070 = vunpack.c.l.b16 %v3496
          %v5071 = vunpack.c.h.b16 %v3496
          %v5072 = vunpack.c.l.b16 %v3497
          %v5073 = vunpack.c.h.b16 %v3497
          %v5074 = vunpack.c.l.b16 %v3498
          %v5075 = vunpack.c.h.b16 %v3498
          %v5076 = vunpack.c.l.b16 %v3499
          %v5077 = vunpack.c.h.b16 %v3499
          %v5078 = vunpack.c.l.b16 %v3500
          %v5079 = vunpack.c.h.b16 %v3500
          %v5080 = vunpack.c.l.b16 %v3501
          %v5081 = vunpack.c.h.b16 %v3501
          %v5082 = vpack.c.b16 %v5054, %v5050
          %v5083 = vpack.c.b16 %v5055, %v5051
          %v5084 = vpack.c.b16 %v5056, %v5052
          %v5085 = vpack.c.b16 %v5057, %v5053
          %v5086 = vpack.c.b16 %v5062, %v5058
          %v5087 = vpack.c.b16 %v5063, %v5059
          %v5088 = vpack.c.b16 %v5064, %v5060
          %v5089 = vpack.c.b16 %v5065, %v5061
          %v5090 = vpack.c.b16 %v5070, %v5066
          %v5091 = vpack.c.b16 %v5071, %v5067
          %v5092 = vpack.c.b16 %v5072, %v5068
          %v5093 = vpack.c.b16 %v5073, %v5069
          %v5094 = vpack.c.b16 %v5078, %v5074
          %v5095 = vpack.c.b16 %v5079, %v5075
          %v5096 = vpack.c.b16 %v5080, %v5076
          %v5097 = vpack.c.b16 %v5081, %v5077
          %5114 = vmatprep.subr.bf16.mxu0 0
          %5115 = vmatpush1.bf16.msra.mxu0 %v3790
          %5116 = vmatprep.subr.bf16.mxu0 0
          %5117 = vmatpush1.bf16.msra.mxu0 %v3791
          %5118 = vmatprep.subr.bf16.mxu0 0
          %5119 = vmatpush1.bf16.msra.mxu0 %v3792
          %5120 = vmatprep.subr.bf16.mxu0 0
          %5121 = vmatpush1.bf16.msra.mxu0 %v3793
          %5122 = vmatprep.subr.bf16.mxu0 0
          %5123 = vmatpush1.bf16.msra.mxu0 %v3794
          %5124 = vmatprep.subr.bf16.mxu0 0
          %5125 = vmatpush1.bf16.msra.mxu0 %v3795
          %5126 = vmatprep.subr.bf16.mxu0 0
          %5127 = vmatpush1.bf16.msra.mxu0 %v3796
          %5128 = vmatprep.subr.bf16.mxu0 0
          %5129 = vmatpush1.bf16.msra.mxu0 %v3797
          %5130 = vmatprep.subr.bf16.mxu0 0
          %5131 = vmatpush1.bf16.msra.mxu0 %v3798
          %5132 = vmatprep.subr.bf16.mxu0 0
          %5133 = vmatpush1.bf16.msra.mxu0 %v3799
          %5134 = vmatprep.subr.bf16.mxu0 0
          %5135 = vmatpush1.bf16.msra.mxu0 %v3800
          %5136 = vmatprep.subr.bf16.mxu0 0
          %5137 = vmatpush1.bf16.msra.mxu0 %v3801
          %5138 = vmatprep.subr.bf16.mxu0 0
          %5139 = vmatpush1.bf16.msra.mxu0 %v3802
          %5140 = vmatprep.subr.bf16.mxu0 0
          %5141 = vmatpush1.bf16.msra.mxu0 %v3803
          %5142 = vmatprep.subr.bf16.mxu0 0
          %5143 = vmatpush1.bf16.msra.mxu0 %v3804
          %5144 = vmatprep.subr.bf16.mxu0 0
          %5145 = vmatpush1.bf16.msra.mxu0 %v3805
          %5146 = vmatprep.mubr.bf16.mxu0 %v5083
          %5147 = vmatmul.mubr.bf16.gmra.mrb[0].mxu0 %v5082
          %v5148 = vpop.f32.mrb[0].mxu0
          %v5149 = vadd.f32 0.0, %v5148
          %v5150 = vpop.f32.mrb[0].mxu0
          %v5151 = vpop.f32.mrb[0].mxu0
          %v5152 = vadd.f32 0.0, %v5151
          %v5153 = vpop.f32.mrb[0].mxu0
          %5154 = vmatprep.mubr.bf16.mxu0 %v5087
          %5155 = vmatmul.mubr.bf16.gmra.mrb[0].mxu0 %v5086
          %v5156 = vpop.f32.mrb[0].mxu0
          %v5157 = vadd.f32 0.0, %v5156
          %v5158 = vpop.f32.mrb[0].mxu0
          %v5159 = vpop.f32.mrb[0].mxu0
          %v5160 = vadd.f32 0.0, %v5159
          %v5161 = vpop.f32.mrb[0].mxu0
          %5162 = vmatprep.mubr.bf16.mxu0 %v5091
          %5163 = vmatmul.mubr.bf16.gmra.mrb[0].mxu0 %v5090
          %v5164 = vpop.f32.mrb[0].mxu0
          %v5165 = vadd.f32 0.0, %v5164
          %v5166 = vpop.f32.mrb[0].mxu0
          %v5167 = vpop.f32.mrb[0].mxu0
          %v5168 = vadd.f32 0.0, %v5167
          %v5169 = vpop.f32.mrb[0].mxu0
          %5170 = vmatprep.mubr.bf16.mxu0 %v5095
          %5171 = vmatmul.mubr.bf16.gmra.mrb[0].mxu0 %v5094
          %v5172 = vpop.f32.mrb[0].mxu0
          %v5173 = vadd.f32 0.0, %v5172
          %v5174 = vpop.f32.mrb[0].mxu0
          %v5175 = vpop.f32.mrb[0].mxu0
          %v5176 = vadd.f32 0.0, %v5175
          %v5177 = vpop.f32.mrb[0].mxu0
          %5178 = vdwg.mxu0
          %5179 = vmatprep.subr.bf16.mxu0 0
          %5180 = vmatpush1.bf16.msra.mxu0 %v3806
          %5181 = vmatprep.subr.bf16.mxu0 0
          %5182 = vmatpush1.bf16.msra.mxu0 %v3807
          %5183 = vmatprep.subr.bf16.mxu0 0
          %5184 = vmatpush1.bf16.msra.mxu0 %v3808
          %5185 = vmatprep.subr.bf16.mxu0 0
          %5186 = vmatpush1.bf16.msra.mxu0 %v3809
          %5187 = vmatprep.subr.bf16.mxu0 0
          %5188 = vmatpush1.bf16.msra.mxu0 %v3810
          %5189 = vmatprep.subr.bf16.mxu0 0
          %5190 = vmatpush1.bf16.msra.mxu0 %v3811
          %5191 = vmatprep.subr.bf16.mxu0 0
          %5192 = vmatpush1.bf16.msra.mxu0 %v3812
          %5193 = vmatprep.subr.bf16.mxu0 0
          %5194 = vmatpush1.bf16.msra.mxu0 %v3813
          %5195 = vmatprep.subr.bf16.mxu0 0
          %5196 = vmatpush1.bf16.msra.mxu0 %v3814
          %5197 = vmatprep.subr.bf16.mxu0 0
          %5198 = vmatpush1.bf16.msra.mxu0 %v3815
          %5199 = vmatprep.subr.bf16.mxu0 0
          %5200 = vmatpush1.bf16.msra.mxu0 %v3816
          %5201 = vmatprep.subr.bf16.mxu0 0
          %5202 = vmatpush1.bf16.msra.mxu0 %v3817
          %5203 = vmatprep.subr.bf16.mxu0 0
          %5204 = vmatpush1.bf16.msra.mxu0 %v3818
          %5205 = vmatprep.subr.bf16.mxu0 0
          %5206 = vmatpush1.bf16.msra.mxu0 %v3819
          %5207 = vmatprep.subr.bf16.mxu0 0
          %5208 = vmatpush1.bf16.msra.mxu0 %v3820
          %5209 = vmatprep.subr.bf16.mxu0 0
          %5210 = vmatpush1.bf16.msra.mxu0 %v3821
          %5211 = vmatprep.mubr.bf16.mxu0 %v5085
          %5212 = vmatmul.mubr.bf16.gmra.mrb[0].mxu0 %v5084
          %v5213 = vpop.f32.mrb[0].mxu0
          %v5214 = vadd.f32 %v5149, %v5213
          %v5215 = vpop.f32.mrb[0].mxu0
          %v5216 = vpop.f32.mrb[0].mxu0
          %v5217 = vadd.f32 %v5152, %v5216
          %v5218 = vpop.f32.mrb[0].mxu0
          %5219 = vmatprep.mubr.bf16.mxu0 %v5089
          %5220 = vmatmul.mubr.bf16.gmra.mrb[0].mxu0 %v5088
          %v5221 = vpop.f32.mrb[0].mxu0
          %v5222 = vadd.f32 %v5157, %v5221
          %v5223 = vpop.f32.mrb[0].mxu0
          %v5224 = vpop.f32.mrb[0].mxu0
          %v5225 = vadd.f32 %v5160, %v5224
          %v5226 = vpop.f32.mrb[0].mxu0
          %5227 = vmatprep.mubr.bf16.mxu0 %v5093
          %5228 = vmatmul.mubr.bf16.gmra.mrb[0].mxu0 %v5092
          %v5229 = vpop.f32.mrb[0].mxu0
          %v5230 = vadd.f32 %v5165, %v5229
          %v5231 = vpop.f32.mrb[0].mxu0
          %v5232 = vpop.f32.mrb[0].mxu0
          %v5233 = vadd.f32 %v5168, %v5232
          %v5234 = vpop.f32.mrb[0].mxu0
          %5235 = vmatprep.mubr.bf16.mxu0 %v5097
          %5236 = vmatmul.mubr.bf16.gmra.mrb[0].mxu0 %v5096
          %v5237 = vpop.f32.mrb[0].mxu0
          %v5238 = vadd.f32 %v5173, %v5237
          %v5239 = vpop.f32.mrb[0].mxu0
          %v5240 = vpop.f32.mrb[0].mxu0
          %v5241 = vadd.f32 %v5176, %v5240
          %v5242 = vpop.f32.mrb[0].mxu0
          %5243 = vdwg.mxu0
          %v5260 = vunpack.c.l.b16 %v3502
          %v5261 = vunpack.c.h.b16 %v3502
          %v5262 = vunpack.c.l.b16 %v3503
          %v5263 = vunpack.c.h.b16 %v3503
          %v5264 = vunpack.c.l.b16 %v3504
          %v5265 = vunpack.c.h.b16 %v3504
          %v5266 = vunpack.c.l.b16 %v3505
          %v5267 = vunpack.c.h.b16 %v3505
          %v5268 = vunpack.c.l.b16 %v3506
          %v5269 = vunpack.c.h.b16 %v3506
          %v5270 = vunpack.c.l.b16 %v3507
          %v5271 = vunpack.c.h.b16 %v3507
          %v5272 = vunpack.c.l.b16 %v3508
          %v5273 = vunpack.c.h.b16 %v3508
          %v5274 = vunpack.c.l.b16 %v3509
          %v5275 = vunpack.c.h.b16 %v3509
          %v5276 = vunpack.c.l.b16 %v3510
          %v5277 = vunpack.c.h.b16 %v3510
          %v5278 = vunpack.c.l.b16 %v3511
          %v5279 = vunpack.c.h.b16 %v3511
          %v5280 = vunpack.c.l.b16 %v3512
          %v5281 = vunpack.c.h.b16 %v3512
          %v5282 = vunpack.c.l.b16 %v3513
          %v5283 = vunpack.c.h.b16 %v3513
          %v5284 = vunpack.c.l.b16 %v3514
          %v5285 = vunpack.c.h.b16 %v3514
          %v5286 = vunpack.c.l.b16 %v3515
          %v5287 = vunpack.c.h.b16 %v3515
          %v5288 = vunpack.c.l.b16 %v3516
          %v5289 = vunpack.c.h.b16 %v3516
          %v5290 = vunpack.c.l.b16 %v3517
          %v5291 = vunpack.c.h.b16 %v3517
          %v5292 = vpack.c.b16 %v5264, %v5260
          %v5293 = vpack.c.b16 %v5265, %v5261
          %v5294 = vpack.c.b16 %v5266, %v5262
          %v5295 = vpack.c.b16 %v5267, %v5263
          %v5296 = vpack.c.b16 %v5272, %v5268
          %v5297 = vpack.c.b16 %v5273, %v5269
          %v5298 = vpack.c.b16 %v5274, %v5270
          %v5299 = vpack.c.b16 %v5275, %v5271
          %v5300 = vpack.c.b16 %v5280, %v5276
          %v5301 = vpack.c.b16 %v5281, %v5277
          %v5302 = vpack.c.b16 %v5282, %v5278
          %v5303 = vpack.c.b16 %v5283, %v5279
          %v5304 = vpack.c.b16 %v5288, %v5284
          %v5305 = vpack.c.b16 %v5289, %v5285
          %v5306 = vpack.c.b16 %v5290, %v5286
          %v5307 = vpack.c.b16 %v5291, %v5287
          %5324 = vmatprep.subr.bf16.mxu0 0
          %5325 = vmatpush1.bf16.msra.mxu0 %v3790
          %5326 = vmatprep.subr.bf16.mxu0 0
          %5327 = vmatpush1.bf16.msra.mxu0 %v3791
          %5328 = vmatprep.subr.bf16.mxu0 0
          %5329 = vmatpush1.bf16.msra.mxu0 %v3792
          %5330 = vmatprep.subr.bf16.mxu0 0
          %5331 = vmatpush1.bf16.msra.mxu0 %v3793
          %5332 = vmatprep.subr.bf16.mxu0 0
          %5333 = vmatpush1.bf16.msra.mxu0 %v3794
          %5334 = vmatprep.subr.bf16.mxu0 0
          %5335 = vmatpush1.bf16.msra.mxu0 %v3795
          %5336 = vmatprep.subr.bf16.mxu0 0
          %5337 = vmatpush1.bf16.msra.mxu0 %v3796
          %5338 = vmatprep.subr.bf16.mxu0 0
          %5339 = vmatpush1.bf16.msra.mxu0 %v3797
          %5340 = vmatprep.subr.bf16.mxu0 0
          %5341 = vmatpush1.bf16.msra.mxu0 %v3798
          %5342 = vmatprep.subr.bf16.mxu0 0
          %5343 = vmatpush1.bf16.msra.mxu0 %v3799
          %5344 = vmatprep.subr.bf16.mxu0 0
          %5345 = vmatpush1.bf16.msra.mxu0 %v3800
          %5346 = vmatprep.subr.bf16.mxu0 0
          %5347 = vmatpush1.bf16.msra.mxu0 %v3801
          %5348 = vmatprep.subr.bf16.mxu0 0
          %5349 = vmatpush1.bf16.msra.mxu0 %v3802
          %5350 = vmatprep.subr.bf16.mxu0 0
          %5351 = vmatpush1.bf16.msra.mxu0 %v3803
          %5352 = vmatprep.subr.bf16.mxu0 0
          %5353 = vmatpush1.bf16.msra.mxu0 %v3804
          %5354 = vmatprep.subr.bf16.mxu0 0
          %5355 = vmatpush1.bf16.msra.mxu0 %v3805
          %5356 = vmatprep.mubr.bf16.mxu0 %v5293
          %5357 = vmatmul.mubr.bf16.gmra.mrb[0].mxu0 %v5292
          %v5358 = vpop.f32.mrb[0].mxu0
          %v5359 = vadd.f32 0.0, %v5358
          %v5360 = vpop.f32.mrb[0].mxu0
          %v5361 = vpop.f32.mrb[0].mxu0
          %v5362 = vadd.f32 0.0, %v5361
          %v5363 = vpop.f32.mrb[0].mxu0
          %5364 = vmatprep.mubr.bf16.mxu0 %v5297
          %5365 = vmatmul.mubr.bf16.gmra.mrb[0].mxu0 %v5296
          %v5366 = vpop.f32.mrb[0].mxu0
          %v5367 = vadd.f32 0.0, %v5366
          %v5368 = vpop.f32.mrb[0].mxu0
          %v5369 = vpop.f32.mrb[0].mxu0
          %v5370 = vadd.f32 0.0, %v5369
          %v5371 = vpop.f32.mrb[0].mxu0
          %5372 = vmatprep.mubr.bf16.mxu0 %v5301
          %5373 = vmatmul.mubr.bf16.gmra.mrb[0].mxu0 %v5300
          %v5374 = vpop.f32.mrb[0].mxu0
          %v5375 = vadd.f32 0.0, %v5374
          %v5376 = vpop.f32.mrb[0].mxu0
          %v5377 = vpop.f32.mrb[0].mxu0
          %v5378 = vadd.f32 0.0, %v5377
          %v5379 = vpop.f32.mrb[0].mxu0
          %5380 = vmatprep.mubr.bf16.mxu0 %v5305
          %5381 = vmatmul.mubr.bf16.gmra.mrb[0].mxu0 %v5304
          %v5382 = vpop.f32.mrb[0].mxu0
          %v5383 = vadd.f32 0.0, %v5382
          %v5384 = vpop.f32.mrb[0].mxu0
          %v5385 = vpop.f32.mrb[0].mxu0
          %v5386 = vadd.f32 0.0, %v5385
          %v5387 = vpop.f32.mrb[0].mxu0
          %5388 = vdwg.mxu0
          %5389 = vmatprep.subr.bf16.mxu0 0
          %5390 = vmatpush1.bf16.msra.mxu0 %v3806
          %5391 = vmatprep.subr.bf16.mxu0 0
          %5392 = vmatpush1.bf16.msra.mxu0 %v3807
          %5393 = vmatprep.subr.bf16.mxu0 0
          %5394 = vmatpush1.bf16.msra.mxu0 %v3808
          %5395 = vmatprep.subr.bf16.mxu0 0
          %5396 = vmatpush1.bf16.msra.mxu0 %v3809
          %5397 = vmatprep.subr.bf16.mxu0 0
          %5398 = vmatpush1.bf16.msra.mxu0 %v3810
          %5399 = vmatprep.subr.bf16.mxu0 0
          %5400 = vmatpush1.bf16.msra.mxu0 %v3811
          %5401 = vmatprep.subr.bf16.mxu0 0
          %5402 = vmatpush1.bf16.msra.mxu0 %v3812
          %5403 = vmatprep.subr.bf16.mxu0 0
          %5404 = vmatpush1.bf16.msra.mxu0 %v3813
          %5405 = vmatprep.subr.bf16.mxu0 0
          %5406 = vmatpush1.bf16.msra.mxu0 %v3814
          %5407 = vmatprep.subr.bf16.mxu0 0
          %5408 = vmatpush1.bf16.msra.mxu0 %v3815
          %5409 = vmatprep.subr.bf16.mxu0 0
          %5410 = vmatpush1.bf16.msra.mxu0 %v3816
          %5411 = vmatprep.subr.bf16.mxu0 0
          %5412 = vmatpush1.bf16.msra.mxu0 %v3817
          %5413 = vmatprep.subr.bf16.mxu0 0
          %5414 = vmatpush1.bf16.msra.mxu0 %v3818
          %5415 = vmatprep.subr.bf16.mxu0 0
          %5416 = vmatpush1.bf16.msra.mxu0 %v3819
          %5417 = vmatprep.subr.bf16.mxu0 0
          %5418 = vmatpush1.bf16.msra.mxu0 %v3820
          %5419 = vmatprep.subr.bf16.mxu0 0
          %5420 = vmatpush1.bf16.msra.mxu0 %v3821
          %5421 = vmatprep.mubr.bf16.mxu0 %v5295
          %5422 = vmatmul.mubr.bf16.gmra.mrb[0].mxu0 %v5294
          %v5423 = vpop.f32.mrb[0].mxu0
          %v5424 = vadd.f32 %v5359, %v5423
          %v5425 = vpop.f32.mrb[0].mxu0
          %v5426 = vpop.f32.mrb[0].mxu0
          %v5427 = vadd.f32 %v5362, %v5426
          %v5428 = vpop.f32.mrb[0].mxu0
          %5429 = vmatprep.mubr.bf16.mxu0 %v5299
          %5430 = vmatmul.mubr.bf16.gmra.mrb[0].mxu0 %v5298
          %v5431 = vpop.f32.mrb[0].mxu0
          %v5432 = vadd.f32 %v5367, %v5431
          %v5433 = vpop.f32.mrb[0].mxu0
          %v5434 = vpop.f32.mrb[0].mxu0
          %v5435 = vadd.f32 %v5370, %v5434
          %v5436 = vpop.f32.mrb[0].mxu0
          %5437 = vmatprep.mubr.bf16.mxu0 %v5303
          %5438 = vmatmul.mubr.bf16.gmra.mrb[0].mxu0 %v5302
          %v5439 = vpop.f32.mrb[0].mxu0
          %v5440 = vadd.f32 %v5375, %v5439
          %v5441 = vpop.f32.mrb[0].mxu0
          %v5442 = vpop.f32.mrb[0].mxu0
          %v5443 = vadd.f32 %v5378, %v5442
          %v5444 = vpop.f32.mrb[0].mxu0
          %5445 = vmatprep.mubr.bf16.mxu0 %v5307
          %5446 = vmatmul.mubr.bf16.gmra.mrb[0].mxu0 %v5306
          %v5447 = vpop.f32.mrb[0].mxu0
          %v5448 = vadd.f32 %v5383, %v5447
          %v5449 = vpop.f32.mrb[0].mxu0
          %v5450 = vpop.f32.mrb[0].mxu0
          %v5451 = vadd.f32 %v5386, %v5450
          %v5452 = vpop.f32.mrb[0].mxu0
          %5453 = vdwg.mxu0
          %5518 = vset.pattern.permute.xlu0 0
          %5519 = vperm.xlu0 %5518, %v3954
          %v5520 = vpop.permute.xlu0 %5519
          %5521 = vset.pattern.permute.xlu0 0
          %5522 = vperm.xlu0 %5521, %v3957
          %v5523 = vpop.permute.xlu0 %5522
          %5524 = vset.pattern.permute.xlu0 0
          %5525 = vperm.xlu0 %5524, %v3962
          %v5526 = vpop.permute.xlu0 %5525
          %5527 = vset.pattern.permute.xlu0 0
          %5528 = vperm.xlu0 %5527, %v3965
          %v5529 = vpop.permute.xlu0 %5528
          %5530 = vset.pattern.permute.xlu0 0
          %5531 = vperm.xlu0 %5530, %v3970
          %v5532 = vpop.permute.xlu0 %5531
          %5533 = vset.pattern.permute.xlu0 0
          %5534 = vperm.xlu0 %5533, %v3973
          %v5535 = vpop.permute.xlu0 %5534
          %5536 = vset.pattern.permute.xlu0 0
          %5537 = vperm.xlu0 %5536, %v3978
          %v5538 = vpop.permute.xlu0 %5537
          %5539 = vset.pattern.permute.xlu0 0
          %5540 = vperm.xlu0 %5539, %v3981
          %v5541 = vpop.permute.xlu0 %5540
          %5542 = vset.pattern.permute.xlu0 0
          %5543 = vperm.xlu0 %5542, %v4164
          %v5544 = vpop.permute.xlu0 %5543
          %5545 = vset.pattern.permute.xlu0 0
          %5546 = vperm.xlu0 %5545, %v4167
          %v5547 = vpop.permute.xlu0 %5546
          %5548 = vset.pattern.permute.xlu0 0
          %5549 = vperm.xlu0 %5548, %v4172
          %v5550 = vpop.permute.xlu0 %5549
          %5551 = vset.pattern.permute.xlu0 0
          %5552 = vperm.xlu0 %5551, %v4175
          %v5553 = vpop.permute.xlu0 %5552
          %5554 = vset.pattern.permute.xlu0 0
          %5555 = vperm.xlu0 %5554, %v4180
          %v5556 = vpop.permute.xlu0 %5555
          %5557 = vset.pattern.permute.xlu0 0
          %5558 = vperm.xlu0 %5557, %v4183
          %v5559 = vpop.permute.xlu0 %5558
          %5560 = vset.pattern.permute.xlu0 0
          %5561 = vperm.xlu0 %5560, %v4188
          %v5562 = vpop.permute.xlu0 %5561
          %5563 = vset.pattern.permute.xlu0 0
          %5564 = vperm.xlu0 %5563, %v4191
          %v5565 = vpop.permute.xlu0 %5564
          %5566 = vset.pattern.permute.xlu0 0
          %5567 = vperm.xlu0 %5566, %v4374
          %v5568 = vpop.permute.xlu0 %5567
          %5569 = vset.pattern.permute.xlu0 0
          %5570 = vperm.xlu0 %5569, %v4377
          %v5571 = vpop.permute.xlu0 %5570
          %5572 = vset.pattern.permute.xlu0 0
          %5573 = vperm.xlu0 %5572, %v4382
          %v5574 = vpop.permute.xlu0 %5573
          %5575 = vset.pattern.permute.xlu0 0
          %5576 = vperm.xlu0 %5575, %v4385
          %v5577 = vpop.permute.xlu0 %5576
          %5578 = vset.pattern.permute.xlu0 0
          %5579 = vperm.xlu0 %5578, %v4390
          %v5580 = vpop.permute.xlu0 %5579
          %5581 = vset.pattern.permute.xlu0 0
          %5582 = vperm.xlu0 %5581, %v4393
          %v5583 = vpop.permute.xlu0 %5582
          %5584 = vset.pattern.permute.xlu0 0
          %5585 = vperm.xlu0 %5584, %v4398
          %v5586 = vpop.permute.xlu0 %5585
          %5587 = vset.pattern.permute.xlu0 0
          %5588 = vperm.xlu0 %5587, %v4401
          %v5589 = vpop.permute.xlu0 %5588
          %5590 = vset.pattern.permute.xlu0 0
          %5591 = vperm.xlu0 %5590, %v4584
          %v5592 = vpop.permute.xlu0 %5591
          %5593 = vset.pattern.permute.xlu0 0
          %5594 = vperm.xlu0 %5593, %v4587
          %v5595 = vpop.permute.xlu0 %5594
          %5596 = vset.pattern.permute.xlu0 0
          %5597 = vperm.xlu0 %5596, %v4592
          %v5598 = vpop.permute.xlu0 %5597
          %5599 = vset.pattern.permute.xlu0 0
          %5600 = vperm.xlu0 %5599, %v4595
          %v5601 = vpop.permute.xlu0 %5600
          %5602 = vset.pattern.permute.xlu0 0
          %5603 = vperm.xlu0 %5602, %v4600
          %v5604 = vpop.permute.xlu0 %5603
          %5605 = vset.pattern.permute.xlu0 0
          %5606 = vperm.xlu0 %5605, %v4603
          %v5607 = vpop.permute.xlu0 %5606
          %5608 = vset.pattern.permute.xlu0 0
          %5609 = vperm.xlu0 %5608, %v4608
          %v5610 = vpop.permute.xlu0 %5609
          %5611 = vset.pattern.permute.xlu0 0
          %5612 = vperm.xlu0 %5611, %v4611
          %v5613 = vpop.permute.xlu0 %5612
          %5614 = vset.pattern.permute.xlu0 0
          %5615 = vperm.xlu0 %5614, %v4794
          %v5616 = vpop.permute.xlu0 %5615
          %5617 = vset.pattern.permute.xlu0 0
          %5618 = vperm.xlu0 %5617, %v4797
          %v5619 = vpop.permute.xlu0 %5618
          %5620 = vset.pattern.permute.xlu0 0
          %5621 = vperm.xlu0 %5620, %v4802
          %v5622 = vpop.permute.xlu0 %5621
          %5623 = vset.pattern.permute.xlu0 0
          %5624 = vperm.xlu0 %5623, %v4805
          %v5625 = vpop.permute.xlu0 %5624
          %5626 = vset.pattern.permute.xlu0 0
          %5627 = vperm.xlu0 %5626, %v4810
          %v5628 = vpop.permute.xlu0 %5627
          %5629 = vset.pattern.permute.xlu0 0
          %5630 = vperm.xlu0 %5629, %v4813
          %v5631 = vpop.permute.xlu0 %5630
          %5632 = vset.pattern.permute.xlu0 0
          %5633 = vperm.xlu0 %5632, %v4818
          %v5634 = vpop.permute.xlu0 %5633
          %5635 = vset.pattern.permute.xlu0 0
          %5636 = vperm.xlu0 %5635, %v4821
          %v5637 = vpop.permute.xlu0 %5636
          %5638 = vset.pattern.permute.xlu0 0
          %5639 = vperm.xlu0 %5638, %v5004
          %v5640 = vpop.permute.xlu0 %5639
          %5641 = vset.pattern.permute.xlu0 0
          %5642 = vperm.xlu0 %5641, %v5007
          %v5643 = vpop.permute.xlu0 %5642
          %5644 = vset.pattern.permute.xlu0 0
          %5645 = vperm.xlu0 %5644, %v5012
          %v5646 = vpop.permute.xlu0 %5645
          %5647 = vset.pattern.permute.xlu0 0
          %5648 = vperm.xlu0 %5647, %v5015
          %v5649 = vpop.permute.xlu0 %5648
          %5650 = vset.pattern.permute.xlu0 0
          %5651 = vperm.xlu0 %5650, %v5020
          %v5652 = vpop.permute.xlu0 %5651
          %5653 = vset.pattern.permute.xlu0 0
          %5654 = vperm.xlu0 %5653, %v5023
          %v5655 = vpop.permute.xlu0 %5654
          %5656 = vset.pattern.permute.xlu0 0
          %5657 = vperm.xlu0 %5656, %v5028
          %v5658 = vpop.permute.xlu0 %5657
          %5659 = vset.pattern.permute.xlu0 0
          %5660 = vperm.xlu0 %5659, %v5031
          %v5661 = vpop.permute.xlu0 %5660
          %5662 = vset.pattern.permute.xlu0 0
          %5663 = vperm.xlu0 %5662, %v5214
          %v5664 = vpop.permute.xlu0 %5663
          %5665 = vset.pattern.permute.xlu0 0
          %5666 = vperm.xlu0 %5665, %v5217
          %v5667 = vpop.permute.xlu0 %5666
          %5668 = vset.pattern.permute.xlu0 0
          %5669 = vperm.xlu0 %5668, %v5222
          %v5670 = vpop.permute.xlu0 %5669
          %5671 = vset.pattern.permute.xlu0 0
          %5672 = vperm.xlu0 %5671, %v5225
          %v5673 = vpop.permute.xlu0 %5672
          %5674 = vset.pattern.permute.xlu0 0
          %5675 = vperm.xlu0 %5674, %v5230
          %v5676 = vpop.permute.xlu0 %5675
          %5677 = vset.pattern.permute.xlu0 0
          %5678 = vperm.xlu0 %5677, %v5233
          %v5679 = vpop.permute.xlu0 %5678
          %5680 = vset.pattern.permute.xlu0 0
          %5681 = vperm.xlu0 %5680, %v5238
          %v5682 = vpop.permute.xlu0 %5681
          %5683 = vset.pattern.permute.xlu0 0
          %5684 = vperm.xlu0 %5683, %v5241
          %v5685 = vpop.permute.xlu0 %5684
          %5686 = vset.pattern.permute.xlu0 0
          %5687 = vperm.xlu0 %5686, %v5424
          %v5688 = vpop.permute.xlu0 %5687
          %5689 = vset.pattern.permute.xlu0 0
          %5690 = vperm.xlu0 %5689, %v5427
          %v5691 = vpop.permute.xlu0 %5690
          %5692 = vset.pattern.permute.xlu0 0
          %5693 = vperm.xlu0 %5692, %v5432
          %v5694 = vpop.permute.xlu0 %5693
          %5695 = vset.pattern.permute.xlu0 0
          %5696 = vperm.xlu0 %5695, %v5435
          %v5697 = vpop.permute.xlu0 %5696
          %5698 = vset.pattern.permute.xlu0 0
          %5699 = vperm.xlu0 %5698, %v5440
          %v5700 = vpop.permute.xlu0 %5699
          %5701 = vset.pattern.permute.xlu0 0
          %5702 = vperm.xlu0 %5701, %v5443
          %v5703 = vpop.permute.xlu0 %5702
          %5704 = vset.pattern.permute.xlu0 0
          %5705 = vperm.xlu0 %5704, %v5448
          %v5706 = vpop.permute.xlu0 %5705
          %5707 = vset.pattern.permute.xlu0 0
          %5708 = vperm.xlu0 %5707, %v5451
          %v5709 = vpop.permute.xlu0 %5708
          %v5710 = vlaneseq
          %v5711 = vand.u32 %v5710, 127
          %v5712 = vlaneseq
          %v5713 = vshrl.u32 %v5712, 7
          %v5714 = vsub.s32 %v5711, %v5713
          %v5715 = vrot.slane %v5520, %v5714
          %v5716 = vadd.s32 %v5711, 4294967288
          %v5717 = vlaneseq
          %v5718 = vshrl.u32 %v5717, 7
          %v5719 = vsub.s32 %v5716, %v5718
          %v5720 = vrot.slane %v5523, %v5719
          %vm5721 = vcmask 130112
          %v5722 = vsel %vm5721, %v5720, %v5715
          %v5723 = vadd.s32 %v5711, 4294967280
          %v5724 = vlaneseq
          %v5725 = vshrl.u32 %v5724, 7
          %v5726 = vsub.s32 %v5723, %v5725
          %v5727 = vrot.slane %v5526, %v5726
          %vm5728 = vcmask 195712
          %v5729 = vsel %vm5728, %v5727, %v5722
          %v5730 = vadd.s32 %v5711, 4294967272
          %v5731 = vlaneseq
          %v5732 = vshrl.u32 %v5731, 7
          %v5733 = vsub.s32 %v5730, %v5732
          %v5734 = vrot.slane %v5529, %v5733
          %vm5735 = vcmask 261312
          %v5736 = vsel %vm5735, %v5734, %v5729
          %v5737 = vadd.s32 %v5711, 4294967264
          %v5738 = vlaneseq
          %v5739 = vshrl.u32 %v5738, 7
          %v5740 = vsub.s32 %v5737, %v5739
          %v5741 = vrot.slane %v5532, %v5740
          %vm5742 = vcmask 326912
          %v5743 = vsel %vm5742, %v5741, %v5736
          %v5744 = vadd.s32 %v5711, 4294967256
          %v5745 = vlaneseq
          %v5746 = vshrl.u32 %v5745, 7
          %v5747 = vsub.s32 %v5744, %v5746
          %v5748 = vrot.slane %v5535, %v5747
          %vm5749 = vcmask 392512
          %v5750 = vsel %vm5749, %v5748, %v5743
          %v5751 = vadd.s32 %v5711, 4294967248
          %v5752 = vlaneseq
          %v5753 = vshrl.u32 %v5752, 7
          %v5754 = vsub.s32 %v5751, %v5753
          %v5755 = vrot.slane %v5538, %v5754
          %vm5756 = vcmask 458112
          %v5757 = vsel %vm5756, %v5755, %v5750
          %v5758 = vadd.s32 %v5711, 4294967240
          %v5759 = vlaneseq
          %v5760 = vshrl.u32 %v5759, 7
          %v5761 = vsub.s32 %v5758, %v5760
          %v5762 = vrot.slane %v5541, %v5761
          %vm5763 = vcmask 523712
          %v5764 = vsel %vm5763, %v5762, %v5757
          %v5765 = vlaneseq
          %v5766 = vshrl.u32 %v5765, 7
          %v5767 = vsub.s32 %v5711, %v5766
          %v5768 = vrot.slane %v5544, %v5767
          %v5769 = vlaneseq
          %v5770 = vshrl.u32 %v5769, 7
          %v5771 = vsub.s32 %v5716, %v5770
          %v5772 = vrot.slane %v5547, %v5771
          %v5773 = vsel %vm5721, %v5772, %v5768
          %v5774 = vlaneseq
          %v5775 = vshrl.u32 %v5774, 7
          %v5776 = vsub.s32 %v5723, %v5775
          %v5777 = vrot.slane %v5550, %v5776
          %v5778 = vsel %vm5728, %v5777, %v5773
          %v5779 = vlaneseq
          %v5780 = vshrl.u32 %v5779, 7
          %v5781 = vsub.s32 %v5730, %v5780
          %v5782 = vrot.slane %v5553, %v5781
          %v5783 = vsel %vm5735, %v5782, %v5778
          %v5784 = vlaneseq
          %v5785 = vshrl.u32 %v5784, 7
          %v5786 = vsub.s32 %v5737, %v5785
          %v5787 = vrot.slane %v5556, %v5786
          %v5788 = vsel %vm5742, %v5787, %v5783
          %v5789 = vlaneseq
          %v5790 = vshrl.u32 %v5789, 7
          %v5791 = vsub.s32 %v5744, %v5790
          %v5792 = vrot.slane %v5559, %v5791
          %v5793 = vsel %vm5749, %v5792, %v5788
          %v5794 = vlaneseq
          %v5795 = vshrl.u32 %v5794, 7
          %v5796 = vsub.s32 %v5751, %v5795
          %v5797 = vrot.slane %v5562, %v5796
          %v5798 = vsel %vm5756, %v5797, %v5793
          %v5799 = vlaneseq
          %v5800 = vshrl.u32 %v5799, 7
          %v5801 = vsub.s32 %v5758, %v5800
          %v5802 = vrot.slane %v5565, %v5801
          %v5803 = vsel %vm5763, %v5802, %v5798
          %v5804 = vlaneseq
          %v5805 = vshrl.u32 %v5804, 7
          %v5806 = vsub.s32 %v5711, %v5805
          %v5807 = vrot.slane %v5568, %v5806
          %v5808 = vlaneseq
          %v5809 = vshrl.u32 %v5808, 7
          %v5810 = vsub.s32 %v5716, %v5809
          %v5811 = vrot.slane %v5571, %v5810
          %v5812 = vsel %vm5721, %v5811, %v5807
          %v5813 = vlaneseq
          %v5814 = vshrl.u32 %v5813, 7
          %v5815 = vsub.s32 %v5723, %v5814
          %v5816 = vrot.slane %v5574, %v5815
          %v5817 = vsel %vm5728, %v5816, %v5812
          %v5818 = vlaneseq
          %v5819 = vshrl.u32 %v5818, 7
          %v5820 = vsub.s32 %v5730, %v5819
          %v5821 = vrot.slane %v5577, %v5820
          %v5822 = vsel %vm5735, %v5821, %v5817
          %v5823 = vlaneseq
          %v5824 = vshrl.u32 %v5823, 7
          %v5825 = vsub.s32 %v5737, %v5824
          %v5826 = vrot.slane %v5580, %v5825
          %v5827 = vsel %vm5742, %v5826, %v5822
          %v5828 = vlaneseq
          %v5829 = vshrl.u32 %v5828, 7
          %v5830 = vsub.s32 %v5744, %v5829
          %v5831 = vrot.slane %v5583, %v5830
          %v5832 = vsel %vm5749, %v5831, %v5827
          %v5833 = vlaneseq
          %v5834 = vshrl.u32 %v5833, 7
          %v5835 = vsub.s32 %v5751, %v5834
          %v5836 = vrot.slane %v5586, %v5835
          %v5837 = vsel %vm5756, %v5836, %v5832
          %v5838 = vlaneseq
          %v5839 = vshrl.u32 %v5838, 7
          %v5840 = vsub.s32 %v5758, %v5839
          %v5841 = vrot.slane %v5589, %v5840
          %v5842 = vsel %vm5763, %v5841, %v5837
          %v5843 = vlaneseq
          %v5844 = vshrl.u32 %v5843, 7
          %v5845 = vsub.s32 %v5711, %v5844
          %v5846 = vrot.slane %v5592, %v5845
          %v5847 = vlaneseq
          %v5848 = vshrl.u32 %v5847, 7
          %v5849 = vsub.s32 %v5716, %v5848
          %v5850 = vrot.slane %v5595, %v5849
          %v5851 = vsel %vm5721, %v5850, %v5846
          %v5852 = vlaneseq
          %v5853 = vshrl.u32 %v5852, 7
          %v5854 = vsub.s32 %v5723, %v5853
          %v5855 = vrot.slane %v5598, %v5854
          %v5856 = vsel %vm5728, %v5855, %v5851
          %v5857 = vlaneseq
          %v5858 = vshrl.u32 %v5857, 7
          %v5859 = vsub.s32 %v5730, %v5858
          %v5860 = vrot.slane %v5601, %v5859
          %v5861 = vsel %vm5735, %v5860, %v5856
          %v5862 = vlaneseq
          %v5863 = vshrl.u32 %v5862, 7
          %v5864 = vsub.s32 %v5737, %v5863
          %v5865 = vrot.slane %v5604, %v5864
          %v5866 = vsel %vm5742, %v5865, %v5861
          %v5867 = vlaneseq
          %v5868 = vshrl.u32 %v5867, 7
          %v5869 = vsub.s32 %v5744, %v5868
          %v5870 = vrot.slane %v5607, %v5869
          %v5871 = vsel %vm5749, %v5870, %v5866
          %v5872 = vlaneseq
          %v5873 = vshrl.u32 %v5872, 7
          %v5874 = vsub.s32 %v5751, %v5873
          %v5875 = vrot.slane %v5610, %v5874
          %v5876 = vsel %vm5756, %v5875, %v5871
          %v5877 = vlaneseq
          %v5878 = vshrl.u32 %v5877, 7
          %v5879 = vsub.s32 %v5758, %v5878
          %v5880 = vrot.slane %v5613, %v5879
          %v5881 = vsel %vm5763, %v5880, %v5876
          %v5882 = vlaneseq
          %v5883 = vshrl.u32 %v5882, 7
          %v5884 = vsub.s32 %v5711, %v5883
          %v5885 = vrot.slane %v5616, %v5884
          %v5886 = vlaneseq
          %v5887 = vshrl.u32 %v5886, 7
          %v5888 = vsub.s32 %v5716, %v5887
          %v5889 = vrot.slane %v5619, %v5888
          %v5890 = vsel %vm5721, %v5889, %v5885
          %v5891 = vlaneseq
          %v5892 = vshrl.u32 %v5891, 7
          %v5893 = vsub.s32 %v5723, %v5892
          %v5894 = vrot.slane %v5622, %v5893
          %v5895 = vsel %vm5728, %v5894, %v5890
          %v5896 = vlaneseq
          %v5897 = vshrl.u32 %v5896, 7
          %v5898 = vsub.s32 %v5730, %v5897
          %v5899 = vrot.slane %v5625, %v5898
          %v5900 = vsel %vm5735, %v5899, %v5895
          %v5901 = vlaneseq
          %v5902 = vshrl.u32 %v5901, 7
          %v5903 = vsub.s32 %v5737, %v5902
          %v5904 = vrot.slane %v5628, %v5903
          %v5905 = vsel %vm5742, %v5904, %v5900
          %v5906 = vlaneseq
          %v5907 = vshrl.u32 %v5906, 7
          %v5908 = vsub.s32 %v5744, %v5907
          %v5909 = vrot.slane %v5631, %v5908
          %v5910 = vsel %vm5749, %v5909, %v5905
          %v5911 = vlaneseq
          %v5912 = vshrl.u32 %v5911, 7
          %v5913 = vsub.s32 %v5751, %v5912
          %v5914 = vrot.slane %v5634, %v5913
          %v5915 = vsel %vm5756, %v5914, %v5910
          %v5916 = vlaneseq
          %v5917 = vshrl.u32 %v5916, 7
          %v5918 = vsub.s32 %v5758, %v5917
          %v5919 = vrot.slane %v5637, %v5918
          %v5920 = vsel %vm5763, %v5919, %v5915
          %v5921 = vlaneseq
          %v5922 = vshrl.u32 %v5921, 7
          %v5923 = vsub.s32 %v5711, %v5922
          %v5924 = vrot.slane %v5640, %v5923
          %v5925 = vlaneseq
          %v5926 = vshrl.u32 %v5925, 7
          %v5927 = vsub.s32 %v5716, %v5926
          %v5928 = vrot.slane %v5643, %v5927
          %v5929 = vsel %vm5721, %v5928, %v5924
          %v5930 = vlaneseq
          %v5931 = vshrl.u32 %v5930, 7
          %v5932 = vsub.s32 %v5723, %v5931
          %v5933 = vrot.slane %v5646, %v5932
          %v5934 = vsel %vm5728, %v5933, %v5929
          %v5935 = vlaneseq
          %v5936 = vshrl.u32 %v5935, 7
          %v5937 = vsub.s32 %v5730, %v5936
          %v5938 = vrot.slane %v5649, %v5937
          %v5939 = vsel %vm5735, %v5938, %v5934
          %v5940 = vlaneseq
          %v5941 = vshrl.u32 %v5940, 7
          %v5942 = vsub.s32 %v5737, %v5941
          %v5943 = vrot.slane %v5652, %v5942
          %v5944 = vsel %vm5742, %v5943, %v5939
          %v5945 = vlaneseq
          %v5946 = vshrl.u32 %v5945, 7
          %v5947 = vsub.s32 %v5744, %v5946
          %v5948 = vrot.slane %v5655, %v5947
          %v5949 = vsel %vm5749, %v5948, %v5944
          %v5950 = vlaneseq
          %v5951 = vshrl.u32 %v5950, 7
          %v5952 = vsub.s32 %v5751, %v5951
          %v5953 = vrot.slane %v5658, %v5952
          %v5954 = vsel %vm5756, %v5953, %v5949
          %v5955 = vlaneseq
          %v5956 = vshrl.u32 %v5955, 7
          %v5957 = vsub.s32 %v5758, %v5956
          %v5958 = vrot.slane %v5661, %v5957
          %v5959 = vsel %vm5763, %v5958, %v5954
          %v5960 = vlaneseq
          %v5961 = vshrl.u32 %v5960, 7
          %v5962 = vsub.s32 %v5711, %v5961
          %v5963 = vrot.slane %v5664, %v5962
          %v5964 = vlaneseq
          %v5965 = vshrl.u32 %v5964, 7
          %v5966 = vsub.s32 %v5716, %v5965
          %v5967 = vrot.slane %v5667, %v5966
          %v5968 = vsel %vm5721, %v5967, %v5963
          %v5969 = vlaneseq
          %v5970 = vshrl.u32 %v5969, 7
          %v5971 = vsub.s32 %v5723, %v5970
          %v5972 = vrot.slane %v5670, %v5971
          %v5973 = vsel %vm5728, %v5972, %v5968
          %v5974 = vlaneseq
          %v5975 = vshrl.u32 %v5974, 7
          %v5976 = vsub.s32 %v5730, %v5975
          %v5977 = vrot.slane %v5673, %v5976
          %v5978 = vsel %vm5735, %v5977, %v5973
          %v5979 = vlaneseq
          %v5980 = vshrl.u32 %v5979, 7
          %v5981 = vsub.s32 %v5737, %v5980
          %v5982 = vrot.slane %v5676, %v5981
          %v5983 = vsel %vm5742, %v5982, %v5978
          %v5984 = vlaneseq
          %v5985 = vshrl.u32 %v5984, 7
          %v5986 = vsub.s32 %v5744, %v5985
          %v5987 = vrot.slane %v5679, %v5986
          %v5988 = vsel %vm5749, %v5987, %v5983
          %v5989 = vlaneseq
          %v5990 = vshrl.u32 %v5989, 7
          %v5991 = vsub.s32 %v5751, %v5990
          %v5992 = vrot.slane %v5682, %v5991
          %v5993 = vsel %vm5756, %v5992, %v5988
          %v5994 = vlaneseq
          %v5995 = vshrl.u32 %v5994, 7
          %v5996 = vsub.s32 %v5758, %v5995
          %v5997 = vrot.slane %v5685, %v5996
          %v5998 = vsel %vm5763, %v5997, %v5993
          %v5999 = vlaneseq
          %v6000 = vshrl.u32 %v5999, 7
          %v6001 = vsub.s32 %v5711, %v6000
          %v6002 = vrot.slane %v5688, %v6001
          %v6003 = vlaneseq
          %v6004 = vshrl.u32 %v6003, 7
          %v6005 = vsub.s32 %v5716, %v6004
          %v6006 = vrot.slane %v5691, %v6005
          %v6007 = vsel %vm5721, %v6006, %v6002
          %v6008 = vlaneseq
          %v6009 = vshrl.u32 %v6008, 7
          %v6010 = vsub.s32 %v5723, %v6009
          %v6011 = vrot.slane %v5694, %v6010
          %v6012 = vsel %vm5728, %v6011, %v6007
          %v6013 = vlaneseq
          %v6014 = vshrl.u32 %v6013, 7
          %v6015 = vsub.s32 %v5730, %v6014
          %v6016 = vrot.slane %v5697, %v6015
          %v6017 = vsel %vm5735, %v6016, %v6012
          %v6018 = vlaneseq
          %v6019 = vshrl.u32 %v6018, 7
          %v6020 = vsub.s32 %v5737, %v6019
          %v6021 = vrot.slane %v5700, %v6020
          %v6022 = vsel %vm5742, %v6021, %v6017
          %v6023 = vlaneseq
          %v6024 = vshrl.u32 %v6023, 7
          %v6025 = vsub.s32 %v5744, %v6024
          %v6026 = vrot.slane %v5703, %v6025
          %v6027 = vsel %vm5749, %v6026, %v6022
          %v6028 = vlaneseq
          %v6029 = vshrl.u32 %v6028, 7
          %v6030 = vsub.s32 %v5751, %v6029
          %v6031 = vrot.slane %v5706, %v6030
          %v6032 = vsel %vm5756, %v6031, %v6027
          %v6033 = vlaneseq
          %v6034 = vshrl.u32 %v6033, 7
          %v6035 = vsub.s32 %v5758, %v6034
          %v6036 = vrot.slane %v5709, %v6035
          %v6037 = vsel %vm5763, %v6036, %v6032
          %vm6038 = vcmask 1041409
          %v6039 = vsel %vm6038, %v5803, %v5764
          %vm6040 = vcmask 1042434
          %v6041 = vsel %vm6040, %v5842, %v6039
          %vm6042 = vcmask 1043459
          %v6043 = vsel %vm6042, %v5881, %v6041
          %vm6044 = vcmask 1044484
          %v6045 = vsel %vm6044, %v5920, %v6043
          %vm6046 = vcmask 1045509
          %v6047 = vsel %vm6046, %v5959, %v6045
          %vm6048 = vcmask 1046534
          %v6049 = vsel %vm6048, %v5998, %v6047
          %vm6050 = vcmask 1047559
          %v6051 = vsel %vm6050, %v6037, %v6049
          %vm6053 = vcmask 523264
          %v6054 = vsel %vm6053, %v6051, -inf
          %6055 = vmax.xlane.f32.xlu0 %v6054
          %v6056 = vpop.xlane.xlu0 %6055
          %v6058 = vlaneseq
          %v6059 = vshrl.u32 %v6058, 7
          %v6060 = vsub.s32 0, %v6059
          %v6061 = vrot.slane %v6056, %v6060
          %v6062 = vlaneseq
          %v6063 = vshrl.u32 %v6062, 7
          %v6064 = vsub.s32 1, %v6063
          %v6065 = vrot.slane %v6056, %v6064
          %v6066 = vlaneseq
          %v6067 = vshrl.u32 %v6066, 7
          %v6068 = vsub.s32 2, %v6067
          %v6069 = vrot.slane %v6056, %v6068
          %v6070 = vlaneseq
          %v6071 = vshrl.u32 %v6070, 7
          %v6072 = vsub.s32 3, %v6071
          %v6073 = vrot.slane %v6056, %v6072
          %v6074 = vlaneseq
          %v6075 = vshrl.u32 %v6074, 7
          %v6076 = vsub.s32 4, %v6075
          %v6077 = vrot.slane %v6056, %v6076
          %v6078 = vlaneseq
          %v6079 = vshrl.u32 %v6078, 7
          %v6080 = vsub.s32 5, %v6079
          %v6081 = vrot.slane %v6056, %v6080
          %v6082 = vlaneseq
          %v6083 = vshrl.u32 %v6082, 7
          %v6084 = vsub.s32 6, %v6083
          %v6085 = vrot.slane %v6056, %v6084
          %v6086 = vlaneseq
          %v6087 = vshrl.u32 %v6086, 7
          %v6088 = vsub.s32 7, %v6087
          %v6089 = vrot.slane %v6056, %v6088
          %v6098 = vsub.f32 %v3954, %v6061
          %v6099 = vsub.f32 %v3957, %v6061
          %v6100 = vsub.f32 %v3962, %v6061
          %v6101 = vsub.f32 %v3965, %v6061
          %v6102 = vsub.f32 %v3970, %v6061
          %v6103 = vsub.f32 %v3973, %v6061
          %v6104 = vsub.f32 %v3978, %v6061
          %v6105 = vsub.f32 %v3981, %v6061
          %v6106 = vsub.f32 %v4164, %v6065
          %v6107 = vsub.f32 %v4167, %v6065
          %v6108 = vsub.f32 %v4172, %v6065
          %v6109 = vsub.f32 %v4175, %v6065
          %v6110 = vsub.f32 %v4180, %v6065
          %v6111 = vsub.f32 %v4183, %v6065
          %v6112 = vsub.f32 %v4188, %v6065
          %v6113 = vsub.f32 %v4191, %v6065
          %v6114 = vsub.f32 %v4374, %v6069
          %v6115 = vsub.f32 %v4377, %v6069
          %v6116 = vsub.f32 %v4382, %v6069
          %v6117 = vsub.f32 %v4385, %v6069
          %v6118 = vsub.f32 %v4390, %v6069
          %v6119 = vsub.f32 %v4393, %v6069
          %v6120 = vsub.f32 %v4398, %v6069
          %v6121 = vsub.f32 %v4401, %v6069
          %v6122 = vsub.f32 %v4584, %v6073
          %v6123 = vsub.f32 %v4587, %v6073
          %v6124 = vsub.f32 %v4592, %v6073
          %v6125 = vsub.f32 %v4595, %v6073
          %v6126 = vsub.f32 %v4600, %v6073
          %v6127 = vsub.f32 %v4603, %v6073
          %v6128 = vsub.f32 %v4608, %v6073
          %v6129 = vsub.f32 %v4611, %v6073
          %v6130 = vsub.f32 %v4794, %v6077
          %v6131 = vsub.f32 %v4797, %v6077
          %v6132 = vsub.f32 %v4802, %v6077
          %v6133 = vsub.f32 %v4805, %v6077
          %v6134 = vsub.f32 %v4810, %v6077
          %v6135 = vsub.f32 %v4813, %v6077
          %v6136 = vsub.f32 %v4818, %v6077
          %v6137 = vsub.f32 %v4821, %v6077
          %v6138 = vsub.f32 %v5004, %v6081
          %v6139 = vsub.f32 %v5007, %v6081
          %v6140 = vsub.f32 %v5012, %v6081
          %v6141 = vsub.f32 %v5015, %v6081
          %v6142 = vsub.f32 %v5020, %v6081
          %v6143 = vsub.f32 %v5023, %v6081
          %v6144 = vsub.f32 %v5028, %v6081
          %v6145 = vsub.f32 %v5031, %v6081
          %v6146 = vsub.f32 %v5214, %v6085
          %v6147 = vsub.f32 %v5217, %v6085
          %v6148 = vsub.f32 %v5222, %v6085
          %v6149 = vsub.f32 %v5225, %v6085
          %v6150 = vsub.f32 %v5230, %v6085
          %v6151 = vsub.f32 %v5233, %v6085
          %v6152 = vsub.f32 %v5238, %v6085
          %v6153 = vsub.f32 %v5241, %v6085
          %v6154 = vsub.f32 %v5424, %v6089
          %v6155 = vsub.f32 %v5427, %v6089
          %v6156 = vsub.f32 %v5432, %v6089
          %v6157 = vsub.f32 %v5435, %v6089
          %v6158 = vsub.f32 %v5440, %v6089
          %v6159 = vsub.f32 %v5443, %v6089
          %v6160 = vsub.f32 %v5448, %v6089
          %v6161 = vsub.f32 %v5451, %v6089
          %v6162 = vmul.f32 %v6098, 1.442695
          %v6163 = vpow.pop %v6162
          %v6164 = vmul.f32 %v6099, 1.442695
          %v6165 = vpow.pop %v6164
          %v6166 = vmul.f32 %v6100, 1.442695
          %v6167 = vpow.pop %v6166
          %v6168 = vmul.f32 %v6101, 1.442695
          %v6169 = vpow.pop %v6168
          %v6170 = vmul.f32 %v6102, 1.442695
          %v6171 = vpow.pop %v6170
          %v6172 = vmul.f32 %v6103, 1.442695
          %v6173 = vpow.pop %v6172
          %v6174 = vmul.f32 %v6104, 1.442695
          %v6175 = vpow.pop %v6174
          %v6176 = vmul.f32 %v6105, 1.442695
          %v6177 = vpow.pop %v6176
          %v6178 = vmul.f32 %v6106, 1.442695
          %v6179 = vpow.pop %v6178
          %v6180 = vmul.f32 %v6107, 1.442695
          %v6181 = vpow.pop %v6180
          %v6182 = vmul.f32 %v6108, 1.442695
          %v6183 = vpow.pop %v6182
          %v6184 = vmul.f32 %v6109, 1.442695
          %v6185 = vpow.pop %v6184
          %v6186 = vmul.f32 %v6110, 1.442695
          %v6187 = vpow.pop %v6186
          %v6188 = vmul.f32 %v6111, 1.442695
          %v6189 = vpow.pop %v6188
          %v6190 = vmul.f32 %v6112, 1.442695
          %v6191 = vpow.pop %v6190
          %v6192 = vmul.f32 %v6113, 1.442695
          %v6193 = vpow.pop %v6192
          %v6194 = vmul.f32 %v6114, 1.442695
          %v6195 = vpow.pop %v6194
          %v6196 = vmul.f32 %v6115, 1.442695
          %v6197 = vpow.pop %v6196
          %v6198 = vmul.f32 %v6116, 1.442695
          %v6199 = vpow.pop %v6198
          %v6200 = vmul.f32 %v6117, 1.442695
          %v6201 = vpow.pop %v6200
          %v6202 = vmul.f32 %v6118, 1.442695
          %v6203 = vpow.pop %v6202
          %v6204 = vmul.f32 %v6119, 1.442695
          %v6205 = vpow.pop %v6204
          %v6206 = vmul.f32 %v6120, 1.442695
          %v6207 = vpow.pop %v6206
          %v6208 = vmul.f32 %v6121, 1.442695
          %v6209 = vpow.pop %v6208
          %v6210 = vmul.f32 %v6122, 1.442695
          %v6211 = vpow.pop %v6210
          %v6212 = vmul.f32 %v6123, 1.442695
          %v6213 = vpow.pop %v6212
          %v6214 = vmul.f32 %v6124, 1.442695
          %v6215 = vpow.pop %v6214
          %v6216 = vmul.f32 %v6125, 1.442695
          %v6217 = vpow.pop %v6216
          %v6218 = vmul.f32 %v6126, 1.442695
          %v6219 = vpow.pop %v6218
          %v6220 = vmul.f32 %v6127, 1.442695
          %v6221 = vpow.pop %v6220
          %v6222 = vmul.f32 %v6128, 1.442695
          %v6223 = vpow.pop %v6222
          %v6224 = vmul.f32 %v6129, 1.442695
          %v6225 = vpow.pop %v6224
          %v6226 = vmul.f32 %v6130, 1.442695
          %v6227 = vpow.pop %v6226
          %v6228 = vmul.f32 %v6131, 1.442695
          %v6229 = vpow.pop %v6228
          %v6230 = vmul.f32 %v6132, 1.442695
          %v6231 = vpow.pop %v6230
          %v6232 = vmul.f32 %v6133, 1.442695
          %v6233 = vpow.pop %v6232
          %v6234 = vmul.f32 %v6134, 1.442695
          %v6235 = vpow.pop %v6234
          %v6236 = vmul.f32 %v6135, 1.442695
          %v6237 = vpow.pop %v6236
          %v6238 = vmul.f32 %v6136, 1.442695
          %v6239 = vpow.pop %v6238
          %v6240 = vmul.f32 %v6137, 1.442695
          %v6241 = vpow.pop %v6240
          %v6242 = vmul.f32 %v6138, 1.442695
          %v6243 = vpow.pop %v6242
          %v6244 = vmul.f32 %v6139, 1.442695
          %v6245 = vpow.pop %v6244
          %v6246 = vmul.f32 %v6140, 1.442695
          %v6247 = vpow.pop %v6246
          %v6248 = vmul.f32 %v6141, 1.442695
          %v6249 = vpow.pop %v6248
          %v6250 = vmul.f32 %v6142, 1.442695
          %v6251 = vpow.pop %v6250
          %v6252 = vmul.f32 %v6143, 1.442695
          %v6253 = vpow.pop %v6252
          %v6254 = vmul.f32 %v6144, 1.442695
          %v6255 = vpow.pop %v6254
          %v6256 = vmul.f32 %v6145, 1.442695
          %v6257 = vpow.pop %v6256
          %v6258 = vmul.f32 %v6146, 1.442695
          %v6259 = vpow.pop %v6258
          %v6260 = vmul.f32 %v6147, 1.442695
          %v6261 = vpow.pop %v6260
          %v6262 = vmul.f32 %v6148, 1.442695
          %v6263 = vpow.pop %v6262
          %v6264 = vmul.f32 %v6149, 1.442695
          %v6265 = vpow.pop %v6264
          %v6266 = vmul.f32 %v6150, 1.442695
          %v6267 = vpow.pop %v6266
          %v6268 = vmul.f32 %v6151, 1.442695
          %v6269 = vpow.pop %v6268
          %v6270 = vmul.f32 %v6152, 1.442695
          %v6271 = vpow.pop %v6270
          %v6272 = vmul.f32 %v6153, 1.442695
          %v6273 = vpow.pop %v6272
          %v6274 = vmul.f32 %v6154, 1.442695
          %v6275 = vpow.pop %v6274
          %v6276 = vmul.f32 %v6155, 1.442695
          %v6277 = vpow.pop %v6276
          %v6278 = vmul.f32 %v6156, 1.442695
          %v6279 = vpow.pop %v6278
          %v6280 = vmul.f32 %v6157, 1.442695
          %v6281 = vpow.pop %v6280
          %v6282 = vmul.f32 %v6158, 1.442695
          %v6283 = vpow.pop %v6282
          %v6284 = vmul.f32 %v6159, 1.442695
          %v6285 = vpow.pop %v6284
          %v6286 = vmul.f32 %v6160, 1.442695
          %v6287 = vpow.pop %v6286
          %v6288 = vmul.f32 %v6161, 1.442695
          %v6289 = vpow.pop %v6288
          %6354 = vset.pattern.permute.xlu0 0
          %6355 = vperm.xlu0 %6354, %v6163
          %v6356 = vpop.permute.xlu0 %6355
          %6357 = vset.pattern.permute.xlu0 0
          %6358 = vperm.xlu0 %6357, %v6165
          %v6359 = vpop.permute.xlu0 %6358
          %6360 = vset.pattern.permute.xlu0 0
          %6361 = vperm.xlu0 %6360, %v6167
          %v6362 = vpop.permute.xlu0 %6361
          %6363 = vset.pattern.permute.xlu0 0
          %6364 = vperm.xlu0 %6363, %v6169
          %v6365 = vpop.permute.xlu0 %6364
          %6366 = vset.pattern.permute.xlu0 0
          %6367 = vperm.xlu0 %6366, %v6171
          %v6368 = vpop.permute.xlu0 %6367
          %6369 = vset.pattern.permute.xlu0 0
          %6370 = vperm.xlu0 %6369, %v6173
          %v6371 = vpop.permute.xlu0 %6370
          %6372 = vset.pattern.permute.xlu0 0
          %6373 = vperm.xlu0 %6372, %v6175
          %v6374 = vpop.permute.xlu0 %6373
          %6375 = vset.pattern.permute.xlu0 0
          %6376 = vperm.xlu0 %6375, %v6177
          %v6377 = vpop.permute.xlu0 %6376
          %6378 = vset.pattern.permute.xlu0 0
          %6379 = vperm.xlu0 %6378, %v6179
          %v6380 = vpop.permute.xlu0 %6379
          %6381 = vset.pattern.permute.xlu0 0
          %6382 = vperm.xlu0 %6381, %v6181
          %v6383 = vpop.permute.xlu0 %6382
          %6384 = vset.pattern.permute.xlu0 0
          %6385 = vperm.xlu0 %6384, %v6183
          %v6386 = vpop.permute.xlu0 %6385
          %6387 = vset.pattern.permute.xlu0 0
          %6388 = vperm.xlu0 %6387, %v6185
          %v6389 = vpop.permute.xlu0 %6388
          %6390 = vset.pattern.permute.xlu0 0
          %6391 = vperm.xlu0 %6390, %v6187
          %v6392 = vpop.permute.xlu0 %6391
          %6393 = vset.pattern.permute.xlu0 0
          %6394 = vperm.xlu0 %6393, %v6189
          %v6395 = vpop.permute.xlu0 %6394
          %6396 = vset.pattern.permute.xlu0 0
          %6397 = vperm.xlu0 %6396, %v6191
          %v6398 = vpop.permute.xlu0 %6397
          %6399 = vset.pattern.permute.xlu0 0
          %6400 = vperm.xlu0 %6399, %v6193
          %v6401 = vpop.permute.xlu0 %6400
          %6402 = vset.pattern.permute.xlu0 0
          %6403 = vperm.xlu0 %6402, %v6195
          %v6404 = vpop.permute.xlu0 %6403
          %6405 = vset.pattern.permute.xlu0 0
          %6406 = vperm.xlu0 %6405, %v6197
          %v6407 = vpop.permute.xlu0 %6406
          %6408 = vset.pattern.permute.xlu0 0
          %6409 = vperm.xlu0 %6408, %v6199
          %v6410 = vpop.permute.xlu0 %6409
          %6411 = vset.pattern.permute.xlu0 0
          %6412 = vperm.xlu0 %6411, %v6201
          %v6413 = vpop.permute.xlu0 %6412
          %6414 = vset.pattern.permute.xlu0 0
          %6415 = vperm.xlu0 %6414, %v6203
          %v6416 = vpop.permute.xlu0 %6415
          %6417 = vset.pattern.permute.xlu0 0
          %6418 = vperm.xlu0 %6417, %v6205
          %v6419 = vpop.permute.xlu0 %6418
          %6420 = vset.pattern.permute.xlu0 0
          %6421 = vperm.xlu0 %6420, %v6207
          %v6422 = vpop.permute.xlu0 %6421
          %6423 = vset.pattern.permute.xlu0 0
          %6424 = vperm.xlu0 %6423, %v6209
          %v6425 = vpop.permute.xlu0 %6424
          %6426 = vset.pattern.permute.xlu0 0
          %6427 = vperm.xlu0 %6426, %v6211
          %v6428 = vpop.permute.xlu0 %6427
          %6429 = vset.pattern.permute.xlu0 0
          %6430 = vperm.xlu0 %6429, %v6213
          %v6431 = vpop.permute.xlu0 %6430
          %6432 = vset.pattern.permute.xlu0 0
          %6433 = vperm.xlu0 %6432, %v6215
          %v6434 = vpop.permute.xlu0 %6433
          %6435 = vset.pattern.permute.xlu0 0
          %6436 = vperm.xlu0 %6435, %v6217
          %v6437 = vpop.permute.xlu0 %6436
          %6438 = vset.pattern.permute.xlu0 0
          %6439 = vperm.xlu0 %6438, %v6219
          %v6440 = vpop.permute.xlu0 %6439
          %6441 = vset.pattern.permute.xlu0 0
          %6442 = vperm.xlu0 %6441, %v6221
          %v6443 = vpop.permute.xlu0 %6442
          %6444 = vset.pattern.permute.xlu0 0
          %6445 = vperm.xlu0 %6444, %v6223
          %v6446 = vpop.permute.xlu0 %6445
          %6447 = vset.pattern.permute.xlu0 0
          %6448 = vperm.xlu0 %6447, %v6225
          %v6449 = vpop.permute.xlu0 %6448
          %6450 = vset.pattern.permute.xlu0 0
          %6451 = vperm.xlu0 %6450, %v6227
          %v6452 = vpop.permute.xlu0 %6451
          %6453 = vset.pattern.permute.xlu0 0
          %6454 = vperm.xlu0 %6453, %v6229
          %v6455 = vpop.permute.xlu0 %6454
          %6456 = vset.pattern.permute.xlu0 0
          %6457 = vperm.xlu0 %6456, %v6231
          %v6458 = vpop.permute.xlu0 %6457
          %6459 = vset.pattern.permute.xlu0 0
          %6460 = vperm.xlu0 %6459, %v6233
          %v6461 = vpop.permute.xlu0 %6460
          %6462 = vset.pattern.permute.xlu0 0
          %6463 = vperm.xlu0 %6462, %v6235
          %v6464 = vpop.permute.xlu0 %6463
          %6465 = vset.pattern.permute.xlu0 0
          %6466 = vperm.xlu0 %6465, %v6237
          %v6467 = vpop.permute.xlu0 %6466
          %6468 = vset.pattern.permute.xlu0 0
          %6469 = vperm.xlu0 %6468, %v6239
          %v6470 = vpop.permute.xlu0 %6469
          %6471 = vset.pattern.permute.xlu0 0
          %6472 = vperm.xlu0 %6471, %v6241
          %v6473 = vpop.permute.xlu0 %6472
          %6474 = vset.pattern.permute.xlu0 0
          %6475 = vperm.xlu0 %6474, %v6243
          %v6476 = vpop.permute.xlu0 %6475
          %6477 = vset.pattern.permute.xlu0 0
          %6478 = vperm.xlu0 %6477, %v6245
          %v6479 = vpop.permute.xlu0 %6478
          %6480 = vset.pattern.permute.xlu0 0
          %6481 = vperm.xlu0 %6480, %v6247
          %v6482 = vpop.permute.xlu0 %6481
          %6483 = vset.pattern.permute.xlu0 0
          %6484 = vperm.xlu0 %6483, %v6249
          %v6485 = vpop.permute.xlu0 %6484
          %6486 = vset.pattern.permute.xlu0 0
          %6487 = vperm.xlu0 %6486, %v6251
          %v6488 = vpop.permute.xlu0 %6487
          %6489 = vset.pattern.permute.xlu0 0
          %6490 = vperm.xlu0 %6489, %v6253
          %v6491 = vpop.permute.xlu0 %6490
          %6492 = vset.pattern.permute.xlu0 0
          %6493 = vperm.xlu0 %6492, %v6255
          %v6494 = vpop.permute.xlu0 %6493
          %6495 = vset.pattern.permute.xlu0 0
          %6496 = vperm.xlu0 %6495, %v6257
          %v6497 = vpop.permute.xlu0 %6496
          %6498 = vset.pattern.permute.xlu0 0
          %6499 = vperm.xlu0 %6498, %v6259
          %v6500 = vpop.permute.xlu0 %6499
          %6501 = vset.pattern.permute.xlu0 0
          %6502 = vperm.xlu0 %6501, %v6261
          %v6503 = vpop.permute.xlu0 %6502
          %6504 = vset.pattern.permute.xlu0 0
          %6505 = vperm.xlu0 %6504, %v6263
          %v6506 = vpop.permute.xlu0 %6505
          %6507 = vset.pattern.permute.xlu0 0
          %6508 = vperm.xlu0 %6507, %v6265
          %v6509 = vpop.permute.xlu0 %6508
          %6510 = vset.pattern.permute.xlu0 0
          %6511 = vperm.xlu0 %6510, %v6267
          %v6512 = vpop.permute.xlu0 %6511
          %6513 = vset.pattern.permute.xlu0 0
          %6514 = vperm.xlu0 %6513, %v6269
          %v6515 = vpop.permute.xlu0 %6514
          %6516 = vset.pattern.permute.xlu0 0
          %6517 = vperm.xlu0 %6516, %v6271
          %v6518 = vpop.permute.xlu0 %6517
          %6519 = vset.pattern.permute.xlu0 0
          %6520 = vperm.xlu0 %6519, %v6273
          %v6521 = vpop.permute.xlu0 %6520
          %6522 = vset.pattern.permute.xlu0 0
          %6523 = vperm.xlu0 %6522, %v6275
          %v6524 = vpop.permute.xlu0 %6523
          %6525 = vset.pattern.permute.xlu0 0
          %6526 = vperm.xlu0 %6525, %v6277
          %v6527 = vpop.permute.xlu0 %6526
          %6528 = vset.pattern.permute.xlu0 0
          %6529 = vperm.xlu0 %6528, %v6279
          %v6530 = vpop.permute.xlu0 %6529
          %6531 = vset.pattern.permute.xlu0 0
          %6532 = vperm.xlu0 %6531, %v6281
          %v6533 = vpop.permute.xlu0 %6532
          %6534 = vset.pattern.permute.xlu0 0
          %6535 = vperm.xlu0 %6534, %v6283
          %v6536 = vpop.permute.xlu0 %6535
          %6537 = vset.pattern.permute.xlu0 0
          %6538 = vperm.xlu0 %6537, %v6285
          %v6539 = vpop.permute.xlu0 %6538
          %6540 = vset.pattern.permute.xlu0 0
          %6541 = vperm.xlu0 %6540, %v6287
          %v6542 = vpop.permute.xlu0 %6541
          %6543 = vset.pattern.permute.xlu0 0
          %6544 = vperm.xlu0 %6543, %v6289
          %v6545 = vpop.permute.xlu0 %6544
          %v6546 = vlaneseq
          %v6547 = vshrl.u32 %v6546, 7
          %v6548 = vsub.s32 %v5711, %v6547
          %v6549 = vrot.slane %v6356, %v6548
          %v6550 = vlaneseq
          %v6551 = vshrl.u32 %v6550, 7
          %v6552 = vsub.s32 %v5716, %v6551
          %v6553 = vrot.slane %v6359, %v6552
          %v6554 = vsel %vm5721, %v6553, %v6549
          %v6555 = vlaneseq
          %v6556 = vshrl.u32 %v6555, 7
          %v6557 = vsub.s32 %v5723, %v6556
          %v6558 = vrot.slane %v6362, %v6557
          %v6559 = vsel %vm5728, %v6558, %v6554
          %v6560 = vlaneseq
          %v6561 = vshrl.u32 %v6560, 7
          %v6562 = vsub.s32 %v5730, %v6561
          %v6563 = vrot.slane %v6365, %v6562
          %v6564 = vsel %vm5735, %v6563, %v6559
          %v6565 = vlaneseq
          %v6566 = vshrl.u32 %v6565, 7
          %v6567 = vsub.s32 %v5737, %v6566
          %v6568 = vrot.slane %v6368, %v6567
          %v6569 = vsel %vm5742, %v6568, %v6564
          %v6570 = vlaneseq
          %v6571 = vshrl.u32 %v6570, 7
          %v6572 = vsub.s32 %v5744, %v6571
          %v6573 = vrot.slane %v6371, %v6572
          %v6574 = vsel %vm5749, %v6573, %v6569
          %v6575 = vlaneseq
          %v6576 = vshrl.u32 %v6575, 7
          %v6577 = vsub.s32 %v5751, %v6576
          %v6578 = vrot.slane %v6374, %v6577
          %v6579 = vsel %vm5756, %v6578, %v6574
          %v6580 = vlaneseq
          %v6581 = vshrl.u32 %v6580, 7
          %v6582 = vsub.s32 %v5758, %v6581
          %v6583 = vrot.slane %v6377, %v6582
          %v6584 = vsel %vm5763, %v6583, %v6579
          %v6585 = vlaneseq
          %v6586 = vshrl.u32 %v6585, 7
          %v6587 = vsub.s32 %v5711, %v6586
          %v6588 = vrot.slane %v6380, %v6587
          %v6589 = vlaneseq
          %v6590 = vshrl.u32 %v6589, 7
          %v6591 = vsub.s32 %v5716, %v6590
          %v6592 = vrot.slane %v6383, %v6591
          %v6593 = vsel %vm5721, %v6592, %v6588
          %v6594 = vlaneseq
          %v6595 = vshrl.u32 %v6594, 7
          %v6596 = vsub.s32 %v5723, %v6595
          %v6597 = vrot.slane %v6386, %v6596
          %v6598 = vsel %vm5728, %v6597, %v6593
          %v6599 = vlaneseq
          %v6600 = vshrl.u32 %v6599, 7
          %v6601 = vsub.s32 %v5730, %v6600
          %v6602 = vrot.slane %v6389, %v6601
          %v6603 = vsel %vm5735, %v6602, %v6598
          %v6604 = vlaneseq
          %v6605 = vshrl.u32 %v6604, 7
          %v6606 = vsub.s32 %v5737, %v6605
          %v6607 = vrot.slane %v6392, %v6606
          %v6608 = vsel %vm5742, %v6607, %v6603
          %v6609 = vlaneseq
          %v6610 = vshrl.u32 %v6609, 7
          %v6611 = vsub.s32 %v5744, %v6610
          %v6612 = vrot.slane %v6395, %v6611
          %v6613 = vsel %vm5749, %v6612, %v6608
          %v6614 = vlaneseq
          %v6615 = vshrl.u32 %v6614, 7
          %v6616 = vsub.s32 %v5751, %v6615
          %v6617 = vrot.slane %v6398, %v6616
          %v6618 = vsel %vm5756, %v6617, %v6613
          %v6619 = vlaneseq
          %v6620 = vshrl.u32 %v6619, 7
          %v6621 = vsub.s32 %v5758, %v6620
          %v6622 = vrot.slane %v6401, %v6621
          %v6623 = vsel %vm5763, %v6622, %v6618
          %v6624 = vlaneseq
          %v6625 = vshrl.u32 %v6624, 7
          %v6626 = vsub.s32 %v5711, %v6625
          %v6627 = vrot.slane %v6404, %v6626
          %v6628 = vlaneseq
          %v6629 = vshrl.u32 %v6628, 7
          %v6630 = vsub.s32 %v5716, %v6629
          %v6631 = vrot.slane %v6407, %v6630
          %v6632 = vsel %vm5721, %v6631, %v6627
          %v6633 = vlaneseq
          %v6634 = vshrl.u32 %v6633, 7
          %v6635 = vsub.s32 %v5723, %v6634
          %v6636 = vrot.slane %v6410, %v6635
          %v6637 = vsel %vm5728, %v6636, %v6632
          %v6638 = vlaneseq
          %v6639 = vshrl.u32 %v6638, 7
          %v6640 = vsub.s32 %v5730, %v6639
          %v6641 = vrot.slane %v6413, %v6640
          %v6642 = vsel %vm5735, %v6641, %v6637
          %v6643 = vlaneseq
          %v6644 = vshrl.u32 %v6643, 7
          %v6645 = vsub.s32 %v5737, %v6644
          %v6646 = vrot.slane %v6416, %v6645
          %v6647 = vsel %vm5742, %v6646, %v6642
          %v6648 = vlaneseq
          %v6649 = vshrl.u32 %v6648, 7
          %v6650 = vsub.s32 %v5744, %v6649
          %v6651 = vrot.slane %v6419, %v6650
          %v6652 = vsel %vm5749, %v6651, %v6647
          %v6653 = vlaneseq
          %v6654 = vshrl.u32 %v6653, 7
          %v6655 = vsub.s32 %v5751, %v6654
          %v6656 = vrot.slane %v6422, %v6655
          %v6657 = vsel %vm5756, %v6656, %v6652
          %v6658 = vlaneseq
          %v6659 = vshrl.u32 %v6658, 7
          %v6660 = vsub.s32 %v5758, %v6659
          %v6661 = vrot.slane %v6425, %v6660
          %v6662 = vsel %vm5763, %v6661, %v6657
          %v6663 = vlaneseq
          %v6664 = vshrl.u32 %v6663, 7
          %v6665 = vsub.s32 %v5711, %v6664
          %v6666 = vrot.slane %v6428, %v6665
          %v6667 = vlaneseq
          %v6668 = vshrl.u32 %v6667, 7
          %v6669 = vsub.s32 %v5716, %v6668
          %v6670 = vrot.slane %v6431, %v6669
          %v6671 = vsel %vm5721, %v6670, %v6666
          %v6672 = vlaneseq
          %v6673 = vshrl.u32 %v6672, 7
          %v6674 = vsub.s32 %v5723, %v6673
          %v6675 = vrot.slane %v6434, %v6674
          %v6676 = vsel %vm5728, %v6675, %v6671
          %v6677 = vlaneseq
          %v6678 = vshrl.u32 %v6677, 7
          %v6679 = vsub.s32 %v5730, %v6678
          %v6680 = vrot.slane %v6437, %v6679
          %v6681 = vsel %vm5735, %v6680, %v6676
          %v6682 = vlaneseq
          %v6683 = vshrl.u32 %v6682, 7
          %v6684 = vsub.s32 %v5737, %v6683
          %v6685 = vrot.slane %v6440, %v6684
          %v6686 = vsel %vm5742, %v6685, %v6681
          %v6687 = vlaneseq
          %v6688 = vshrl.u32 %v6687, 7
          %v6689 = vsub.s32 %v5744, %v6688
          %v6690 = vrot.slane %v6443, %v6689
          %v6691 = vsel %vm5749, %v6690, %v6686
          %v6692 = vlaneseq
          %v6693 = vshrl.u32 %v6692, 7
          %v6694 = vsub.s32 %v5751, %v6693
          %v6695 = vrot.slane %v6446, %v6694
          %v6696 = vsel %vm5756, %v6695, %v6691
          %v6697 = vlaneseq
          %v6698 = vshrl.u32 %v6697, 7
          %v6699 = vsub.s32 %v5758, %v6698
          %v6700 = vrot.slane %v6449, %v6699
          %v6701 = vsel %vm5763, %v6700, %v6696
          %v6702 = vlaneseq
          %v6703 = vshrl.u32 %v6702, 7
          %v6704 = vsub.s32 %v5711, %v6703
          %v6705 = vrot.slane %v6452, %v6704
          %v6706 = vlaneseq
          %v6707 = vshrl.u32 %v6706, 7
          %v6708 = vsub.s32 %v5716, %v6707
          %v6709 = vrot.slane %v6455, %v6708
          %v6710 = vsel %vm5721, %v6709, %v6705
          %v6711 = vlaneseq
          %v6712 = vshrl.u32 %v6711, 7
          %v6713 = vsub.s32 %v5723, %v6712
          %v6714 = vrot.slane %v6458, %v6713
          %v6715 = vsel %vm5728, %v6714, %v6710
          %v6716 = vlaneseq
          %v6717 = vshrl.u32 %v6716, 7
          %v6718 = vsub.s32 %v5730, %v6717
          %v6719 = vrot.slane %v6461, %v6718
          %v6720 = vsel %vm5735, %v6719, %v6715
          %v6721 = vlaneseq
          %v6722 = vshrl.u32 %v6721, 7
          %v6723 = vsub.s32 %v5737, %v6722
          %v6724 = vrot.slane %v6464, %v6723
          %v6725 = vsel %vm5742, %v6724, %v6720
          %v6726 = vlaneseq
          %v6727 = vshrl.u32 %v6726, 7
          %v6728 = vsub.s32 %v5744, %v6727
          %v6729 = vrot.slane %v6467, %v6728
          %v6730 = vsel %vm5749, %v6729, %v6725
          %v6731 = vlaneseq
          %v6732 = vshrl.u32 %v6731, 7
          %v6733 = vsub.s32 %v5751, %v6732
          %v6734 = vrot.slane %v6470, %v6733
          %v6735 = vsel %vm5756, %v6734, %v6730
          %v6736 = vlaneseq
          %v6737 = vshrl.u32 %v6736, 7
          %v6738 = vsub.s32 %v5758, %v6737
          %v6739 = vrot.slane %v6473, %v6738
          %v6740 = vsel %vm5763, %v6739, %v6735
          %v6741 = vlaneseq
          %v6742 = vshrl.u32 %v6741, 7
          %v6743 = vsub.s32 %v5711, %v6742
          %v6744 = vrot.slane %v6476, %v6743
          %v6745 = vlaneseq
          %v6746 = vshrl.u32 %v6745, 7
          %v6747 = vsub.s32 %v5716, %v6746
          %v6748 = vrot.slane %v6479, %v6747
          %v6749 = vsel %vm5721, %v6748, %v6744
          %v6750 = vlaneseq
          %v6751 = vshrl.u32 %v6750, 7
          %v6752 = vsub.s32 %v5723, %v6751
          %v6753 = vrot.slane %v6482, %v6752
          %v6754 = vsel %vm5728, %v6753, %v6749
          %v6755 = vlaneseq
          %v6756 = vshrl.u32 %v6755, 7
          %v6757 = vsub.s32 %v5730, %v6756
          %v6758 = vrot.slane %v6485, %v6757
          %v6759 = vsel %vm5735, %v6758, %v6754
          %v6760 = vlaneseq
          %v6761 = vshrl.u32 %v6760, 7
          %v6762 = vsub.s32 %v5737, %v6761
          %v6763 = vrot.slane %v6488, %v6762
          %v6764 = vsel %vm5742, %v6763, %v6759
          %v6765 = vlaneseq
          %v6766 = vshrl.u32 %v6765, 7
          %v6767 = vsub.s32 %v5744, %v6766
          %v6768 = vrot.slane %v6491, %v6767
          %v6769 = vsel %vm5749, %v6768, %v6764
          %v6770 = vlaneseq
          %v6771 = vshrl.u32 %v6770, 7
          %v6772 = vsub.s32 %v5751, %v6771
          %v6773 = vrot.slane %v6494, %v6772
          %v6774 = vsel %vm5756, %v6773, %v6769
          %v6775 = vlaneseq
          %v6776 = vshrl.u32 %v6775, 7
          %v6777 = vsub.s32 %v5758, %v6776
          %v6778 = vrot.slane %v6497, %v6777
          %v6779 = vsel %vm5763, %v6778, %v6774
          %v6780 = vlaneseq
          %v6781 = vshrl.u32 %v6780, 7
          %v6782 = vsub.s32 %v5711, %v6781
          %v6783 = vrot.slane %v6500, %v6782
          %v6784 = vlaneseq
          %v6785 = vshrl.u32 %v6784, 7
          %v6786 = vsub.s32 %v5716, %v6785
          %v6787 = vrot.slane %v6503, %v6786
          %v6788 = vsel %vm5721, %v6787, %v6783
          %v6789 = vlaneseq
          %v6790 = vshrl.u32 %v6789, 7
          %v6791 = vsub.s32 %v5723, %v6790
          %v6792 = vrot.slane %v6506, %v6791
          %v6793 = vsel %vm5728, %v6792, %v6788
          %v6794 = vlaneseq
          %v6795 = vshrl.u32 %v6794, 7
          %v6796 = vsub.s32 %v5730, %v6795
          %v6797 = vrot.slane %v6509, %v6796
          %v6798 = vsel %vm5735, %v6797, %v6793
          %v6799 = vlaneseq
          %v6800 = vshrl.u32 %v6799, 7
          %v6801 = vsub.s32 %v5737, %v6800
          %v6802 = vrot.slane %v6512, %v6801
          %v6803 = vsel %vm5742, %v6802, %v6798
          %v6804 = vlaneseq
          %v6805 = vshrl.u32 %v6804, 7
          %v6806 = vsub.s32 %v5744, %v6805
          %v6807 = vrot.slane %v6515, %v6806
          %v6808 = vsel %vm5749, %v6807, %v6803
          %v6809 = vlaneseq
          %v6810 = vshrl.u32 %v6809, 7
          %v6811 = vsub.s32 %v5751, %v6810
          %v6812 = vrot.slane %v6518, %v6811
          %v6813 = vsel %vm5756, %v6812, %v6808
          %v6814 = vlaneseq
          %v6815 = vshrl.u32 %v6814, 7
          %v6816 = vsub.s32 %v5758, %v6815
          %v6817 = vrot.slane %v6521, %v6816
          %v6818 = vsel %vm5763, %v6817, %v6813
          %v6819 = vlaneseq
          %v6820 = vshrl.u32 %v6819, 7
          %v6821 = vsub.s32 %v5711, %v6820
          %v6822 = vrot.slane %v6524, %v6821
          %v6823 = vlaneseq
          %v6824 = vshrl.u32 %v6823, 7
          %v6825 = vsub.s32 %v5716, %v6824
          %v6826 = vrot.slane %v6527, %v6825
          %v6827 = vsel %vm5721, %v6826, %v6822
          %v6828 = vlaneseq
          %v6829 = vshrl.u32 %v6828, 7
          %v6830 = vsub.s32 %v5723, %v6829
          %v6831 = vrot.slane %v6530, %v6830
          %v6832 = vsel %vm5728, %v6831, %v6827
          %v6833 = vlaneseq
          %v6834 = vshrl.u32 %v6833, 7
          %v6835 = vsub.s32 %v5730, %v6834
          %v6836 = vrot.slane %v6533, %v6835
          %v6837 = vsel %vm5735, %v6836, %v6832
          %v6838 = vlaneseq
          %v6839 = vshrl.u32 %v6838, 7
          %v6840 = vsub.s32 %v5737, %v6839
          %v6841 = vrot.slane %v6536, %v6840
          %v6842 = vsel %vm5742, %v6841, %v6837
          %v6843 = vlaneseq
          %v6844 = vshrl.u32 %v6843, 7
          %v6845 = vsub.s32 %v5744, %v6844
          %v6846 = vrot.slane %v6539, %v6845
          %v6847 = vsel %vm5749, %v6846, %v6842
          %v6848 = vlaneseq
          %v6849 = vshrl.u32 %v6848, 7
          %v6850 = vsub.s32 %v5751, %v6849
          %v6851 = vrot.slane %v6542, %v6850
          %v6852 = vsel %vm5756, %v6851, %v6847
          %v6853 = vlaneseq
          %v6854 = vshrl.u32 %v6853, 7
          %v6855 = vsub.s32 %v5758, %v6854
          %v6856 = vrot.slane %v6545, %v6855
          %v6857 = vsel %vm5763, %v6856, %v6852
          %v6858 = vsel %vm6038, %v6623, %v6584
          %v6859 = vsel %vm6040, %v6662, %v6858
          %v6860 = vsel %vm6042, %v6701, %v6859
          %v6861 = vsel %vm6044, %v6740, %v6860
          %v6862 = vsel %vm6046, %v6779, %v6861
          %v6863 = vsel %vm6048, %v6818, %v6862
          %v6864 = vsel %vm6050, %v6857, %v6863
          %v6866 = vsel %vm6053, %v6864, 0.0
          %6867 = vadd.xlane.f32.xlu0 %v6866
          %v6868 = vpop.xlane.xlu0 %6867
          %v6869 = vrcp.pop %v6868
          %v6871 = vlaneseq
          %v6872 = vshrl.u32 %v6871, 7
          %v6873 = vsub.s32 0, %v6872
          %v6874 = vrot.slane %v6869, %v6873
          %v6875 = vlaneseq
          %v6876 = vshrl.u32 %v6875, 7
          %v6877 = vsub.s32 1, %v6876
          %v6878 = vrot.slane %v6869, %v6877
          %v6879 = vlaneseq
          %v6880 = vshrl.u32 %v6879, 7
          %v6881 = vsub.s32 2, %v6880
          %v6882 = vrot.slane %v6869, %v6881
          %v6883 = vlaneseq
          %v6884 = vshrl.u32 %v6883, 7
          %v6885 = vsub.s32 3, %v6884
          %v6886 = vrot.slane %v6869, %v6885
          %v6887 = vlaneseq
          %v6888 = vshrl.u32 %v6887, 7
          %v6889 = vsub.s32 4, %v6888
          %v6890 = vrot.slane %v6869, %v6889
          %v6891 = vlaneseq
          %v6892 = vshrl.u32 %v6891, 7
          %v6893 = vsub.s32 5, %v6892
          %v6894 = vrot.slane %v6869, %v6893
          %v6895 = vlaneseq
          %v6896 = vshrl.u32 %v6895, 7
          %v6897 = vsub.s32 6, %v6896
          %v6898 = vrot.slane %v6869, %v6897
          %v6899 = vlaneseq
          %v6900 = vshrl.u32 %v6899, 7
          %v6901 = vsub.s32 7, %v6900
          %v6902 = vrot.slane %v6869, %v6901
          %v6911 = vmul.f32 %v6163, %v6874
          %v6912 = vmul.f32 %v6165, %v6874
          %v6913 = vmul.f32 %v6167, %v6874
          %v6914 = vmul.f32 %v6169, %v6874
          %v6915 = vmul.f32 %v6171, %v6874
          %v6916 = vmul.f32 %v6173, %v6874
          %v6917 = vmul.f32 %v6175, %v6874
          %v6918 = vmul.f32 %v6177, %v6874
          %v6919 = vmul.f32 %v6179, %v6878
          %v6920 = vmul.f32 %v6181, %v6878
          %v6921 = vmul.f32 %v6183, %v6878
          %v6922 = vmul.f32 %v6185, %v6878
          %v6923 = vmul.f32 %v6187, %v6878
          %v6924 = vmul.f32 %v6189, %v6878
          %v6925 = vmul.f32 %v6191, %v6878
          %v6926 = vmul.f32 %v6193, %v6878
          %v6927 = vmul.f32 %v6195, %v6882
          %v6928 = vmul.f32 %v6197, %v6882
          %v6929 = vmul.f32 %v6199, %v6882
          %v6930 = vmul.f32 %v6201, %v6882
          %v6931 = vmul.f32 %v6203, %v6882
          %v6932 = vmul.f32 %v6205, %v6882
          %v6933 = vmul.f32 %v6207, %v6882
          %v6934 = vmul.f32 %v6209, %v6882
          %v6935 = vmul.f32 %v6211, %v6886
          %v6936 = vmul.f32 %v6213, %v6886
          %v6937 = vmul.f32 %v6215, %v6886
          %v6938 = vmul.f32 %v6217, %v6886
          %v6939 = vmul.f32 %v6219, %v6886
          %v6940 = vmul.f32 %v6221, %v6886
          %v6941 = vmul.f32 %v6223, %v6886
          %v6942 = vmul.f32 %v6225, %v6886
          %v6943 = vmul.f32 %v6227, %v6890
          %v6944 = vmul.f32 %v6229, %v6890
          %v6945 = vmul.f32 %v6231, %v6890
          %v6946 = vmul.f32 %v6233, %v6890
          %v6947 = vmul.f32 %v6235, %v6890
          %v6948 = vmul.f32 %v6237, %v6890
          %v6949 = vmul.f32 %v6239, %v6890
          %v6950 = vmul.f32 %v6241, %v6890
          %v6951 = vmul.f32 %v6243, %v6894
          %v6952 = vmul.f32 %v6245, %v6894
          %v6953 = vmul.f32 %v6247, %v6894
          %v6954 = vmul.f32 %v6249, %v6894
          %v6955 = vmul.f32 %v6251, %v6894
          %v6956 = vmul.f32 %v6253, %v6894
          %v6957 = vmul.f32 %v6255, %v6894
          %v6958 = vmul.f32 %v6257, %v6894
          %v6959 = vmul.f32 %v6259, %v6898
          %v6960 = vmul.f32 %v6261, %v6898
          %v6961 = vmul.f32 %v6263, %v6898
          %v6962 = vmul.f32 %v6265, %v6898
          %v6963 = vmul.f32 %v6267, %v6898
          %v6964 = vmul.f32 %v6269, %v6898
          %v6965 = vmul.f32 %v6271, %v6898
          %v6966 = vmul.f32 %v6273, %v6898
          %v6967 = vmul.f32 %v6275, %v6902
          %v6968 = vmul.f32 %v6277, %v6902
          %v6969 = vmul.f32 %v6279, %v6902
          %v6970 = vmul.f32 %v6281, %v6902
          %v6971 = vmul.f32 %v6283, %v6902
          %v6972 = vmul.f32 %v6285, %v6902
          %v6973 = vmul.f32 %v6287, %v6902
          %v6974 = vmul.f32 %v6289, %v6902
          %v6975 = vpack.c.bf16 %v6912, %v6911
          %v6976 = vpack.c.bf16 %v6914, %v6913
          %v6977 = vpack.c.bf16 %v6916, %v6915
          %v6978 = vpack.c.bf16 %v6918, %v6917
          %v6979 = vpack.c.bf16 %v6920, %v6919
          %v6980 = vpack.c.bf16 %v6922, %v6921
          %v6981 = vpack.c.bf16 %v6924, %v6923
          %v6982 = vpack.c.bf16 %v6926, %v6925
          %v6983 = vpack.c.bf16 %v6928, %v6927
          %v6984 = vpack.c.bf16 %v6930, %v6929
          %v6985 = vpack.c.bf16 %v6932, %v6931
          %v6986 = vpack.c.bf16 %v6934, %v6933
          %v6987 = vpack.c.bf16 %v6936, %v6935
          %v6988 = vpack.c.bf16 %v6938, %v6937
          %v6989 = vpack.c.bf16 %v6940, %v6939
          %v6990 = vpack.c.bf16 %v6942, %v6941
          %v6991 = vpack.c.bf16 %v6944, %v6943
          %v6992 = vpack.c.bf16 %v6946, %v6945
          %v6993 = vpack.c.bf16 %v6948, %v6947
          %v6994 = vpack.c.bf16 %v6950, %v6949
          %v6995 = vpack.c.bf16 %v6952, %v6951
          %v6996 = vpack.c.bf16 %v6954, %v6953
          %v6997 = vpack.c.bf16 %v6956, %v6955
          %v6998 = vpack.c.bf16 %v6958, %v6957
          %v6999 = vpack.c.bf16 %v6960, %v6959
          %v7000 = vpack.c.bf16 %v6962, %v6961
          %v7001 = vpack.c.bf16 %v6964, %v6963
          %v7002 = vpack.c.bf16 %v6966, %v6965
          %v7003 = vpack.c.bf16 %v6968, %v6967
          %v7004 = vpack.c.bf16 %v6970, %v6969
          %v7005 = vpack.c.bf16 %v6972, %v6971
          %v7006 = vpack.c.bf16 %v6974, %v6973
          %v7011 = vunpack.c.l.b16 %v6975
          %v7012 = vunpack.c.h.b16 %v6975
          %v7013 = vunpack.c.l.b16 %v6976
          %v7014 = vunpack.c.h.b16 %v6976
          %v7015 = vunpack.c.l.b16 %v6977
          %v7016 = vunpack.c.h.b16 %v6977
          %v7017 = vunpack.c.l.b16 %v6978
          %v7018 = vunpack.c.h.b16 %v6978
          %7019 = vset.pattern.permute.xlu0 0
          %7020 = vperm.xlu0 %7019, %v7011
          %v7021 = vpop.permute.xlu0 %7020
          %7022 = vset.pattern.permute.xlu0 0
          %7023 = vperm.xlu0 %7022, %v7012
          %v7024 = vpop.permute.xlu0 %7023
          %7025 = vset.pattern.permute.xlu0 0
          %7026 = vperm.xlu0 %7025, %v7013
          %v7027 = vpop.permute.xlu0 %7026
          %7028 = vset.pattern.permute.xlu0 0
          %7029 = vperm.xlu0 %7028, %v7014
          %v7030 = vpop.permute.xlu0 %7029
          %7031 = vset.pattern.permute.xlu0 0
          %7032 = vperm.xlu0 %7031, %v7015
          %v7033 = vpop.permute.xlu0 %7032
          %7034 = vset.pattern.permute.xlu0 0
          %7035 = vperm.xlu0 %7034, %v7016
          %v7036 = vpop.permute.xlu0 %7035
          %7037 = vset.pattern.permute.xlu0 0
          %7038 = vperm.xlu0 %7037, %v7017
          %v7039 = vpop.permute.xlu0 %7038
          %7040 = vset.pattern.permute.xlu0 0
          %7041 = vperm.xlu0 %7040, %v7018
          %v7042 = vpop.permute.xlu0 %7041
          %v7043 = vlaneseq
          %v7044 = vshrl.u32 %v7043, 7
          %v7045 = vsub.s32 %v5711, %v7044
          %v7046 = vrot.slane %v7021, %v7045
          %v7047 = vlaneseq
          %v7048 = vshrl.u32 %v7047, 7
          %v7049 = vsub.s32 %v5716, %v7048
          %v7050 = vrot.slane %v7024, %v7049
          %v7051 = vsel %vm5721, %v7050, %v7046
          %v7052 = vlaneseq
          %v7053 = vshrl.u32 %v7052, 7
          %v7054 = vsub.s32 %v5723, %v7053
          %v7055 = vrot.slane %v7027, %v7054
          %v7056 = vsel %vm5728, %v7055, %v7051
          %v7057 = vlaneseq
          %v7058 = vshrl.u32 %v7057, 7
          %v7059 = vsub.s32 %v5730, %v7058
          %v7060 = vrot.slane %v7030, %v7059
          %v7061 = vsel %vm5735, %v7060, %v7056
          %v7062 = vlaneseq
          %v7063 = vshrl.u32 %v7062, 7
          %v7064 = vsub.s32 %v5737, %v7063
          %v7065 = vrot.slane %v7033, %v7064
          %v7066 = vsel %vm5742, %v7065, %v7061
          %v7067 = vlaneseq
          %v7068 = vshrl.u32 %v7067, 7
          %v7069 = vsub.s32 %v5744, %v7068
          %v7070 = vrot.slane %v7036, %v7069
          %v7071 = vsel %vm5749, %v7070, %v7066
          %v7072 = vlaneseq
          %v7073 = vshrl.u32 %v7072, 7
          %v7074 = vsub.s32 %v5751, %v7073
          %v7075 = vrot.slane %v7039, %v7074
          %v7076 = vsel %vm5756, %v7075, %v7071
          %v7077 = vlaneseq
          %v7078 = vshrl.u32 %v7077, 7
          %v7079 = vsub.s32 %v5758, %v7078
          %v7080 = vrot.slane %v7042, %v7079
          %v7081 = vsel %vm5763, %v7080, %v7076
          %v7082 = vpack.c.b16 %v7081, %v7081
          %v7099 = vunpack.c.l.b16 %v2628
          %v7100 = vunpack.c.h.b16 %v2628
          %v7101 = vunpack.c.l.b16 %v2629
          %v7102 = vunpack.c.h.b16 %v2629
          %v7103 = vunpack.c.l.b16 %v2630
          %v7104 = vunpack.c.h.b16 %v2630
          %v7105 = vunpack.c.l.b16 %v2631
          %v7106 = vunpack.c.h.b16 %v2631
          %v7107 = vunpack.c.l.b16 %v2632
          %v7108 = vunpack.c.h.b16 %v2632
          %v7109 = vunpack.c.l.b16 %v2633
          %v7110 = vunpack.c.h.b16 %v2633
          %v7111 = vunpack.c.l.b16 %v2634
          %v7112 = vunpack.c.h.b16 %v2634
          %v7113 = vunpack.c.l.b16 %v2635
          %v7114 = vunpack.c.h.b16 %v2635
          %v7115 = vunpack.c.l.b16 %v2636
          %v7116 = vunpack.c.h.b16 %v2636
          %v7117 = vunpack.c.l.b16 %v2637
          %v7118 = vunpack.c.h.b16 %v2637
          %v7119 = vunpack.c.l.b16 %v2638
          %v7120 = vunpack.c.h.b16 %v2638
          %v7121 = vunpack.c.l.b16 %v2639
          %v7122 = vunpack.c.h.b16 %v2639
          %v7123 = vunpack.c.l.b16 %v2640
          %v7124 = vunpack.c.h.b16 %v2640
          %v7125 = vunpack.c.l.b16 %v2641
          %v7126 = vunpack.c.h.b16 %v2641
          %v7127 = vunpack.c.l.b16 %v2642
          %v7128 = vunpack.c.h.b16 %v2642
          %v7129 = vunpack.c.l.b16 %v2643
          %v7130 = vunpack.c.h.b16 %v2643
          %v7131 = vpack.c.b16 %v7103, %v7099
          %v7132 = vpack.c.b16 %v7104, %v7100
          %v7133 = vpack.c.b16 %v7105, %v7101
          %v7134 = vpack.c.b16 %v7106, %v7102
          %v7135 = vpack.c.b16 %v7111, %v7107
          %v7136 = vpack.c.b16 %v7112, %v7108
          %v7137 = vpack.c.b16 %v7113, %v7109
          %v7138 = vpack.c.b16 %v7114, %v7110
          %v7139 = vpack.c.b16 %v7119, %v7115
          %v7140 = vpack.c.b16 %v7120, %v7116
          %v7141 = vpack.c.b16 %v7121, %v7117
          %v7142 = vpack.c.b16 %v7122, %v7118
          %v7143 = vpack.c.b16 %v7127, %v7123
          %v7144 = vpack.c.b16 %v7128, %v7124
          %v7145 = vpack.c.b16 %v7129, %v7125
          %v7146 = vpack.c.b16 %v7130, %v7126
          %v7164 = vsel %vm6053, %v7082, 0
          %7166 = vmatprep.subr.bf16.mxu0 %v7132
          %7167 = vmatpush1.bf16.msra.mxu0 %v7131
          %7168 = vmatprep.subr.bf16.mxu0 %v7136
          %7169 = vmatpush1.bf16.msra.mxu0 %v7135
          %7170 = vmatprep.subr.bf16.mxu0 %v7140
          %7171 = vmatpush1.bf16.msra.mxu0 %v7139
          %7172 = vmatprep.subr.bf16.mxu0 %v7144
          %7173 = vmatpush1.bf16.msra.mxu0 %v7143
          %7174 = vmatprep.subr.bf16.mxu0 0
          %7175 = vmatpush1.bf16.msra.mxu0 0
          %7176 = vmatprep.subr.bf16.mxu0 0
          %7177 = vmatpush1.bf16.msra.mxu0 0
          %7178 = vmatprep.subr.bf16.mxu0 0
          %7179 = vmatpush1.bf16.msra.mxu0 0
          %7180 = vmatprep.subr.bf16.mxu0 0
          %7181 = vmatpush1.bf16.msra.mxu0 0
          %7182 = vmatprep.subr.bf16.mxu0 0
          %7183 = vmatpush1.bf16.msra.mxu0 0
          %7184 = vmatprep.subr.bf16.mxu0 0
          %7185 = vmatpush1.bf16.msra.mxu0 0
          %7186 = vmatprep.subr.bf16.mxu0 0
          %7187 = vmatpush1.bf16.msra.mxu0 0
          %7188 = vmatprep.subr.bf16.mxu0 0
          %7189 = vmatpush1.bf16.msra.mxu0 0
          %7190 = vmatprep.subr.bf16.mxu0 0
          %7191 = vmatpush1.bf16.msra.mxu0 0
          %7192 = vmatprep.subr.bf16.mxu0 0
          %7193 = vmatpush1.bf16.msra.mxu0 0
          %7194 = vmatprep.subr.bf16.mxu0 0
          %7195 = vmatpush1.bf16.msra.mxu0 0
          %7196 = vmatprep.subr.bf16.mxu0 0
          %7197 = vmatpush1.bf16.msra.mxu0 0
          %7198 = vmatprep.mubr.bf16.mxu0 0
          %7199 = vmatmul.mubr.bf16.gmra.mrb[0].mxu0 %v7164
          %v7200 = vpop.f32.mrb[0].mxu0
          %v7201 = vadd.f32 0.0, %v7200
          %v7202 = vpop.f32.mrb[0].mxu0
          %v7203 = vadd.f32 0.0, %v7202
          %v7204 = vpop.f32.mrb[0].mxu0
          %v7205 = vpop.f32.mrb[0].mxu0
          %7206 = vdwg.mxu0
          %7207 = vmatprep.subr.bf16.mxu0 %v7134
          %7208 = vmatpush1.bf16.msra.mxu0 %v7133
          %7209 = vmatprep.subr.bf16.mxu0 %v7138
          %7210 = vmatpush1.bf16.msra.mxu0 %v7137
          %7211 = vmatprep.subr.bf16.mxu0 %v7142
          %7212 = vmatpush1.bf16.msra.mxu0 %v7141
          %7213 = vmatprep.subr.bf16.mxu0 %v7146
          %7214 = vmatpush1.bf16.msra.mxu0 %v7145
          %7215 = vmatprep.subr.bf16.mxu0 0
          %7216 = vmatpush1.bf16.msra.mxu0 0
          %7217 = vmatprep.subr.bf16.mxu0 0
          %7218 = vmatpush1.bf16.msra.mxu0 0
          %7219 = vmatprep.subr.bf16.mxu0 0
          %7220 = vmatpush1.bf16.msra.mxu0 0
          %7221 = vmatprep.subr.bf16.mxu0 0
          %7222 = vmatpush1.bf16.msra.mxu0 0
          %7223 = vmatprep.subr.bf16.mxu0 0
          %7224 = vmatpush1.bf16.msra.mxu0 0
          %7225 = vmatprep.subr.bf16.mxu0 0
          %7226 = vmatpush1.bf16.msra.mxu0 0
          %7227 = vmatprep.subr.bf16.mxu0 0
          %7228 = vmatpush1.bf16.msra.mxu0 0
          %7229 = vmatprep.subr.bf16.mxu0 0
          %7230 = vmatpush1.bf16.msra.mxu0 0
          %7231 = vmatprep.subr.bf16.mxu0 0
          %7232 = vmatpush1.bf16.msra.mxu0 0
          %7233 = vmatprep.subr.bf16.mxu0 0
          %7234 = vmatpush1.bf16.msra.mxu0 0
          %7235 = vmatprep.subr.bf16.mxu0 0
          %7236 = vmatpush1.bf16.msra.mxu0 0
          %7237 = vmatprep.subr.bf16.mxu0 0
          %7238 = vmatpush1.bf16.msra.mxu0 0
          %7239 = vmatprep.mubr.bf16.mxu0 0
          %7240 = vmatmul.mubr.bf16.gmra.mrb[0].mxu0 %v7164
          %v7241 = vpop.f32.mrb[0].mxu0
          %v7242 = vadd.f32 0.0, %v7241
          %v7243 = vpop.f32.mrb[0].mxu0
          %v7244 = vadd.f32 0.0, %v7243
          %v7245 = vpop.f32.mrb[0].mxu0
          %v7246 = vpop.f32.mrb[0].mxu0
          %7247 = vdwg.mxu0
          %v7252 = vunpack.c.l.b16 %v6979
          %v7253 = vunpack.c.h.b16 %v6979
          %v7254 = vunpack.c.l.b16 %v6980
          %v7255 = vunpack.c.h.b16 %v6980
          %v7256 = vunpack.c.l.b16 %v6981
          %v7257 = vunpack.c.h.b16 %v6981
          %v7258 = vunpack.c.l.b16 %v6982
          %v7259 = vunpack.c.h.b16 %v6982
          %7260 = vset.pattern.permute.xlu0 0
          %7261 = vperm.xlu0 %7260, %v7252
          %v7262 = vpop.permute.xlu0 %7261
          %7263 = vset.pattern.permute.xlu0 0
          %7264 = vperm.xlu0 %7263, %v7253
          %v7265 = vpop.permute.xlu0 %7264
          %7266 = vset.pattern.permute.xlu0 0
          %7267 = vperm.xlu0 %7266, %v7254
          %v7268 = vpop.permute.xlu0 %7267
          %7269 = vset.pattern.permute.xlu0 0
          %7270 = vperm.xlu0 %7269, %v7255
          %v7271 = vpop.permute.xlu0 %7270
          %7272 = vset.pattern.permute.xlu0 0
          %7273 = vperm.xlu0 %7272, %v7256
          %v7274 = vpop.permute.xlu0 %7273
          %7275 = vset.pattern.permute.xlu0 0
          %7276 = vperm.xlu0 %7275, %v7257
          %v7277 = vpop.permute.xlu0 %7276
          %7278 = vset.pattern.permute.xlu0 0
          %7279 = vperm.xlu0 %7278, %v7258
          %v7280 = vpop.permute.xlu0 %7279
          %7281 = vset.pattern.permute.xlu0 0
          %7282 = vperm.xlu0 %7281, %v7259
          %v7283 = vpop.permute.xlu0 %7282
          %v7284 = vlaneseq
          %v7285 = vshrl.u32 %v7284, 7
          %v7286 = vsub.s32 %v5711, %v7285
          %v7287 = vrot.slane %v7262, %v7286
          %v7288 = vlaneseq
          %v7289 = vshrl.u32 %v7288, 7
          %v7290 = vsub.s32 %v5716, %v7289
          %v7291 = vrot.slane %v7265, %v7290
          %v7292 = vsel %vm5721, %v7291, %v7287
          %v7293 = vlaneseq
          %v7294 = vshrl.u32 %v7293, 7
          %v7295 = vsub.s32 %v5723, %v7294
          %v7296 = vrot.slane %v7268, %v7295
          %v7297 = vsel %vm5728, %v7296, %v7292
          %v7298 = vlaneseq
          %v7299 = vshrl.u32 %v7298, 7
          %v7300 = vsub.s32 %v5730, %v7299
          %v7301 = vrot.slane %v7271, %v7300
          %v7302 = vsel %vm5735, %v7301, %v7297
          %v7303 = vlaneseq
          %v7304 = vshrl.u32 %v7303, 7
          %v7305 = vsub.s32 %v5737, %v7304
          %v7306 = vrot.slane %v7274, %v7305
          %v7307 = vsel %vm5742, %v7306, %v7302
          %v7308 = vlaneseq
          %v7309 = vshrl.u32 %v7308, 7
          %v7310 = vsub.s32 %v5744, %v7309
          %v7311 = vrot.slane %v7277, %v7310
          %v7312 = vsel %vm5749, %v7311, %v7307
          %v7313 = vlaneseq
          %v7314 = vshrl.u32 %v7313, 7
          %v7315 = vsub.s32 %v5751, %v7314
          %v7316 = vrot.slane %v7280, %v7315
          %v7317 = vsel %vm5756, %v7316, %v7312
          %v7318 = vlaneseq
          %v7319 = vshrl.u32 %v7318, 7
          %v7320 = vsub.s32 %v5758, %v7319
          %v7321 = vrot.slane %v7283, %v7320
          %v7322 = vsel %vm5763, %v7321, %v7317
          %v7323 = vpack.c.b16 %v7322, %v7322
          %v7340 = vunpack.c.l.b16 %v2644
          %v7341 = vunpack.c.h.b16 %v2644
          %v7342 = vunpack.c.l.b16 %v2645
          %v7343 = vunpack.c.h.b16 %v2645
          %v7344 = vunpack.c.l.b16 %v2646
          %v7345 = vunpack.c.h.b16 %v2646
          %v7346 = vunpack.c.l.b16 %v2647
          %v7347 = vunpack.c.h.b16 %v2647
          %v7348 = vunpack.c.l.b16 %v2648
          %v7349 = vunpack.c.h.b16 %v2648
          %v7350 = vunpack.c.l.b16 %v2649
          %v7351 = vunpack.c.h.b16 %v2649
          %v7352 = vunpack.c.l.b16 %v2650
          %v7353 = vunpack.c.h.b16 %v2650
          %v7354 = vunpack.c.l.b16 %v2651
          %v7355 = vunpack.c.h.b16 %v2651
          %v7356 = vunpack.c.l.b16 %v2652
          %v7357 = vunpack.c.h.b16 %v2652
          %v7358 = vunpack.c.l.b16 %v2653
          %v7359 = vunpack.c.h.b16 %v2653
          %v7360 = vunpack.c.l.b16 %v2654
          %v7361 = vunpack.c.h.b16 %v2654
          %v7362 = vunpack.c.l.b16 %v2655
          %v7363 = vunpack.c.h.b16 %v2655
          %v7364 = vunpack.c.l.b16 %v2656
          %v7365 = vunpack.c.h.b16 %v2656
          %v7366 = vunpack.c.l.b16 %v2657
          %v7367 = vunpack.c.h.b16 %v2657
          %v7368 = vunpack.c.l.b16 %v2658
          %v7369 = vunpack.c.h.b16 %v2658
          %v7370 = vunpack.c.l.b16 %v2659
          %v7371 = vunpack.c.h.b16 %v2659
          %v7372 = vpack.c.b16 %v7344, %v7340
          %v7373 = vpack.c.b16 %v7345, %v7341
          %v7374 = vpack.c.b16 %v7346, %v7342
          %v7375 = vpack.c.b16 %v7347, %v7343
          %v7376 = vpack.c.b16 %v7352, %v7348
          %v7377 = vpack.c.b16 %v7353, %v7349
          %v7378 = vpack.c.b16 %v7354, %v7350
          %v7379 = vpack.c.b16 %v7355, %v7351
          %v7380 = vpack.c.b16 %v7360, %v7356
          %v7381 = vpack.c.b16 %v7361, %v7357
          %v7382 = vpack.c.b16 %v7362, %v7358
          %v7383 = vpack.c.b16 %v7363, %v7359
          %v7384 = vpack.c.b16 %v7368, %v7364
          %v7385 = vpack.c.b16 %v7369, %v7365
          %v7386 = vpack.c.b16 %v7370, %v7366
          %v7387 = vpack.c.b16 %v7371, %v7367
          %v7405 = vsel %vm6053, %v7323, 0
          %7407 = vmatprep.subr.bf16.mxu0 %v7373
          %7408 = vmatpush1.bf16.msra.mxu0 %v7372
          %7409 = vmatprep.subr.bf16.mxu0 %v7377
          %7410 = vmatpush1.bf16.msra.mxu0 %v7376
          %7411 = vmatprep.subr.bf16.mxu0 %v7381
          %7412 = vmatpush1.bf16.msra.mxu0 %v7380
          %7413 = vmatprep.subr.bf16.mxu0 %v7385
          %7414 = vmatpush1.bf16.msra.mxu0 %v7384
          %7415 = vmatprep.subr.bf16.mxu0 0
          %7416 = vmatpush1.bf16.msra.mxu0 0
          %7417 = vmatprep.subr.bf16.mxu0 0
          %7418 = vmatpush1.bf16.msra.mxu0 0
          %7419 = vmatprep.subr.bf16.mxu0 0
          %7420 = vmatpush1.bf16.msra.mxu0 0
          %7421 = vmatprep.subr.bf16.mxu0 0
          %7422 = vmatpush1.bf16.msra.mxu0 0
          %7423 = vmatprep.subr.bf16.mxu0 0
          %7424 = vmatpush1.bf16.msra.mxu0 0
          %7425 = vmatprep.subr.bf16.mxu0 0
          %7426 = vmatpush1.bf16.msra.mxu0 0
          %7427 = vmatprep.subr.bf16.mxu0 0
          %7428 = vmatpush1.bf16.msra.mxu0 0
          %7429 = vmatprep.subr.bf16.mxu0 0
          %7430 = vmatpush1.bf16.msra.mxu0 0
          %7431 = vmatprep.subr.bf16.mxu0 0
          %7432 = vmatpush1.bf16.msra.mxu0 0
          %7433 = vmatprep.subr.bf16.mxu0 0
          %7434 = vmatpush1.bf16.msra.mxu0 0
          %7435 = vmatprep.subr.bf16.mxu0 0
          %7436 = vmatpush1.bf16.msra.mxu0 0
          %7437 = vmatprep.subr.bf16.mxu0 0
          %7438 = vmatpush1.bf16.msra.mxu0 0
          %7439 = vmatprep.mubr.bf16.mxu0 0
          %7440 = vmatmul.mubr.bf16.gmra.mrb[0].mxu0 %v7405
          %v7441 = vpop.f32.mrb[0].mxu0
          %v7442 = vadd.f32 0.0, %v7441
          %v7443 = vpop.f32.mrb[0].mxu0
          %v7444 = vadd.f32 0.0, %v7443
          %v7445 = vpop.f32.mrb[0].mxu0
          %v7446 = vpop.f32.mrb[0].mxu0
          %7447 = vdwg.mxu0
          %7448 = vmatprep.subr.bf16.mxu0 %v7375
          %7449 = vmatpush1.bf16.msra.mxu0 %v7374
          %7450 = vmatprep.subr.bf16.mxu0 %v7379
          %7451 = vmatpush1.bf16.msra.mxu0 %v7378
          %7452 = vmatprep.subr.bf16.mxu0 %v7383
          %7453 = vmatpush1.bf16.msra.mxu0 %v7382
          %7454 = vmatprep.subr.bf16.mxu0 %v7387
          %7455 = vmatpush1.bf16.msra.mxu0 %v7386
          %7456 = vmatprep.subr.bf16.mxu0 0
          %7457 = vmatpush1.bf16.msra.mxu0 0
          %7458 = vmatprep.subr.bf16.mxu0 0
          %7459 = vmatpush1.bf16.msra.mxu0 0
          %7460 = vmatprep.subr.bf16.mxu0 0
          %7461 = vmatpush1.bf16.msra.mxu0 0
          %7462 = vmatprep.subr.bf16.mxu0 0
          %7463 = vmatpush1.bf16.msra.mxu0 0
          %7464 = vmatprep.subr.bf16.mxu0 0
          %7465 = vmatpush1.bf16.msra.mxu0 0
          %7466 = vmatprep.subr.bf16.mxu0 0
          %7467 = vmatpush1.bf16.msra.mxu0 0
          %7468 = vmatprep.subr.bf16.mxu0 0
          %7469 = vmatpush1.bf16.msra.mxu0 0
          %7470 = vmatprep.subr.bf16.mxu0 0
          %7471 = vmatpush1.bf16.msra.mxu0 0
          %7472 = vmatprep.subr.bf16.mxu0 0
          %7473 = vmatpush1.bf16.msra.mxu0 0
          %7474 = vmatprep.subr.bf16.mxu0 0
          %7475 = vmatpush1.bf16.msra.mxu0 0
          %7476 = vmatprep.subr.bf16.mxu0 0
          %7477 = vmatpush1.bf16.msra.mxu0 0
          %7478 = vmatprep.subr.bf16.mxu0 0
          %7479 = vmatpush1.bf16.msra.mxu0 0
          %7480 = vmatprep.mubr.bf16.mxu0 0
          %7481 = vmatmul.mubr.bf16.gmra.mrb[0].mxu0 %v7405
          %v7482 = vpop.f32.mrb[0].mxu0
          %v7483 = vadd.f32 0.0, %v7482
          %v7484 = vpop.f32.mrb[0].mxu0
          %v7485 = vadd.f32 0.0, %v7484
          %v7486 = vpop.f32.mrb[0].mxu0
          %v7487 = vpop.f32.mrb[0].mxu0
          %7488 = vdwg.mxu0
          %v7493 = vunpack.c.l.b16 %v6983
          %v7494 = vunpack.c.h.b16 %v6983
          %v7495 = vunpack.c.l.b16 %v6984
          %v7496 = vunpack.c.h.b16 %v6984
          %v7497 = vunpack.c.l.b16 %v6985
          %v7498 = vunpack.c.h.b16 %v6985
          %v7499 = vunpack.c.l.b16 %v6986
          %v7500 = vunpack.c.h.b16 %v6986
          %7501 = vset.pattern.permute.xlu0 0
          %7502 = vperm.xlu0 %7501, %v7493
          %v7503 = vpop.permute.xlu0 %7502
          %7504 = vset.pattern.permute.xlu0 0
          %7505 = vperm.xlu0 %7504, %v7494
          %v7506 = vpop.permute.xlu0 %7505
          %7507 = vset.pattern.permute.xlu0 0
          %7508 = vperm.xlu0 %7507, %v7495
          %v7509 = vpop.permute.xlu0 %7508
          %7510 = vset.pattern.permute.xlu0 0
          %7511 = vperm.xlu0 %7510, %v7496
          %v7512 = vpop.permute.xlu0 %7511
          %7513 = vset.pattern.permute.xlu0 0
          %7514 = vperm.xlu0 %7513, %v7497
          %v7515 = vpop.permute.xlu0 %7514
          %7516 = vset.pattern.permute.xlu0 0
          %7517 = vperm.xlu0 %7516, %v7498
          %v7518 = vpop.permute.xlu0 %7517
          %7519 = vset.pattern.permute.xlu0 0
          %7520 = vperm.xlu0 %7519, %v7499
          %v7521 = vpop.permute.xlu0 %7520
          %7522 = vset.pattern.permute.xlu0 0
          %7523 = vperm.xlu0 %7522, %v7500
          %v7524 = vpop.permute.xlu0 %7523
          %v7525 = vlaneseq
          %v7526 = vshrl.u32 %v7525, 7
          %v7527 = vsub.s32 %v5711, %v7526
          %v7528 = vrot.slane %v7503, %v7527
          %v7529 = vlaneseq
          %v7530 = vshrl.u32 %v7529, 7
          %v7531 = vsub.s32 %v5716, %v7530
          %v7532 = vrot.slane %v7506, %v7531
          %v7533 = vsel %vm5721, %v7532, %v7528
          %v7534 = vlaneseq
          %v7535 = vshrl.u32 %v7534, 7
          %v7536 = vsub.s32 %v5723, %v7535
          %v7537 = vrot.slane %v7509, %v7536
          %v7538 = vsel %vm5728, %v7537, %v7533
          %v7539 = vlaneseq
          %v7540 = vshrl.u32 %v7539, 7
          %v7541 = vsub.s32 %v5730, %v7540
          %v7542 = vrot.slane %v7512, %v7541
          %v7543 = vsel %vm5735, %v7542, %v7538
          %v7544 = vlaneseq
          %v7545 = vshrl.u32 %v7544, 7
          %v7546 = vsub.s32 %v5737, %v7545
          %v7547 = vrot.slane %v7515, %v7546
          %v7548 = vsel %vm5742, %v7547, %v7543
          %v7549 = vlaneseq
          %v7550 = vshrl.u32 %v7549, 7
          %v7551 = vsub.s32 %v5744, %v7550
          %v7552 = vrot.slane %v7518, %v7551
          %v7553 = vsel %vm5749, %v7552, %v7548
          %v7554 = vlaneseq
          %v7555 = vshrl.u32 %v7554, 7
          %v7556 = vsub.s32 %v5751, %v7555
          %v7557 = vrot.slane %v7521, %v7556
          %v7558 = vsel %vm5756, %v7557, %v7553
          %v7559 = vlaneseq
          %v7560 = vshrl.u32 %v7559, 7
          %v7561 = vsub.s32 %v5758, %v7560
          %v7562 = vrot.slane %v7524, %v7561
          %v7563 = vsel %vm5763, %v7562, %v7558
          %v7564 = vpack.c.b16 %v7563, %v7563
          %v7581 = vunpack.c.l.b16 %v2660
          %v7582 = vunpack.c.h.b16 %v2660
          %v7583 = vunpack.c.l.b16 %v2661
          %v7584 = vunpack.c.h.b16 %v2661
          %v7585 = vunpack.c.l.b16 %v2662
          %v7586 = vunpack.c.h.b16 %v2662
          %v7587 = vunpack.c.l.b16 %v2663
          %v7588 = vunpack.c.h.b16 %v2663
          %v7589 = vunpack.c.l.b16 %v2664
          %v7590 = vunpack.c.h.b16 %v2664
          %v7591 = vunpack.c.l.b16 %v2665
          %v7592 = vunpack.c.h.b16 %v2665
          %v7593 = vunpack.c.l.b16 %v2666
          %v7594 = vunpack.c.h.b16 %v2666
          %v7595 = vunpack.c.l.b16 %v2667
          %v7596 = vunpack.c.h.b16 %v2667
          %v7597 = vunpack.c.l.b16 %v2668
          %v7598 = vunpack.c.h.b16 %v2668
          %v7599 = vunpack.c.l.b16 %v2669
          %v7600 = vunpack.c.h.b16 %v2669
          %v7601 = vunpack.c.l.b16 %v2670
          %v7602 = vunpack.c.h.b16 %v2670
          %v7603 = vunpack.c.l.b16 %v2671
          %v7604 = vunpack.c.h.b16 %v2671
          %v7605 = vunpack.c.l.b16 %v2672
          %v7606 = vunpack.c.h.b16 %v2672
          %v7607 = vunpack.c.l.b16 %v2673
          %v7608 = vunpack.c.h.b16 %v2673
          %v7609 = vunpack.c.l.b16 %v2674
          %v7610 = vunpack.c.h.b16 %v2674
          %v7611 = vunpack.c.l.b16 %v2675
          %v7612 = vunpack.c.h.b16 %v2675
          %v7613 = vpack.c.b16 %v7585, %v7581
          %v7614 = vpack.c.b16 %v7586, %v7582
          %v7615 = vpack.c.b16 %v7587, %v7583
          %v7616 = vpack.c.b16 %v7588, %v7584
          %v7617 = vpack.c.b16 %v7593, %v7589
          %v7618 = vpack.c.b16 %v7594, %v7590
          %v7619 = vpack.c.b16 %v7595, %v7591
          %v7620 = vpack.c.b16 %v7596, %v7592
          %v7621 = vpack.c.b16 %v7601, %v7597
          %v7622 = vpack.c.b16 %v7602, %v7598
          %v7623 = vpack.c.b16 %v7603, %v7599
          %v7624 = vpack.c.b16 %v7604, %v7600
          %v7625 = vpack.c.b16 %v7609, %v7605
          %v7626 = vpack.c.b16 %v7610, %v7606
          %v7627 = vpack.c.b16 %v7611, %v7607
          %v7628 = vpack.c.b16 %v7612, %v7608
          %v7646 = vsel %vm6053, %v7564, 0
          %7648 = vmatprep.subr.bf16.mxu0 %v7614
          %7649 = vmatpush1.bf16.msra.mxu0 %v7613
          %7650 = vmatprep.subr.bf16.mxu0 %v7618
          %7651 = vmatpush1.bf16.msra.mxu0 %v7617
          %7652 = vmatprep.subr.bf16.mxu0 %v7622
          %7653 = vmatpush1.bf16.msra.mxu0 %v7621
          %7654 = vmatprep.subr.bf16.mxu0 %v7626
          %7655 = vmatpush1.bf16.msra.mxu0 %v7625
          %7656 = vmatprep.subr.bf16.mxu0 0
          %7657 = vmatpush1.bf16.msra.mxu0 0
          %7658 = vmatprep.subr.bf16.mxu0 0
          %7659 = vmatpush1.bf16.msra.mxu0 0
          %7660 = vmatprep.subr.bf16.mxu0 0
          %7661 = vmatpush1.bf16.msra.mxu0 0
          %7662 = vmatprep.subr.bf16.mxu0 0
          %7663 = vmatpush1.bf16.msra.mxu0 0
          %7664 = vmatprep.subr.bf16.mxu0 0
          %7665 = vmatpush1.bf16.msra.mxu0 0
          %7666 = vmatprep.subr.bf16.mxu0 0
          %7667 = vmatpush1.bf16.msra.mxu0 0
          %7668 = vmatprep.subr.bf16.mxu0 0
          %7669 = vmatpush1.bf16.msra.mxu0 0
          %7670 = vmatprep.subr.bf16.mxu0 0
          %7671 = vmatpush1.bf16.msra.mxu0 0
          %7672 = vmatprep.subr.bf16.mxu0 0
          %7673 = vmatpush1.bf16.msra.mxu0 0
          %7674 = vmatprep.subr.bf16.mxu0 0
          %7675 = vmatpush1.bf16.msra.mxu0 0
          %7676 = vmatprep.subr.bf16.mxu0 0
          %7677 = vmatpush1.bf16.msra.mxu0 0
          %7678 = vmatprep.subr.bf16.mxu0 0
          %7679 = vmatpush1.bf16.msra.mxu0 0
          %7680 = vmatprep.mubr.bf16.mxu0 0
          %7681 = vmatmul.mubr.bf16.gmra.mrb[0].mxu0 %v7646
          %v7682 = vpop.f32.mrb[0].mxu0
          %v7683 = vadd.f32 0.0, %v7682
          %v7684 = vpop.f32.mrb[0].mxu0
          %v7685 = vadd.f32 0.0, %v7684
          %v7686 = vpop.f32.mrb[0].mxu0
          %v7687 = vpop.f32.mrb[0].mxu0
          %7688 = vdwg.mxu0
          %7689 = vmatprep.subr.bf16.mxu0 %v7616
          %7690 = vmatpush1.bf16.msra.mxu0 %v7615
          %7691 = vmatprep.subr.bf16.mxu0 %v7620
          %7692 = vmatpush1.bf16.msra.mxu0 %v7619
          %7693 = vmatprep.subr.bf16.mxu0 %v7624
          %7694 = vmatpush1.bf16.msra.mxu0 %v7623
          %7695 = vmatprep.subr.bf16.mxu0 %v7628
          %7696 = vmatpush1.bf16.msra.mxu0 %v7627
          %7697 = vmatprep.subr.bf16.mxu0 0
          %7698 = vmatpush1.bf16.msra.mxu0 0
          %7699 = vmatprep.subr.bf16.mxu0 0
          %7700 = vmatpush1.bf16.msra.mxu0 0
          %7701 = vmatprep.subr.bf16.mxu0 0
          %7702 = vmatpush1.bf16.msra.mxu0 0
          %7703 = vmatprep.subr.bf16.mxu0 0
          %7704 = vmatpush1.bf16.msra.mxu0 0
          %7705 = vmatprep.subr.bf16.mxu0 0
          %7706 = vmatpush1.bf16.msra.mxu0 0
          %7707 = vmatprep.subr.bf16.mxu0 0
          %7708 = vmatpush1.bf16.msra.mxu0 0
          %7709 = vmatprep.subr.bf16.mxu0 0
          %7710 = vmatpush1.bf16.msra.mxu0 0
          %7711 = vmatprep.subr.bf16.mxu0 0
          %7712 = vmatpush1.bf16.msra.mxu0 0
          %7713 = vmatprep.subr.bf16.mxu0 0
          %7714 = vmatpush1.bf16.msra.mxu0 0
          %7715 = vmatprep.subr.bf16.mxu0 0
          %7716 = vmatpush1.bf16.msra.mxu0 0
          %7717 = vmatprep.subr.bf16.mxu0 0
          %7718 = vmatpush1.bf16.msra.mxu0 0
          %7719 = vmatprep.subr.bf16.mxu0 0
          %7720 = vmatpush1.bf16.msra.mxu0 0
          %7721 = vmatprep.mubr.bf16.mxu0 0
          %7722 = vmatmul.mubr.bf16.gmra.mrb[0].mxu0 %v7646
          %v7723 = vpop.f32.mrb[0].mxu0
          %v7724 = vadd.f32 0.0, %v7723
          %v7725 = vpop.f32.mrb[0].mxu0
          %v7726 = vadd.f32 0.0, %v7725
          %v7727 = vpop.f32.mrb[0].mxu0
          %v7728 = vpop.f32.mrb[0].mxu0
          %7729 = vdwg.mxu0
          %v7734 = vunpack.c.l.b16 %v6987
          %v7735 = vunpack.c.h.b16 %v6987
          %v7736 = vunpack.c.l.b16 %v6988
          %v7737 = vunpack.c.h.b16 %v6988
          %v7738 = vunpack.c.l.b16 %v6989
          %v7739 = vunpack.c.h.b16 %v6989
          %v7740 = vunpack.c.l.b16 %v6990
          %v7741 = vunpack.c.h.b16 %v6990
          %7742 = vset.pattern.permute.xlu0 0
          %7743 = vperm.xlu0 %7742, %v7734
          %v7744 = vpop.permute.xlu0 %7743
          %7745 = vset.pattern.permute.xlu0 0
          %7746 = vperm.xlu0 %7745, %v7735
          %v7747 = vpop.permute.xlu0 %7746
          %7748 = vset.pattern.permute.xlu0 0
          %7749 = vperm.xlu0 %7748, %v7736
          %v7750 = vpop.permute.xlu0 %7749
          %7751 = vset.pattern.permute.xlu0 0
          %7752 = vperm.xlu0 %7751, %v7737
          %v7753 = vpop.permute.xlu0 %7752
          %7754 = vset.pattern.permute.xlu0 0
          %7755 = vperm.xlu0 %7754, %v7738
          %v7756 = vpop.permute.xlu0 %7755
          %7757 = vset.pattern.permute.xlu0 0
          %7758 = vperm.xlu0 %7757, %v7739
          %v7759 = vpop.permute.xlu0 %7758
          %7760 = vset.pattern.permute.xlu0 0
          %7761 = vperm.xlu0 %7760, %v7740
          %v7762 = vpop.permute.xlu0 %7761
          %7763 = vset.pattern.permute.xlu0 0
          %7764 = vperm.xlu0 %7763, %v7741
          %v7765 = vpop.permute.xlu0 %7764
          %v7766 = vlaneseq
          %v7767 = vshrl.u32 %v7766, 7
          %v7768 = vsub.s32 %v5711, %v7767
          %v7769 = vrot.slane %v7744, %v7768
          %v7770 = vlaneseq
          %v7771 = vshrl.u32 %v7770, 7
          %v7772 = vsub.s32 %v5716, %v7771
          %v7773 = vrot.slane %v7747, %v7772
          %v7774 = vsel %vm5721, %v7773, %v7769
          %v7775 = vlaneseq
          %v7776 = vshrl.u32 %v7775, 7
          %v7777 = vsub.s32 %v5723, %v7776
          %v7778 = vrot.slane %v7750, %v7777
          %v7779 = vsel %vm5728, %v7778, %v7774
          %v7780 = vlaneseq
          %v7781 = vshrl.u32 %v7780, 7
          %v7782 = vsub.s32 %v5730, %v7781
          %v7783 = vrot.slane %v7753, %v7782
          %v7784 = vsel %vm5735, %v7783, %v7779
          %v7785 = vlaneseq
          %v7786 = vshrl.u32 %v7785, 7
          %v7787 = vsub.s32 %v5737, %v7786
          %v7788 = vrot.slane %v7756, %v7787
          %v7789 = vsel %vm5742, %v7788, %v7784
          %v7790 = vlaneseq
          %v7791 = vshrl.u32 %v7790, 7
          %v7792 = vsub.s32 %v5744, %v7791
          %v7793 = vrot.slane %v7759, %v7792
          %v7794 = vsel %vm5749, %v7793, %v7789
          %v7795 = vlaneseq
          %v7796 = vshrl.u32 %v7795, 7
          %v7797 = vsub.s32 %v5751, %v7796
          %v7798 = vrot.slane %v7762, %v7797
          %v7799 = vsel %vm5756, %v7798, %v7794
          %v7800 = vlaneseq
          %v7801 = vshrl.u32 %v7800, 7
          %v7802 = vsub.s32 %v5758, %v7801
          %v7803 = vrot.slane %v7765, %v7802
          %v7804 = vsel %vm5763, %v7803, %v7799
          %v7805 = vpack.c.b16 %v7804, %v7804
          %v7822 = vunpack.c.l.b16 %v2676
          %v7823 = vunpack.c.h.b16 %v2676
          %v7824 = vunpack.c.l.b16 %v2677
          %v7825 = vunpack.c.h.b16 %v2677
          %v7826 = vunpack.c.l.b16 %v2678
          %v7827 = vunpack.c.h.b16 %v2678
          %v7828 = vunpack.c.l.b16 %v2679
          %v7829 = vunpack.c.h.b16 %v2679
          %v7830 = vunpack.c.l.b16 %v2680
          %v7831 = vunpack.c.h.b16 %v2680
          %v7832 = vunpack.c.l.b16 %v2681
          %v7833 = vunpack.c.h.b16 %v2681
          %v7834 = vunpack.c.l.b16 %v2682
          %v7835 = vunpack.c.h.b16 %v2682
          %v7836 = vunpack.c.l.b16 %v2683
          %v7837 = vunpack.c.h.b16 %v2683
          %v7838 = vunpack.c.l.b16 %v2684
          %v7839 = vunpack.c.h.b16 %v2684
          %v7840 = vunpack.c.l.b16 %v2685
          %v7841 = vunpack.c.h.b16 %v2685
          %v7842 = vunpack.c.l.b16 %v2686
          %v7843 = vunpack.c.h.b16 %v2686
          %v7844 = vunpack.c.l.b16 %v2687
          %v7845 = vunpack.c.h.b16 %v2687
          %v7846 = vunpack.c.l.b16 %v2688
          %v7847 = vunpack.c.h.b16 %v2688
          %v7848 = vunpack.c.l.b16 %v2689
          %v7849 = vunpack.c.h.b16 %v2689
          %v7850 = vunpack.c.l.b16 %v2690
          %v7851 = vunpack.c.h.b16 %v2690
          %v7852 = vunpack.c.l.b16 %v2691
          %v7853 = vunpack.c.h.b16 %v2691
          %v7854 = vpack.c.b16 %v7826, %v7822
          %v7855 = vpack.c.b16 %v7827, %v7823
          %v7856 = vpack.c.b16 %v7828, %v7824
          %v7857 = vpack.c.b16 %v7829, %v7825
          %v7858 = vpack.c.b16 %v7834, %v7830
          %v7859 = vpack.c.b16 %v7835, %v7831
          %v7860 = vpack.c.b16 %v7836, %v7832
          %v7861 = vpack.c.b16 %v7837, %v7833
          %v7862 = vpack.c.b16 %v7842, %v7838
          %v7863 = vpack.c.b16 %v7843, %v7839
          %v7864 = vpack.c.b16 %v7844, %v7840
          %v7865 = vpack.c.b16 %v7845, %v7841
          %v7866 = vpack.c.b16 %v7850, %v7846
          %v7867 = vpack.c.b16 %v7851, %v7847
          %v7868 = vpack.c.b16 %v7852, %v7848
          %v7869 = vpack.c.b16 %v7853, %v7849
          %v7887 = vsel %vm6053, %v7805, 0
          %7889 = vmatprep.subr.bf16.mxu0 %v7855
          %7890 = vmatpush1.bf16.msra.mxu0 %v7854
          %7891 = vmatprep.subr.bf16.mxu0 %v7859
          %7892 = vmatpush1.bf16.msra.mxu0 %v7858
          %7893 = vmatprep.subr.bf16.mxu0 %v7863
          %7894 = vmatpush1.bf16.msra.mxu0 %v7862
          %7895 = vmatprep.subr.bf16.mxu0 %v7867
          %7896 = vmatpush1.bf16.msra.mxu0 %v7866
          %7897 = vmatprep.subr.bf16.mxu0 0
          %7898 = vmatpush1.bf16.msra.mxu0 0
          %7899 = vmatprep.subr.bf16.mxu0 0
          %7900 = vmatpush1.bf16.msra.mxu0 0
          %7901 = vmatprep.subr.bf16.mxu0 0
          %7902 = vmatpush1.bf16.msra.mxu0 0
          %7903 = vmatprep.subr.bf16.mxu0 0
          %7904 = vmatpush1.bf16.msra.mxu0 0
          %7905 = vmatprep.subr.bf16.mxu0 0
          %7906 = vmatpush1.bf16.msra.mxu0 0
          %7907 = vmatprep.subr.bf16.mxu0 0
          %7908 = vmatpush1.bf16.msra.mxu0 0
          %7909 = vmatprep.subr.bf16.mxu0 0
          %7910 = vmatpush1.bf16.msra.mxu0 0
          %7911 = vmatprep.subr.bf16.mxu0 0
          %7912 = vmatpush1.bf16.msra.mxu0 0
          %7913 = vmatprep.subr.bf16.mxu0 0
          %7914 = vmatpush1.bf16.msra.mxu0 0
          %7915 = vmatprep.subr.bf16.mxu0 0
          %7916 = vmatpush1.bf16.msra.mxu0 0
          %7917 = vmatprep.subr.bf16.mxu0 0
          %7918 = vmatpush1.bf16.msra.mxu0 0
          %7919 = vmatprep.subr.bf16.mxu0 0
          %7920 = vmatpush1.bf16.msra.mxu0 0
          %7921 = vmatprep.mubr.bf16.mxu0 0
          %7922 = vmatmul.mubr.bf16.gmra.mrb[0].mxu0 %v7887
          %v7923 = vpop.f32.mrb[0].mxu0
          %v7924 = vadd.f32 0.0, %v7923
          %v7925 = vpop.f32.mrb[0].mxu0
          %v7926 = vadd.f32 0.0, %v7925
          %v7927 = vpop.f32.mrb[0].mxu0
          %v7928 = vpop.f32.mrb[0].mxu0
          %7929 = vdwg.mxu0
          %7930 = vmatprep.subr.bf16.mxu0 %v7857
          %7931 = vmatpush1.bf16.msra.mxu0 %v7856
          %7932 = vmatprep.subr.bf16.mxu0 %v7861
          %7933 = vmatpush1.bf16.msra.mxu0 %v7860
          %7934 = vmatprep.subr.bf16.mxu0 %v7865
          %7935 = vmatpush1.bf16.msra.mxu0 %v7864
          %7936 = vmatprep.subr.bf16.mxu0 %v7869
          %7937 = vmatpush1.bf16.msra.mxu0 %v7868
          %7938 = vmatprep.subr.bf16.mxu0 0
          %7939 = vmatpush1.bf16.msra.mxu0 0
          %7940 = vmatprep.subr.bf16.mxu0 0
          %7941 = vmatpush1.bf16.msra.mxu0 0
          %7942 = vmatprep.subr.bf16.mxu0 0
          %7943 = vmatpush1.bf16.msra.mxu0 0
          %7944 = vmatprep.subr.bf16.mxu0 0
          %7945 = vmatpush1.bf16.msra.mxu0 0
          %7946 = vmatprep.subr.bf16.mxu0 0
          %7947 = vmatpush1.bf16.msra.mxu0 0
          %7948 = vmatprep.subr.bf16.mxu0 0
          %7949 = vmatpush1.bf16.msra.mxu0 0
          %7950 = vmatprep.subr.bf16.mxu0 0
          %7951 = vmatpush1.bf16.msra.mxu0 0
          %7952 = vmatprep.subr.bf16.mxu0 0
          %7953 = vmatpush1.bf16.msra.mxu0 0
          %7954 = vmatprep.subr.bf16.mxu0 0
          %7955 = vmatpush1.bf16.msra.mxu0 0
          %7956 = vmatprep.subr.bf16.mxu0 0
          %7957 = vmatpush1.bf16.msra.mxu0 0
          %7958 = vmatprep.subr.bf16.mxu0 0
          %7959 = vmatpush1.bf16.msra.mxu0 0
          %7960 = vmatprep.subr.bf16.mxu0 0
          %7961 = vmatpush1.bf16.msra.mxu0 0
          %7962 = vmatprep.mubr.bf16.mxu0 0
          %7963 = vmatmul.mubr.bf16.gmra.mrb[0].mxu0 %v7887
          %v7964 = vpop.f32.mrb[0].mxu0
          %v7965 = vadd.f32 0.0, %v7964
          %v7966 = vpop.f32.mrb[0].mxu0
          %v7967 = vadd.f32 0.0, %v7966
          %v7968 = vpop.f32.mrb[0].mxu0
          %v7969 = vpop.f32.mrb[0].mxu0
          %7970 = vdwg.mxu0
          %v7975 = vunpack.c.l.b16 %v6991
          %v7976 = vunpack.c.h.b16 %v6991
          %v7977 = vunpack.c.l.b16 %v6992
          %v7978 = vunpack.c.h.b16 %v6992
          %v7979 = vunpack.c.l.b16 %v6993
          %v7980 = vunpack.c.h.b16 %v6993
          %v7981 = vunpack.c.l.b16 %v6994
          %v7982 = vunpack.c.h.b16 %v6994
          %7983 = vset.pattern.permute.xlu0 0
          %7984 = vperm.xlu0 %7983, %v7975
          %v7985 = vpop.permute.xlu0 %7984
          %7986 = vset.pattern.permute.xlu0 0
          %7987 = vperm.xlu0 %7986, %v7976
          %v7988 = vpop.permute.xlu0 %7987
          %7989 = vset.pattern.permute.xlu0 0
          %7990 = vperm.xlu0 %7989, %v7977
          %v7991 = vpop.permute.xlu0 %7990
          %7992 = vset.pattern.permute.xlu0 0
          %7993 = vperm.xlu0 %7992, %v7978
          %v7994 = vpop.permute.xlu0 %7993
          %7995 = vset.pattern.permute.xlu0 0
          %7996 = vperm.xlu0 %7995, %v7979
          %v7997 = vpop.permute.xlu0 %7996
          %7998 = vset.pattern.permute.xlu0 0
          %7999 = vperm.xlu0 %7998, %v7980
          %v8000 = vpop.permute.xlu0 %7999
          %8001 = vset.pattern.permute.xlu0 0
          %8002 = vperm.xlu0 %8001, %v7981
          %v8003 = vpop.permute.xlu0 %8002
          %8004 = vset.pattern.permute.xlu0 0
          %8005 = vperm.xlu0 %8004, %v7982
          %v8006 = vpop.permute.xlu0 %8005
          %v8007 = vlaneseq
          %v8008 = vshrl.u32 %v8007, 7
          %v8009 = vsub.s32 %v5711, %v8008
          %v8010 = vrot.slane %v7985, %v8009
          %v8011 = vlaneseq
          %v8012 = vshrl.u32 %v8011, 7
          %v8013 = vsub.s32 %v5716, %v8012
          %v8014 = vrot.slane %v7988, %v8013
          %v8015 = vsel %vm5721, %v8014, %v8010
          %v8016 = vlaneseq
          %v8017 = vshrl.u32 %v8016, 7
          %v8018 = vsub.s32 %v5723, %v8017
          %v8019 = vrot.slane %v7991, %v8018
          %v8020 = vsel %vm5728, %v8019, %v8015
          %v8021 = vlaneseq
          %v8022 = vshrl.u32 %v8021, 7
          %v8023 = vsub.s32 %v5730, %v8022
          %v8024 = vrot.slane %v7994, %v8023
          %v8025 = vsel %vm5735, %v8024, %v8020
          %v8026 = vlaneseq
          %v8027 = vshrl.u32 %v8026, 7
          %v8028 = vsub.s32 %v5737, %v8027
          %v8029 = vrot.slane %v7997, %v8028
          %v8030 = vsel %vm5742, %v8029, %v8025
          %v8031 = vlaneseq
          %v8032 = vshrl.u32 %v8031, 7
          %v8033 = vsub.s32 %v5744, %v8032
          %v8034 = vrot.slane %v8000, %v8033
          %v8035 = vsel %vm5749, %v8034, %v8030
          %v8036 = vlaneseq
          %v8037 = vshrl.u32 %v8036, 7
          %v8038 = vsub.s32 %v5751, %v8037
          %v8039 = vrot.slane %v8003, %v8038
          %v8040 = vsel %vm5756, %v8039, %v8035
          %v8041 = vlaneseq
          %v8042 = vshrl.u32 %v8041, 7
          %v8043 = vsub.s32 %v5758, %v8042
          %v8044 = vrot.slane %v8006, %v8043
          %v8045 = vsel %vm5763, %v8044, %v8040
          %v8046 = vpack.c.b16 %v8045, %v8045
          %v8063 = vunpack.c.l.b16 %v2692
          %v8064 = vunpack.c.h.b16 %v2692
          %v8065 = vunpack.c.l.b16 %v2693
          %v8066 = vunpack.c.h.b16 %v2693
          %v8067 = vunpack.c.l.b16 %v2694
          %v8068 = vunpack.c.h.b16 %v2694
          %v8069 = vunpack.c.l.b16 %v2695
          %v8070 = vunpack.c.h.b16 %v2695
          %v8071 = vunpack.c.l.b16 %v2696
          %v8072 = vunpack.c.h.b16 %v2696
          %v8073 = vunpack.c.l.b16 %v2697
          %v8074 = vunpack.c.h.b16 %v2697
          %v8075 = vunpack.c.l.b16 %v2698
          %v8076 = vunpack.c.h.b16 %v2698
          %v8077 = vunpack.c.l.b16 %v2699
          %v8078 = vunpack.c.h.b16 %v2699
          %v8079 = vunpack.c.l.b16 %v2700
          %v8080 = vunpack.c.h.b16 %v2700
          %v8081 = vunpack.c.l.b16 %v2701
          %v8082 = vunpack.c.h.b16 %v2701
          %v8083 = vunpack.c.l.b16 %v2702
          %v8084 = vunpack.c.h.b16 %v2702
          %v8085 = vunpack.c.l.b16 %v2703
          %v8086 = vunpack.c.h.b16 %v2703
          %v8087 = vunpack.c.l.b16 %v2704
          %v8088 = vunpack.c.h.b16 %v2704
          %v8089 = vunpack.c.l.b16 %v2705
          %v8090 = vunpack.c.h.b16 %v2705
          %v8091 = vunpack.c.l.b16 %v2706
          %v8092 = vunpack.c.h.b16 %v2706
          %v8093 = vunpack.c.l.b16 %v2707
          %v8094 = vunpack.c.h.b16 %v2707
          %v8095 = vpack.c.b16 %v8067, %v8063
          %v8096 = vpack.c.b16 %v8068, %v8064
          %v8097 = vpack.c.b16 %v8069, %v8065
          %v8098 = vpack.c.b16 %v8070, %v8066
          %v8099 = vpack.c.b16 %v8075, %v8071
          %v8100 = vpack.c.b16 %v8076, %v8072
          %v8101 = vpack.c.b16 %v8077, %v8073
          %v8102 = vpack.c.b16 %v8078, %v8074
          %v8103 = vpack.c.b16 %v8083, %v8079
          %v8104 = vpack.c.b16 %v8084, %v8080
          %v8105 = vpack.c.b16 %v8085, %v8081
          %v8106 = vpack.c.b16 %v8086, %v8082
          %v8107 = vpack.c.b16 %v8091, %v8087
          %v8108 = vpack.c.b16 %v8092, %v8088
          %v8109 = vpack.c.b16 %v8093, %v8089
          %v8110 = vpack.c.b16 %v8094, %v8090
          %v8128 = vsel %vm6053, %v8046, 0
          %8130 = vmatprep.subr.bf16.mxu0 %v8096
          %8131 = vmatpush1.bf16.msra.mxu0 %v8095
          %8132 = vmatprep.subr.bf16.mxu0 %v8100
          %8133 = vmatpush1.bf16.msra.mxu0 %v8099
          %8134 = vmatprep.subr.bf16.mxu0 %v8104
          %8135 = vmatpush1.bf16.msra.mxu0 %v8103
          %8136 = vmatprep.subr.bf16.mxu0 %v8108
          %8137 = vmatpush1.bf16.msra.mxu0 %v8107
          %8138 = vmatprep.subr.bf16.mxu0 0
          %8139 = vmatpush1.bf16.msra.mxu0 0
          %8140 = vmatprep.subr.bf16.mxu0 0
          %8141 = vmatpush1.bf16.msra.mxu0 0
          %8142 = vmatprep.subr.bf16.mxu0 0
          %8143 = vmatpush1.bf16.msra.mxu0 0
          %8144 = vmatprep.subr.bf16.mxu0 0
          %8145 = vmatpush1.bf16.msra.mxu0 0
          %8146 = vmatprep.subr.bf16.mxu0 0
          %8147 = vmatpush1.bf16.msra.mxu0 0
          %8148 = vmatprep.subr.bf16.mxu0 0
          %8149 = vmatpush1.bf16.msra.mxu0 0
          %8150 = vmatprep.subr.bf16.mxu0 0
          %8151 = vmatpush1.bf16.msra.mxu0 0
          %8152 = vmatprep.subr.bf16.mxu0 0
          %8153 = vmatpush1.bf16.msra.mxu0 0
          %8154 = vmatprep.subr.bf16.mxu0 0
          %8155 = vmatpush1.bf16.msra.mxu0 0
          %8156 = vmatprep.subr.bf16.mxu0 0
          %8157 = vmatpush1.bf16.msra.mxu0 0
          %8158 = vmatprep.subr.bf16.mxu0 0
          %8159 = vmatpush1.bf16.msra.mxu0 0
          %8160 = vmatprep.subr.bf16.mxu0 0
          %8161 = vmatpush1.bf16.msra.mxu0 0
          %8162 = vmatprep.mubr.bf16.mxu0 0
          %8163 = vmatmul.mubr.bf16.gmra.mrb[0].mxu0 %v8128
          %v8164 = vpop.f32.mrb[0].mxu0
          %v8165 = vadd.f32 0.0, %v8164
          %v8166 = vpop.f32.mrb[0].mxu0
          %v8167 = vadd.f32 0.0, %v8166
          %v8168 = vpop.f32.mrb[0].mxu0
          %v8169 = vpop.f32.mrb[0].mxu0
          %8170 = vdwg.mxu0
          %8171 = vmatprep.subr.bf16.mxu0 %v8098
          %8172 = vmatpush1.bf16.msra.mxu0 %v8097
          %8173 = vmatprep.subr.bf16.mxu0 %v8102
          %8174 = vmatpush1.bf16.msra.mxu0 %v8101
          %8175 = vmatprep.subr.bf16.mxu0 %v8106
          %8176 = vmatpush1.bf16.msra.mxu0 %v8105
          %8177 = vmatprep.subr.bf16.mxu0 %v8110
          %8178 = vmatpush1.bf16.msra.mxu0 %v8109
          %8179 = vmatprep.subr.bf16.mxu0 0
          %8180 = vmatpush1.bf16.msra.mxu0 0
          %8181 = vmatprep.subr.bf16.mxu0 0
          %8182 = vmatpush1.bf16.msra.mxu0 0
          %8183 = vmatprep.subr.bf16.mxu0 0
          %8184 = vmatpush1.bf16.msra.mxu0 0
          %8185 = vmatprep.subr.bf16.mxu0 0
          %8186 = vmatpush1.bf16.msra.mxu0 0
          %8187 = vmatprep.subr.bf16.mxu0 0
          %8188 = vmatpush1.bf16.msra.mxu0 0
          %8189 = vmatprep.subr.bf16.mxu0 0
          %8190 = vmatpush1.bf16.msra.mxu0 0
          %8191 = vmatprep.subr.bf16.mxu0 0
          %8192 = vmatpush1.bf16.msra.mxu0 0
          %8193 = vmatprep.subr.bf16.mxu0 0
          %8194 = vmatpush1.bf16.msra.mxu0 0
          %8195 = vmatprep.subr.bf16.mxu0 0
          %8196 = vmatpush1.bf16.msra.mxu0 0
          %8197 = vmatprep.subr.bf16.mxu0 0
          %8198 = vmatpush1.bf16.msra.mxu0 0
          %8199 = vmatprep.subr.bf16.mxu0 0
          %8200 = vmatpush1.bf16.msra.mxu0 0
          %8201 = vmatprep.subr.bf16.mxu0 0
          %8202 = vmatpush1.bf16.msra.mxu0 0
          %8203 = vmatprep.mubr.bf16.mxu0 0
          %8204 = vmatmul.mubr.bf16.gmra.mrb[0].mxu0 %v8128
          %v8205 = vpop.f32.mrb[0].mxu0
          %v8206 = vadd.f32 0.0, %v8205
          %v8207 = vpop.f32.mrb[0].mxu0
          %v8208 = vadd.f32 0.0, %v8207
          %v8209 = vpop.f32.mrb[0].mxu0
          %v8210 = vpop.f32.mrb[0].mxu0
          %8211 = vdwg.mxu0
          %v8216 = vunpack.c.l.b16 %v6995
          %v8217 = vunpack.c.h.b16 %v6995
          %v8218 = vunpack.c.l.b16 %v6996
          %v8219 = vunpack.c.h.b16 %v6996
          %v8220 = vunpack.c.l.b16 %v6997
          %v8221 = vunpack.c.h.b16 %v6997
          %v8222 = vunpack.c.l.b16 %v6998
          %v8223 = vunpack.c.h.b16 %v6998
          %8224 = vset.pattern.permute.xlu0 0
          %8225 = vperm.xlu0 %8224, %v8216
          %v8226 = vpop.permute.xlu0 %8225
          %8227 = vset.pattern.permute.xlu0 0
          %8228 = vperm.xlu0 %8227, %v8217
          %v8229 = vpop.permute.xlu0 %8228
          %8230 = vset.pattern.permute.xlu0 0
          %8231 = vperm.xlu0 %8230, %v8218
          %v8232 = vpop.permute.xlu0 %8231
          %8233 = vset.pattern.permute.xlu0 0
          %8234 = vperm.xlu0 %8233, %v8219
          %v8235 = vpop.permute.xlu0 %8234
          %8236 = vset.pattern.permute.xlu0 0
          %8237 = vperm.xlu0 %8236, %v8220
          %v8238 = vpop.permute.xlu0 %8237
          %8239 = vset.pattern.permute.xlu0 0
          %8240 = vperm.xlu0 %8239, %v8221
          %v8241 = vpop.permute.xlu0 %8240
          %8242 = vset.pattern.permute.xlu0 0
          %8243 = vperm.xlu0 %8242, %v8222
          %v8244 = vpop.permute.xlu0 %8243
          %8245 = vset.pattern.permute.xlu0 0
          %8246 = vperm.xlu0 %8245, %v8223
          %v8247 = vpop.permute.xlu0 %8246
          %v8248 = vlaneseq
          %v8249 = vshrl.u32 %v8248, 7
          %v8250 = vsub.s32 %v5711, %v8249
          %v8251 = vrot.slane %v8226, %v8250
          %v8252 = vlaneseq
          %v8253 = vshrl.u32 %v8252, 7
          %v8254 = vsub.s32 %v5716, %v8253
          %v8255 = vrot.slane %v8229, %v8254
          %v8256 = vsel %vm5721, %v8255, %v8251
          %v8257 = vlaneseq
          %v8258 = vshrl.u32 %v8257, 7
          %v8259 = vsub.s32 %v5723, %v8258
          %v8260 = vrot.slane %v8232, %v8259
          %v8261 = vsel %vm5728, %v8260, %v8256
          %v8262 = vlaneseq
          %v8263 = vshrl.u32 %v8262, 7
          %v8264 = vsub.s32 %v5730, %v8263
          %v8265 = vrot.slane %v8235, %v8264
          %v8266 = vsel %vm5735, %v8265, %v8261
          %v8267 = vlaneseq
          %v8268 = vshrl.u32 %v8267, 7
          %v8269 = vsub.s32 %v5737, %v8268
          %v8270 = vrot.slane %v8238, %v8269
          %v8271 = vsel %vm5742, %v8270, %v8266
          %v8272 = vlaneseq
          %v8273 = vshrl.u32 %v8272, 7
          %v8274 = vsub.s32 %v5744, %v8273
          %v8275 = vrot.slane %v8241, %v8274
          %v8276 = vsel %vm5749, %v8275, %v8271
          %v8277 = vlaneseq
          %v8278 = vshrl.u32 %v8277, 7
          %v8279 = vsub.s32 %v5751, %v8278
          %v8280 = vrot.slane %v8244, %v8279
          %v8281 = vsel %vm5756, %v8280, %v8276
          %v8282 = vlaneseq
          %v8283 = vshrl.u32 %v8282, 7
          %v8284 = vsub.s32 %v5758, %v8283
          %v8285 = vrot.slane %v8247, %v8284
          %v8286 = vsel %vm5763, %v8285, %v8281
          %v8287 = vpack.c.b16 %v8286, %v8286
          %v8304 = vunpack.c.l.b16 %v2708
          %v8305 = vunpack.c.h.b16 %v2708
          %v8306 = vunpack.c.l.b16 %v2709
          %v8307 = vunpack.c.h.b16 %v2709
          %v8308 = vunpack.c.l.b16 %v2710
          %v8309 = vunpack.c.h.b16 %v2710
          %v8310 = vunpack.c.l.b16 %v2711
          %v8311 = vunpack.c.h.b16 %v2711
          %v8312 = vunpack.c.l.b16 %v2712
          %v8313 = vunpack.c.h.b16 %v2712
          %v8314 = vunpack.c.l.b16 %v2713
          %v8315 = vunpack.c.h.b16 %v2713
          %v8316 = vunpack.c.l.b16 %v2714
          %v8317 = vunpack.c.h.b16 %v2714
          %v8318 = vunpack.c.l.b16 %v2715
          %v8319 = vunpack.c.h.b16 %v2715
          %v8320 = vunpack.c.l.b16 %v2716
          %v8321 = vunpack.c.h.b16 %v2716
          %v8322 = vunpack.c.l.b16 %v2717
          %v8323 = vunpack.c.h.b16 %v2717
          %v8324 = vunpack.c.l.b16 %v2718
          %v8325 = vunpack.c.h.b16 %v2718
          %v8326 = vunpack.c.l.b16 %v2719
          %v8327 = vunpack.c.h.b16 %v2719
          %v8328 = vunpack.c.l.b16 %v2720
          %v8329 = vunpack.c.h.b16 %v2720
          %v8330 = vunpack.c.l.b16 %v2721
          %v8331 = vunpack.c.h.b16 %v2721
          %v8332 = vunpack.c.l.b16 %v2722
          %v8333 = vunpack.c.h.b16 %v2722
          %v8334 = vunpack.c.l.b16 %v2723
          %v8335 = vunpack.c.h.b16 %v2723
          %v8336 = vpack.c.b16 %v8308, %v8304
          %v8337 = vpack.c.b16 %v8309, %v8305
          %v8338 = vpack.c.b16 %v8310, %v8306
          %v8339 = vpack.c.b16 %v8311, %v8307
          %v8340 = vpack.c.b16 %v8316, %v8312
          %v8341 = vpack.c.b16 %v8317, %v8313
          %v8342 = vpack.c.b16 %v8318, %v8314
          %v8343 = vpack.c.b16 %v8319, %v8315
          %v8344 = vpack.c.b16 %v8324, %v8320
          %v8345 = vpack.c.b16 %v8325, %v8321
          %v8346 = vpack.c.b16 %v8326, %v8322
          %v8347 = vpack.c.b16 %v8327, %v8323
          %v8348 = vpack.c.b16 %v8332, %v8328
          %v8349 = vpack.c.b16 %v8333, %v8329
          %v8350 = vpack.c.b16 %v8334, %v8330
          %v8351 = vpack.c.b16 %v8335, %v8331
          %v8369 = vsel %vm6053, %v8287, 0
          %8371 = vmatprep.subr.bf16.mxu0 %v8337
          %8372 = vmatpush1.bf16.msra.mxu0 %v8336
          %8373 = vmatprep.subr.bf16.mxu0 %v8341
          %8374 = vmatpush1.bf16.msra.mxu0 %v8340
          %8375 = vmatprep.subr.bf16.mxu0 %v8345
          %8376 = vmatpush1.bf16.msra.mxu0 %v8344
          %8377 = vmatprep.subr.bf16.mxu0 %v8349
          %8378 = vmatpush1.bf16.msra.mxu0 %v8348
          %8379 = vmatprep.subr.bf16.mxu0 0
          %8380 = vmatpush1.bf16.msra.mxu0 0
          %8381 = vmatprep.subr.bf16.mxu0 0
          %8382 = vmatpush1.bf16.msra.mxu0 0
          %8383 = vmatprep.subr.bf16.mxu0 0
          %8384 = vmatpush1.bf16.msra.mxu0 0
          %8385 = vmatprep.subr.bf16.mxu0 0
          %8386 = vmatpush1.bf16.msra.mxu0 0
          %8387 = vmatprep.subr.bf16.mxu0 0
          %8388 = vmatpush1.bf16.msra.mxu0 0
          %8389 = vmatprep.subr.bf16.mxu0 0
          %8390 = vmatpush1.bf16.msra.mxu0 0
          %8391 = vmatprep.subr.bf16.mxu0 0
          %8392 = vmatpush1.bf16.msra.mxu0 0
          %8393 = vmatprep.subr.bf16.mxu0 0
          %8394 = vmatpush1.bf16.msra.mxu0 0
          %8395 = vmatprep.subr.bf16.mxu0 0
          %8396 = vmatpush1.bf16.msra.mxu0 0
          %8397 = vmatprep.subr.bf16.mxu0 0
          %8398 = vmatpush1.bf16.msra.mxu0 0
          %8399 = vmatprep.subr.bf16.mxu0 0
          %8400 = vmatpush1.bf16.msra.mxu0 0
          %8401 = vmatprep.subr.bf16.mxu0 0
          %8402 = vmatpush1.bf16.msra.mxu0 0
          %8403 = vmatprep.mubr.bf16.mxu0 0
          %8404 = vmatmul.mubr.bf16.gmra.mrb[0].mxu0 %v8369
          %v8405 = vpop.f32.mrb[0].mxu0
          %v8406 = vadd.f32 0.0, %v8405
          %v8407 = vpop.f32.mrb[0].mxu0
          %v8408 = vadd.f32 0.0, %v8407
          %v8409 = vpop.f32.mrb[0].mxu0
          %v8410 = vpop.f32.mrb[0].mxu0
          %8411 = vdwg.mxu0
          %8412 = vmatprep.subr.bf16.mxu0 %v8339
          %8413 = vmatpush1.bf16.msra.mxu0 %v8338
          %8414 = vmatprep.subr.bf16.mxu0 %v8343
          %8415 = vmatpush1.bf16.msra.mxu0 %v8342
          %8416 = vmatprep.subr.bf16.mxu0 %v8347
          %8417 = vmatpush1.bf16.msra.mxu0 %v8346
          %8418 = vmatprep.subr.bf16.mxu0 %v8351
          %8419 = vmatpush1.bf16.msra.mxu0 %v8350
          %8420 = vmatprep.subr.bf16.mxu0 0
          %8421 = vmatpush1.bf16.msra.mxu0 0
          %8422 = vmatprep.subr.bf16.mxu0 0
          %8423 = vmatpush1.bf16.msra.mxu0 0
          %8424 = vmatprep.subr.bf16.mxu0 0
          %8425 = vmatpush1.bf16.msra.mxu0 0
          %8426 = vmatprep.subr.bf16.mxu0 0
          %8427 = vmatpush1.bf16.msra.mxu0 0
          %8428 = vmatprep.subr.bf16.mxu0 0
          %8429 = vmatpush1.bf16.msra.mxu0 0
          %8430 = vmatprep.subr.bf16.mxu0 0
          %8431 = vmatpush1.bf16.msra.mxu0 0
          %8432 = vmatprep.subr.bf16.mxu0 0
          %8433 = vmatpush1.bf16.msra.mxu0 0
          %8434 = vmatprep.subr.bf16.mxu0 0
          %8435 = vmatpush1.bf16.msra.mxu0 0
          %8436 = vmatprep.subr.bf16.mxu0 0
          %8437 = vmatpush1.bf16.msra.mxu0 0
          %8438 = vmatprep.subr.bf16.mxu0 0
          %8439 = vmatpush1.bf16.msra.mxu0 0
          %8440 = vmatprep.subr.bf16.mxu0 0
          %8441 = vmatpush1.bf16.msra.mxu0 0
          %8442 = vmatprep.subr.bf16.mxu0 0
          %8443 = vmatpush1.bf16.msra.mxu0 0
          %8444 = vmatprep.mubr.bf16.mxu0 0
          %8445 = vmatmul.mubr.bf16.gmra.mrb[0].mxu0 %v8369
          %v8446 = vpop.f32.mrb[0].mxu0
          %v8447 = vadd.f32 0.0, %v8446
          %v8448 = vpop.f32.mrb[0].mxu0
          %v8449 = vadd.f32 0.0, %v8448
          %v8450 = vpop.f32.mrb[0].mxu0
          %v8451 = vpop.f32.mrb[0].mxu0
          %8452 = vdwg.mxu0
          %v8457 = vunpack.c.l.b16 %v6999
          %v8458 = vunpack.c.h.b16 %v6999
          %v8459 = vunpack.c.l.b16 %v7000
          %v8460 = vunpack.c.h.b16 %v7000
          %v8461 = vunpack.c.l.b16 %v7001
          %v8462 = vunpack.c.h.b16 %v7001
          %v8463 = vunpack.c.l.b16 %v7002
          %v8464 = vunpack.c.h.b16 %v7002
          %8465 = vset.pattern.permute.xlu0 0
          %8466 = vperm.xlu0 %8465, %v8457
          %v8467 = vpop.permute.xlu0 %8466
          %8468 = vset.pattern.permute.xlu0 0
          %8469 = vperm.xlu0 %8468, %v8458
          %v8470 = vpop.permute.xlu0 %8469
          %8471 = vset.pattern.permute.xlu0 0
          %8472 = vperm.xlu0 %8471, %v8459
          %v8473 = vpop.permute.xlu0 %8472
          %8474 = vset.pattern.permute.xlu0 0
          %8475 = vperm.xlu0 %8474, %v8460
          %v8476 = vpop.permute.xlu0 %8475
          %8477 = vset.pattern.permute.xlu0 0
          %8478 = vperm.xlu0 %8477, %v8461
          %v8479 = vpop.permute.xlu0 %8478
          %8480 = vset.pattern.permute.xlu0 0
          %8481 = vperm.xlu0 %8480, %v8462
          %v8482 = vpop.permute.xlu0 %8481
          %8483 = vset.pattern.permute.xlu0 0
          %8484 = vperm.xlu0 %8483, %v8463
          %v8485 = vpop.permute.xlu0 %8484
          %8486 = vset.pattern.permute.xlu0 0
          %8487 = vperm.xlu0 %8486, %v8464
          %v8488 = vpop.permute.xlu0 %8487
          %v8489 = vlaneseq
          %v8490 = vshrl.u32 %v8489, 7
          %v8491 = vsub.s32 %v5711, %v8490
          %v8492 = vrot.slane %v8467, %v8491
          %v8493 = vlaneseq
          %v8494 = vshrl.u32 %v8493, 7
          %v8495 = vsub.s32 %v5716, %v8494
          %v8496 = vrot.slane %v8470, %v8495
          %v8497 = vsel %vm5721, %v8496, %v8492
          %v8498 = vlaneseq
          %v8499 = vshrl.u32 %v8498, 7
          %v8500 = vsub.s32 %v5723, %v8499
          %v8501 = vrot.slane %v8473, %v8500
          %v8502 = vsel %vm5728, %v8501, %v8497
          %v8503 = vlaneseq
          %v8504 = vshrl.u32 %v8503, 7
          %v8505 = vsub.s32 %v5730, %v8504
          %v8506 = vrot.slane %v8476, %v8505
          %v8507 = vsel %vm5735, %v8506, %v8502
          %v8508 = vlaneseq
          %v8509 = vshrl.u32 %v8508, 7
          %v8510 = vsub.s32 %v5737, %v8509
          %v8511 = vrot.slane %v8479, %v8510
          %v8512 = vsel %vm5742, %v8511, %v8507
          %v8513 = vlaneseq
          %v8514 = vshrl.u32 %v8513, 7
          %v8515 = vsub.s32 %v5744, %v8514
          %v8516 = vrot.slane %v8482, %v8515
          %v8517 = vsel %vm5749, %v8516, %v8512
          %v8518 = vlaneseq
          %v8519 = vshrl.u32 %v8518, 7
          %v8520 = vsub.s32 %v5751, %v8519
          %v8521 = vrot.slane %v8485, %v8520
          %v8522 = vsel %vm5756, %v8521, %v8517
          %v8523 = vlaneseq
          %v8524 = vshrl.u32 %v8523, 7
          %v8525 = vsub.s32 %v5758, %v8524
          %v8526 = vrot.slane %v8488, %v8525
          %v8527 = vsel %vm5763, %v8526, %v8522
          %v8528 = vpack.c.b16 %v8527, %v8527
          %v8545 = vunpack.c.l.b16 %v2724
          %v8546 = vunpack.c.h.b16 %v2724
          %v8547 = vunpack.c.l.b16 %v2725
          %v8548 = vunpack.c.h.b16 %v2725
          %v8549 = vunpack.c.l.b16 %v2726
          %v8550 = vunpack.c.h.b16 %v2726
          %v8551 = vunpack.c.l.b16 %v2727
          %v8552 = vunpack.c.h.b16 %v2727
          %v8553 = vunpack.c.l.b16 %v2728
          %v8554 = vunpack.c.h.b16 %v2728
          %v8555 = vunpack.c.l.b16 %v2729
          %v8556 = vunpack.c.h.b16 %v2729
          %v8557 = vunpack.c.l.b16 %v2730
          %v8558 = vunpack.c.h.b16 %v2730
          %v8559 = vunpack.c.l.b16 %v2731
          %v8560 = vunpack.c.h.b16 %v2731
          %v8561 = vunpack.c.l.b16 %v2732
          %v8562 = vunpack.c.h.b16 %v2732
          %v8563 = vunpack.c.l.b16 %v2733
          %v8564 = vunpack.c.h.b16 %v2733
          %v8565 = vunpack.c.l.b16 %v2734
          %v8566 = vunpack.c.h.b16 %v2734
          %v8567 = vunpack.c.l.b16 %v2735
          %v8568 = vunpack.c.h.b16 %v2735
          %v8569 = vunpack.c.l.b16 %v2736
          %v8570 = vunpack.c.h.b16 %v2736
          %v8571 = vunpack.c.l.b16 %v2737
          %v8572 = vunpack.c.h.b16 %v2737
          %v8573 = vunpack.c.l.b16 %v2738
          %v8574 = vunpack.c.h.b16 %v2738
          %v8575 = vunpack.c.l.b16 %v2739
          %v8576 = vunpack.c.h.b16 %v2739
          %v8577 = vpack.c.b16 %v8549, %v8545
          %v8578 = vpack.c.b16 %v8550, %v8546
          %v8579 = vpack.c.b16 %v8551, %v8547
          %v8580 = vpack.c.b16 %v8552, %v8548
          %v8581 = vpack.c.b16 %v8557, %v8553
          %v8582 = vpack.c.b16 %v8558, %v8554
          %v8583 = vpack.c.b16 %v8559, %v8555
          %v8584 = vpack.c.b16 %v8560, %v8556
          %v8585 = vpack.c.b16 %v8565, %v8561
          %v8586 = vpack.c.b16 %v8566, %v8562
          %v8587 = vpack.c.b16 %v8567, %v8563
          %v8588 = vpack.c.b16 %v8568, %v8564
          %v8589 = vpack.c.b16 %v8573, %v8569
          %v8590 = vpack.c.b16 %v8574, %v8570
          %v8591 = vpack.c.b16 %v8575, %v8571
          %v8592 = vpack.c.b16 %v8576, %v8572
          %v8610 = vsel %vm6053, %v8528, 0
          %8612 = vmatprep.subr.bf16.mxu0 %v8578
          %8613 = vmatpush1.bf16.msra.mxu0 %v8577
          %8614 = vmatprep.subr.bf16.mxu0 %v8582
          %8615 = vmatpush1.bf16.msra.mxu0 %v8581
          %8616 = vmatprep.subr.bf16.mxu0 %v8586
          %8617 = vmatpush1.bf16.msra.mxu0 %v8585
          %8618 = vmatprep.subr.bf16.mxu0 %v8590
          %8619 = vmatpush1.bf16.msra.mxu0 %v8589
          %8620 = vmatprep.subr.bf16.mxu0 0
          %8621 = vmatpush1.bf16.msra.mxu0 0
          %8622 = vmatprep.subr.bf16.mxu0 0
          %8623 = vmatpush1.bf16.msra.mxu0 0
          %8624 = vmatprep.subr.bf16.mxu0 0
          %8625 = vmatpush1.bf16.msra.mxu0 0
          %8626 = vmatprep.subr.bf16.mxu0 0
          %8627 = vmatpush1.bf16.msra.mxu0 0
          %8628 = vmatprep.subr.bf16.mxu0 0
          %8629 = vmatpush1.bf16.msra.mxu0 0
          %8630 = vmatprep.subr.bf16.mxu0 0
          %8631 = vmatpush1.bf16.msra.mxu0 0
          %8632 = vmatprep.subr.bf16.mxu0 0
          %8633 = vmatpush1.bf16.msra.mxu0 0
          %8634 = vmatprep.subr.bf16.mxu0 0
          %8635 = vmatpush1.bf16.msra.mxu0 0
          %8636 = vmatprep.subr.bf16.mxu0 0
          %8637 = vmatpush1.bf16.msra.mxu0 0
          %8638 = vmatprep.subr.bf16.mxu0 0
          %8639 = vmatpush1.bf16.msra.mxu0 0
          %8640 = vmatprep.subr.bf16.mxu0 0
          %8641 = vmatpush1.bf16.msra.mxu0 0
          %8642 = vmatprep.subr.bf16.mxu0 0
          %8643 = vmatpush1.bf16.msra.mxu0 0
          %8644 = vmatprep.mubr.bf16.mxu0 0
          %8645 = vmatmul.mubr.bf16.gmra.mrb[0].mxu0 %v8610
          %v8646 = vpop.f32.mrb[0].mxu0
          %v8647 = vadd.f32 0.0, %v8646
          %v8648 = vpop.f32.mrb[0].mxu0
          %v8649 = vadd.f32 0.0, %v8648
          %v8650 = vpop.f32.mrb[0].mxu0
          %v8651 = vpop.f32.mrb[0].mxu0
          %8652 = vdwg.mxu0
          %8653 = vmatprep.subr.bf16.mxu0 %v8580
          %8654 = vmatpush1.bf16.msra.mxu0 %v8579
          %8655 = vmatprep.subr.bf16.mxu0 %v8584
          %8656 = vmatpush1.bf16.msra.mxu0 %v8583
          %8657 = vmatprep.subr.bf16.mxu0 %v8588
          %8658 = vmatpush1.bf16.msra.mxu0 %v8587
          %8659 = vmatprep.subr.bf16.mxu0 %v8592
          %8660 = vmatpush1.bf16.msra.mxu0 %v8591
          %8661 = vmatprep.subr.bf16.mxu0 0
          %8662 = vmatpush1.bf16.msra.mxu0 0
          %8663 = vmatprep.subr.bf16.mxu0 0
          %8664 = vmatpush1.bf16.msra.mxu0 0
          %8665 = vmatprep.subr.bf16.mxu0 0
          %8666 = vmatpush1.bf16.msra.mxu0 0
          %8667 = vmatprep.subr.bf16.mxu0 0
          %8668 = vmatpush1.bf16.msra.mxu0 0
          %8669 = vmatprep.subr.bf16.mxu0 0
          %8670 = vmatpush1.bf16.msra.mxu0 0
          %8671 = vmatprep.subr.bf16.mxu0 0
          %8672 = vmatpush1.bf16.msra.mxu0 0
          %8673 = vmatprep.subr.bf16.mxu0 0
          %8674 = vmatpush1.bf16.msra.mxu0 0
          %8675 = vmatprep.subr.bf16.mxu0 0
          %8676 = vmatpush1.bf16.msra.mxu0 0
          %8677 = vmatprep.subr.bf16.mxu0 0
          %8678 = vmatpush1.bf16.msra.mxu0 0
          %8679 = vmatprep.subr.bf16.mxu0 0
          %8680 = vmatpush1.bf16.msra.mxu0 0
          %8681 = vmatprep.subr.bf16.mxu0 0
          %8682 = vmatpush1.bf16.msra.mxu0 0
          %8683 = vmatprep.subr.bf16.mxu0 0
          %8684 = vmatpush1.bf16.msra.mxu0 0
          %8685 = vmatprep.mubr.bf16.mxu0 0
          %8686 = vmatmul.mubr.bf16.gmra.mrb[0].mxu0 %v8610
          %v8687 = vpop.f32.mrb[0].mxu0
          %v8688 = vadd.f32 0.0, %v8687
          %v8689 = vpop.f32.mrb[0].mxu0
          %v8690 = vadd.f32 0.0, %v8689
          %v8691 = vpop.f32.mrb[0].mxu0
          %v8692 = vpop.f32.mrb[0].mxu0
          %8693 = vdwg.mxu0
          %v8698 = vunpack.c.l.b16 %v7003
          %v8699 = vunpack.c.h.b16 %v7003
          %v8700 = vunpack.c.l.b16 %v7004
          %v8701 = vunpack.c.h.b16 %v7004
          %v8702 = vunpack.c.l.b16 %v7005
          %v8703 = vunpack.c.h.b16 %v7005
          %v8704 = vunpack.c.l.b16 %v7006
          %v8705 = vunpack.c.h.b16 %v7006
          %8706 = vset.pattern.permute.xlu0 0
          %8707 = vperm.xlu0 %8706, %v8698
          %v8708 = vpop.permute.xlu0 %8707
          %8709 = vset.pattern.permute.xlu0 0
          %8710 = vperm.xlu0 %8709, %v8699
          %v8711 = vpop.permute.xlu0 %8710
          %8712 = vset.pattern.permute.xlu0 0
          %8713 = vperm.xlu0 %8712, %v8700
          %v8714 = vpop.permute.xlu0 %8713
          %8715 = vset.pattern.permute.xlu0 0
          %8716 = vperm.xlu0 %8715, %v8701
          %v8717 = vpop.permute.xlu0 %8716
          %8718 = vset.pattern.permute.xlu0 0
          %8719 = vperm.xlu0 %8718, %v8702
          %v8720 = vpop.permute.xlu0 %8719
          %8721 = vset.pattern.permute.xlu0 0
          %8722 = vperm.xlu0 %8721, %v8703
          %v8723 = vpop.permute.xlu0 %8722
          %8724 = vset.pattern.permute.xlu0 0
          %8725 = vperm.xlu0 %8724, %v8704
          %v8726 = vpop.permute.xlu0 %8725
          %8727 = vset.pattern.permute.xlu0 0
          %8728 = vperm.xlu0 %8727, %v8705
          %v8729 = vpop.permute.xlu0 %8728
          %v8730 = vlaneseq
          %v8731 = vshrl.u32 %v8730, 7
          %v8732 = vsub.s32 %v5711, %v8731
          %v8733 = vrot.slane %v8708, %v8732
          %v8734 = vlaneseq
          %v8735 = vshrl.u32 %v8734, 7
          %v8736 = vsub.s32 %v5716, %v8735
          %v8737 = vrot.slane %v8711, %v8736
          %v8738 = vsel %vm5721, %v8737, %v8733
          %v8739 = vlaneseq
          %v8740 = vshrl.u32 %v8739, 7
          %v8741 = vsub.s32 %v5723, %v8740
          %v8742 = vrot.slane %v8714, %v8741
          %v8743 = vsel %vm5728, %v8742, %v8738
          %v8744 = vlaneseq
          %v8745 = vshrl.u32 %v8744, 7
          %v8746 = vsub.s32 %v5730, %v8745
          %v8747 = vrot.slane %v8717, %v8746
          %v8748 = vsel %vm5735, %v8747, %v8743
          %v8749 = vlaneseq
          %v8750 = vshrl.u32 %v8749, 7
          %v8751 = vsub.s32 %v5737, %v8750
          %v8752 = vrot.slane %v8720, %v8751
          %v8753 = vsel %vm5742, %v8752, %v8748
          %v8754 = vlaneseq
          %v8755 = vshrl.u32 %v8754, 7
          %v8756 = vsub.s32 %v5744, %v8755
          %v8757 = vrot.slane %v8723, %v8756
          %v8758 = vsel %vm5749, %v8757, %v8753
          %v8759 = vlaneseq
          %v8760 = vshrl.u32 %v8759, 7
          %v8761 = vsub.s32 %v5751, %v8760
          %v8762 = vrot.slane %v8726, %v8761
          %v8763 = vsel %vm5756, %v8762, %v8758
          %v8764 = vlaneseq
          %v8765 = vshrl.u32 %v8764, 7
          %v8766 = vsub.s32 %v5758, %v8765
          %v8767 = vrot.slane %v8729, %v8766
          %v8768 = vsel %vm5763, %v8767, %v8763
          %v8769 = vpack.c.b16 %v8768, %v8768
          %v8786 = vunpack.c.l.b16 %v2740
          %v8787 = vunpack.c.h.b16 %v2740
          %v8788 = vunpack.c.l.b16 %v2741
          %v8789 = vunpack.c.h.b16 %v2741
          %v8790 = vunpack.c.l.b16 %v2742
          %v8791 = vunpack.c.h.b16 %v2742
          %v8792 = vunpack.c.l.b16 %v2743
          %v8793 = vunpack.c.h.b16 %v2743
          %v8794 = vunpack.c.l.b16 %v2744
          %v8795 = vunpack.c.h.b16 %v2744
          %v8796 = vunpack.c.l.b16 %v2745
          %v8797 = vunpack.c.h.b16 %v2745
          %v8798 = vunpack.c.l.b16 %v2746
          %v8799 = vunpack.c.h.b16 %v2746
          %v8800 = vunpack.c.l.b16 %v2747
          %v8801 = vunpack.c.h.b16 %v2747
          %v8802 = vunpack.c.l.b16 %v2748
          %v8803 = vunpack.c.h.b16 %v2748
          %v8804 = vunpack.c.l.b16 %v2749
          %v8805 = vunpack.c.h.b16 %v2749
          %v8806 = vunpack.c.l.b16 %v2750
          %v8807 = vunpack.c.h.b16 %v2750
          %v8808 = vunpack.c.l.b16 %v2751
          %v8809 = vunpack.c.h.b16 %v2751
          %v8810 = vunpack.c.l.b16 %v2752
          %v8811 = vunpack.c.h.b16 %v2752
          %v8812 = vunpack.c.l.b16 %v2753
          %v8813 = vunpack.c.h.b16 %v2753
          %v8814 = vunpack.c.l.b16 %v2754
          %v8815 = vunpack.c.h.b16 %v2754
          %v8816 = vunpack.c.l.b16 %v2755
          %v8817 = vunpack.c.h.b16 %v2755
          %v8818 = vpack.c.b16 %v8790, %v8786
          %v8819 = vpack.c.b16 %v8791, %v8787
          %v8820 = vpack.c.b16 %v8792, %v8788
          %v8821 = vpack.c.b16 %v8793, %v8789
          %v8822 = vpack.c.b16 %v8798, %v8794
          %v8823 = vpack.c.b16 %v8799, %v8795
          %v8824 = vpack.c.b16 %v8800, %v8796
          %v8825 = vpack.c.b16 %v8801, %v8797
          %v8826 = vpack.c.b16 %v8806, %v8802
          %v8827 = vpack.c.b16 %v8807, %v8803
          %v8828 = vpack.c.b16 %v8808, %v8804
          %v8829 = vpack.c.b16 %v8809, %v8805
          %v8830 = vpack.c.b16 %v8814, %v8810
          %v8831 = vpack.c.b16 %v8815, %v8811
          %v8832 = vpack.c.b16 %v8816, %v8812
          %v8833 = vpack.c.b16 %v8817, %v8813
          %v8851 = vsel %vm6053, %v8769, 0
          %8853 = vmatprep.subr.bf16.mxu0 %v8819
          %8854 = vmatpush1.bf16.msra.mxu0 %v8818
          %8855 = vmatprep.subr.bf16.mxu0 %v8823
          %8856 = vmatpush1.bf16.msra.mxu0 %v8822
          %8857 = vmatprep.subr.bf16.mxu0 %v8827
          %8858 = vmatpush1.bf16.msra.mxu0 %v8826
          %8859 = vmatprep.subr.bf16.mxu0 %v8831
          %8860 = vmatpush1.bf16.msra.mxu0 %v8830
          %8861 = vmatprep.subr.bf16.mxu0 0
          %8862 = vmatpush1.bf16.msra.mxu0 0
          %8863 = vmatprep.subr.bf16.mxu0 0
          %8864 = vmatpush1.bf16.msra.mxu0 0
          %8865 = vmatprep.subr.bf16.mxu0 0
          %8866 = vmatpush1.bf16.msra.mxu0 0
          %8867 = vmatprep.subr.bf16.mxu0 0
          %8868 = vmatpush1.bf16.msra.mxu0 0
          %8869 = vmatprep.subr.bf16.mxu0 0
          %8870 = vmatpush1.bf16.msra.mxu0 0
          %8871 = vmatprep.subr.bf16.mxu0 0
          %8872 = vmatpush1.bf16.msra.mxu0 0
          %8873 = vmatprep.subr.bf16.mxu0 0
          %8874 = vmatpush1.bf16.msra.mxu0 0
          %8875 = vmatprep.subr.bf16.mxu0 0
          %8876 = vmatpush1.bf16.msra.mxu0 0
          %8877 = vmatprep.subr.bf16.mxu0 0
          %8878 = vmatpush1.bf16.msra.mxu0 0
          %8879 = vmatprep.subr.bf16.mxu0 0
          %8880 = vmatpush1.bf16.msra.mxu0 0
          %8881 = vmatprep.subr.bf16.mxu0 0
          %8882 = vmatpush1.bf16.msra.mxu0 0
          %8883 = vmatprep.subr.bf16.mxu0 0
          %8884 = vmatpush1.bf16.msra.mxu0 0
          %8885 = vmatprep.mubr.bf16.mxu0 0
          %8886 = vmatmul.mubr.bf16.gmra.mrb[0].mxu0 %v8851
          %v8887 = vpop.f32.mrb[0].mxu0
          %v8888 = vadd.f32 0.0, %v8887
          %v8889 = vpop.f32.mrb[0].mxu0
          %v8890 = vadd.f32 0.0, %v8889
          %v8891 = vpop.f32.mrb[0].mxu0
          %v8892 = vpop.f32.mrb[0].mxu0
          %8893 = vdwg.mxu0
          %8894 = vmatprep.subr.bf16.mxu0 %v8821
          %8895 = vmatpush1.bf16.msra.mxu0 %v8820
          %8896 = vmatprep.subr.bf16.mxu0 %v8825
          %8897 = vmatpush1.bf16.msra.mxu0 %v8824
          %8898 = vmatprep.subr.bf16.mxu0 %v8829
          %8899 = vmatpush1.bf16.msra.mxu0 %v8828
          %8900 = vmatprep.subr.bf16.mxu0 %v8833
          %8901 = vmatpush1.bf16.msra.mxu0 %v8832
          %8902 = vmatprep.subr.bf16.mxu0 0
          %8903 = vmatpush1.bf16.msra.mxu0 0
          %8904 = vmatprep.subr.bf16.mxu0 0
          %8905 = vmatpush1.bf16.msra.mxu0 0
          %8906 = vmatprep.subr.bf16.mxu0 0
          %8907 = vmatpush1.bf16.msra.mxu0 0
          %8908 = vmatprep.subr.bf16.mxu0 0
          %8909 = vmatpush1.bf16.msra.mxu0 0
          %8910 = vmatprep.subr.bf16.mxu0 0
          %8911 = vmatpush1.bf16.msra.mxu0 0
          %8912 = vmatprep.subr.bf16.mxu0 0
          %8913 = vmatpush1.bf16.msra.mxu0 0
          %8914 = vmatprep.subr.bf16.mxu0 0
          %8915 = vmatpush1.bf16.msra.mxu0 0
          %8916 = vmatprep.subr.bf16.mxu0 0
          %8917 = vmatpush1.bf16.msra.mxu0 0
          %8918 = vmatprep.subr.bf16.mxu0 0
          %8919 = vmatpush1.bf16.msra.mxu0 0
          %8920 = vmatprep.subr.bf16.mxu0 0
          %8921 = vmatpush1.bf16.msra.mxu0 0
          %8922 = vmatprep.subr.bf16.mxu0 0
          %8923 = vmatpush1.bf16.msra.mxu0 0
          %8924 = vmatprep.subr.bf16.mxu0 0
          %8925 = vmatpush1.bf16.msra.mxu0 0
          %8926 = vmatprep.mubr.bf16.mxu0 0
          %8927 = vmatmul.mubr.bf16.gmra.mrb[0].mxu0 %v8851
          %v8928 = vpop.f32.mrb[0].mxu0
          %v8929 = vadd.f32 0.0, %v8928
          %v8930 = vpop.f32.mrb[0].mxu0
          %v8931 = vadd.f32 0.0, %v8930
          %v8932 = vpop.f32.mrb[0].mxu0
          %v8933 = vpop.f32.mrb[0].mxu0
          %8934 = vdwg.mxu0
          %v8967 = vrot.slane %v7442, 7
          %v8968 = vsel %vm6038, %v8967, %v7201
          %v8969 = vrot.slane %v7683, 6
          %v8970 = vsel %vm6040, %v8969, %v8968
          %v8971 = vrot.slane %v7924, 5
          %v8972 = vsel %vm6042, %v8971, %v8970
          %v8973 = vrot.slane %v8165, 4
          %v8974 = vsel %vm6044, %v8973, %v8972
          %v8975 = vrot.slane %v8406, 3
          %v8976 = vsel %vm6046, %v8975, %v8974
          %v8977 = vrot.slane %v8647, 2
          %v8978 = vsel %vm6048, %v8977, %v8976
          %v8979 = vrot.slane %v8888, 1
          %v8980 = vsel %vm6050, %v8979, %v8978
          %v8981 = vrot.slane %v7444, 7
          %v8982 = vsel %vm6038, %v8981, %v7203
          %v8983 = vrot.slane %v7685, 6
          %v8984 = vsel %vm6040, %v8983, %v8982
          %v8985 = vrot.slane %v7926, 5
          %v8986 = vsel %vm6042, %v8985, %v8984
          %v8987 = vrot.slane %v8167, 4
          %v8988 = vsel %vm6044, %v8987, %v8986
          %v8989 = vrot.slane %v8408, 3
          %v8990 = vsel %vm6046, %v8989, %v8988
          %v8991 = vrot.slane %v8649, 2
          %v8992 = vsel %vm6048, %v8991, %v8990
          %v8993 = vrot.slane %v8890, 1
          %v8994 = vsel %vm6050, %v8993, %v8992
          %v8995 = vrot.slane %v7483, 7
          %v8996 = vsel %vm6038, %v8995, %v7242
          %v8997 = vrot.slane %v7724, 6
          %v8998 = vsel %vm6040, %v8997, %v8996
          %v8999 = vrot.slane %v7965, 5
          %v9000 = vsel %vm6042, %v8999, %v8998
          %v9001 = vrot.slane %v8206, 4
          %v9002 = vsel %vm6044, %v9001, %v9000
          %v9003 = vrot.slane %v8447, 3
          %v9004 = vsel %vm6046, %v9003, %v9002
          %v9005 = vrot.slane %v8688, 2
          %v9006 = vsel %vm6048, %v9005, %v9004
          %v9007 = vrot.slane %v8929, 1
          %v9008 = vsel %vm6050, %v9007, %v9006
          %v9009 = vrot.slane %v7485, 7
          %v9010 = vsel %vm6038, %v9009, %v7244
          %v9011 = vrot.slane %v7726, 6
          %v9012 = vsel %vm6040, %v9011, %v9010
          %v9013 = vrot.slane %v7967, 5
          %v9014 = vsel %vm6042, %v9013, %v9012
          %v9015 = vrot.slane %v8208, 4
          %v9016 = vsel %vm6044, %v9015, %v9014
          %v9017 = vrot.slane %v8449, 3
          %v9018 = vsel %vm6046, %v9017, %v9016
          %v9019 = vrot.slane %v8690, 2
          %v9020 = vsel %vm6048, %v9019, %v9018
          %v9021 = vrot.slane %v8931, 1
          %v9022 = vsel %vm6050, %v9021, %v9020
          %9027 = vst [vmem:[#allocation14] sm:$0xff] %v8980
          %9028 = vst [vmem:[#allocation14 + $0x8] sm:$0xff] %v8994
          %9029 = vst [vmem:[#allocation14 + $0x10] sm:$0xff] %v9008
          %9030 = vst [vmem:[#allocation14 + $0x18] sm:$0xff] %v9022
        $region80: #{lstm_spatial_forward.1} parent=51 // pred_fallthru
          _
        // Predicated region
        $region81: #{lstm_spatial_forward.1} parent=51 // pred_check
          %p9031 = pneg %p217
        $region82: #{lstm_spatial_forward.1} parent=51 // pred_check_branch
          %9033 = sbr.rel (%p9031) target = $region84
        $region83: #{lstm_spatial_forward.1} parent=51 // pred_region
          %s9035 = ssub.s32 512, 512
          %9036 = vsyncadd [#allocation5], %s9035
          %s9038 = sshll.u32 [#allocation13], 4
          %s9039 = int_to_ptr.vmem [resolvable:$true] %s9038
          %9041 = dma.vmem_to_hbm [thread:$0]  %s9039, 512, %s8, [#allocation5]
        $region84: #{lstm_spatial_forward.1} parent=51 // pred_fallthru
          _
        // Predicated region
        $region85: #{lstm_spatial_forward.1} parent=51 // pred_check
          %p9042 = pneg %p238
        $region86: #{lstm_spatial_forward.1} parent=51 // pred_check_branch
          %9044 = sbr.rel (%p9042) target = $region88
        $region87: #{lstm_spatial_forward.1} parent=51 // pred_region
          %s9046 = ssub.s32 512, 512
          %9047 = vsyncadd [#allocation15], %s9046
          %s9049 = sshll.u32 [#allocation14], 4
          %s9050 = int_to_ptr.vmem [resolvable:$true] %s9049
          %9052 = dma.vmem_to_hbm [thread:$0]  %s9050, 512, %s9, [#allocation15]
        $region88: #{lstm_spatial_forward.1} parent=51 // pred_fallthru
          _
        // Predicated region
        $region89: #{lstm_spatial_forward.1} parent=51 // pred_check
          %p9053 = pneg %p217
        $region90: #{lstm_spatial_forward.1} parent=51 // pred_check_branch
          %9055 = sbr.rel (%p9053) target = $region92
        $region91: #{lstm_spatial_forward.1} parent=51 // pred_region
          %9056 = dma.done [#allocation5], 512
        $region92: #{lstm_spatial_forward.1} parent=51 // pred_fallthru
          _
        // Predicated region
        $region93: #{lstm_spatial_forward.1} parent=51 // pred_check
          %p9057 = pneg %p238
        $region94: #{lstm_spatial_forward.1} parent=51 // pred_check_branch
          %9059 = sbr.rel (%p9057) target = $region96
        $region95: #{lstm_spatial_forward.1} parent=51 // pred_region
          %9060 = dma.done [#allocation15], 512
        $region96: #{lstm_spatial_forward.1} parent=51 // pred_fallthru
          _
      $region52: #{lstm_spatial_forward.1} parent=5 // pred_fallthru
        _
      %p9061 = scmp.le.s32.totalorder 2, %s21
      // Predicated region
      $region97: #{lstm_spatial_forward.1} parent=5 // pred_check
        %p9062 = pneg %p9061
      $region98: #{lstm_spatial_forward.1} parent=5 // pred_check_branch
        %9064 = sbr.rel (%p9062) target = $region100
      $region99: #{lstm_spatial_forward.1} parent=5 // pred_region
        %s9065 = ssub.s32 %s21, 2
      $region100: #{lstm_spatial_forward.1} parent=5 // pred_fallthru
        _
    $region6: #{lstm_spatial_forward.1} parent=1 // loop_footer
      %s25 = sadd.s32 1, %s21
    $region7: #{lstm_spatial_forward.1} parent=1 // loop_footer_branch
      %20 = sbr.rel target = $region3
    $region8: #{lstm_spatial_forward.1} parent=1 // loop_exit
      _
    %9066 = vsyncpa [#allocation4], 1
    %s9067 = scalar_lea.sflag [#allocation4], 1
    %9068 = vsyncpa %s9067, 1
    %9069 = vsyncpa [#allocation7], 1
    %9070 = vsyncpa [#allocation12], 1
    %9071 = vsyncpa [#allocation5], 1
    %s9072 = scalar_lea.sflag [#allocation5], 1
    %9073 = vsyncpa %s9072, 1
    %9074 = vsyncpa [#allocation15], 1

</llo_original>
